<compile_context>
chip_gen: v6e
topology: v6e:2x2x1
jax: 0.10.0
libtpu: 0.0.40
codegen_flags: <defaults>
</compile_context>

<pallas_src>
import functools
import math

import jax
import jax.numpy as jnp
from jax.experimental import pallas as pl
from jax.experimental.pallas import tpu as pltpu


# ----------------------------------------------------------- generation-aware defaults
def _tpu_defaults():
    """(max_row_tile, vmem_limit_bytes) per TPU generation."""
    kind = ""
    try:
        kind = jax.devices()[0].device_kind.lower()
    except Exception:
        pass
    if "v7" in kind:                        # 64 MiB physical VMEM, 2 TC/chip
        return 256, 48 << 20
    if "v6" in kind:                        # 128 MiB physical VMEM, wide MXU
        return 1024, 96 << 20
    if "v5 lite" in kind or "v5e" in kind:  # 16 MiB default scoped VMEM
        return 256, 64 << 20
    if "v5" in kind:                        # v5p
        return 512, 64 << 20
    return 512, None                        # unknown generation: stay conservative


_MAX_ROW_TILE, _VMEM_LIMIT = _tpu_defaults()
_TOKEN_TILE = 8          # tokens per attention grid step (sublane-aligned)
_MAX_FFN_CHUNK = 1024    # max Dff slice resident per FFN grid step


def _cparams(*dim_semantics):
    kw = dict(dimension_semantics=dim_semantics)
    if _VMEM_LIMIT is not None:
        kw["vmem_limit_bytes"] = _VMEM_LIMIT
    return pltpu.CompilerParams(**kw)


def _row_plan(M):
    """(row_tile, padded_M).  The layer-loop kernels never pad: the token axis is
    padded once up front so M = S * N_pad is a multiple of 8 and divisible by the
    chosen tile."""
    if M <= _MAX_ROW_TILE:
        # Split into 2 tiles when cleanly possible so a 2-TensorCore part (v7x)
        # can shard the "parallel" grid axis; otherwise one full-M block.
        if M >= 16 and M % 16 == 0:
            return M // 2, M
        return M, M
    if M % 8 == 0:
        tm = _MAX_ROW_TILE - (_MAX_ROW_TILE % 8)
        while M % tm:
            tm -= 8
        return tm, M
    # Cold fallback (odd patch-embed shapes only): pad to the tile.
    tm = _MAX_ROW_TILE
    return tm, ((M + tm - 1) // tm) * tm


def _ffn_chunk(dff):
    if dff <= _MAX_FFN_CHUNK:
        return dff
    c = _MAX_FFN_CHUNK - (_MAX_FFN_CHUNK % 128)
    while c >= 128 and dff % c:
        c -= 128
    return c if c >= 128 and dff % c == 0 else dff


# --------------------------------------------------------------------- linear (+ReLU)
def _linear_kernel(x_ref, w_ref, b_ref, o_ref, *, activation):
    acc = jnp.dot(x_ref[...], w_ref[...], preferred_element_type=jnp.float32)
    acc = acc + b_ref[...]
    if activation == "relu":
        acc = jnp.maximum(acc, 0.0)
    o_ref[...] = acc.astype(o_ref.dtype)


def linear(x, w, b, activation=None, out_dtype=jnp.bfloat16):
    """y = act(x @ w + b).  x:(M,K) bf16, w:(K,N) bf16 pre-transposed, b:(1,N) f32."""
    M, K = x.shape
    N = w.shape[1]
    tm, Mp = _row_plan(M)
    if Mp != M:                      # cold path only; the layer loop is pad-free
        x = jnp.pad(x, ((0, Mp - M), (0, 0)))
    out_b = jnp.dtype(out_dtype).itemsize
    ce = pl.CostEstimate(flops=2 * Mp * K * N, transcendentals=0,
                         bytes_accessed=Mp * K * 2 + K * N * 2 + N * 4 + Mp * N * out_b)
    out = pl.pallas_call(
        functools.partial(_linear_kernel, activation=activation),
        out_shape=jax.ShapeDtypeStruct((Mp, N), out_dtype),
        grid=(Mp // tm,),
        in_specs=[
            pl.BlockSpec((tm, K), lambda i: (i, 0)),
            # constant index_map -> weight/bias fetched once and stay resident
            # TODO(synk): single-buffer these via pipeline_mode=pl.Buffered(1) once
            # that path is verified on the target jax build (reclaims ~half the
            # weight VMEM in the big-model regime).
            pl.BlockSpec((K, N), lambda i: (0, 0)),
            pl.BlockSpec((1, N), lambda i: (0, 0)),
        ],
        out_specs=pl.BlockSpec((tm, N), lambda i: (i, 0)),
        compiler_params=_cparams("parallel"),
        cost_estimate=ce,
    )(x, w, b)
    return out if Mp == M else out[:M]


# ------------------------------------------------- fused matmul + residual + LayerNorm
def _linear_add_ln_kernel(x_ref, w_ref, b_ref, res_ref, g_ref, bb_ref, o_ref, *, eps):
    acc = jnp.dot(x_ref[...], w_ref[...], preferred_element_type=jnp.float32)
    y = acc + b_ref[...] + res_ref[...].astype(jnp.float32)
    mu = jnp.mean(y, axis=-1, keepdims=True)
    var = jnp.mean(jnp.square(y - mu), axis=-1, keepdims=True)
    o_ref[...] = ((y - mu) * jax.lax.rsqrt(var + eps) * g_ref[...]
                  + bb_ref[...]).astype(o_ref.dtype)


def linear_add_layernorm(x, w, b, res, gamma, beta, eps=1e-5):
    M, K = x.shape
    N = w.shape[1]
    tm, Mp = _row_plan(M)
    if Mp != M:
        x = jnp.pad(x, ((0, Mp - M), (0, 0)))
        res = jnp.pad(res, ((0, Mp - M), (0, 0)))
    ce = pl.CostEstimate(flops=2 * Mp * K * N + 6 * Mp * N, transcendentals=Mp,
                         bytes_accessed=2 * Mp * K * 2 + K * N * 2 + Mp * N * 2 + 3 * N * 4)
    out = pl.pallas_call(
        functools.partial(_linear_add_ln_kernel, eps=eps),
        out_shape=jax.ShapeDtypeStruct((Mp, N), jnp.bfloat16),
        grid=(Mp // tm,),
        in_specs=[
            pl.BlockSpec((tm, K), lambda i: (i, 0)),
            pl.BlockSpec((K, N), lambda i: (0, 0)),
            pl.BlockSpec((1, N), lambda i: (0, 0)),
            pl.BlockSpec((tm, N), lambda i: (i, 0)),
            pl.BlockSpec((1, N), lambda i: (0, 0)),
            pl.BlockSpec((1, N), lambda i: (0, 0)),
        ],
        out_specs=pl.BlockSpec((tm, N), lambda i: (i, 0)),
        compiler_params=_cparams("parallel"),
        cost_estimate=ce,
    )(x, w, b, res, gamma, beta)
    return out if Mp == M else out[:M]


# ----------------------- fused FFN: lin1 + ReLU + lin2 + res + LN, Dff tiled reduction
def _ffn_kernel(x_ref, w1_ref, b1_ref, w2_ref, b2_ref, g_ref, bb_ref, o_ref, acc_ref,
                *, eps):
    k = pl.program_id(1)

    @pl.when(k == 0)
    def _():
        acc_ref[...] = jnp.zeros_like(acc_ref)

    x = x_ref[...]
    h = jnp.dot(x, w1_ref[...], preferred_element_type=jnp.float32) + b1_ref[...]
    h = jnp.maximum(h, 0.0).astype(jnp.bfloat16)       # ReLU is per-chunk -> fusion holds
    acc_ref[...] += jnp.dot(h, w2_ref[...], preferred_element_type=jnp.float32)

    @pl.when(k == pl.num_programs(1) - 1)
    def _():
        y = acc_ref[...] + b2_ref[...] + x.astype(jnp.float32)
        mu = jnp.mean(y, axis=-1, keepdims=True)
        var = jnp.mean(jnp.square(y - mu), axis=-1, keepdims=True)
        o_ref[...] = ((y - mu) * jax.lax.rsqrt(var + eps) * g_ref[...]
                      + bb_ref[...]).astype(o_ref.dtype)


def ffn_block(x, w1, b1, w2, b2, gamma, beta, eps=1e-5):
    M, E = x.shape
    Dff = w1.shape[1]
    tm, Mp = _row_plan(M)
    if Mp != M:
        x = jnp.pad(x, ((0, Mp - M), (0, 0)))
    td = _ffn_chunk(Dff)
    ce = pl.CostEstimate(flops=4 * Mp * E * Dff, transcendentals=Mp,
                         bytes_accessed=2 * Mp * E * 2 + 2 * E * Dff * 2 + (Dff + 3 * E) * 4)
    out = pl.pallas_call(
        functools.partial(_ffn_kernel, eps=eps),
        out_shape=jax.ShapeDtypeStruct((Mp, E), jnp.bfloat16),
        grid=(Mp // tm, Dff // td),               # reduction (Dff) axis last
        in_specs=[
            pl.BlockSpec((tm, E), lambda i, k: (i, 0)),     # resident across k
            pl.BlockSpec((E, td), lambda i, k: (0, k)),     # w1 chunk
            pl.BlockSpec((1, td), lambda i, k: (0, k)),     # b1 chunk
            pl.BlockSpec((td, E), lambda i, k: (k, 0)),     # w2 chunk
            pl.BlockSpec((1, E), lambda i, k: (0, 0)),
            pl.BlockSpec((1, E), lambda i, k: (0, 0)),
            pl.BlockSpec((1, E), lambda i, k: (0, 0)),
        ],
        out_specs=pl.BlockSpec((tm, E), lambda i, k: (i, 0)),
        scratch_shapes=[pltpu.VMEM((tm, E), jnp.float32)],
        compiler_params=_cparams("parallel", "arbitrary"),
        cost_estimate=ce,
    )(x, w1, b1, w2, b2, gamma, beta)
    return out if Mp == M else out[:M]


# ------------------------------------------------------------------------- attention
def _attn_kernel(qkv_ref, o_ref, *, n_heads, E, scale, tn):
    # qkv_ref block: (S, tn, 3E) bf16 ; o_ref block: (S, tn, E).
    Dh = E // n_heads
    for j in range(tn):                                  # static token loop
        tok = qkv_ref[:, j, :]                           # (S, 3E) static slice load
        for h in range(n_heads):                         # static head loop
            q = tok[:, h * Dh:(h + 1) * Dh]
            k = tok[:, E + h * Dh:E + (h + 1) * Dh]
            v = tok[:, 2 * E + h * Dh:2 * E + (h + 1) * Dh]
            s = jax.lax.dot_general(q, k, (((1,), (1,)), ((), ())),
                                    preferred_element_type=jnp.float32) * scale
            s = s - jnp.max(s, axis=-1, keepdims=True)
            p = jnp.exp(s)
            p = p * pl.reciprocal(jnp.sum(p, axis=-1, keepdims=True), approx=True)
            pv = jnp.dot(p.astype(jnp.bfloat16), v, preferred_element_type=jnp.float32)
            # Cast + store each head immediately (static indices): no f32 head
            # outputs stay live, no lane concatenate.
            # TODO(synk): head-pair (128-lane) aligned w_in column layout would make
            # these slices whole-vreg views; kept in PyTorch q|k|v head-major order.
            o_ref[:, j, h * Dh:(h + 1) * Dh] = pv.astype(o_ref.dtype)


def attention(qkv, n_heads, scale):
    """qkv: (S, N, 3E) bf16 -> ctx (S, N, E) bf16; attention over S for every token n.

    Blocks over token chunks of the middle axis so both input and output stay in
    (S, N, .) layout — the surrounding reshapes to/from (S*N, .) are free and no HBM
    transpose is needed on either side of the kernel."""
    S, N, threeE = qkv.shape
    E = threeE // 3
    tn = _TOKEN_TILE if N % _TOKEN_TILE == 0 else N
    ce = pl.CostEstimate(flops=4 * N * S * S * E,
                         transcendentals=N * n_heads * S * S,
                         bytes_accessed=S * N * threeE * 2 + S * N * E * 2)
    return pl.pallas_call(
        functools.partial(_attn_kernel, n_heads=n_heads, E=E, scale=scale, tn=tn),
        out_shape=jax.ShapeDtypeStruct((S, N, E), jnp.bfloat16),
        grid=(N // tn,),
        in_specs=[pl.BlockSpec((S, tn, threeE), lambda i: (0, i, 0))],
        out_specs=pl.BlockSpec((S, tn, E), lambda i: (0, i, 0)),
        compiler_params=_cparams("parallel"),
        cost_estimate=ce,
    )(qkv)


# ------------------------------------------------------------------------- parameters
def init_params(key, img_size, patch_size, in_channels, embed_dim, n_heads,
                n_layers, mlp_ratio, n_classes):
    n_patches = (img_size // patch_size) ** 2
    d_ff = int(embed_dim * mlp_ratio)
    n_cls_pad = ((n_classes + 127) // 128) * 128       # lane-dense classifier output

    def nrm(k, shape, scale=0.02, dtype=jnp.bfloat16):
        return (scale * jax.random.normal(k, shape, dtype=jnp.float32)).astype(dtype)

    keys = iter(jax.random.split(key, 8 + 12 * n_layers))
    # All matmul weights are stored pre-transposed (K, N) in bf16.
    params = {
        "proj_w": nrm(next(keys), (in_channels * patch_size * patch_size, embed_dim)),
        "proj_b": nrm(next(keys), (1, embed_dim), dtype=jnp.float32),
        "cls_token": nrm(next(keys), (1, 1, embed_dim)),
        "pos_embed": nrm(next(keys), (1, n_patches + 1, embed_dim)),
        "cls_w": jnp.zeros((embed_dim, n_cls_pad), jnp.bfloat16)
                 .at[:, :n_classes].set(nrm(next(keys), (embed_dim, n_classes))),
        "cls_b": jnp.zeros((1, n_cls_pad), jnp.float32)
                 .at[:, :n_classes].set(nrm(next(keys), (1, n_classes),
                                            dtype=jnp.float32)),
        "layers": [],
    }
    for _ in range(n_layers):
        params["layers"].append({
            "w_in": nrm(next(keys), (embed_dim, 3 * embed_dim)),
            "b_in": nrm(next(keys), (1, 3 * embed_dim), dtype=jnp.float32),
            "w_out": nrm(next(keys), (embed_dim, embed_dim)),
            "b_out": nrm(next(keys), (1, embed_dim), dtype=jnp.float32),
            "ln1_g": jnp.ones((1, embed_dim), jnp.float32),
            "ln1_b": jnp.zeros((1, embed_dim), jnp.float32),
            "w1": nrm(next(keys), (embed_dim, d_ff)),
            "b1": nrm(next(keys), (1, d_ff), dtype=jnp.float32),
            "w2": nrm(next(keys), (d_ff, embed_dim)),
            "b2": nrm(next(keys), (1, embed_dim), dtype=jnp.float32),
            "ln2_g": jnp.ones((1, embed_dim), jnp.float32),
            "ln2_b": jnp.zeros((1, embed_dim), jnp.float32),
        })
    return params


# ------------------------------------------------------------------------ forward pass
def vision_transformer_forward(x, params, *, patch_size, n_heads, n_classes):
    B, C, H, W = x.shape
    ps = patch_size
    Hp, Wp = H // ps, W // ps
    P = Hp * Wp
    E = params["proj_w"].shape[1]

    # --- PatchEmbedding: Conv2d(kernel=stride=ps) as im2col + tiled matmul kernel ---
    # TODO(synk): patch extraction stays as plain-JAX reshape/transpose; (ps, ps)
    # windows are too lane-sparse for a BlockSpec gather and it is a one-time pass.
    patches = (
        x.reshape(B, C, Hp, ps, Wp, ps)
        .transpose(0, 2, 4, 1, 3, 5)
        .reshape(B * P, C * ps * ps)
        .astype(jnp.bfloat16)
    )
    emb = linear(patches, params["proj_w"], params["proj_b"]).reshape(B, P, E)

    # --- cls token + positional embedding (glue), then pad the token axis ONCE so the
    # per-layer kernels are pad-free and attention token tiles divide evenly ---
    cls = jnp.broadcast_to(params["cls_token"], (B, 1, E))
    seq = jnp.concatenate([cls, emb], axis=1) + params["pos_embed"]    # (B, P+1, E)
    N = P + 1
    N_pad = ((N + _TOKEN_TILE - 1) // _TOKEN_TILE) * _TOKEN_TILE
    if N_pad != N:
        seq = jnp.pad(seq, ((0, 0), (0, N_pad - N), (0, 0)))

    # --- TransformerEncoder (post-norm, ReLU FFN; batch_first=False semantics) ---
    S = B                       # S = PyTorch "sequence" axis (= image batch)
    Dh = E // n_heads
    scale = 1.0 / math.sqrt(Dh)
    x2 = seq.reshape(S * N_pad, E)                      # row index = s * N_pad + n

    for layer in params["layers"]:
        # fused QKV projection; result stays in natural (S, N_pad, 3E) row order
        qkv = linear(x2, layer["w_in"], layer["b_in"])                 # (S*N_pad, 3E)
        # attention reads strided (S, tn, 3E) blocks and writes (S, tn, E) blocks
        # directly back in (S, N_pad, E) order -> no XLA transpose on either side
        ctx = attention(qkv.reshape(S, N_pad, 3 * E), n_heads, scale)  # (S, N_pad, E)
        # fused: out-projection + residual add + LayerNorm
        # TODO(synk): dropout is treated as eval-mode identity (no RNG dropout).
        x2 = linear_add_layernorm(ctx.reshape(S * N_pad, E), layer["w_out"],
                                  layer["b_out"], x2, layer["ln1_g"], layer["ln1_b"])
        # fused: lin1 + ReLU + lin2 + residual + LayerNorm (Dff tiled reduction axis)
        x2 = ffn_block(x2, layer["w1"], layer["b1"], layer["w2"], layer["b2"],
                       layer["ln2_g"], layer["ln2_b"])

    # --- ClassificationHead: Linear on token 0; lane-padded output sliced back ---
    cls_out = x2.reshape(S, N_pad, E)[:, 0, :]                         # (B, E)
    logits = linear(cls_out, params["cls_w"], params["cls_b"],
                    out_dtype=jnp.float32)                             # (B, 128*k)
    return logits[:, :n_classes]                                       # (B, n_classes)


# ------------------------------------------------------------------------------- main
if __name__ == "__main__":
    B, C, IMG, PS = 2, 4, 16, 4
    E, HEADS, LAYERS, MLP_RATIO, CLASSES = 32, 4, 2, 2.0, 10

    key = jax.random.PRNGKey(0)
    pkey, xkey = jax.random.split(key)
    params = init_params(pkey, IMG, PS, C, E, HEADS, LAYERS, MLP_RATIO, CLASSES)
    x = jax.random.normal(xkey, (B, C, IMG, IMG), dtype=jnp.float32)

    fwd = jax.jit(functools.partial(vision_transformer_forward,
                                    patch_size=PS, n_heads=HEADS, n_classes=CLASSES))
    out = fwd(x, params)
    jax.block_until_ready(out)
    assert out.shape == (B, CLASSES) and out.dtype == jnp.float32
    print("KERNEL_OK")
</pallas_src>

<mosaic_0001>
module attributes {stable_mosaic.version = 11 : i64} {
  func.func @_linear_kernel(%arg0: i32, %arg1: memref<16x64xbf16, #tpu.memory_space<vmem>>, %arg2: memref<64x32xbf16, #tpu.memory_space<vmem>>, %arg3: memref<1x32xf32, #tpu.memory_space<vmem>>, %arg4: memref<16x32xbf16, #tpu.memory_space<vmem>>) attributes {dimension_semantics = [#tpu.dimension_semantics<parallel>], iteration_bounds = array<i64: 2>, scalar_prefetch = 0 : i64, scratch_operands = 0 : i64, tpu.core_type = #tpu.core_type<tc>, window_params = [{transform_indices = @transform_0, window_bounds = array<i64: 16, 64>}, {pipeline_mode = #tpu.pipeline_mode<synchronous>, transform_indices = @transform_1, window_bounds = array<i64: 64, 32>}, {pipeline_mode = #tpu.pipeline_mode<synchronous>, transform_indices = @transform_2, window_bounds = array<i64: 1, 32>}, {transform_indices = @transform_3, window_bounds = array<i64: 16, 32>}]} {
    %c0 = arith.constant 0 : index
    %c0_0 = arith.constant 0 : index
    %0 = vector.load %arg1[%c0, %c0_0] : memref<16x64xbf16, #tpu.memory_space<vmem>>, vector<16x64xbf16>
    %c0_1 = arith.constant 0 : index
    %c0_2 = arith.constant 0 : index
    %1 = vector.load %arg2[%c0_1, %c0_2] : memref<64x32xbf16, #tpu.memory_space<vmem>>, vector<64x32xbf16>
    %cst = arith.constant dense<0.000000e+00> : vector<16x32xf32>
    %2 = tpu.matmul %0, %1, %cst {dimension_numbers = #tpu.dot_dimension_numbers<[1], [0], [0], [1], [0, 0, 1, 1], [], []>} : vector<16x64xbf16>, vector<64x32xbf16>, vector<16x32xf32> -> vector<16x32xf32>
    %c0_3 = arith.constant 0 : index
    %c0_4 = arith.constant 0 : index
    %3 = vector.load %arg3[%c0_3, %c0_4] : memref<1x32xf32, #tpu.memory_space<vmem>>, vector<1x32xf32>
    %4 = vector.broadcast %3 : vector<1x32xf32> to vector<16x32xf32>
    %5 = arith.addf %2, %4 : vector<16x32xf32>
    %6 = arith.truncf %5 : vector<16x32xf32> to vector<16x32xbf16>
    %c0_5 = arith.constant 0 : index
    %c0_6 = arith.constant 0 : index
    %7 = vector.load %arg4[%c0_5, %c0_6] : memref<16x32xbf16, #tpu.memory_space<vmem>>, vector<16x32xbf16>
    tpu.vector_store %arg4[%c0_5, %c0_6], %6 {strides = array<i32>} : memref<16x32xbf16, #tpu.memory_space<vmem>>, vector<16x32xbf16>,
    return
  }
  func.func @transform_0(%arg0: i32) -> (i32, i32) {
    %c0_i32 = arith.constant 0 : i32
    %c0_i32_0 = arith.constant 0 : i32
    return %arg0, %c0_i32 : i32, i32
  }
  func.func @transform_1(%arg0: i32) -> (i32, i32) {
    %c0_i32 = arith.constant 0 : i32
    %c0_i32_0 = arith.constant 0 : i32
    %c0_i32_1 = arith.constant 0 : i32
    return %c0_i32, %c0_i32_0 : i32, i32
  }
  func.func @transform_2(%arg0: i32) -> (i32, i32) {
    %c0_i32 = arith.constant 0 : i32
    %c0_i32_0 = arith.constant 0 : i32
    %c0_i32_1 = arith.constant 0 : i32
    return %c0_i32, %c0_i32_0 : i32, i32
  }
  func.func @transform_3(%arg0: i32) -> (i32, i32) {
    %c0_i32 = arith.constant 0 : i32
    %c0_i32_0 = arith.constant 0 : i32
    return %arg0, %c0_i32 : i32, i32
  }
}

module attributes {stable_mosaic.version = 11 : i64} {
  func.func @_linear_kernel(%arg0: i32, %arg1: memref<24x32xbf16, #tpu.memory_space<vmem>>, %arg2: memref<32x96xbf16, #tpu.memory_space<vmem>>, %arg3: memref<1x96xf32, #tpu.memory_space<vmem>>, %arg4: memref<24x96xbf16, #tpu.memory_space<vmem>>) attributes {dimension_semantics = [#tpu.dimension_semantics<parallel>], iteration_bounds = array<i64: 2>, scalar_prefetch = 0 : i64, scratch_operands = 0 : i64, tpu.core_type = #tpu.core_type<tc>, window_params = [{transform_indices = @transform_0, window_bounds = array<i64: 24, 32>}, {pipeline_mode = #tpu.pipeline_mode<synchronous>, transform_indices = @transform_1, window_bounds = array<i64: 32, 96>}, {pipeline_mode = #tpu.pipeline_mode<synchronous>, transform_indices = @transform_2, window_bounds = array<i64: 1, 96>}, {transform_indices = @transform_3, window_bounds = array<i64: 24, 96>}]} {
    %c0 = arith.constant 0 : index
    %c0_0 = arith.constant 0 : index
    %0 = vector.load %arg1[%c0, %c0_0] : memref<24x32xbf16, #tpu.memory_space<vmem>>, vector<24x32xbf16>
    %c0_1 = arith.constant 0 : index
    %c0_2 = arith.constant 0 : index
    %1 = vector.load %arg2[%c0_1, %c0_2] : memref<32x96xbf16, #tpu.memory_space<vmem>>, vector<32x96xbf16>
    %cst = arith.constant dense<0.000000e+00> : vector<24x96xf32>
    %2 = tpu.matmul %0, %1, %cst {dimension_numbers = #tpu.dot_dimension_numbers<[1], [0], [0], [1], [0, 0, 1, 1], [], []>} : vector<24x32xbf16>, vector<32x96xbf16>, vector<24x96xf32> -> vector<24x96xf32>
    %c0_3 = arith.constant 0 : index
    %c0_4 = arith.constant 0 : index
    %3 = vector.load %arg3[%c0_3, %c0_4] : memref<1x96xf32, #tpu.memory_space<vmem>>, vector<1x96xf32>
    %4 = vector.broadcast %3 : vector<1x96xf32> to vector<24x96xf32>
    %5 = arith.addf %2, %4 : vector<24x96xf32>
    %6 = arith.truncf %5 : vector<24x96xf32> to vector<24x96xbf16>
    %c0_5 = arith.constant 0 : index
    %c0_6 = arith.constant 0 : index
    %7 = vector.load %arg4[%c0_5, %c0_6] : memref<24x96xbf16, #tpu.memory_space<vmem>>, vector<24x96xbf16>
    tpu.vector_store %arg4[%c0_5, %c0_6], %6 {strides = array<i32>} : memref<24x96xbf16, #tpu.memory_space<vmem>>, vector<24x96xbf16>,
    return
  }
  func.func @transform_0(%arg0: i32) -> (i32, i32) {
    %c0_i32 = arith.constant 0 : i32
    %c0_i32_0 = arith.constant 0 : i32
    return %arg0, %c0_i32 : i32, i32
  }
  func.func @transform_1(%arg0: i32) -> (i32, i32) {
    %c0_i32 = arith.constant 0 : i32
    %c0_i32_0 = arith.constant 0 : i32
    %c0_i32_1 = arith.constant 0 : i32
    return %c0_i32, %c0_i32_0 : i32, i32
  }
  func.func @transform_2(%arg0: i32) -> (i32, i32) {
    %c0_i32 = arith.constant 0 : i32
    %c0_i32_0 = arith.constant 0 : i32
    %c0_i32_1 = arith.constant 0 : i32
    return %c0_i32, %c0_i32_0 : i32, i32
  }
  func.func @transform_3(%arg0: i32) -> (i32, i32) {
    %c0_i32 = arith.constant 0 : i32
    %c0_i32_0 = arith.constant 0 : i32
    return %arg0, %c0_i32 : i32, i32
  }
}

module attributes {stable_mosaic.version = 11 : i64} {
  func.func @_attn_kernel(%arg0: i32, %arg1: memref<2x8x96xbf16, #tpu.memory_space<vmem>>, %arg2: memref<2x8x32xbf16, #tpu.memory_space<vmem>>) attributes {dimension_semantics = [#tpu.dimension_semantics<parallel>], iteration_bounds = array<i64: 3>, scalar_prefetch = 0 : i64, scratch_operands = 0 : i64, tpu.core_type = #tpu.core_type<tc>, window_params = [{transform_indices = @transform_0, window_bounds = array<i64: 2, 8, 96>}, {transform_indices = @transform_1, window_bounds = array<i64: 2, 8, 32>}]} {
    %c0 = arith.constant 0 : index
    %c0_0 = arith.constant 0 : index
    %c0_1 = arith.constant 0 : index
    %0 = vector.load %arg1[%c0, %c0_0, %c0_1] : memref<2x8x96xbf16, #tpu.memory_space<vmem>>, vector<2x1x96xbf16>
    %1 = vector.shape_cast %0 : vector<2x1x96xbf16> to vector<2x96xbf16>
    %2 = vector.extract_strided_slice %1 {offsets = [0, 0], sizes = [2, 8], strides = [1, 1]} : vector<2x96xbf16> to vector<2x8xbf16>
    %3 = vector.extract_strided_slice %1 {offsets = [0, 32], sizes = [2, 8], strides = [1, 1]} : vector<2x96xbf16> to vector<2x8xbf16>
    %4 = vector.extract_strided_slice %1 {offsets = [0, 64], sizes = [2, 8], strides = [1, 1]} : vector<2x96xbf16> to vector<2x8xbf16>
    %cst = arith.constant dense<0.000000e+00> : vector<2x2xf32>
    %5 = tpu.matmul %2, %3, %cst {dimension_numbers = #tpu.dot_dimension_numbers<[1], [1], [0], [0], [0, 0, 1, 0], [], []>} : vector<2x8xbf16>, vector<2x8xbf16>, vector<2x2xf32> -> vector<2x2xf32>
    %cst_2 = arith.constant 0.353553385 : f32
    %6 = vector.broadcast %cst_2 : f32 to vector<2x2xf32>
    %7 = arith.mulf %5, %6 : vector<2x2xf32>
    %cst_3 = arith.constant dense<0xFF800000> : vector<2xf32>
    %8 = vector.multi_reduction <maximumf>, %7, %cst_3 [1] : vector<2x2xf32> to vector<2xf32>
    %9 = vector.shape_cast %8 : vector<2xf32> to vector<2x1xf32>
    %10 = vector.broadcast %9 : vector<2x1xf32> to vector<2x2xf32>
    %11 = arith.subf %7, %10 : vector<2x2xf32>
    %12 = math.exp %11 : vector<2x2xf32>
    %cst_4 = arith.constant dense<0.000000e+00> : vector<2xf32>
    %13 = vector.multi_reduction <add>, %12, %cst_4 [1] : vector<2x2xf32> to vector<2xf32>
    %14 = vector.shape_cast %13 : vector<2xf32> to vector<2x1xf32>
    %15 = tpu.reciprocal %14 {approx = true} : vector<2x1xf32> -> vector<2x1xf32>
    %16 = vector.broadcast %15 : vector<2x1xf32> to vector<2x2xf32>
    %17 = arith.mulf %12, %16 : vector<2x2xf32>
    %18 = arith.truncf %17 : vector<2x2xf32> to vector<2x2xbf16>
    %cst_5 = arith.constant dense<0.000000e+00> : vector<2x8xf32>
    %19 = tpu.matmul %18, %4, %cst_5 {dimension_numbers = #tpu.dot_dimension_numbers<[1], [0], [0], [1], [0, 0, 1, 1], [], []>} : vector<2x2xbf16>, vector<2x8xbf16>, vector<2x8xf32> -> vector<2x8xf32>
    %20 = arith.truncf %19 : vector<2x8xf32> to vector<2x8xbf16>
    %c0_6 = arith.constant 0 : index
    %c0_7 = arith.constant 0 : index
    %c0_8 = arith.constant 0 : index
    %21 = vector.load %arg2[%c0_6, %c0_7, %c0_8] : memref<2x8x32xbf16, #tpu.memory_space<vmem>>, vector<2x1x8xbf16>
    %22 = vector.shape_cast %21 : vector<2x1x8xbf16> to vector<2x8xbf16>
    %23 = vector.shape_cast %20 : vector<2x8xbf16> to vector<2x1x8xbf16>
    tpu.vector_store %arg2[%c0_6, %c0_7, %c0_8], %23 {strides = array<i32>} : memref<2x8x32xbf16, #tpu.memory_space<vmem>>, vector<2x1x8xbf16>,
    %24 = vector.extract_strided_slice %1 {offsets = [0, 8], sizes = [2, 8], strides = [1, 1]} : vector<2x96xbf16> to vector<2x8xbf16>
    %25 = vector.extract_strided_slice %1 {offsets = [0, 40], sizes = [2, 8], strides = [1, 1]} : vector<2x96xbf16> to vector<2x8xbf16>
    %26 = vector.extract_strided_slice %1 {offsets = [0, 72], sizes = [2, 8], strides = [1, 1]} : vector<2x96xbf16> to vector<2x8xbf16>
    %cst_9 = arith.constant dense<0.000000e+00> : vector<2x2xf32>
    %27 = tpu.matmul %24, %25, %cst_9 {dimension_numbers = #tpu.dot_dimension_numbers<[1], [1], [0], [0], [0, 0, 1, 0], [], []>} : vector<2x8xbf16>, vector<2x8xbf16>, vector<2x2xf32> -> vector<2x2xf32>
    %cst_10 = arith.constant 0.353553385 : f32
    %28 = vector.broadcast %cst_10 : f32 to vector<2x2xf32>
    %29 = arith.mulf %27, %28 : vector<2x2xf32>
    %cst_11 = arith.constant dense<0xFF800000> : vector<2xf32>
    %30 = vector.multi_reduction <maximumf>, %29, %cst_11 [1] : vector<2x2xf32> to vector<2xf32>
    %31 = vector.shape_cast %30 : vector<2xf32> to vector<2x1xf32>
    %32 = vector.broadcast %31 : vector<2x1xf32> to vector<2x2xf32>
    %33 = arith.subf %29, %32 : vector<2x2xf32>
    %34 = math.exp %33 : vector<2x2xf32>
    %cst_12 = arith.constant dense<0.000000e+00> : vector<2xf32>
    %35 = vector.multi_reduction <add>, %34, %cst_12 [1] : vector<2x2xf32> to vector<2xf32>
    %36 = vector.shape_cast %35 : vector<2xf32> to vector<2x1xf32>
    %37 = tpu.reciprocal %36 {approx = true} : vector<2x1xf32> -> vector<2x1xf32>
    %38 = vector.broadcast %37 : vector<2x1xf32> to vector<2x2xf32>
    %39 = arith.mulf %34, %38 : vector<2x2xf32>
    %40 = arith.truncf %39 : vector<2x2xf32> to vector<2x2xbf16>
    %cst_13 = arith.constant dense<0.000000e+00> : vector<2x8xf32>
    %41 = tpu.matmul %40, %26, %cst_13 {dimension_numbers = #tpu.dot_dimension_numbers<[1], [0], [0], [1], [0, 0, 1, 1], [], []>} : vector<2x2xbf16>, vector<2x8xbf16>, vector<2x8xf32> -> vector<2x8xf32>
    %42 = arith.truncf %41 : vector<2x8xf32> to vector<2x8xbf16>
    %c0_14 = arith.constant 0 : index
    %c0_15 = arith.constant 0 : index
    %c8 = arith.constant 8 : index
    %43 = vector.load %arg2[%c0_14, %c0_15, %c8] : memref<2x8x32xbf16, #tpu.memory_space<vmem>>, vector<2x1x8xbf16>
    %44 = vector.shape_cast %43 : vector<2x1x8xbf16> to vector<2x8xbf16>
    %45 = vector.shape_cast %42 : vector<2x8xbf16> to vector<2x1x8xbf16>
    tpu.vector_store %arg2[%c0_14, %c0_15, %c8], %45 {strides = array<i32>} : memref<2x8x32xbf16, #tpu.memory_space<vmem>>, vector<2x1x8xbf16>,
    %46 = vector.extract_strided_slice %1 {offsets = [0, 16], sizes = [2, 8], strides = [1, 1]} : vector<2x96xbf16> to vector<2x8xbf16>
    %47 = vector.extract_strided_slice %1 {offsets = [0, 48], sizes = [2, 8], strides = [1, 1]} : vector<2x96xbf16> to vector<2x8xbf16>
    %48 = vector.extract_strided_slice %1 {offsets = [0, 80], sizes = [2, 8], strides = [1, 1]} : vector<2x96xbf16> to vector<2x8xbf16>
    %cst_16 = arith.constant dense<0.000000e+00> : vector<2x2xf32>
    %49 = tpu.matmul %46, %47, %cst_16 {dimension_numbers = #tpu.dot_dimension_numbers<[1], [1], [0], [0], [0, 0, 1, 0], [], []>} : vector<2x8xbf16>, vector<2x8xbf16>, vector<2x2xf32> -> vector<2x2xf32>
    %cst_17 = arith.constant 0.353553385 : f32
    %50 = vector.broadcast %cst_17 : f32 to vector<2x2xf32>
    %51 = arith.mulf %49, %50 : vector<2x2xf32>
    %cst_18 = arith.constant dense<0xFF800000> : vector<2xf32>
    %52 = vector.multi_reduction <maximumf>, %51, %cst_18 [1] : vector<2x2xf32> to vector<2xf32>
    %53 = vector.shape_cast %52 : vector<2xf32> to vector<2x1xf32>
    %54 = vector.broadcast %53 : vector<2x1xf32> to vector<2x2xf32>
    %55 = arith.subf %51, %54 : vector<2x2xf32>
    %56 = math.exp %55 : vector<2x2xf32>
    %cst_19 = arith.constant dense<0.000000e+00> : vector<2xf32>
    %57 = vector.multi_reduction <add>, %56, %cst_19 [1] : vector<2x2xf32> to vector<2xf32>
    %58 = vector.shape_cast %57 : vector<2xf32> to vector<2x1xf32>
    %59 = tpu.reciprocal %58 {approx = true} : vector<2x1xf32> -> vector<2x1xf32>
    %60 = vector.broadcast %59 : vector<2x1xf32> to vector<2x2xf32>
    %61 = arith.mulf %56, %60 : vector<2x2xf32>
    %62 = arith.truncf %61 : vector<2x2xf32> to vector<2x2xbf16>
    %cst_20 = arith.constant dense<0.000000e+00> : vector<2x8xf32>
    %63 = tpu.matmul %62, %48, %cst_20 {dimension_numbers = #tpu.dot_dimension_numbers<[1], [0], [0], [1], [0, 0, 1, 1], [], []>} : vector<2x2xbf16>, vector<2x8xbf16>, vector<2x8xf32> -> vector<2x8xf32>
    %64 = arith.truncf %63 : vector<2x8xf32> to vector<2x8xbf16>
    %c0_21 = arith.constant 0 : index
    %c0_22 = arith.constant 0 : index
    %c16 = arith.constant 16 : index
    %65 = vector.load %arg2[%c0_21, %c0_22, %c16] : memref<2x8x32xbf16, #tpu.memory_space<vmem>>, vector<2x1x8xbf16>
    %66 = vector.shape_cast %65 : vector<2x1x8xbf16> to vector<2x8xbf16>
    %67 = vector.shape_cast %64 : vector<2x8xbf16> to vector<2x1x8xbf16>
    tpu.vector_store %arg2[%c0_21, %c0_22, %c16], %67 {strides = array<i32>} : memref<2x8x32xbf16, #tpu.memory_space<vmem>>, vector<2x1x8xbf16>,
    %68 = vector.extract_strided_slice %1 {offsets = [0, 24], sizes = [2, 8], strides = [1, 1]} : vector<2x96xbf16> to vector<2x8xbf16>
    %69 = vector.extract_strided_slice %1 {offsets = [0, 56], sizes = [2, 8], strides = [1, 1]} : vector<2x96xbf16> to vector<2x8xbf16>
    %70 = vector.extract_strided_slice %1 {offsets = [0, 88], sizes = [2, 8], strides = [1, 1]} : vector<2x96xbf16> to vector<2x8xbf16>
    %cst_23 = arith.constant dense<0.000000e+00> : vector<2x2xf32>
    %71 = tpu.matmul %68, %69, %cst_23 {dimension_numbers = #tpu.dot_dimension_numbers<[1], [1], [0], [0], [0, 0, 1, 0], [], []>} : vector<2x8xbf16>, vector<2x8xbf16>, vector<2x2xf32> -> vector<2x2xf32>
    %cst_24 = arith.constant 0.353553385 : f32
    %72 = vector.broadcast %cst_24 : f32 to vector<2x2xf32>
    %73 = arith.mulf %71, %72 : vector<2x2xf32>
    %cst_25 = arith.constant dense<0xFF800000> : vector<2xf32>
    %74 = vector.multi_reduction <maximumf>, %73, %cst_25 [1] : vector<2x2xf32> to vector<2xf32>
    %75 = vector.shape_cast %74 : vector<2xf32> to vector<2x1xf32>
    %76 = vector.broadcast %75 : vector<2x1xf32> to vector<2x2xf32>
    %77 = arith.subf %73, %76 : vector<2x2xf32>
    %78 = math.exp %77 : vector<2x2xf32>
    %cst_26 = arith.constant dense<0.000000e+00> : vector<2xf32>
    %79 = vector.multi_reduction <add>, %78, %cst_26 [1] : vector<2x2xf32> to vector<2xf32>
    %80 = vector.shape_cast %79 : vector<2xf32> to vector<2x1xf32>
    %81 = tpu.reciprocal %80 {approx = true} : vector<2x1xf32> -> vector<2x1xf32>
    %82 = vector.broadcast %81 : vector<2x1xf32> to vector<2x2xf32>
    %83 = arith.mulf %78, %82 : vector<2x2xf32>
    %84 = arith.truncf %83 : vector<2x2xf32> to vector<2x2xbf16>
    %cst_27 = arith.constant dense<0.000000e+00> : vector<2x8xf32>
    %85 = tpu.matmul %84, %70, %cst_27 {dimension_numbers = #tpu.dot_dimension_numbers<[1], [0], [0], [1], [0, 0, 1, 1], [], []>} : vector<2x2xbf16>, vector<2x8xbf16>, vector<2x8xf32> -> vector<2x8xf32>
    %86 = arith.truncf %85 : vector<2x8xf32> to vector<2x8xbf16>
    %c0_28 = arith.constant 0 : index
    %c0_29 = arith.constant 0 : index
    %c24 = arith.constant 24 : index
    %87 = vector.load %arg2[%c0_28, %c0_29, %c24] : memref<2x8x32xbf16, #tpu.memory_space<vmem>>, vector<2x1x8xbf16>
    %88 = vector.shape_cast %87 : vector<2x1x8xbf16> to vector<2x8xbf16>
    %89 = vector.shape_cast %86 : vector<2x8xbf16> to vector<2x1x8xbf16>
    tpu.vector_store %arg2[%c0_28, %c0_29, %c24], %89 {strides = array<i32>} : memref<2x8x32xbf16, #tpu.memory_space<vmem>>, vector<2x1x8xbf16>,
    %c0_30 = arith.constant 0 : index
    %c1 = arith.constant 1 : index
    %c0_31 = arith.constant 0 : index
    %90 = vector.load %arg1[%c0_30, %c1, %c0_31] : memref<2x8x96xbf16, #tpu.memory_space<vmem>>, vector<2x1x96xbf16>
    %91 = vector.shape_cast %90 : vector<2x1x96xbf16> to vector<2x96xbf16>
    %92 = vector.extract_strided_slice %91 {offsets = [0, 0], sizes = [2, 8], strides = [1, 1]} : vector<2x96xbf16> to vector<2x8xbf16>
    %93 = vector.extract_strided_slice %91 {offsets = [0, 32], sizes = [2, 8], strides = [1, 1]} : vector<2x96xbf16> to vector<2x8xbf16>
    %94 = vector.extract_strided_slice %91 {offsets = [0, 64], sizes = [2, 8], strides = [1, 1]} : vector<2x96xbf16> to vector<2x8xbf16>
    %cst_32 = arith.constant dense<0.000000e+00> : vector<2x2xf32>
    %95 = tpu.matmul %92, %93, %cst_32 {dimension_numbers = #tpu.dot_dimension_numbers<[1], [1], [0], [0], [0, 0, 1, 0], [], []>} : vector<2x8xbf16>, vector<2x8xbf16>, vector<2x2xf32> -> vector<2x2xf32>
    %cst_33 = arith.constant 0.353553385 : f32
    %96 = vector.broadcast %cst_33 : f32 to vector<2x2xf32>
    %97 = arith.mulf %95, %96 : vector<2x2xf32>
    %cst_34 = arith.constant dense<0xFF800000> : vector<2xf32>
    %98 = vector.multi_reduction <maximumf>, %97, %cst_34 [1] : vector<2x2xf32> to vector<2xf32>
    %99 = vector.shape_cast %98 : vector<2xf32> to vector<2x1xf32>
    %100 = vector.broadcast %99 : vector<2x1xf32> to vector<2x2xf32>
    %101 = arith.subf %97, %100 : vector<2x2xf32>
    %102 = math.exp %101 : vector<2x2xf32>
    %cst_35 = arith.constant dense<0.000000e+00> : vector<2xf32>
    %103 = vector.multi_reduction <add>, %102, %cst_35 [1] : vector<2x2xf32> to vector<2xf32>
    %104 = vector.shape_cast %103 : vector<2xf32> to vector<2x1xf32>
    %105 = tpu.reciprocal %104 {approx = true} : vector<2x1xf32> -> vector<2x1xf32>
    %106 = vector.broadcast %105 : vector<2x1xf32> to vector<2x2xf32>
    %107 = arith.mulf %102, %106 : vector<2x2xf32>
    %108 = arith.truncf %107 : vector<2x2xf32> to vector<2x2xbf16>
    %cst_36 = arith.constant dense<0.000000e+00> : vector<2x8xf32>
    %109 = tpu.matmul %108, %94, %cst_36 {dimension_numbers = #tpu.dot_dimension_numbers<[1], [0], [0], [1], [0, 0, 1, 1], [], []>} : vector<2x2xbf16>, vector<2x8xbf16>, vector<2x8xf32> -> vector<2x8xf32>
    %110 = arith.truncf %109 : vector<2x8xf32> to vector<2x8xbf16>
    %c0_37 = arith.constant 0 : index
    %c1_38 = arith.constant 1 : index
    %c0_39 = arith.constant 0 : index
    %111 = vector.load %arg2[%c0_37, %c1_38, %c0_39] : memref<2x8x32xbf16, #tpu.memory_space<vmem>>, vector<2x1x8xbf16>
    %112 = vector.shape_cast %111 : vector<2x1x8xbf16> to vector<2x8xbf16>
    %113 = vector.shape_cast %110 : vector<2x8xbf16> to vector<2x1x8xbf16>
    tpu.vector_store %arg2[%c0_37, %c1_38, %c0_39], %113 {strides = array<i32>} : memref<2x8x32xbf16, #tpu.memory_space<vmem>>, vector<2x1x8xbf16>,
    %114 = vector.extract_strided_slice %91 {offsets = [0, 8], sizes = [2, 8], strides = [1, 1]} : vector<2x96xbf16> to vector<2x8xbf16>
    %115 = vector.extract_strided_slice %91 {offsets = [0, 40], sizes = [2, 8], strides = [1, 1]} : vector<2x96xbf16> to vector<2x8xbf16>
    %116 = vector.extract_strided_slice %91 {offsets = [0, 72], sizes = [2, 8], strides = [1, 1]} : vector<2x96xbf16> to vector<2x8xbf16>
    %cst_40 = arith.constant dense<0.000000e+00> : vector<2x2xf32>
    %117 = tpu.matmul %114, %115, %cst_40 {dimension_numbers = #tpu.dot_dimension_numbers<[1], [1], [0], [0], [0, 0, 1, 0], [], []>} : vector<2x8xbf16>, vector<2x8xbf16>, vector<2x2xf32> -> vector<2x2xf32>
    %cst_41 = arith.constant 0.353553385 : f32
    %118 = vector.broadcast %cst_41 : f32 to vector<2x2xf32>
    %119 = arith.mulf %117, %118 : vector<2x2xf32>
    %cst_42 = arith.constant dense<0xFF800000> : vector<2xf32>
    %120 = vector.multi_reduction <maximumf>, %119, %cst_42 [1] : vector<2x2xf32> to vector<2xf32>
    %121 = vector.shape_cast %120 : vector<2xf32> to vector<2x1xf32>
    %122 = vector.broadcast %121 : vector<2x1xf32> to vector<2x2xf32>
    %123 = arith.subf %119, %122 : vector<2x2xf32>
    %124 = math.exp %123 : vector<2x2xf32>
    %cst_43 = arith.constant dense<0.000000e+00> : vector<2xf32>
    %125 = vector.multi_reduction <add>, %124, %cst_43 [1] : vector<2x2xf32> to vector<2xf32>
    %126 = vector.shape_cast %125 : vector<2xf32> to vector<2x1xf32>
    %127 = tpu.reciprocal %126 {approx = true} : vector<2x1xf32> -> vector<2x1xf32>
    %128 = vector.broadcast %127 : vector<2x1xf32> to vector<2x2xf32>
    %129 = arith.mulf %124, %128 : vector<2x2xf32>
    %130 = arith.truncf %129 : vector<2x2xf32> to vector<2x2xbf16>
    %cst_44 = arith.constant dense<0.000000e+00> : vector<2x8xf32>
    %131 = tpu.matmul %130, %116, %cst_44 {dimension_numbers = #tpu.dot_dimension_numbers<[1], [0], [0], [1], [0, 0, 1, 1], [], []>} : vector<2x2xbf16>, vector<2x8xbf16>, vector<2x8xf32> -> vector<2x8xf32>
    %132 = arith.truncf %131 : vector<2x8xf32> to vector<2x8xbf16>
    %c0_45 = arith.constant 0 : index
    %c1_46 = arith.constant 1 : index
    %c8_47 = arith.constant 8 : index
    %133 = vector.load %arg2[%c0_45, %c1_46, %c8_47] : memref<2x8x32xbf16, #tpu.memory_space<vmem>>, vector<2x1x8xbf16>
    %134 = vector.shape_cast %133 : vector<2x1x8xbf16> to vector<2x8xbf16>
    %135 = vector.shape_cast %132 : vector<2x8xbf16> to vector<2x1x8xbf16>
    tpu.vector_store %arg2[%c0_45, %c1_46, %c8_47], %135 {strides = array<i32>} : memref<2x8x32xbf16, #tpu.memory_space<vmem>>, vector<2x1x8xbf16>,
    %136 = vector.extract_strided_slice %91 {offsets = [0, 16], sizes = [2, 8], strides = [1, 1]} : vector<2x96xbf16> to vector<2x8xbf16>
    %137 = vector.extract_strided_slice %91 {offsets = [0, 48], sizes = [2, 8], strides = [1, 1]} : vector<2x96xbf16> to vector<2x8xbf16>
    %138 = vector.extract_strided_slice %91 {offsets = [0, 80], sizes = [2, 8], strides = [1, 1]} : vector<2x96xbf16> to vector<2x8xbf16>
    %cst_48 = arith.constant dense<0.000000e+00> : vector<2x2xf32>
    %139 = tpu.matmul %136, %137, %cst_48 {dimension_numbers = #tpu.dot_dimension_numbers<[1], [1], [0], [0], [0, 0, 1, 0], [], []>} : vector<2x8xbf16>, vector<2x8xbf16>, vector<2x2xf32> -> vector<2x2xf32>
    %cst_49 = arith.constant 0.353553385 : f32
    %140 = vector.broadcast %cst_49 : f32 to vector<2x2xf32>
    %141 = arith.mulf %139, %140 : vector<2x2xf32>
    %cst_50 = arith.constant dense<0xFF800000> : vector<2xf32>
    %142 = vector.multi_reduction <maximumf>, %141, %cst_50 [1] : vector<2x2xf32> to vector<2xf32>
    %143 = vector.shape_cast %142 : vector<2xf32> to vector<2x1xf32>
    %144 = vector.broadcast %143 : vector<2x1xf32> to vector<2x2xf32>
    %145 = arith.subf %141, %144 : vector<2x2xf32>
    %146 = math.exp %145 : vector<2x2xf32>
    %cst_51 = arith.constant dense<0.000000e+00> : vector<2xf32>
    %147 = vector.multi_reduction <add>, %146, %cst_51 [1] : vector<2x2xf32> to vector<2xf32>
    %148 = vector.shape_cast %147 : vector<2xf32> to vector<2x1xf32>
    %149 = tpu.reciprocal %148 {approx = true} : vector<2x1xf32> -> vector<2x1xf32>
    %150 = vector.broadcast %149 : vector<2x1xf32> to vector<2x2xf32>
    %151 = arith.mulf %146, %150 : vector<2x2xf32>
    %152 = arith.truncf %151 : vector<2x2xf32> to vector<2x2xbf16>
    %cst_52 = arith.constant dense<0.000000e+00> : vector<2x8xf32>
    %153 = tpu.matmul %152, %138, %cst_52 {dimension_numbers = #tpu.dot_dimension_numbers<[1], [0], [0], [1], [0, 0, 1, 1], [], []>} : vector<2x2xbf16>, vector<2x8xbf16>, vector<2x8xf32> -> vector<2x8xf32>
    %154 = arith.truncf %153 : vector<2x8xf32> to vector<2x8xbf16>
    %c0_53 = arith.constant 0 : index
    %c1_54 = arith.constant 1 : index
    %c16_55 = arith.constant 16 : index
    %155 = vector.load %arg2[%c0_53, %c1_54, %c16_55] : memref<2x8x32xbf16, #tpu.memory_space<vmem>>, vector<2x1x8xbf16>
    %156 = vector.shape_cast %155 : vector<2x1x8xbf16> to vector<2x8xbf16>
    %157 = vector.shape_cast %154 : vector<2x8xbf16> to vector<2x1x8xbf16>
    tpu.vector_store %arg2[%c0_53, %c1_54, %c16_55], %157 {strides = array<i32>} : memref<2x8x32xbf16, #tpu.memory_space<vmem>>, vector<2x1x8xbf16>,
    %158 = vector.extract_strided_slice %91 {offsets = [0, 24], sizes = [2, 8], strides = [1, 1]} : vector<2x96xbf16> to vector<2x8xbf16>
    %159 = vector.extract_strided_slice %91 {offsets = [0, 56], sizes = [2, 8], strides = [1, 1]} : vector<2x96xbf16> to vector<2x8xbf16>
    %160 = vector.extract_strided_slice %91 {offsets = [0, 88], sizes = [2, 8], strides = [1, 1]} : vector<2x96xbf16> to vector<2x8xbf16>
    %cst_56 = arith.constant dense<0.000000e+00> : vector<2x2xf32>
    %161 = tpu.matmul %158, %159, %cst_56 {dimension_numbers = #tpu.dot_dimension_numbers<[1], [1], [0], [0], [0, 0, 1, 0], [], []>} : vector<2x8xbf16>, vector<2x8xbf16>, vector<2x2xf32> -> vector<2x2xf32>
    %cst_57 = arith.constant 0.353553385 : f32
    %162 = vector.broadcast %cst_57 : f32 to vector<2x2xf32>
    %163 = arith.mulf %161, %162 : vector<2x2xf32>
    %cst_58 = arith.constant dense<0xFF800000> : vector<2xf32>
    %164 = vector.multi_reduction <maximumf>, %163, %cst_58 [1] : vector<2x2xf32> to vector<2xf32>
    %165 = vector.shape_cast %164 : vector<2xf32> to vector<2x1xf32>
    %166 = vector.broadcast %165 : vector<2x1xf32> to vector<2x2xf32>
    %167 = arith.subf %163, %166 : vector<2x2xf32>
    %168 = math.exp %167 : vector<2x2xf32>
    %cst_59 = arith.constant dense<0.000000e+00> : vector<2xf32>
    %169 = vector.multi_reduction <add>, %168, %cst_59 [1] : vector<2x2xf32> to vector<2xf32>
    %170 = vector.shape_cast %169 : vector<2xf32> to vector<2x1xf32>
    %171 = tpu.reciprocal %170 {approx = true} : vector<2x1xf32> -> vector<2x1xf32>
    %172 = vector.broadcast %171 : vector<2x1xf32> to vector<2x2xf32>
    %173 = arith.mulf %168, %172 : vector<2x2xf32>
    %174 = arith.truncf %173 : vector<2x2xf32> to vector<2x2xbf16>
    %cst_60 = arith.constant dense<0.000000e+00> : vector<2x8xf32>
    %175 = tpu.matmul %174, %160, %cst_60 {dimension_numbers = #tpu.dot_dimension_numbers<[1], [0], [0], [1], [0, 0, 1, 1], [], []>} : vector<2x2xbf16>, vector<2x8xbf16>, vector<2x8xf32> -> vector<2x8xf32>
    %176 = arith.truncf %175 : vector<2x8xf32> to vector<2x8xbf16>
    %c0_61 = arith.constant 0 : index
    %c1_62 = arith.constant 1 : index
    %c24_63 = arith.constant 24 : index
    %177 = vector.load %arg2[%c0_61, %c1_62, %c24_63] : memref<2x8x32xbf16, #tpu.memory_space<vmem>>, vector<2x1x8xbf16>
    %178 = vector.shape_cast %177 : vector<2x1x8xbf16> to vector<2x8xbf16>
    %179 = vector.shape_cast %176 : vector<2x8xbf16> to vector<2x1x8xbf16>
    tpu.vector_store %arg2[%c0_61, %c1_62, %c24_63], %179 {strides = array<i32>} : memref<2x8x32xbf16, #tpu.memory_space<vmem>>, vector<2x1x8xbf16>,
    %c0_64 = arith.constant 0 : index
    %c2 = arith.constant 2 : index
    %c0_65 = arith.constant 0 : index
    %180 = vector.load %arg1[%c0_64, %c2, %c0_65] : memref<2x8x96xbf16, #tpu.memory_space<vmem>>, vector<2x1x96xbf16>
    %181 = vector.shape_cast %180 : vector<2x1x96xbf16> to vector<2x96xbf16>
    %182 = vector.extract_strided_slice %181 {offsets = [0, 0], sizes = [2, 8], strides = [1, 1]} : vector<2x96xbf16> to vector<2x8xbf16>
    %183 = vector.extract_strided_slice %181 {offsets = [0, 32], sizes = [2, 8], strides = [1, 1]} : vector<2x96xbf16> to vector<2x8xbf16>
    %184 = vector.extract_strided_slice %181 {offsets = [0, 64], sizes = [2, 8], strides = [1, 1]} : vector<2x96xbf16> to vector<2x8xbf16>
    %cst_66 = arith.constant dense<0.000000e+00> : vector<2x2xf32>
    %185 = tpu.matmul %182, %183, %cst_66 {dimension_numbers = #tpu.dot_dimension_numbers<[1], [1], [0], [0], [0, 0, 1, 0], [], []>} : vector<2x8xbf16>, vector<2x8xbf16>, vector<2x2xf32> -> vector<2x2xf32>
    %cst_67 = arith.constant 0.353553385 : f32
    %186 = vector.broadcast %cst_67 : f32 to vector<2x2xf32>
    %187 = arith.mulf %185, %186 : vector<2x2xf32>
    %cst_68 = arith.constant dense<0xFF800000> : vector<2xf32>
    %188 = vector.multi_reduction <maximumf>, %187, %cst_68 [1] : vector<2x2xf32> to vector<2xf32>
    %189 = vector.shape_cast %188 : vector<2xf32> to vector<2x1xf32>
    %190 = vector.broadcast %189 : vector<2x1xf32> to vector<2x2xf32>
    %191 = arith.subf %187, %190 : vector<2x2xf32>
    %192 = math.exp %191 : vector<2x2xf32>
    %cst_69 = arith.constant dense<0.000000e+00> : vector<2xf32>
    %193 = vector.multi_reduction <add>, %192, %cst_69 [1] : vector<2x2xf32> to vector<2xf32>
    %194 = vector.shape_cast %193 : vector<2xf32> to vector<2x1xf32>
    %195 = tpu.reciprocal %194 {approx = true} : vector<2x1xf32> -> vector<2x1xf32>
    %196 = vector.broadcast %195 : vector<2x1xf32> to vector<2x2xf32>
    %197 = arith.mulf %192, %196 : vector<2x2xf32>
    %198 = arith.truncf %197 : vector<2x2xf32> to vector<2x2xbf16>
    %cst_70 = arith.constant dense<0.000000e+00> : vector<2x8xf32>
    %199 = tpu.matmul %198, %184, %cst_70 {dimension_numbers = #tpu.dot_dimension_numbers<[1], [0], [0], [1], [0, 0, 1, 1], [], []>} : vector<2x2xbf16>, vector<2x8xbf16>, vector<2x8xf32> -> vector<2x8xf32>
    %200 = arith.truncf %199 : vector<2x8xf32> to vector<2x8xbf16>
    %c0_71 = arith.constant 0 : index
    %c2_72 = arith.constant 2 : index
    %c0_73 = arith.constant 0 : index
    %201 = vector.load %arg2[%c0_71, %c2_72, %c0_73] : memref<2x8x32xbf16, #tpu.memory_space<vmem>>, vector<2x1x8xbf16>
    %202 = vector.shape_cast %201 : vector<2x1x8xbf16> to vector<2x8xbf16>
    %203 = vector.shape_cast %200 : vector<2x8xbf16> to vector<2x1x8xbf16>
    tpu.vector_store %arg2[%c0_71, %c2_72, %c0_73], %203 {strides = array<i32>} : memref<2x8x32xbf16, #tpu.memory_space<vmem>>, vector<2x1x8xbf16>,
    %204 = vector.extract_strided_slice %181 {offsets = [0, 8], sizes = [2, 8], strides = [1, 1]} : vector<2x96xbf16> to vector<2x8xbf16>
    %205 = vector.extract_strided_slice %181 {offsets = [0, 40], sizes = [2, 8], strides = [1, 1]} : vector<2x96xbf16> to vector<2x8xbf16>
    %206 = vector.extract_strided_slice %181 {offsets = [0, 72], sizes = [2, 8], strides = [1, 1]} : vector<2x96xbf16> to vector<2x8xbf16>
    %cst_74 = arith.constant dense<0.000000e+00> : vector<2x2xf32>
    %207 = tpu.matmul %204, %205, %cst_74 {dimension_numbers = #tpu.dot_dimension_numbers<[1], [1], [0], [0], [0, 0, 1, 0], [], []>} : vector<2x8xbf16>, vector<2x8xbf16>, vector<2x2xf32> -> vector<2x2xf32>
    %cst_75 = arith.constant 0.353553385 : f32
    %208 = vector.broadcast %cst_75 : f32 to vector<2x2xf32>
    %209 = arith.mulf %207, %208 : vector<2x2xf32>
    %cst_76 = arith.constant dense<0xFF800000> : vector<2xf32>
    %210 = vector.multi_reduction <maximumf>, %209, %cst_76 [1] : vector<2x2xf32> to vector<2xf32>
    %211 = vector.shape_cast %210 : vector<2xf32> to vector<2x1xf32>
    %212 = vector.broadcast %211 : vector<2x1xf32> to vector<2x2xf32>
    %213 = arith.subf %209, %212 : vector<2x2xf32>
    %214 = math.exp %213 : vector<2x2xf32>
    %cst_77 = arith.constant dense<0.000000e+00> : vector<2xf32>
    %215 = vector.multi_reduction <add>, %214, %cst_77 [1] : vector<2x2xf32> to vector<2xf32>
    %216 = vector.shape_cast %215 : vector<2xf32> to vector<2x1xf32>
    %217 = tpu.reciprocal %216 {approx = true} : vector<2x1xf32> -> vector<2x1xf32>
    %218 = vector.broadcast %217 : vector<2x1xf32> to vector<2x2xf32>
    %219 = arith.mulf %214, %218 : vector<2x2xf32>
    %220 = arith.truncf %219 : vector<2x2xf32> to vector<2x2xbf16>
    %cst_78 = arith.constant dense<0.000000e+00> : vector<2x8xf32>
    %221 = tpu.matmul %220, %206, %cst_78 {dimension_numbers = #tpu.dot_dimension_numbers<[1], [0], [0], [1], [0, 0, 1, 1], [], []>} : vector<2x2xbf16>, vector<2x8xbf16>, vector<2x8xf32> -> vector<2x8xf32>
    %222 = arith.truncf %221 : vector<2x8xf32> to vector<2x8xbf16>
    %c0_79 = arith.constant 0 : index
    %c2_80 = arith.constant 2 : index
    %c8_81 = arith.constant 8 : index
    %223 = vector.load %arg2[%c0_79, %c2_80, %c8_81] : memref<2x8x32xbf16, #tpu.memory_space<vmem>>, vector<2x1x8xbf16>
    %224 = vector.shape_cast %223 : vector<2x1x8xbf16> to vector<2x8xbf16>
    %225 = vector.shape_cast %222 : vector<2x8xbf16> to vector<2x1x8xbf16>
    tpu.vector_store %arg2[%c0_79, %c2_80, %c8_81], %225 {strides = array<i32>} : memref<2x8x32xbf16, #tpu.memory_space<vmem>>, vector<2x1x8xbf16>,
    %226 = vector.extract_strided_slice %181 {offsets = [0, 16], sizes = [2, 8], strides = [1, 1]} : vector<2x96xbf16> to vector<2x8xbf16>
    %227 = vector.extract_strided_slice %181 {offsets = [0, 48], sizes = [2, 8], strides = [1, 1]} : vector<2x96xbf16> to vector<2x8xbf16>
    %228 = vector.extract_strided_slice %181 {offsets = [0, 80], sizes = [2, 8], strides = [1, 1]} : vector<2x96xbf16> to vector<2x8xbf16>
    %cst_82 = arith.constant dense<0.000000e+00> : vector<2x2xf32>
    %229 = tpu.matmul %226, %227, %cst_82 {dimension_numbers = #tpu.dot_dimension_numbers<[1], [1], [0], [0], [0, 0, 1, 0], [], []>} : vector<2x8xbf16>, vector<2x8xbf16>, vector<2x2xf32> -> vector<2x2xf32>
    %cst_83 = arith.constant 0.353553385 : f32
    %230 = vector.broadcast %cst_83 : f32 to vector<2x2xf32>
    %231 = arith.mulf %229, %230 : vector<2x2xf32>
    %cst_84 = arith.constant dense<0xFF800000> : vector<2xf32>
    %232 = vector.multi_reduction <maximumf>, %231, %cst_84 [1] : vector<2x2xf32> to vector<2xf32>
    %233 = vector.shape_cast %232 : vector<2xf32> to vector<2x1xf32>
    %234 = vector.broadcast %233 : vector<2x1xf32> to vector<2x2xf32>
    %235 = arith.subf %231, %234 : vector<2x2xf32>
    %236 = math.exp %235 : vector<2x2xf32>
    %cst_85 = arith.constant dense<0.000000e+00> : vector<2xf32>
    %237 = vector.multi_reduction <add>, %236, %cst_85 [1] : vector<2x2xf32> to vector<2xf32>
    %238 = vector.shape_cast %237 : vector<2xf32> to vector<2x1xf32>
    %239 = tpu.reciprocal %238 {approx = true} : vector<2x1xf32> -> vector<2x1xf32>
    %240 = vector.broadcast %239 : vector<2x1xf32> to vector<2x2xf32>
    %241 = arith.mulf %236, %240 : vector<2x2xf32>
    %242 = arith.truncf %241 : vector<2x2xf32> to vector<2x2xbf16>
    %cst_86 = arith.constant dense<0.000000e+00> : vector<2x8xf32>
    %243 = tpu.matmul %242, %228, %cst_86 {dimension_numbers = #tpu.dot_dimension_numbers<[1], [0], [0], [1], [0, 0, 1, 1], [], []>} : vector<2x2xbf16>, vector<2x8xbf16>, vector<2x8xf32> -> vector<2x8xf32>
    %244 = arith.truncf %243 : vector<2x8xf32> to vector<2x8xbf16>
    %c0_87 = arith.constant 0 : index
    %c2_88 = arith.constant 2 : index
    %c16_89 = arith.constant 16 : index
    %245 = vector.load %arg2[%c0_87, %c2_88, %c16_89] : memref<2x8x32xbf16, #tpu.memory_space<vmem>>, vector<2x1x8xbf16>
    %246 = vector.shape_cast %245 : vector<2x1x8xbf16> to vector<2x8xbf16>
    %247 = vector.shape_cast %244 : vector<2x8xbf16> to vector<2x1x8xbf16>
    tpu.vector_store %arg2[%c0_87, %c2_88, %c16_89], %247 {strides = array<i32>} : memref<2x8x32xbf16, #tpu.memory_space<vmem>>, vector<2x1x8xbf16>,
    %248 = vector.extract_strided_slice %181 {offsets = [0, 24], sizes = [2, 8], strides = [1, 1]} : vector<2x96xbf16> to vector<2x8xbf16>
    %249 = vector.extract_strided_slice %181 {offsets = [0, 56], sizes = [2, 8], strides = [1, 1]} : vector<2x96xbf16> to vector<2x8xbf16>
    %250 = vector.extract_strided_slice %181 {offsets = [0, 88], sizes = [2, 8], strides = [1, 1]} : vector<2x96xbf16> to vector<2x8xbf16>
    %cst_90 = arith.constant dense<0.000000e+00> : vector<2x2xf32>
    %251 = tpu.matmul %248, %249, %cst_90 {dimension_numbers = #tpu.dot_dimension_numbers<[1], [1], [0], [0], [0, 0, 1, 0], [], []>} : vector<2x8xbf16>, vector<2x8xbf16>, vector<2x2xf32> -> vector<2x2xf32>
    %cst_91 = arith.constant 0.353553385 : f32
    %252 = vector.broadcast %cst_91 : f32 to vector<2x2xf32>
    %253 = arith.mulf %251, %252 : vector<2x2xf32>
    %cst_92 = arith.constant dense<0xFF800000> : vector<2xf32>
    %254 = vector.multi_reduction <maximumf>, %253, %cst_92 [1] : vector<2x2xf32> to vector<2xf32>
    %255 = vector.shape_cast %254 : vector<2xf32> to vector<2x1xf32>
    %256 = vector.broadcast %255 : vector<2x1xf32> to vector<2x2xf32>
    %257 = arith.subf %253, %256 : vector<2x2xf32>
    %258 = math.exp %257 : vector<2x2xf32>
    %cst_93 = arith.constant dense<0.000000e+00> : vector<2xf32>
    %259 = vector.multi_reduction <add>, %258, %cst_93 [1] : vector<2x2xf32> to vector<2xf32>
    %260 = vector.shape_cast %259 : vector<2xf32> to vector<2x1xf32>
    %261 = tpu.reciprocal %260 {approx = true} : vector<2x1xf32> -> vector<2x1xf32>
    %262 = vector.broadcast %261 : vector<2x1xf32> to vector<2x2xf32>
    %263 = arith.mulf %258, %262 : vector<2x2xf32>
    %264 = arith.truncf %263 : vector<2x2xf32> to vector<2x2xbf16>
    %cst_94 = arith.constant dense<0.000000e+00> : vector<2x8xf32>
    %265 = tpu.matmul %264, %250, %cst_94 {dimension_numbers = #tpu.dot_dimension_numbers<[1], [0], [0], [1], [0, 0, 1, 1], [], []>} : vector<2x2xbf16>, vector<2x8xbf16>, vector<2x8xf32> -> vector<2x8xf32>
    %266 = arith.truncf %265 : vector<2x8xf32> to vector<2x8xbf16>
    %c0_95 = arith.constant 0 : index
    %c2_96 = arith.constant 2 : index
    %c24_97 = arith.constant 24 : index
    %267 = vector.load %arg2[%c0_95, %c2_96, %c24_97] : memref<2x8x32xbf16, #tpu.memory_space<vmem>>, vector<2x1x8xbf16>
    %268 = vector.shape_cast %267 : vector<2x1x8xbf16> to vector<2x8xbf16>
    %269 = vector.shape_cast %266 : vector<2x8xbf16> to vector<2x1x8xbf16>
    tpu.vector_store %arg2[%c0_95, %c2_96, %c24_97], %269 {strides = array<i32>} : memref<2x8x32xbf16, #tpu.memory_space<vmem>>, vector<2x1x8xbf16>,
    %c0_98 = arith.constant 0 : index
    %c3 = arith.constant 3 : index
    %c0_99 = arith.constant 0 : index
    %270 = vector.load %arg1[%c0_98, %c3, %c0_99] : memref<2x8x96xbf16, #tpu.memory_space<vmem>>, vector<2x1x96xbf16>
    %271 = vector.shape_cast %270 : vector<2x1x96xbf16> to vector<2x96xbf16>
    %272 = vector.extract_strided_slice %271 {offsets = [0, 0], sizes = [2, 8], strides = [1, 1]} : vector<2x96xbf16> to vector<2x8xbf16>
    %273 = vector.extract_strided_slice %271 {offsets = [0, 32], sizes = [2, 8], strides = [1, 1]} : vector<2x96xbf16> to vector<2x8xbf16>
    %274 = vector.extract_strided_slice %271 {offsets = [0, 64], sizes = [2, 8], strides = [1, 1]} : vector<2x96xbf16> to vector<2x8xbf16>
    %cst_100 = arith.constant dense<0.000000e+00> : vector<2x2xf32>
    %275 = tpu.matmul %272, %273, %cst_100 {dimension_numbers = #tpu.dot_dimension_numbers<[1], [1], [0], [0], [0, 0, 1, 0], [], []>} : vector<2x8xbf16>, vector<2x8xbf16>, vector<2x2xf32> -> vector<2x2xf32>
    %cst_101 = arith.constant 0.353553385 : f32
    %276 = vector.broadcast %cst_101 : f32 to vector<2x2xf32>
    %277 = arith.mulf %275, %276 : vector<2x2xf32>
    %cst_102 = arith.constant dense<0xFF800000> : vector<2xf32>
    %278 = vector.multi_reduction <maximumf>, %277, %cst_102 [1] : vector<2x2xf32> to vector<2xf32>
    %279 = vector.shape_cast %278 : vector<2xf32> to vector<2x1xf32>
    %280 = vector.broadcast %279 : vector<2x1xf32> to vector<2x2xf32>
    %281 = arith.subf %277, %280 : vector<2x2xf32>
    %282 = math.exp %281 : vector<2x2xf32>
    %cst_103 = arith.constant dense<0.000000e+00> : vector<2xf32>
    %283 = vector.multi_reduction <add>, %282, %cst_103 [1] : vector<2x2xf32> to vector<2xf32>
    %284 = vector.shape_cast %283 : vector<2xf32> to vector<2x1xf32>
    %285 = tpu.reciprocal %284 {approx = true} : vector<2x1xf32> -> vector<2x1xf32>
    %286 = vector.broadcast %285 : vector<2x1xf32> to vector<2x2xf32>
    %287 = arith.mulf %282, %286 : vector<2x2xf32>
    %288 = arith.truncf %287 : vector<2x2xf32> to vector<2x2xbf16>
    %cst_104 = arith.constant dense<0.000000e+00> : vector<2x8xf32>
    %289 = tpu.matmul %288, %274, %cst_104 {dimension_numbers = #tpu.dot_dimension_numbers<[1], [0], [0], [1], [0, 0, 1, 1], [], []>} : vector<2x2xbf16>, vector<2x8xbf16>, vector<2x8xf32> -> vector<2x8xf32>
    %290 = arith.truncf %289 : vector<2x8xf32> to vector<2x8xbf16>
    %c0_105 = arith.constant 0 : index
    %c3_106 = arith.constant 3 : index
    %c0_107 = arith.constant 0 : index
    %291 = vector.load %arg2[%c0_105, %c3_106, %c0_107] : memref<2x8x32xbf16, #tpu.memory_space<vmem>>, vector<2x1x8xbf16>
    %292 = vector.shape_cast %291 : vector<2x1x8xbf16> to vector<2x8xbf16>
    %293 = vector.shape_cast %290 : vector<2x8xbf16> to vector<2x1x8xbf16>
    tpu.vector_store %arg2[%c0_105, %c3_106, %c0_107], %293 {strides = array<i32>} : memref<2x8x32xbf16, #tpu.memory_space<vmem>>, vector<2x1x8xbf16>,
    %294 = vector.extract_strided_slice %271 {offsets = [0, 8], sizes = [2, 8], strides = [1, 1]} : vector<2x96xbf16> to vector<2x8xbf16>
    %295 = vector.extract_strided_slice %271 {offsets = [0, 40], sizes = [2, 8], strides = [1, 1]} : vector<2x96xbf16> to vector<2x8xbf16>
    %296 = vector.extract_strided_slice %271 {offsets = [0, 72], sizes = [2, 8], strides = [1, 1]} : vector<2x96xbf16> to vector<2x8xbf16>
    %cst_108 = arith.constant dense<0.000000e+00> : vector<2x2xf32>
    %297 = tpu.matmul %294, %295, %cst_108 {dimension_numbers = #tpu.dot_dimension_numbers<[1], [1], [0], [0], [0, 0, 1, 0], [], []>} : vector<2x8xbf16>, vector<2x8xbf16>, vector<2x2xf32> -> vector<2x2xf32>
    %cst_109 = arith.constant 0.353553385 : f32
    %298 = vector.broadcast %cst_109 : f32 to vector<2x2xf32>
    %299 = arith.mulf %297, %298 : vector<2x2xf32>
    %cst_110 = arith.constant dense<0xFF800000> : vector<2xf32>
    %300 = vector.multi_reduction <maximumf>, %299, %cst_110 [1] : vector<2x2xf32> to vector<2xf32>
    %301 = vector.shape_cast %300 : vector<2xf32> to vector<2x1xf32>
    %302 = vector.broadcast %301 : vector<2x1xf32> to vector<2x2xf32>
    %303 = arith.subf %299, %302 : vector<2x2xf32>
    %304 = math.exp %303 : vector<2x2xf32>
    %cst_111 = arith.constant dense<0.000000e+00> : vector<2xf32>
    %305 = vector.multi_reduction <add>, %304, %cst_111 [1] : vector<2x2xf32> to vector<2xf32>
    %306 = vector.shape_cast %305 : vector<2xf32> to vector<2x1xf32>
    %307 = tpu.reciprocal %306 {approx = true} : vector<2x1xf32> -> vector<2x1xf32>
    %308 = vector.broadcast %307 : vector<2x1xf32> to vector<2x2xf32>
    %309 = arith.mulf %304, %308 : vector<2x2xf32>
    %310 = arith.truncf %309 : vector<2x2xf32> to vector<2x2xbf16>
    %cst_112 = arith.constant dense<0.000000e+00> : vector<2x8xf32>
    %311 = tpu.matmul %310, %296, %cst_112 {dimension_numbers = #tpu.dot_dimension_numbers<[1], [0], [0], [1], [0, 0, 1, 1], [], []>} : vector<2x2xbf16>, vector<2x8xbf16>, vector<2x8xf32> -> vector<2x8xf32>
    %312 = arith.truncf %311 : vector<2x8xf32> to vector<2x8xbf16>
    %c0_113 = arith.constant 0 : index
    %c3_114 = arith.constant 3 : index
    %c8_115 = arith.constant 8 : index
    %313 = vector.load %arg2[%c0_113, %c3_114, %c8_115] : memref<2x8x32xbf16, #tpu.memory_space<vmem>>, vector<2x1x8xbf16>
    %314 = vector.shape_cast %313 : vector<2x1x8xbf16> to vector<2x8xbf16>
    %315 = vector.shape_cast %312 : vector<2x8xbf16> to vector<2x1x8xbf16>
    tpu.vector_store %arg2[%c0_113, %c3_114, %c8_115], %315 {strides = array<i32>} : memref<2x8x32xbf16, #tpu.memory_space<vmem>>, vector<2x1x8xbf16>,
    %316 = vector.extract_strided_slice %271 {offsets = [0, 16], sizes = [2, 8], strides = [1, 1]} : vector<2x96xbf16> to vector<2x8xbf16>
    %317 = vector.extract_strided_slice %271 {offsets = [0, 48], sizes = [2, 8], strides = [1, 1]} : vector<2x96xbf16> to vector<2x8xbf16>
    %318 = vector.extract_strided_slice %271 {offsets = [0, 80], sizes = [2, 8], strides = [1, 1]} : vector<2x96xbf16> to vector<2x8xbf16>
    %cst_116 = arith.constant dense<0.000000e+00> : vector<2x2xf32>
    %319 = tpu.matmul %316, %317, %cst_116 {dimension_numbers = #tpu.dot_dimension_numbers<[1], [1], [0], [0], [0, 0, 1, 0], [], []>} : vector<2x8xbf16>, vector<2x8xbf16>, vector<2x2xf32> -> vector<2x2xf32>
    %cst_117 = arith.constant 0.353553385 : f32
    %320 = vector.broadcast %cst_117 : f32 to vector<2x2xf32>
    %321 = arith.mulf %319, %320 : vector<2x2xf32>
    %cst_118 = arith.constant dense<0xFF800000> : vector<2xf32>
    %322 = vector.multi_reduction <maximumf>, %321, %cst_118 [1] : vector<2x2xf32> to vector<2xf32>
    %323 = vector.shape_cast %322 : vector<2xf32> to vector<2x1xf32>
    %324 = vector.broadcast %323 : vector<2x1xf32> to vector<2x2xf32>
    %325 = arith.subf %321, %324 : vector<2x2xf32>
    %326 = math.exp %325 : vector<2x2xf32>
    %cst_119 = arith.constant dense<0.000000e+00> : vector<2xf32>
    %327 = vector.multi_reduction <add>, %326, %cst_119 [1] : vector<2x2xf32> to vector<2xf32>
    %328 = vector.shape_cast %327 : vector<2xf32> to vector<2x1xf32>
    %329 = tpu.reciprocal %328 {approx = true} : vector<2x1xf32> -> vector<2x1xf32>
    %330 = vector.broadcast %329 : vector<2x1xf32> to vector<2x2xf32>
    %331 = arith.mulf %326, %330 : vector<2x2xf32>
    %332 = arith.truncf %331 : vector<2x2xf32> to vector<2x2xbf16>
    %cst_120 = arith.constant dense<0.000000e+00> : vector<2x8xf32>
    %333 = tpu.matmul %332, %318, %cst_120 {dimension_numbers = #tpu.dot_dimension_numbers<[1], [0], [0], [1], [0, 0, 1, 1], [], []>} : vector<2x2xbf16>, vector<2x8xbf16>, vector<2x8xf32> -> vector<2x8xf32>
    %334 = arith.truncf %333 : vector<2x8xf32> to vector<2x8xbf16>
    %c0_121 = arith.constant 0 : index
    %c3_122 = arith.constant 3 : index
    %c16_123 = arith.constant 16 : index
    %335 = vector.load %arg2[%c0_121, %c3_122, %c16_123] : memref<2x8x32xbf16, #tpu.memory_space<vmem>>, vector<2x1x8xbf16>
    %336 = vector.shape_cast %335 : vector<2x1x8xbf16> to vector<2x8xbf16>
    %337 = vector.shape_cast %334 : vector<2x8xbf16> to vector<2x1x8xbf16>
    tpu.vector_store %arg2[%c0_121, %c3_122, %c16_123], %337 {strides = array<i32>} : memref<2x8x32xbf16, #tpu.memory_space<vmem>>, vector<2x1x8xbf16>,
    %338 = vector.extract_strided_slice %271 {offsets = [0, 24], sizes = [2, 8], strides = [1, 1]} : vector<2x96xbf16> to vector<2x8xbf16>
    %339 = vector.extract_strided_slice %271 {offsets = [0, 56], sizes = [2, 8], strides = [1, 1]} : vector<2x96xbf16> to vector<2x8xbf16>
    %340 = vector.extract_strided_slice %271 {offsets = [0, 88], sizes = [2, 8], strides = [1, 1]} : vector<2x96xbf16> to vector<2x8xbf16>
    %cst_124 = arith.constant dense<0.000000e+00> : vector<2x2xf32>
    %341 = tpu.matmul %338, %339, %cst_124 {dimension_numbers = #tpu.dot_dimension_numbers<[1], [1], [0], [0], [0, 0, 1, 0], [], []>} : vector<2x8xbf16>, vector<2x8xbf16>, vector<2x2xf32> -> vector<2x2xf32>
    %cst_125 = arith.constant 0.353553385 : f32
    %342 = vector.broadcast %cst_125 : f32 to vector<2x2xf32>
    %343 = arith.mulf %341, %342 : vector<2x2xf32>
    %cst_126 = arith.constant dense<0xFF800000> : vector<2xf32>
    %344 = vector.multi_reduction <maximumf>, %343, %cst_126 [1] : vector<2x2xf32> to vector<2xf32>
    %345 = vector.shape_cast %344 : vector<2xf32> to vector<2x1xf32>
    %346 = vector.broadcast %345 : vector<2x1xf32> to vector<2x2xf32>
    %347 = arith.subf %343, %346 : vector<2x2xf32>
    %348 = math.exp %347 : vector<2x2xf32>
    %cst_127 = arith.constant dense<0.000000e+00> : vector<2xf32>
    %349 = vector.multi_reduction <add>, %348, %cst_127 [1] : vector<2x2xf32> to vector<2xf32>
    %350 = vector.shape_cast %349 : vector<2xf32> to vector<2x1xf32>
    %351 = tpu.reciprocal %350 {approx = true} : vector<2x1xf32> -> vector<2x1xf32>
    %352 = vector.broadcast %351 : vector<2x1xf32> to vector<2x2xf32>
    %353 = arith.mulf %348, %352 : vector<2x2xf32>
    %354 = arith.truncf %353 : vector<2x2xf32> to vector<2x2xbf16>
    %cst_128 = arith.constant dense<0.000000e+00> : vector<2x8xf32>
    %355 = tpu.matmul %354, %340, %cst_128 {dimension_numbers = #tpu.dot_dimension_numbers<[1], [0], [0], [1], [0, 0, 1, 1], [], []>} : vector<2x2xbf16>, vector<2x8xbf16>, vector<2x8xf32> -> vector<2x8xf32>
    %356 = arith.truncf %355 : vector<2x8xf32> to vector<2x8xbf16>
    %c0_129 = arith.constant 0 : index
    %c3_130 = arith.constant 3 : index
    %c24_131 = arith.constant 24 : index
    %357 = vector.load %arg2[%c0_129, %c3_130, %c24_131] : memref<2x8x32xbf16, #tpu.memory_space<vmem>>, vector<2x1x8xbf16>
    %358 = vector.shape_cast %357 : vector<2x1x8xbf16> to vector<2x8xbf16>
    %359 = vector.shape_cast %356 : vector<2x8xbf16> to vector<2x1x8xbf16>
    tpu.vector_store %arg2[%c0_129, %c3_130, %c24_131], %359 {strides = array<i32>} : memref<2x8x32xbf16, #tpu.memory_space<vmem>>, vector<2x1x8xbf16>,
    %c0_132 = arith.constant 0 : index
    %c4 = arith.constant 4 : index
    %c0_133 = arith.constant 0 : index
    %360 = vector.load %arg1[%c0_132, %c4, %c0_133] : memref<2x8x96xbf16, #tpu.memory_space<vmem>>, vector<2x1x96xbf16>
    %361 = vector.shape_cast %360 : vector<2x1x96xbf16> to vector<2x96xbf16>
    %362 = vector.extract_strided_slice %361 {offsets = [0, 0], sizes = [2, 8], strides = [1, 1]} : vector<2x96xbf16> to vector<2x8xbf16>
    %363 = vector.extract_strided_slice %361 {offsets = [0, 32], sizes = [2, 8], strides = [1, 1]} : vector<2x96xbf16> to vector<2x8xbf16>
    %364 = vector.extract_strided_slice %361 {offsets = [0, 64], sizes = [2, 8], strides = [1, 1]} : vector<2x96xbf16> to vector<2x8xbf16>
    %cst_134 = arith.constant dense<0.000000e+00> : vector<2x2xf32>
    %365 = tpu.matmul %362, %363, %cst_134 {dimension_numbers = #tpu.dot_dimension_numbers<[1], [1], [0], [0], [0, 0, 1, 0], [], []>} : vector<2x8xbf16>, vector<2x8xbf16>, vector<2x2xf32> -> vector<2x2xf32>
    %cst_135 = arith.constant 0.353553385 : f32
    %366 = vector.broadcast %cst_135 : f32 to vector<2x2xf32>
    %367 = arith.mulf %365, %366 : vector<2x2xf32>
    %cst_136 = arith.constant dense<0xFF800000> : vector<2xf32>
    %368 = vector.multi_reduction <maximumf>, %367, %cst_136 [1] : vector<2x2xf32> to vector<2xf32>
    %369 = vector.shape_cast %368 : vector<2xf32> to vector<2x1xf32>
    %370 = vector.broadcast %369 : vector<2x1xf32> to vector<2x2xf32>
    %371 = arith.subf %367, %370 : vector<2x2xf32>
    %372 = math.exp %371 : vector<2x2xf32>
    %cst_137 = arith.constant dense<0.000000e+00> : vector<2xf32>
    %373 = vector.multi_reduction <add>, %372, %cst_137 [1] : vector<2x2xf32> to vector<2xf32>
    %374 = vector.shape_cast %373 : vector<2xf32> to vector<2x1xf32>
    %375 = tpu.reciprocal %374 {approx = true} : vector<2x1xf32> -> vector<2x1xf32>
    %376 = vector.broadcast %375 : vector<2x1xf32> to vector<2x2xf32>
    %377 = arith.mulf %372, %376 : vector<2x2xf32>
    %378 = arith.truncf %377 : vector<2x2xf32> to vector<2x2xbf16>
    %cst_138 = arith.constant dense<0.000000e+00> : vector<2x8xf32>
    %379 = tpu.matmul %378, %364, %cst_138 {dimension_numbers = #tpu.dot_dimension_numbers<[1], [0], [0], [1], [0, 0, 1, 1], [], []>} : vector<2x2xbf16>, vector<2x8xbf16>, vector<2x8xf32> -> vector<2x8xf32>
    %380 = arith.truncf %379 : vector<2x8xf32> to vector<2x8xbf16>
    %c0_139 = arith.constant 0 : index
    %c4_140 = arith.constant 4 : index
    %c0_141 = arith.constant 0 : index
    %381 = vector.load %arg2[%c0_139, %c4_140, %c0_141] : memref<2x8x32xbf16, #tpu.memory_space<vmem>>, vector<2x1x8xbf16>
    %382 = vector.shape_cast %381 : vector<2x1x8xbf16> to vector<2x8xbf16>
    %383 = vector.shape_cast %380 : vector<2x8xbf16> to vector<2x1x8xbf16>
    tpu.vector_store %arg2[%c0_139, %c4_140, %c0_141], %383 {strides = array<i32>} : memref<2x8x32xbf16, #tpu.memory_space<vmem>>, vector<2x1x8xbf16>,
    %384 = vector.extract_strided_slice %361 {offsets = [0, 8], sizes = [2, 8], strides = [1, 1]} : vector<2x96xbf16> to vector<2x8xbf16>
    %385 = vector.extract_strided_slice %361 {offsets = [0, 40], sizes = [2, 8], strides = [1, 1]} : vector<2x96xbf16> to vector<2x8xbf16>
    %386 = vector.extract_strided_slice %361 {offsets = [0, 72], sizes = [2, 8], strides = [1, 1]} : vector<2x96xbf16> to vector<2x8xbf16>
    %cst_142 = arith.constant dense<0.000000e+00> : vector<2x2xf32>
    %387 = tpu.matmul %384, %385, %cst_142 {dimension_numbers = #tpu.dot_dimension_numbers<[1], [1], [0], [0], [0, 0, 1, 0], [], []>} : vector<2x8xbf16>, vector<2x8xbf16>, vector<2x2xf32> -> vector<2x2xf32>
    %cst_143 = arith.constant 0.353553385 : f32
    %388 = vector.broadcast %cst_143 : f32 to vector<2x2xf32>
    %389 = arith.mulf %387, %388 : vector<2x2xf32>
    %cst_144 = arith.constant dense<0xFF800000> : vector<2xf32>
    %390 = vector.multi_reduction <maximumf>, %389, %cst_144 [1] : vector<2x2xf32> to vector<2xf32>
    %391 = vector.shape_cast %390 : vector<2xf32> to vector<2x1xf32>
    %392 = vector.broadcast %391 : vector<2x1xf32> to vector<2x2xf32>
    %393 = arith.subf %389, %392 : vector<2x2xf32>
    %394 = math.exp %393 : vector<2x2xf32>
    %cst_145 = arith.constant dense<0.000000e+00> : vector<2xf32>
    %395 = vector.multi_reduction <add>, %394, %cst_145 [1] : vector<2x2xf32> to vector<2xf32>
    %396 = vector.shape_cast %395 : vector<2xf32> to vector<2x1xf32>
    %397 = tpu.reciprocal %396 {approx = true} : vector<2x1xf32> -> vector<2x1xf32>
    %398 = vector.broadcast %397 : vector<2x1xf32> to vector<2x2xf32>
    %399 = arith.mulf %394, %398 : vector<2x2xf32>
    %400 = arith.truncf %399 : vector<2x2xf32> to vector<2x2xbf16>
    %cst_146 = arith.constant dense<0.000000e+00> : vector<2x8xf32>
    %401 = tpu.matmul %400, %386, %cst_146 {dimension_numbers = #tpu.dot_dimension_numbers<[1], [0], [0], [1], [0, 0, 1, 1], [], []>} : vector<2x2xbf16>, vector<2x8xbf16>, vector<2x8xf32> -> vector<2x8xf32>
    %402 = arith.truncf %401 : vector<2x8xf32> to vector<2x8xbf16>
    %c0_147 = arith.constant 0 : index
    %c4_148 = arith.constant 4 : index
    %c8_149 = arith.constant 8 : index
    %403 = vector.load %arg2[%c0_147, %c4_148, %c8_149] : memref<2x8x32xbf16, #tpu.memory_space<vmem>>, vector<2x1x8xbf16>
    %404 = vector.shape_cast %403 : vector<2x1x8xbf16> to vector<2x8xbf16>
    %405 = vector.shape_cast %402 : vector<2x8xbf16> to vector<2x1x8xbf16>
    tpu.vector_store %arg2[%c0_147, %c4_148, %c8_149], %405 {strides = array<i32>} : memref<2x8x32xbf16, #tpu.memory_space<vmem>>, vector<2x1x8xbf16>,
    %406 = vector.extract_strided_slice %361 {offsets = [0, 16], sizes = [2, 8], strides = [1, 1]} : vector<2x96xbf16> to vector<2x8xbf16>
    %407 = vector.extract_strided_slice %361 {offsets = [0, 48], sizes = [2, 8], strides = [1, 1]} : vector<2x96xbf16> to vector<2x8xbf16>
    %408 = vector.extract_strided_slice %361 {offsets = [0, 80], sizes = [2, 8], strides = [1, 1]} : vector<2x96xbf16> to vector<2x8xbf16>
    %cst_150 = arith.constant dense<0.000000e+00> : vector<2x2xf32>
    %409 = tpu.matmul %406, %407, %cst_150 {dimension_numbers = #tpu.dot_dimension_numbers<[1], [1], [0], [0], [0, 0, 1, 0], [], []>} : vector<2x8xbf16>, vector<2x8xbf16>, vector<2x2xf32> -> vector<2x2xf32>
    %cst_151 = arith.constant 0.353553385 : f32
    %410 = vector.broadcast %cst_151 : f32 to vector<2x2xf32>
    %411 = arith.mulf %409, %410 : vector<2x2xf32>
    %cst_152 = arith.constant dense<0xFF800000> : vector<2xf32>
    %412 = vector.multi_reduction <maximumf>, %411, %cst_152 [1] : vector<2x2xf32> to vector<2xf32>
    %413 = vector.shape_cast %412 : vector<2xf32> to vector<2x1xf32>
    %414 = vector.broadcast %413 : vector<2x1xf32> to vector<2x2xf32>
    %415 = arith.subf %411, %414 : vector<2x2xf32>
    %416 = math.exp %415 : vector<2x2xf32>
    %cst_153 = arith.constant dense<0.000000e+00> : vector<2xf32>
    %417 = vector.multi_reduction <add>, %416, %cst_153 [1] : vector<2x2xf32> to vector<2xf32>
    %418 = vector.shape_cast %417 : vector<2xf32> to vector<2x1xf32>
    %419 = tpu.reciprocal %418 {approx = true} : vector<2x1xf32> -> vector<2x1xf32>
    %420 = vector.broadcast %419 : vector<2x1xf32> to vector<2x2xf32>
    %421 = arith.mulf %416, %420 : vector<2x2xf32>
    %422 = arith.truncf %421 : vector<2x2xf32> to vector<2x2xbf16>
    %cst_154 = arith.constant dense<0.000000e+00> : vector<2x8xf32>
    %423 = tpu.matmul %422, %408, %cst_154 {dimension_numbers = #tpu.dot_dimension_numbers<[1], [0], [0], [1], [0, 0, 1, 1], [], []>} : vector<2x2xbf16>, vector<2x8xbf16>, vector<2x8xf32> -> vector<2x8xf32>
    %424 = arith.truncf %423 : vector<2x8xf32> to vector<2x8xbf16>
    %c0_155 = arith.constant 0 : index
    %c4_156 = arith.constant 4 : index
    %c16_157 = arith.constant 16 : index
    %425 = vector.load %arg2[%c0_155, %c4_156, %c16_157] : memref<2x8x32xbf16, #tpu.memory_space<vmem>>, vector<2x1x8xbf16>
    %426 = vector.shape_cast %425 : vector<2x1x8xbf16> to vector<2x8xbf16>
    %427 = vector.shape_cast %424 : vector<2x8xbf16> to vector<2x1x8xbf16>
    tpu.vector_store %arg2[%c0_155, %c4_156, %c16_157], %427 {strides = array<i32>} : memref<2x8x32xbf16, #tpu.memory_space<vmem>>, vector<2x1x8xbf16>,
    %428 = vector.extract_strided_slice %361 {offsets = [0, 24], sizes = [2, 8], strides = [1, 1]} : vector<2x96xbf16> to vector<2x8xbf16>
    %429 = vector.extract_strided_slice %361 {offsets = [0, 56], sizes = [2, 8], strides = [1, 1]} : vector<2x96xbf16> to vector<2x8xbf16>
    %430 = vector.extract_strided_slice %361 {offsets = [0, 88], sizes = [2, 8], strides = [1, 1]} : vector<2x96xbf16> to vector<2x8xbf16>
    %cst_158 = arith.constant dense<0.000000e+00> : vector<2x2xf32>
    %431 = tpu.matmul %428, %429, %cst_158 {dimension_numbers = #tpu.dot_dimension_numbers<[1], [1], [0], [0], [0, 0, 1, 0], [], []>} : vector<2x8xbf16>, vector<2x8xbf16>, vector<2x2xf32> -> vector<2x2xf32>
    %cst_159 = arith.constant 0.353553385 : f32
    %432 = vector.broadcast %cst_159 : f32 to vector<2x2xf32>
    %433 = arith.mulf %431, %432 : vector<2x2xf32>
    %cst_160 = arith.constant dense<0xFF800000> : vector<2xf32>
    %434 = vector.multi_reduction <maximumf>, %433, %cst_160 [1] : vector<2x2xf32> to vector<2xf32>
    %435 = vector.shape_cast %434 : vector<2xf32> to vector<2x1xf32>
    %436 = vector.broadcast %435 : vector<2x1xf32> to vector<2x2xf32>
    %437 = arith.subf %433, %436 : vector<2x2xf32>
    %438 = math.exp %437 : vector<2x2xf32>
    %cst_161 = arith.constant dense<0.000000e+00> : vector<2xf32>
    %439 = vector.multi_reduction <add>, %438, %cst_161 [1] : vector<2x2xf32> to vector<2xf32>
    %440 = vector.shape_cast %439 : vector<2xf32> to vector<2x1xf32>
    %441 = tpu.reciprocal %440 {approx = true} : vector<2x1xf32> -> vector<2x1xf32>
    %442 = vector.broadcast %441 : vector<2x1xf32> to vector<2x2xf32>
    %443 = arith.mulf %438, %442 : vector<2x2xf32>
    %444 = arith.truncf %443 : vector<2x2xf32> to vector<2x2xbf16>
    %cst_162 = arith.constant dense<0.000000e+00> : vector<2x8xf32>
    %445 = tpu.matmul %444, %430, %cst_162 {dimension_numbers = #tpu.dot_dimension_numbers<[1], [0], [0], [1], [0, 0, 1, 1], [], []>} : vector<2x2xbf16>, vector<2x8xbf16>, vector<2x8xf32> -> vector<2x8xf32>
    %446 = arith.truncf %445 : vector<2x8xf32> to vector<2x8xbf16>
    %c0_163 = arith.constant 0 : index
    %c4_164 = arith.constant 4 : index
    %c24_165 = arith.constant 24 : index
    %447 = vector.load %arg2[%c0_163, %c4_164, %c24_165] : memref<2x8x32xbf16, #tpu.memory_space<vmem>>, vector<2x1x8xbf16>
    %448 = vector.shape_cast %447 : vector<2x1x8xbf16> to vector<2x8xbf16>
    %449 = vector.shape_cast %446 : vector<2x8xbf16> to vector<2x1x8xbf16>
    tpu.vector_store %arg2[%c0_163, %c4_164, %c24_165], %449 {strides = array<i32>} : memref<2x8x32xbf16, #tpu.memory_space<vmem>>, vector<2x1x8xbf16>,
    %c0_166 = arith.constant 0 : index
    %c5 = arith.constant 5 : index
    %c0_167 = arith.constant 0 : index
    %450 = vector.load %arg1[%c0_166, %c5, %c0_167] : memref<2x8x96xbf16, #tpu.memory_space<vmem>>, vector<2x1x96xbf16>
    %451 = vector.shape_cast %450 : vector<2x1x96xbf16> to vector<2x96xbf16>
    %452 = vector.extract_strided_slice %451 {offsets = [0, 0], sizes = [2, 8], strides = [1, 1]} : vector<2x96xbf16> to vector<2x8xbf16>
    %453 = vector.extract_strided_slice %451 {offsets = [0, 32], sizes = [2, 8], strides = [1, 1]} : vector<2x96xbf16> to vector<2x8xbf16>
    %454 = vector.extract_strided_slice %451 {offsets = [0, 64], sizes = [2, 8], strides = [1, 1]} : vector<2x96xbf16> to vector<2x8xbf16>
    %cst_168 = arith.constant dense<0.000000e+00> : vector<2x2xf32>
    %455 = tpu.matmul %452, %453, %cst_168 {dimension_numbers = #tpu.dot_dimension_numbers<[1], [1], [0], [0], [0, 0, 1, 0], [], []>} : vector<2x8xbf16>, vector<2x8xbf16>, vector<2x2xf32> -> vector<2x2xf32>
    %cst_169 = arith.constant 0.353553385 : f32
    %456 = vector.broadcast %cst_169 : f32 to vector<2x2xf32>
    %457 = arith.mulf %455, %456 : vector<2x2xf32>
    %cst_170 = arith.constant dense<0xFF800000> : vector<2xf32>
    %458 = vector.multi_reduction <maximumf>, %457, %cst_170 [1] : vector<2x2xf32> to vector<2xf32>
    %459 = vector.shape_cast %458 : vector<2xf32> to vector<2x1xf32>
    %460 = vector.broadcast %459 : vector<2x1xf32> to vector<2x2xf32>
    %461 = arith.subf %457, %460 : vector<2x2xf32>
    %462 = math.exp %461 : vector<2x2xf32>
    %cst_171 = arith.constant dense<0.000000e+00> : vector<2xf32>
    %463 = vector.multi_reduction <add>, %462, %cst_171 [1] : vector<2x2xf32> to vector<2xf32>
    %464 = vector.shape_cast %463 : vector<2xf32> to vector<2x1xf32>
    %465 = tpu.reciprocal %464 {approx = true} : vector<2x1xf32> -> vector<2x1xf32>
    %466 = vector.broadcast %465 : vector<2x1xf32> to vector<2x2xf32>
    %467 = arith.mulf %462, %466 : vector<2x2xf32>
    %468 = arith.truncf %467 : vector<2x2xf32> to vector<2x2xbf16>
    %cst_172 = arith.constant dense<0.000000e+00> : vector<2x8xf32>
    %469 = tpu.matmul %468, %454, %cst_172 {dimension_numbers = #tpu.dot_dimension_numbers<[1], [0], [0], [1], [0, 0, 1, 1], [], []>} : vector<2x2xbf16>, vector<2x8xbf16>, vector<2x8xf32> -> vector<2x8xf32>
    %470 = arith.truncf %469 : vector<2x8xf32> to vector<2x8xbf16>
    %c0_173 = arith.constant 0 : index
    %c5_174 = arith.constant 5 : index
    %c0_175 = arith.constant 0 : index
    %471 = vector.load %arg2[%c0_173, %c5_174, %c0_175] : memref<2x8x32xbf16, #tpu.memory_space<vmem>>, vector<2x1x8xbf16>
    %472 = vector.shape_cast %471 : vector<2x1x8xbf16> to vector<2x8xbf16>
    %473 = vector.shape_cast %470 : vector<2x8xbf16> to vector<2x1x8xbf16>
    tpu.vector_store %arg2[%c0_173, %c5_174, %c0_175], %473 {strides = array<i32>} : memref<2x8x32xbf16, #tpu.memory_space<vmem>>, vector<2x1x8xbf16>,
    %474 = vector.extract_strided_slice %451 {offsets = [0, 8], sizes = [2, 8], strides = [1, 1]} : vector<2x96xbf16> to vector<2x8xbf16>
    %475 = vector.extract_strided_slice %451 {offsets = [0, 40], sizes = [2, 8], strides = [1, 1]} : vector<2x96xbf16> to vector<2x8xbf16>
    %476 = vector.extract_strided_slice %451 {offsets = [0, 72], sizes = [2, 8], strides = [1, 1]} : vector<2x96xbf16> to vector<2x8xbf16>
    %cst_176 = arith.constant dense<0.000000e+00> : vector<2x2xf32>
    %477 = tpu.matmul %474, %475, %cst_176 {dimension_numbers = #tpu.dot_dimension_numbers<[1], [1], [0], [0], [0, 0, 1, 0], [], []>} : vector<2x8xbf16>, vector<2x8xbf16>, vector<2x2xf32> -> vector<2x2xf32>
    %cst_177 = arith.constant 0.353553385 : f32
    %478 = vector.broadcast %cst_177 : f32 to vector<2x2xf32>
    %479 = arith.mulf %477, %478 : vector<2x2xf32>
    %cst_178 = arith.constant dense<0xFF800000> : vector<2xf32>
    %480 = vector.multi_reduction <maximumf>, %479, %cst_178 [1] : vector<2x2xf32> to vector<2xf32>
    %481 = vector.shape_cast %480 : vector<2xf32> to vector<2x1xf32>
    %482 = vector.broadcast %481 : vector<2x1xf32> to vector<2x2xf32>
    %483 = arith.subf %479, %482 : vector<2x2xf32>
    %484 = math.exp %483 : vector<2x2xf32>
    %cst_179 = arith.constant dense<0.000000e+00> : vector<2xf32>
    %485 = vector.multi_reduction <add>, %484, %cst_179 [1] : vector<2x2xf32> to vector<2xf32>
    %486 = vector.shape_cast %485 : vector<2xf32> to vector<2x1xf32>
    %487 = tpu.reciprocal %486 {approx = true} : vector<2x1xf32> -> vector<2x1xf32>
    %488 = vector.broadcast %487 : vector<2x1xf32> to vector<2x2xf32>
    %489 = arith.mulf %484, %488 : vector<2x2xf32>
    %490 = arith.truncf %489 : vector<2x2xf32> to vector<2x2xbf16>
    %cst_180 = arith.constant dense<0.000000e+00> : vector<2x8xf32>
    %491 = tpu.matmul %490, %476, %cst_180 {dimension_numbers = #tpu.dot_dimension_numbers<[1], [0], [0], [1], [0, 0, 1, 1], [], []>} : vector<2x2xbf16>, vector<2x8xbf16>, vector<2x8xf32> -> vector<2x8xf32>
    %492 = arith.truncf %491 : vector<2x8xf32> to vector<2x8xbf16>
    %c0_181 = arith.constant 0 : index
    %c5_182 = arith.constant 5 : index
    %c8_183 = arith.constant 8 : index
    %493 = vector.load %arg2[%c0_181, %c5_182, %c8_183] : memref<2x8x32xbf16, #tpu.memory_space<vmem>>, vector<2x1x8xbf16>
    %494 = vector.shape_cast %493 : vector<2x1x8xbf16> to vector<2x8xbf16>
    %495 = vector.shape_cast %492 : vector<2x8xbf16> to vector<2x1x8xbf16>
    tpu.vector_store %arg2[%c0_181, %c5_182, %c8_183], %495 {strides = array<i32>} : memref<2x8x32xbf16, #tpu.memory_space<vmem>>, vector<2x1x8xbf16>,
    %496 = vector.extract_strided_slice %451 {offsets = [0, 16], sizes = [2, 8], strides = [1, 1]} : vector<2x96xbf16> to vector<2x8xbf16>
    %497 = vector.extract_strided_slice %451 {offsets = [0, 48], sizes = [2, 8], strides = [1, 1]} : vector<2x96xbf16> to vector<2x8xbf16>
    %498 = vector.extract_strided_slice %451 {offsets = [0, 80], sizes = [2, 8], strides = [1, 1]} : vector<2x96xbf16> to vector<2x8xbf16>
    %cst_184 = arith.constant dense<0.000000e+00> : vector<2x2xf32>
    %499 = tpu.matmul %496, %497, %cst_184 {dimension_numbers = #tpu.dot_dimension_numbers<[1], [1], [0], [0], [0, 0, 1, 0], [], []>} : vector<2x8xbf16>, vector<2x8xbf16>, vector<2x2xf32> -> vector<2x2xf32>
    %cst_185 = arith.constant 0.353553385 : f32
    %500 = vector.broadcast %cst_185 : f32 to vector<2x2xf32>
    %501 = arith.mulf %499, %500 : vector<2x2xf32>
    %cst_186 = arith.constant dense<0xFF800000> : vector<2xf32>
    %502 = vector.multi_reduction <maximumf>, %501, %cst_186 [1] : vector<2x2xf32> to vector<2xf32>
    %503 = vector.shape_cast %502 : vector<2xf32> to vector<2x1xf32>
    %504 = vector.broadcast %503 : vector<2x1xf32> to vector<2x2xf32>
    %505 = arith.subf %501, %504 : vector<2x2xf32>
    %506 = math.exp %505 : vector<2x2xf32>
    %cst_187 = arith.constant dense<0.000000e+00> : vector<2xf32>
    %507 = vector.multi_reduction <add>, %506, %cst_187 [1] : vector<2x2xf32> to vector<2xf32>
    %508 = vector.shape_cast %507 : vector<2xf32> to vector<2x1xf32>
    %509 = tpu.reciprocal %508 {approx = true} : vector<2x1xf32> -> vector<2x1xf32>
    %510 = vector.broadcast %509 : vector<2x1xf32> to vector<2x2xf32>
    %511 = arith.mulf %506, %510 : vector<2x2xf32>
    %512 = arith.truncf %511 : vector<2x2xf32> to vector<2x2xbf16>
    %cst_188 = arith.constant dense<0.000000e+00> : vector<2x8xf32>
    %513 = tpu.matmul %512, %498, %cst_188 {dimension_numbers = #tpu.dot_dimension_numbers<[1], [0], [0], [1], [0, 0, 1, 1], [], []>} : vector<2x2xbf16>, vector<2x8xbf16>, vector<2x8xf32> -> vector<2x8xf32>
    %514 = arith.truncf %513 : vector<2x8xf32> to vector<2x8xbf16>
    %c0_189 = arith.constant 0 : index
    %c5_190 = arith.constant 5 : index
    %c16_191 = arith.constant 16 : index
    %515 = vector.load %arg2[%c0_189, %c5_190, %c16_191] : memref<2x8x32xbf16, #tpu.memory_space<vmem>>, vector<2x1x8xbf16>
    %516 = vector.shape_cast %515 : vector<2x1x8xbf16> to vector<2x8xbf16>
    %517 = vector.shape_cast %514 : vector<2x8xbf16> to vector<2x1x8xbf16>
    tpu.vector_store %arg2[%c0_189, %c5_190, %c16_191], %517 {strides = array<i32>} : memref<2x8x32xbf16, #tpu.memory_space<vmem>>, vector<2x1x8xbf16>,
    %518 = vector.extract_strided_slice %451 {offsets = [0, 24], sizes = [2, 8], strides = [1, 1]} : vector<2x96xbf16> to vector<2x8xbf16>
    %519 = vector.extract_strided_slice %451 {offsets = [0, 56], sizes = [2, 8], strides = [1, 1]} : vector<2x96xbf16> to vector<2x8xbf16>
    %520 = vector.extract_strided_slice %451 {offsets = [0, 88], sizes = [2, 8], strides = [1, 1]} : vector<2x96xbf16> to vector<2x8xbf16>
    %cst_192 = arith.constant dense<0.000000e+00> : vector<2x2xf32>
    %521 = tpu.matmul %518, %519, %cst_192 {dimension_numbers = #tpu.dot_dimension_numbers<[1], [1], [0], [0], [0, 0, 1, 0], [], []>} : vector<2x8xbf16>, vector<2x8xbf16>, vector<2x2xf32> -> vector<2x2xf32>
    %cst_193 = arith.constant 0.353553385 : f32
    %522 = vector.broadcast %cst_193 : f32 to vector<2x2xf32>
    %523 = arith.mulf %521, %522 : vector<2x2xf32>
    %cst_194 = arith.constant dense<0xFF800000> : vector<2xf32>
    %524 = vector.multi_reduction <maximumf>, %523, %cst_194 [1] : vector<2x2xf32> to vector<2xf32>
    %525 = vector.shape_cast %524 : vector<2xf32> to vector<2x1xf32>
    %526 = vector.broadcast %525 : vector<2x1xf32> to vector<2x2xf32>
    %527 = arith.subf %523, %526 : vector<2x2xf32>
    %528 = math.exp %527 : vector<2x2xf32>
    %cst_195 = arith.constant dense<0.000000e+00> : vector<2xf32>
    %529 = vector.multi_reduction <add>, %528, %cst_195 [1] : vector<2x2xf32> to vector<2xf32>
    %530 = vector.shape_cast %529 : vector<2xf32> to vector<2x1xf32>
    %531 = tpu.reciprocal %530 {approx = true} : vector<2x1xf32> -> vector<2x1xf32>
    %532 = vector.broadcast %531 : vector<2x1xf32> to vector<2x2xf32>
    %533 = arith.mulf %528, %532 : vector<2x2xf32>
    %534 = arith.truncf %533 : vector<2x2xf32> to vector<2x2xbf16>
    %cst_196 = arith.constant dense<0.000000e+00> : vector<2x8xf32>
    %535 = tpu.matmul %534, %520, %cst_196 {dimension_numbers = #tpu.dot_dimension_numbers<[1], [0], [0], [1], [0, 0, 1, 1], [], []>} : vector<2x2xbf16>, vector<2x8xbf16>, vector<2x8xf32> -> vector<2x8xf32>
    %536 = arith.truncf %535 : vector<2x8xf32> to vector<2x8xbf16>
    %c0_197 = arith.constant 0 : index
    %c5_198 = arith.constant 5 : index
    %c24_199 = arith.constant 24 : index
    %537 = vector.load %arg2[%c0_197, %c5_198, %c24_199] : memref<2x8x32xbf16, #tpu.memory_space<vmem>>, vector<2x1x8xbf16>
    %538 = vector.shape_cast %537 : vector<2x1x8xbf16> to vector<2x8xbf16>
    %539 = vector.shape_cast %536 : vector<2x8xbf16> to vector<2x1x8xbf16>
    tpu.vector_store %arg2[%c0_197, %c5_198, %c24_199], %539 {strides = array<i32>} : memref<2x8x32xbf16, #tpu.memory_space<vmem>>, vector<2x1x8xbf16>,
    %c0_200 = arith.constant 0 : index
    %c6 = arith.constant 6 : index
    %c0_201 = arith.constant 0 : index
    %540 = vector.load %arg1[%c0_200, %c6, %c0_201] : memref<2x8x96xbf16, #tpu.memory_space<vmem>>, vector<2x1x96xbf16>
    %541 = vector.shape_cast %540 : vector<2x1x96xbf16> to vector<2x96xbf16>
    %542 = vector.extract_strided_slice %541 {offsets = [0, 0], sizes = [2, 8], strides = [1, 1]} : vector<2x96xbf16> to vector<2x8xbf16>
    %543 = vector.extract_strided_slice %541 {offsets = [0, 32], sizes = [2, 8], strides = [1, 1]} : vector<2x96xbf16> to vector<2x8xbf16>
    %544 = vector.extract_strided_slice %541 {offsets = [0, 64], sizes = [2, 8], strides = [1, 1]} : vector<2x96xbf16> to vector<2x8xbf16>
    %cst_202 = arith.constant dense<0.000000e+00> : vector<2x2xf32>
    %545 = tpu.matmul %542, %543, %cst_202 {dimension_numbers = #tpu.dot_dimension_numbers<[1], [1], [0], [0], [0, 0, 1, 0], [], []>} : vector<2x8xbf16>, vector<2x8xbf16>, vector<2x2xf32> -> vector<2x2xf32>
    %cst_203 = arith.constant 0.353553385 : f32
    %546 = vector.broadcast %cst_203 : f32 to vector<2x2xf32>
    %547 = arith.mulf %545, %546 : vector<2x2xf32>
    %cst_204 = arith.constant dense<0xFF800000> : vector<2xf32>
    %548 = vector.multi_reduction <maximumf>, %547, %cst_204 [1] : vector<2x2xf32> to vector<2xf32>
    %549 = vector.shape_cast %548 : vector<2xf32> to vector<2x1xf32>
    %550 = vector.broadcast %549 : vector<2x1xf32> to vector<2x2xf32>
    %551 = arith.subf %547, %550 : vector<2x2xf32>
    %552 = math.exp %551 : vector<2x2xf32>
    %cst_205 = arith.constant dense<0.000000e+00> : vector<2xf32>
    %553 = vector.multi_reduction <add>, %552, %cst_205 [1] : vector<2x2xf32> to vector<2xf32>
    %554 = vector.shape_cast %553 : vector<2xf32> to vector<2x1xf32>
    %555 = tpu.reciprocal %554 {approx = true} : vector<2x1xf32> -> vector<2x1xf32>
    %556 = vector.broadcast %555 : vector<2x1xf32> to vector<2x2xf32>
    %557 = arith.mulf %552, %556 : vector<2x2xf32>
    %558 = arith.truncf %557 : vector<2x2xf32> to vector<2x2xbf16>
    %cst_206 = arith.constant dense<0.000000e+00> : vector<2x8xf32>
    %559 = tpu.matmul %558, %544, %cst_206 {dimension_numbers = #tpu.dot_dimension_numbers<[1], [0], [0], [1], [0, 0, 1, 1], [], []>} : vector<2x2xbf16>, vector<2x8xbf16>, vector<2x8xf32> -> vector<2x8xf32>
    %560 = arith.truncf %559 : vector<2x8xf32> to vector<2x8xbf16>
    %c0_207 = arith.constant 0 : index
    %c6_208 = arith.constant 6 : index
    %c0_209 = arith.constant 0 : index
    %561 = vector.load %arg2[%c0_207, %c6_208, %c0_209] : memref<2x8x32xbf16, #tpu.memory_space<vmem>>, vector<2x1x8xbf16>
    %562 = vector.shape_cast %561 : vector<2x1x8xbf16> to vector<2x8xbf16>
    %563 = vector.shape_cast %560 : vector<2x8xbf16> to vector<2x1x8xbf16>
    tpu.vector_store %arg2[%c0_207, %c6_208, %c0_209], %563 {strides = array<i32>} : memref<2x8x32xbf16, #tpu.memory_space<vmem>>, vector<2x1x8xbf16>,
    %564 = vector.extract_strided_slice %541 {offsets = [0, 8], sizes = [2, 8], strides = [1, 1]} : vector<2x96xbf16> to vector<2x8xbf16>
    %565 = vector.extract_strided_slice %541 {offsets = [0, 40], sizes = [2, 8], strides = [1, 1]} : vector<2x96xbf16> to vector<2x8xbf16>
    %566 = vector.extract_strided_slice %541 {offsets = [0, 72], sizes = [2, 8], strides = [1, 1]} : vector<2x96xbf16> to vector<2x8xbf16>
    %cst_210 = arith.constant dense<0.000000e+00> : vector<2x2xf32>
    %567 = tpu.matmul %564, %565, %cst_210 {dimension_numbers = #tpu.dot_dimension_numbers<[1], [1], [0], [0], [0, 0, 1, 0], [], []>} : vector<2x8xbf16>, vector<2x8xbf16>, vector<2x2xf32> -> vector<2x2xf32>
    %cst_211 = arith.constant 0.353553385 : f32
    %568 = vector.broadcast %cst_211 : f32 to vector<2x2xf32>
    %569 = arith.mulf %567, %568 : vector<2x2xf32>
    %cst_212 = arith.constant dense<0xFF800000> : vector<2xf32>
    %570 = vector.multi_reduction <maximumf>, %569, %cst_212 [1] : vector<2x2xf32> to vector<2xf32>
    %571 = vector.shape_cast %570 : vector<2xf32> to vector<2x1xf32>
    %572 = vector.broadcast %571 : vector<2x1xf32> to vector<2x2xf32>
    %573 = arith.subf %569, %572 : vector<2x2xf32>
    %574 = math.exp %573 : vector<2x2xf32>
    %cst_213 = arith.constant dense<0.000000e+00> : vector<2xf32>
    %575 = vector.multi_reduction <add>, %574, %cst_213 [1] : vector<2x2xf32> to vector<2xf32>
    %576 = vector.shape_cast %575 : vector<2xf32> to vector<2x1xf32>
    %577 = tpu.reciprocal %576 {approx = true} : vector<2x1xf32> -> vector<2x1xf32>
    %578 = vector.broadcast %577 : vector<2x1xf32> to vector<2x2xf32>
    %579 = arith.mulf %574, %578 : vector<2x2xf32>
    %580 = arith.truncf %579 : vector<2x2xf32> to vector<2x2xbf16>
    %cst_214 = arith.constant dense<0.000000e+00> : vector<2x8xf32>
    %581 = tpu.matmul %580, %566, %cst_214 {dimension_numbers = #tpu.dot_dimension_numbers<[1], [0], [0], [1], [0, 0, 1, 1], [], []>} : vector<2x2xbf16>, vector<2x8xbf16>, vector<2x8xf32> -> vector<2x8xf32>
    %582 = arith.truncf %581 : vector<2x8xf32> to vector<2x8xbf16>
    %c0_215 = arith.constant 0 : index
    %c6_216 = arith.constant 6 : index
    %c8_217 = arith.constant 8 : index
    %583 = vector.load %arg2[%c0_215, %c6_216, %c8_217] : memref<2x8x32xbf16, #tpu.memory_space<vmem>>, vector<2x1x8xbf16>
    %584 = vector.shape_cast %583 : vector<2x1x8xbf16> to vector<2x8xbf16>
    %585 = vector.shape_cast %582 : vector<2x8xbf16> to vector<2x1x8xbf16>
    tpu.vector_store %arg2[%c0_215, %c6_216, %c8_217], %585 {strides = array<i32>} : memref<2x8x32xbf16, #tpu.memory_space<vmem>>, vector<2x1x8xbf16>,
    %586 = vector.extract_strided_slice %541 {offsets = [0, 16], sizes = [2, 8], strides = [1, 1]} : vector<2x96xbf16> to vector<2x8xbf16>
    %587 = vector.extract_strided_slice %541 {offsets = [0, 48], sizes = [2, 8], strides = [1, 1]} : vector<2x96xbf16> to vector<2x8xbf16>
    %588 = vector.extract_strided_slice %541 {offsets = [0, 80], sizes = [2, 8], strides = [1, 1]} : vector<2x96xbf16> to vector<2x8xbf16>
    %cst_218 = arith.constant dense<0.000000e+00> : vector<2x2xf32>
    %589 = tpu.matmul %586, %587, %cst_218 {dimension_numbers = #tpu.dot_dimension_numbers<[1], [1], [0], [0], [0, 0, 1, 0], [], []>} : vector<2x8xbf16>, vector<2x8xbf16>, vector<2x2xf32> -> vector<2x2xf32>
    %cst_219 = arith.constant 0.353553385 : f32
    %590 = vector.broadcast %cst_219 : f32 to vector<2x2xf32>
    %591 = arith.mulf %589, %590 : vector<2x2xf32>
    %cst_220 = arith.constant dense<0xFF800000> : vector<2xf32>
    %592 = vector.multi_reduction <maximumf>, %591, %cst_220 [1] : vector<2x2xf32> to vector<2xf32>
    %593 = vector.shape_cast %592 : vector<2xf32> to vector<2x1xf32>
    %594 = vector.broadcast %593 : vector<2x1xf32> to vector<2x2xf32>
    %595 = arith.subf %591, %594 : vector<2x2xf32>
    %596 = math.exp %595 : vector<2x2xf32>
    %cst_221 = arith.constant dense<0.000000e+00> : vector<2xf32>
    %597 = vector.multi_reduction <add>, %596, %cst_221 [1] : vector<2x2xf32> to vector<2xf32>
    %598 = vector.shape_cast %597 : vector<2xf32> to vector<2x1xf32>
    %599 = tpu.reciprocal %598 {approx = true} : vector<2x1xf32> -> vector<2x1xf32>
    %600 = vector.broadcast %599 : vector<2x1xf32> to vector<2x2xf32>
    %601 = arith.mulf %596, %600 : vector<2x2xf32>
    %602 = arith.truncf %601 : vector<2x2xf32> to vector<2x2xbf16>
    %cst_222 = arith.constant dense<0.000000e+00> : vector<2x8xf32>
    %603 = tpu.matmul %602, %588, %cst_222 {dimension_numbers = #tpu.dot_dimension_numbers<[1], [0], [0], [1], [0, 0, 1, 1], [], []>} : vector<2x2xbf16>, vector<2x8xbf16>, vector<2x8xf32> -> vector<2x8xf32>
    %604 = arith.truncf %603 : vector<2x8xf32> to vector<2x8xbf16>
    %c0_223 = arith.constant 0 : index
    %c6_224 = arith.constant 6 : index
    %c16_225 = arith.constant 16 : index
    %605 = vector.load %arg2[%c0_223, %c6_224, %c16_225] : memref<2x8x32xbf16, #tpu.memory_space<vmem>>, vector<2x1x8xbf16>
    %606 = vector.shape_cast %605 : vector<2x1x8xbf16> to vector<2x8xbf16>
    %607 = vector.shape_cast %604 : vector<2x8xbf16> to vector<2x1x8xbf16>
    tpu.vector_store %arg2[%c0_223, %c6_224, %c16_225], %607 {strides = array<i32>} : memref<2x8x32xbf16, #tpu.memory_space<vmem>>, vector<2x1x8xbf16>,
    %608 = vector.extract_strided_slice %541 {offsets = [0, 24], sizes = [2, 8], strides = [1, 1]} : vector<2x96xbf16> to vector<2x8xbf16>
    %609 = vector.extract_strided_slice %541 {offsets = [0, 56], sizes = [2, 8], strides = [1, 1]} : vector<2x96xbf16> to vector<2x8xbf16>
    %610 = vector.extract_strided_slice %541 {offsets = [0, 88], sizes = [2, 8], strides = [1, 1]} : vector<2x96xbf16> to vector<2x8xbf16>
    %cst_226 = arith.constant dense<0.000000e+00> : vector<2x2xf32>
    %611 = tpu.matmul %608, %609, %cst_226 {dimension_numbers = #tpu.dot_dimension_numbers<[1], [1], [0], [0], [0, 0, 1, 0], [], []>} : vector<2x8xbf16>, vector<2x8xbf16>, vector<2x2xf32> -> vector<2x2xf32>
    %cst_227 = arith.constant 0.353553385 : f32
    %612 = vector.broadcast %cst_227 : f32 to vector<2x2xf32>
    %613 = arith.mulf %611, %612 : vector<2x2xf32>
    %cst_228 = arith.constant dense<0xFF800000> : vector<2xf32>
    %614 = vector.multi_reduction <maximumf>, %613, %cst_228 [1] : vector<2x2xf32> to vector<2xf32>
    %615 = vector.shape_cast %614 : vector<2xf32> to vector<2x1xf32>
    %616 = vector.broadcast %615 : vector<2x1xf32> to vector<2x2xf32>
    %617 = arith.subf %613, %616 : vector<2x2xf32>
    %618 = math.exp %617 : vector<2x2xf32>
    %cst_229 = arith.constant dense<0.000000e+00> : vector<2xf32>
    %619 = vector.multi_reduction <add>, %618, %cst_229 [1] : vector<2x2xf32> to vector<2xf32>
    %620 = vector.shape_cast %619 : vector<2xf32> to vector<2x1xf32>
    %621 = tpu.reciprocal %620 {approx = true} : vector<2x1xf32> -> vector<2x1xf32>
    %622 = vector.broadcast %621 : vector<2x1xf32> to vector<2x2xf32>
    %623 = arith.mulf %618, %622 : vector<2x2xf32>
    %624 = arith.truncf %623 : vector<2x2xf32> to vector<2x2xbf16>
    %cst_230 = arith.constant dense<0.000000e+00> : vector<2x8xf32>
    %625 = tpu.matmul %624, %610, %cst_230 {dimension_numbers = #tpu.dot_dimension_numbers<[1], [0], [0], [1], [0, 0, 1, 1], [], []>} : vector<2x2xbf16>, vector<2x8xbf16>, vector<2x8xf32> -> vector<2x8xf32>
    %626 = arith.truncf %625 : vector<2x8xf32> to vector<2x8xbf16>
    %c0_231 = arith.constant 0 : index
    %c6_232 = arith.constant 6 : index
    %c24_233 = arith.constant 24 : index
    %627 = vector.load %arg2[%c0_231, %c6_232, %c24_233] : memref<2x8x32xbf16, #tpu.memory_space<vmem>>, vector<2x1x8xbf16>
    %628 = vector.shape_cast %627 : vector<2x1x8xbf16> to vector<2x8xbf16>
    %629 = vector.shape_cast %626 : vector<2x8xbf16> to vector<2x1x8xbf16>
    tpu.vector_store %arg2[%c0_231, %c6_232, %c24_233], %629 {strides = array<i32>} : memref<2x8x32xbf16, #tpu.memory_space<vmem>>, vector<2x1x8xbf16>,
    %c0_234 = arith.constant 0 : index
    %c7 = arith.constant 7 : index
    %c0_235 = arith.constant 0 : index
    %630 = vector.load %arg1[%c0_234, %c7, %c0_235] : memref<2x8x96xbf16, #tpu.memory_space<vmem>>, vector<2x1x96xbf16>
    %631 = vector.shape_cast %630 : vector<2x1x96xbf16> to vector<2x96xbf16>
    %632 = vector.extract_strided_slice %631 {offsets = [0, 0], sizes = [2, 8], strides = [1, 1]} : vector<2x96xbf16> to vector<2x8xbf16>
    %633 = vector.extract_strided_slice %631 {offsets = [0, 32], sizes = [2, 8], strides = [1, 1]} : vector<2x96xbf16> to vector<2x8xbf16>
    %634 = vector.extract_strided_slice %631 {offsets = [0, 64], sizes = [2, 8], strides = [1, 1]} : vector<2x96xbf16> to vector<2x8xbf16>
    %cst_236 = arith.constant dense<0.000000e+00> : vector<2x2xf32>
    %635 = tpu.matmul %632, %633, %cst_236 {dimension_numbers = #tpu.dot_dimension_numbers<[1], [1], [0], [0], [0, 0, 1, 0], [], []>} : vector<2x8xbf16>, vector<2x8xbf16>, vector<2x2xf32> -> vector<2x2xf32>
    %cst_237 = arith.constant 0.353553385 : f32
    %636 = vector.broadcast %cst_237 : f32 to vector<2x2xf32>
    %637 = arith.mulf %635, %636 : vector<2x2xf32>
    %cst_238 = arith.constant dense<0xFF800000> : vector<2xf32>
    %638 = vector.multi_reduction <maximumf>, %637, %cst_238 [1] : vector<2x2xf32> to vector<2xf32>
    %639 = vector.shape_cast %638 : vector<2xf32> to vector<2x1xf32>
    %640 = vector.broadcast %639 : vector<2x1xf32> to vector<2x2xf32>
    %641 = arith.subf %637, %640 : vector<2x2xf32>
    %642 = math.exp %641 : vector<2x2xf32>
    %cst_239 = arith.constant dense<0.000000e+00> : vector<2xf32>
    %643 = vector.multi_reduction <add>, %642, %cst_239 [1] : vector<2x2xf32> to vector<2xf32>
    %644 = vector.shape_cast %643 : vector<2xf32> to vector<2x1xf32>
    %645 = tpu.reciprocal %644 {approx = true} : vector<2x1xf32> -> vector<2x1xf32>
    %646 = vector.broadcast %645 : vector<2x1xf32> to vector<2x2xf32>
    %647 = arith.mulf %642, %646 : vector<2x2xf32>
    %648 = arith.truncf %647 : vector<2x2xf32> to vector<2x2xbf16>
    %cst_240 = arith.constant dense<0.000000e+00> : vector<2x8xf32>
    %649 = tpu.matmul %648, %634, %cst_240 {dimension_numbers = #tpu.dot_dimension_numbers<[1], [0], [0], [1], [0, 0, 1, 1], [], []>} : vector<2x2xbf16>, vector<2x8xbf16>, vector<2x8xf32> -> vector<2x8xf32>
    %650 = arith.truncf %649 : vector<2x8xf32> to vector<2x8xbf16>
    %c0_241 = arith.constant 0 : index
    %c7_242 = arith.constant 7 : index
    %c0_243 = arith.constant 0 : index
    %651 = vector.load %arg2[%c0_241, %c7_242, %c0_243] : memref<2x8x32xbf16, #tpu.memory_space<vmem>>, vector<2x1x8xbf16>
    %652 = vector.shape_cast %651 : vector<2x1x8xbf16> to vector<2x8xbf16>
    %653 = vector.shape_cast %650 : vector<2x8xbf16> to vector<2x1x8xbf16>
    tpu.vector_store %arg2[%c0_241, %c7_242, %c0_243], %653 {strides = array<i32>} : memref<2x8x32xbf16, #tpu.memory_space<vmem>>, vector<2x1x8xbf16>,
    %654 = vector.extract_strided_slice %631 {offsets = [0, 8], sizes = [2, 8], strides = [1, 1]} : vector<2x96xbf16> to vector<2x8xbf16>
    %655 = vector.extract_strided_slice %631 {offsets = [0, 40], sizes = [2, 8], strides = [1, 1]} : vector<2x96xbf16> to vector<2x8xbf16>
    %656 = vector.extract_strided_slice %631 {offsets = [0, 72], sizes = [2, 8], strides = [1, 1]} : vector<2x96xbf16> to vector<2x8xbf16>
    %cst_244 = arith.constant dense<0.000000e+00> : vector<2x2xf32>
    %657 = tpu.matmul %654, %655, %cst_244 {dimension_numbers = #tpu.dot_dimension_numbers<[1], [1], [0], [0], [0, 0, 1, 0], [], []>} : vector<2x8xbf16>, vector<2x8xbf16>, vector<2x2xf32> -> vector<2x2xf32>
    %cst_245 = arith.constant 0.353553385 : f32
    %658 = vector.broadcast %cst_245 : f32 to vector<2x2xf32>
    %659 = arith.mulf %657, %658 : vector<2x2xf32>
    %cst_246 = arith.constant dense<0xFF800000> : vector<2xf32>
    %660 = vector.multi_reduction <maximumf>, %659, %cst_246 [1] : vector<2x2xf32> to vector<2xf32>
    %661 = vector.shape_cast %660 : vector<2xf32> to vector<2x1xf32>
    %662 = vector.broadcast %661 : vector<2x1xf32> to vector<2x2xf32>
    %663 = arith.subf %659, %662 : vector<2x2xf32>
    %664 = math.exp %663 : vector<2x2xf32>
    %cst_247 = arith.constant dense<0.000000e+00> : vector<2xf32>
    %665 = vector.multi_reduction <add>, %664, %cst_247 [1] : vector<2x2xf32> to vector<2xf32>
    %666 = vector.shape_cast %665 : vector<2xf32> to vector<2x1xf32>
    %667 = tpu.reciprocal %666 {approx = true} : vector<2x1xf32> -> vector<2x1xf32>
    %668 = vector.broadcast %667 : vector<2x1xf32> to vector<2x2xf32>
    %669 = arith.mulf %664, %668 : vector<2x2xf32>
    %670 = arith.truncf %669 : vector<2x2xf32> to vector<2x2xbf16>
    %cst_248 = arith.constant dense<0.000000e+00> : vector<2x8xf32>
    %671 = tpu.matmul %670, %656, %cst_248 {dimension_numbers = #tpu.dot_dimension_numbers<[1], [0], [0], [1], [0, 0, 1, 1], [], []>} : vector<2x2xbf16>, vector<2x8xbf16>, vector<2x8xf32> -> vector<2x8xf32>
    %672 = arith.truncf %671 : vector<2x8xf32> to vector<2x8xbf16>
    %c0_249 = arith.constant 0 : index
    %c7_250 = arith.constant 7 : index
    %c8_251 = arith.constant 8 : index
    %673 = vector.load %arg2[%c0_249, %c7_250, %c8_251] : memref<2x8x32xbf16, #tpu.memory_space<vmem>>, vector<2x1x8xbf16>
    %674 = vector.shape_cast %673 : vector<2x1x8xbf16> to vector<2x8xbf16>
    %675 = vector.shape_cast %672 : vector<2x8xbf16> to vector<2x1x8xbf16>
    tpu.vector_store %arg2[%c0_249, %c7_250, %c8_251], %675 {strides = array<i32>} : memref<2x8x32xbf16, #tpu.memory_space<vmem>>, vector<2x1x8xbf16>,
    %676 = vector.extract_strided_slice %631 {offsets = [0, 16], sizes = [2, 8], strides = [1, 1]} : vector<2x96xbf16> to vector<2x8xbf16>
    %677 = vector.extract_strided_slice %631 {offsets = [0, 48], sizes = [2, 8], strides = [1, 1]} : vector<2x96xbf16> to vector<2x8xbf16>
    %678 = vector.extract_strided_slice %631 {offsets = [0, 80], sizes = [2, 8], strides = [1, 1]} : vector<2x96xbf16> to vector<2x8xbf16>
    %cst_252 = arith.constant dense<0.000000e+00> : vector<2x2xf32>
    %679 = tpu.matmul %676, %677, %cst_252 {dimension_numbers = #tpu.dot_dimension_numbers<[1], [1], [0], [0], [0, 0, 1, 0], [], []>} : vector<2x8xbf16>, vector<2x8xbf16>, vector<2x2xf32> -> vector<2x2xf32>
    %cst_253 = arith.constant 0.353553385 : f32
    %680 = vector.broadcast %cst_253 : f32 to vector<2x2xf32>
    %681 = arith.mulf %679, %680 : vector<2x2xf32>
    %cst_254 = arith.constant dense<0xFF800000> : vector<2xf32>
    %682 = vector.multi_reduction <maximumf>, %681, %cst_254 [1] : vector<2x2xf32> to vector<2xf32>
    %683 = vector.shape_cast %682 : vector<2xf32> to vector<2x1xf32>
    %684 = vector.broadcast %683 : vector<2x1xf32> to vector<2x2xf32>
    %685 = arith.subf %681, %684 : vector<2x2xf32>
    %686 = math.exp %685 : vector<2x2xf32>
    %cst_255 = arith.constant dense<0.000000e+00> : vector<2xf32>
    %687 = vector.multi_reduction <add>, %686, %cst_255 [1] : vector<2x2xf32> to vector<2xf32>
    %688 = vector.shape_cast %687 : vector<2xf32> to vector<2x1xf32>
    %689 = tpu.reciprocal %688 {approx = true} : vector<2x1xf32> -> vector<2x1xf32>
    %690 = vector.broadcast %689 : vector<2x1xf32> to vector<2x2xf32>
    %691 = arith.mulf %686, %690 : vector<2x2xf32>
    %692 = arith.truncf %691 : vector<2x2xf32> to vector<2x2xbf16>
    %cst_256 = arith.constant dense<0.000000e+00> : vector<2x8xf32>
    %693 = tpu.matmul %692, %678, %cst_256 {dimension_numbers = #tpu.dot_dimension_numbers<[1], [0], [0], [1], [0, 0, 1, 1], [], []>} : vector<2x2xbf16>, vector<2x8xbf16>, vector<2x8xf32> -> vector<2x8xf32>
    %694 = arith.truncf %693 : vector<2x8xf32> to vector<2x8xbf16>
    %c0_257 = arith.constant 0 : index
    %c7_258 = arith.constant 7 : index
    %c16_259 = arith.constant 16 : index
    %695 = vector.load %arg2[%c0_257, %c7_258, %c16_259] : memref<2x8x32xbf16, #tpu.memory_space<vmem>>, vector<2x1x8xbf16>
    %696 = vector.shape_cast %695 : vector<2x1x8xbf16> to vector<2x8xbf16>
    %697 = vector.shape_cast %694 : vector<2x8xbf16> to vector<2x1x8xbf16>
    tpu.vector_store %arg2[%c0_257, %c7_258, %c16_259], %697 {strides = array<i32>} : memref<2x8x32xbf16, #tpu.memory_space<vmem>>, vector<2x1x8xbf16>,
    %698 = vector.extract_strided_slice %631 {offsets = [0, 24], sizes = [2, 8], strides = [1, 1]} : vector<2x96xbf16> to vector<2x8xbf16>
    %699 = vector.extract_strided_slice %631 {offsets = [0, 56], sizes = [2, 8], strides = [1, 1]} : vector<2x96xbf16> to vector<2x8xbf16>
    %700 = vector.extract_strided_slice %631 {offsets = [0, 88], sizes = [2, 8], strides = [1, 1]} : vector<2x96xbf16> to vector<2x8xbf16>
    %cst_260 = arith.constant dense<0.000000e+00> : vector<2x2xf32>
    %701 = tpu.matmul %698, %699, %cst_260 {dimension_numbers = #tpu.dot_dimension_numbers<[1], [1], [0], [0], [0, 0, 1, 0], [], []>} : vector<2x8xbf16>, vector<2x8xbf16>, vector<2x2xf32> -> vector<2x2xf32>
    %cst_261 = arith.constant 0.353553385 : f32
    %702 = vector.broadcast %cst_261 : f32 to vector<2x2xf32>
    %703 = arith.mulf %701, %702 : vector<2x2xf32>
    %cst_262 = arith.constant dense<0xFF800000> : vector<2xf32>
    %704 = vector.multi_reduction <maximumf>, %703, %cst_262 [1] : vector<2x2xf32> to vector<2xf32>
    %705 = vector.shape_cast %704 : vector<2xf32> to vector<2x1xf32>
    %706 = vector.broadcast %705 : vector<2x1xf32> to vector<2x2xf32>
    %707 = arith.subf %703, %706 : vector<2x2xf32>
    %708 = math.exp %707 : vector<2x2xf32>
    %cst_263 = arith.constant dense<0.000000e+00> : vector<2xf32>
    %709 = vector.multi_reduction <add>, %708, %cst_263 [1] : vector<2x2xf32> to vector<2xf32>
    %710 = vector.shape_cast %709 : vector<2xf32> to vector<2x1xf32>
    %711 = tpu.reciprocal %710 {approx = true} : vector<2x1xf32> -> vector<2x1xf32>
    %712 = vector.broadcast %711 : vector<2x1xf32> to vector<2x2xf32>
    %713 = arith.mulf %708, %712 : vector<2x2xf32>
    %714 = arith.truncf %713 : vector<2x2xf32> to vector<2x2xbf16>
    %cst_264 = arith.constant dense<0.000000e+00> : vector<2x8xf32>
    %715 = tpu.matmul %714, %700, %cst_264 {dimension_numbers = #tpu.dot_dimension_numbers<[1], [0], [0], [1], [0, 0, 1, 1], [], []>} : vector<2x2xbf16>, vector<2x8xbf16>, vector<2x8xf32> -> vector<2x8xf32>
    %716 = arith.truncf %715 : vector<2x8xf32> to vector<2x8xbf16>
    %c0_265 = arith.constant 0 : index
    %c7_266 = arith.constant 7 : index
    %c24_267 = arith.constant 24 : index
    %717 = vector.load %arg2[%c0_265, %c7_266, %c24_267] : memref<2x8x32xbf16, #tpu.memory_space<vmem>>, vector<2x1x8xbf16>
    %718 = vector.shape_cast %717 : vector<2x1x8xbf16> to vector<2x8xbf16>
    %719 = vector.shape_cast %716 : vector<2x8xbf16> to vector<2x1x8xbf16>
    tpu.vector_store %arg2[%c0_265, %c7_266, %c24_267], %719 {strides = array<i32>} : memref<2x8x32xbf16, #tpu.memory_space<vmem>>, vector<2x1x8xbf16>,
    return
  }
  func.func @transform_0(%arg0: i32) -> (i32, i32, i32) {
    %c0_i32 = arith.constant 0 : i32
    %c0_i32_0 = arith.constant 0 : i32
    %c0_i32_1 = arith.constant 0 : i32
    return %c0_i32, %arg0, %c0_i32_0 : i32, i32, i32
  }
  func.func @transform_1(%arg0: i32) -> (i32, i32, i32) {
    %c0_i32 = arith.constant 0 : i32
    %c0_i32_0 = arith.constant 0 : i32
    %c0_i32_1 = arith.constant 0 : i32
    return %c0_i32, %arg0, %c0_i32_0 : i32, i32, i32
  }
}

module attributes {stable_mosaic.version = 11 : i64} {
  func.func @_linear_add_ln_kernel(%arg0: i32, %arg1: memref<24x32xbf16, #tpu.memory_space<vmem>>, %arg2: memref<32x32xbf16, #tpu.memory_space<vmem>>, %arg3: memref<1x32xf32, #tpu.memory_space<vmem>>, %arg4: memref<24x32xbf16, #tpu.memory_space<vmem>>, %arg5: memref<1x32xf32, #tpu.memory_space<vmem>>, %arg6: memref<1x32xf32, #tpu.memory_space<vmem>>, %arg7: memref<24x32xbf16, #tpu.memory_space<vmem>>) attributes {dimension_semantics = [#tpu.dimension_semantics<parallel>], iteration_bounds = array<i64: 2>, scalar_prefetch = 0 : i64, scratch_operands = 0 : i64, tpu.core_type = #tpu.core_type<tc>, window_params = [{transform_indices = @transform_0, window_bounds = array<i64: 24, 32>}, {pipeline_mode = #tpu.pipeline_mode<synchronous>, transform_indices = @transform_1, window_bounds = array<i64: 32, 32>}, {pipeline_mode = #tpu.pipeline_mode<synchronous>, transform_indices = @transform_2, window_bounds = array<i64: 1, 32>}, {transform_indices = @transform_3, window_bounds = array<i64: 24, 32>}, {pipeline_mode = #tpu.pipeline_mode<synchronous>, transform_indices = @transform_4, window_bounds = array<i64: 1, 32>}, {pipeline_mode = #tpu.pipeline_mode<synchronous>, transform_indices = @transform_5, window_bounds = array<i64: 1, 32>}, {transform_indices = @transform_6, window_bounds = array<i64: 24, 32>}]} {
    %c0 = arith.constant 0 : index
    %c0_0 = arith.constant 0 : index
    %0 = vector.load %arg1[%c0, %c0_0] : memref<24x32xbf16, #tpu.memory_space<vmem>>, vector<24x32xbf16>
    %c0_1 = arith.constant 0 : index
    %c0_2 = arith.constant 0 : index
    %1 = vector.load %arg2[%c0_1, %c0_2] : memref<32x32xbf16, #tpu.memory_space<vmem>>, vector<32x32xbf16>
    %cst = arith.constant dense<0.000000e+00> : vector<24x32xf32>
    %2 = tpu.matmul %0, %1, %cst {dimension_numbers = #tpu.dot_dimension_numbers<[1], [0], [0], [1], [0, 0, 1, 1], [], []>} : vector<24x32xbf16>, vector<32x32xbf16>, vector<24x32xf32> -> vector<24x32xf32>
    %c0_3 = arith.constant 0 : index
    %c0_4 = arith.constant 0 : index
    %3 = vector.load %arg3[%c0_3, %c0_4] : memref<1x32xf32, #tpu.memory_space<vmem>>, vector<1x32xf32>
    %4 = vector.broadcast %3 : vector<1x32xf32> to vector<24x32xf32>
    %5 = arith.addf %2, %4 : vector<24x32xf32>
    %c0_5 = arith.constant 0 : index
    %c0_6 = arith.constant 0 : index
    %6 = vector.load %arg4[%c0_5, %c0_6] : memref<24x32xbf16, #tpu.memory_space<vmem>>, vector<24x32xbf16>
    %7 = arith.extf %6 : vector<24x32xbf16> to vector<24x32xf32>
    %8 = arith.addf %5, %7 : vector<24x32xf32>
    %cst_7 = arith.constant dense<0.000000e+00> : vector<24xf32>
    %9 = vector.multi_reduction <add>, %8, %cst_7 [1] : vector<24x32xf32> to vector<24xf32>
    %10 = vector.shape_cast %9 : vector<24xf32> to vector<24x1xf32>
    %cst_8 = arith.constant 3.200000e+01 : f32
    %11 = vector.broadcast %cst_8 : f32 to vector<24x1xf32>
    %12 = arith.divf %10, %11 : vector<24x1xf32>
    %13 = vector.broadcast %12 : vector<24x1xf32> to vector<24x32xf32>
    %14 = arith.subf %8, %13 : vector<24x32xf32>
    %15 = arith.mulf %14, %14 : vector<24x32xf32>
    %cst_9 = arith.constant dense<0.000000e+00> : vector<24xf32>
    %16 = vector.multi_reduction <add>, %15, %cst_9 [1] : vector<24x32xf32> to vector<24xf32>
    %17 = vector.shape_cast %16 : vector<24xf32> to vector<24x1xf32>
    %cst_10 = arith.constant 3.200000e+01 : f32
    %18 = vector.broadcast %cst_10 : f32 to vector<24x1xf32>
    %19 = arith.divf %17, %18 : vector<24x1xf32>
    %20 = vector.broadcast %12 : vector<24x1xf32> to vector<24x32xf32>
    %21 = arith.subf %8, %20 : vector<24x32xf32>
    %cst_11 = arith.constant 9.99999974E-6 : f32
    %22 = vector.broadcast %cst_11 : f32 to vector<24x1xf32>
    %23 = arith.addf %19, %22 : vector<24x1xf32>
    %24 = math.rsqrt %23 : vector<24x1xf32>
    %25 = vector.broadcast %24 : vector<24x1xf32> to vector<24x32xf32>
    %26 = arith.mulf %21, %25 : vector<24x32xf32>
    %c0_12 = arith.constant 0 : index
    %c0_13 = arith.constant 0 : index
    %27 = vector.load %arg5[%c0_12, %c0_13] : memref<1x32xf32, #tpu.memory_space<vmem>>, vector<1x32xf32>
    %28 = vector.broadcast %27 : vector<1x32xf32> to vector<24x32xf32>
    %29 = arith.mulf %26, %28 : vector<24x32xf32>
    %c0_14 = arith.constant 0 : index
    %c0_15 = arith.constant 0 : index
    %30 = vector.load %arg6[%c0_14, %c0_15] : memref<1x32xf32, #tpu.memory_space<vmem>>, vector<1x32xf32>
    %31 = vector.broadcast %30 : vector<1x32xf32> to vector<24x32xf32>
    %32 = arith.addf %29, %31 : vector<24x32xf32>
    %33 = arith.truncf %32 : vector<24x32xf32> to vector<24x32xbf16>
    %c0_16 = arith.constant 0 : index
    %c0_17 = arith.constant 0 : index
    %34 = vector.load %arg7[%c0_16, %c0_17] : memref<24x32xbf16, #tpu.memory_space<vmem>>, vector<24x32xbf16>
    tpu.vector_store %arg7[%c0_16, %c0_17], %33 {strides = array<i32>} : memref<24x32xbf16, #tpu.memory_space<vmem>>, vector<24x32xbf16>,
    return
  }
  func.func @transform_0(%arg0: i32) -> (i32, i32) {
    %c0_i32 = arith.constant 0 : i32
    %c0_i32_0 = arith.constant 0 : i32
    return %arg0, %c0_i32 : i32, i32
  }
  func.func @transform_1(%arg0: i32) -> (i32, i32) {
    %c0_i32 = arith.constant 0 : i32
    %c0_i32_0 = arith.constant 0 : i32
    %c0_i32_1 = arith.constant 0 : i32
    return %c0_i32, %c0_i32_0 : i32, i32
  }
  func.func @transform_2(%arg0: i32) -> (i32, i32) {
    %c0_i32 = arith.constant 0 : i32
    %c0_i32_0 = arith.constant 0 : i32
    %c0_i32_1 = arith.constant 0 : i32
    return %c0_i32, %c0_i32_0 : i32, i32
  }
  func.func @transform_3(%arg0: i32) -> (i32, i32) {
    %c0_i32 = arith.constant 0 : i32
    %c0_i32_0 = arith.constant 0 : i32
    return %arg0, %c0_i32 : i32, i32
  }
  func.func @transform_4(%arg0: i32) -> (i32, i32) {
    %c0_i32 = arith.constant 0 : i32
    %c0_i32_0 = arith.constant 0 : i32
    %c0_i32_1 = arith.constant 0 : i32
    return %c0_i32, %c0_i32_0 : i32, i32
  }
  func.func @transform_5(%arg0: i32) -> (i32, i32) {
    %c0_i32 = arith.constant 0 : i32
    %c0_i32_0 = arith.constant 0 : i32
    %c0_i32_1 = arith.constant 0 : i32
    return %c0_i32, %c0_i32_0 : i32, i32
  }
  func.func @transform_6(%arg0: i32) -> (i32, i32) {
    %c0_i32 = arith.constant 0 : i32
    %c0_i32_0 = arith.constant 0 : i32
    return %arg0, %c0_i32 : i32, i32
  }
}

module attributes {stable_mosaic.version = 11 : i64} {
  func.func @_ffn_kernel(%arg0: i32, %arg1: i32, %arg2: memref<24x32xbf16, #tpu.memory_space<vmem>>, %arg3: memref<32x64xbf16, #tpu.memory_space<vmem>>, %arg4: memref<1x64xf32, #tpu.memory_space<vmem>>, %arg5: memref<64x32xbf16, #tpu.memory_space<vmem>>, %arg6: memref<1x32xf32, #tpu.memory_space<vmem>>, %arg7: memref<1x32xf32, #tpu.memory_space<vmem>>, %arg8: memref<1x32xf32, #tpu.memory_space<vmem>>, %arg9: memref<24x32xbf16, #tpu.memory_space<vmem>>, %arg10: memref<24x32xf32, #tpu.memory_space<vmem>>) attributes {dimension_semantics = [#tpu.dimension_semantics<parallel>, #tpu.dimension_semantics<arbitrary>], iteration_bounds = array<i64: 2, 1>, scalar_prefetch = 0 : i64, scratch_operands = 1 : i64, tpu.core_type = #tpu.core_type<tc>, window_params = [{transform_indices = @transform_0, window_bounds = array<i64: 24, 32>}, {transform_indices = @transform_1, window_bounds = array<i64: 32, 64>}, {transform_indices = @transform_2, window_bounds = array<i64: 1, 64>}, {transform_indices = @transform_3, window_bounds = array<i64: 64, 32>}, {pipeline_mode = #tpu.pipeline_mode<synchronous>, transform_indices = @transform_4, window_bounds = array<i64: 1, 32>}, {pipeline_mode = #tpu.pipeline_mode<synchronous>, transform_indices = @transform_5, window_bounds = array<i64: 1, 32>}, {pipeline_mode = #tpu.pipeline_mode<synchronous>, transform_indices = @transform_6, window_bounds = array<i64: 1, 32>}, {transform_indices = @transform_7, window_bounds = array<i64: 24, 32>}]} {
    %c0_i32 = arith.constant 0 : i32
    %0 = arith.cmpi eq, %arg1, %c0_i32 : i32
    %1 = arith.extui %0 : i1 to i32
    %c0_i32_0 = arith.constant 0 : i32
    %2 = arith.cmpi ne, %1, %c0_i32_0 : i32
    scf.if %2 {
      %cst_16 = arith.constant 0.000000e+00 : f32
      %20 = vector.broadcast %cst_16 : f32 to vector<24x32xf32>
      %c0_17 = arith.constant 0 : index
      %c0_18 = arith.constant 0 : index
      %21 = vector.load %arg10[%c0_17, %c0_18] : memref<24x32xf32, #tpu.memory_space<vmem>>, vector<24x32xf32>
      tpu.vector_store %arg10[%c0_17, %c0_18], %20 {strides = array<i32>} : memref<24x32xf32, #tpu.memory_space<vmem>>, vector<24x32xf32>,
    } else {
    }
    %c0 = arith.constant 0 : index
    %c0_1 = arith.constant 0 : index
    %3 = vector.load %arg2[%c0, %c0_1] : memref<24x32xbf16, #tpu.memory_space<vmem>>, vector<24x32xbf16>
    %c0_2 = arith.constant 0 : index
    %c0_3 = arith.constant 0 : index
    %4 = vector.load %arg3[%c0_2, %c0_3] : memref<32x64xbf16, #tpu.memory_space<vmem>>, vector<32x64xbf16>
    %cst = arith.constant dense<0.000000e+00> : vector<24x64xf32>
    %5 = tpu.matmul %3, %4, %cst {dimension_numbers = #tpu.dot_dimension_numbers<[1], [0], [0], [1], [0, 0, 1, 1], [], []>} : vector<24x32xbf16>, vector<32x64xbf16>, vector<24x64xf32> -> vector<24x64xf32>
    %c0_4 = arith.constant 0 : index
    %c0_5 = arith.constant 0 : index
    %6 = vector.load %arg4[%c0_4, %c0_5] : memref<1x64xf32, #tpu.memory_space<vmem>>, vector<1x64xf32>
    %7 = vector.broadcast %6 : vector<1x64xf32> to vector<24x64xf32>
    %8 = arith.addf %5, %7 : vector<24x64xf32>
    %cst_6 = arith.constant 0.000000e+00 : f32
    %9 = vector.broadcast %cst_6 : f32 to vector<24x64xf32>
    %10 = arith.maximumf %8, %9 : vector<24x64xf32>
    %11 = arith.truncf %10 : vector<24x64xf32> to vector<24x64xbf16>
    %c0_7 = arith.constant 0 : index
    %c0_8 = arith.constant 0 : index
    %12 = vector.load %arg10[%c0_7, %c0_8] : memref<24x32xf32, #tpu.memory_space<vmem>>, vector<24x32xf32>
    %c0_9 = arith.constant 0 : index
    %c0_10 = arith.constant 0 : index
    %13 = vector.load %arg5[%c0_9, %c0_10] : memref<64x32xbf16, #tpu.memory_space<vmem>>, vector<64x32xbf16>
    %cst_11 = arith.constant dense<0.000000e+00> : vector<24x32xf32>
    %14 = tpu.matmul %11, %13, %cst_11 {dimension_numbers = #tpu.dot_dimension_numbers<[1], [0], [0], [1], [0, 0, 1, 1], [], []>} : vector<24x64xbf16>, vector<64x32xbf16>, vector<24x32xf32> -> vector<24x32xf32>
    %15 = arith.addf %12, %14 : vector<24x32xf32>
    %c0_12 = arith.constant 0 : index
    %c0_13 = arith.constant 0 : index
    %16 = vector.load %arg10[%c0_12, %c0_13] : memref<24x32xf32, #tpu.memory_space<vmem>>, vector<24x32xf32>
    tpu.vector_store %arg10[%c0_12, %c0_13], %15 {strides = array<i32>} : memref<24x32xf32, #tpu.memory_space<vmem>>, vector<24x32xf32>,
    %c0_i32_14 = arith.constant 0 : i32
    %17 = arith.cmpi eq, %arg1, %c0_i32_14 : i32
    %18 = arith.extui %17 : i1 to i32
    %c0_i32_15 = arith.constant 0 : i32
    %19 = arith.cmpi ne, %18, %c0_i32_15 : i32
    scf.if %19 {
      %c0_16 = arith.constant 0 : index
      %c0_17 = arith.constant 0 : index
      %20 = vector.load %arg10[%c0_16, %c0_17] : memref<24x32xf32, #tpu.memory_space<vmem>>, vector<24x32xf32>
      %c0_18 = arith.constant 0 : index
      %c0_19 = arith.constant 0 : index
      %21 = vector.load %arg6[%c0_18, %c0_19] : memref<1x32xf32, #tpu.memory_space<vmem>>, vector<1x32xf32>
      %22 = vector.broadcast %21 : vector<1x32xf32> to vector<24x32xf32>
      %23 = arith.addf %20, %22 : vector<24x32xf32>
      %24 = arith.extf %3 : vector<24x32xbf16> to vector<24x32xf32>
      %25 = arith.addf %23, %24 : vector<24x32xf32>
      %cst_20 = arith.constant dense<0.000000e+00> : vector<24xf32>
      %26 = vector.multi_reduction <add>, %25, %cst_20 [1] : vector<24x32xf32> to vector<24xf32>
      %27 = vector.shape_cast %26 : vector<24xf32> to vector<24x1xf32>
      %cst_21 = arith.constant 3.200000e+01 : f32
      %28 = vector.broadcast %cst_21 : f32 to vector<24x1xf32>
      %29 = arith.divf %27, %28 : vector<24x1xf32>
      %30 = vector.broadcast %29 : vector<24x1xf32> to vector<24x32xf32>
      %31 = arith.subf %25, %30 : vector<24x32xf32>
      %32 = arith.mulf %31, %31 : vector<24x32xf32>
      %cst_22 = arith.constant dense<0.000000e+00> : vector<24xf32>
      %33 = vector.multi_reduction <add>, %32, %cst_22 [1] : vector<24x32xf32> to vector<24xf32>
      %34 = vector.shape_cast %33 : vector<24xf32> to vector<24x1xf32>
      %cst_23 = arith.constant 3.200000e+01 : f32
      %35 = vector.broadcast %cst_23 : f32 to vector<24x1xf32>
      %36 = arith.divf %34, %35 : vector<24x1xf32>
      %37 = vector.broadcast %29 : vector<24x1xf32> to vector<24x32xf32>
      %38 = arith.subf %25, %37 : vector<24x32xf32>
      %cst_24 = arith.constant 9.99999974E-6 : f32
      %39 = vector.broadcast %cst_24 : f32 to vector<24x1xf32>
      %40 = arith.addf %36, %39 : vector<24x1xf32>
      %41 = math.rsqrt %40 : vector<24x1xf32>
      %42 = vector.broadcast %41 : vector<24x1xf32> to vector<24x32xf32>
      %43 = arith.mulf %38, %42 : vector<24x32xf32>
      %c0_25 = arith.constant 0 : index
      %c0_26 = arith.constant 0 : index
      %44 = vector.load %arg7[%c0_25, %c0_26] : memref<1x32xf32, #tpu.memory_space<vmem>>, vector<1x32xf32>
      %45 = vector.broadcast %44 : vector<1x32xf32> to vector<24x32xf32>
      %46 = arith.mulf %43, %45 : vector<24x32xf32>
      %c0_27 = arith.constant 0 : index
      %c0_28 = arith.constant 0 : index
      %47 = vector.load %arg8[%c0_27, %c0_28] : memref<1x32xf32, #tpu.memory_space<vmem>>, vector<1x32xf32>
      %48 = vector.broadcast %47 : vector<1x32xf32> to vector<24x32xf32>
      %49 = arith.addf %46, %48 : vector<24x32xf32>
      %50 = arith.truncf %49 : vector<24x32xf32> to vector<24x32xbf16>
      %c0_29 = arith.constant 0 : index
      %c0_30 = arith.constant 0 : index
      %51 = vector.load %arg9[%c0_29, %c0_30] : memref<24x32xbf16, #tpu.memory_space<vmem>>, vector<24x32xbf16>
      tpu.vector_store %arg9[%c0_29, %c0_30], %50 {strides = array<i32>} : memref<24x32xbf16, #tpu.memory_space<vmem>>, vector<24x32xbf16>,
    } else {
    }
    return
  }
  func.func @transform_0(%arg0: i32, %arg1: i32) -> (i32, i32) {
    %c0_i32 = arith.constant 0 : i32
    %c0_i32_0 = arith.constant 0 : i32
    return %arg0, %c0_i32 : i32, i32
  }
  func.func @transform_1(%arg0: i32, %arg1: i32) -> (i32, i32) {
    %c0_i32 = arith.constant 0 : i32
    %c0_i32_0 = arith.constant 0 : i32
    return %c0_i32, %arg1 : i32, i32
  }
  func.func @transform_2(%arg0: i32, %arg1: i32) -> (i32, i32) {
    %c0_i32 = arith.constant 0 : i32
    %c0_i32_0 = arith.constant 0 : i32
    return %c0_i32, %arg1 : i32, i32
  }
  func.func @transform_3(%arg0: i32, %arg1: i32) -> (i32, i32) {
    %c0_i32 = arith.constant 0 : i32
    %c0_i32_0 = arith.constant 0 : i32
    return %arg1, %c0_i32 : i32, i32
  }
  func.func @transform_4(%arg0: i32, %arg1: i32) -> (i32, i32) {
    %c0_i32 = arith.constant 0 : i32
    %c0_i32_0 = arith.constant 0 : i32
    %c0_i32_1 = arith.constant 0 : i32
    return %c0_i32, %c0_i32_0 : i32, i32
  }
  func.func @transform_5(%arg0: i32, %arg1: i32) -> (i32, i32) {
    %c0_i32 = arith.constant 0 : i32
    %c0_i32_0 = arith.constant 0 : i32
    %c0_i32_1 = arith.constant 0 : i32
    return %c0_i32, %c0_i32_0 : i32, i32
  }
  func.func @transform_6(%arg0: i32, %arg1: i32) -> (i32, i32) {
    %c0_i32 = arith.constant 0 : i32
    %c0_i32_0 = arith.constant 0 : i32
    %c0_i32_1 = arith.constant 0 : i32
    return %c0_i32, %c0_i32_0 : i32, i32
  }
  func.func @transform_7(%arg0: i32, %arg1: i32) -> (i32, i32) {
    %c0_i32 = arith.constant 0 : i32
    %c0_i32_0 = arith.constant 0 : i32
    return %arg0, %c0_i32 : i32, i32
  }
}

module attributes {stable_mosaic.version = 11 : i64} {
  func.func @_linear_kernel(%arg0: i32, %arg1: memref<2x32xbf16, #tpu.memory_space<vmem>>, %arg2: memref<32x128xbf16, #tpu.memory_space<vmem>>, %arg3: memref<1x128xf32, #tpu.memory_space<vmem>>, %arg4: memref<2x128xf32, #tpu.memory_space<vmem>>) attributes {dimension_semantics = [#tpu.dimension_semantics<parallel>], iteration_bounds = array<i64: 1>, scalar_prefetch = 0 : i64, scratch_operands = 0 : i64, tpu.core_type = #tpu.core_type<tc>, window_params = [{transform_indices = @transform_0, window_bounds = array<i64: 2, 32>}, {pipeline_mode = #tpu.pipeline_mode<synchronous>, transform_indices = @transform_1, window_bounds = array<i64: 32, 128>}, {pipeline_mode = #tpu.pipeline_mode<synchronous>, transform_indices = @transform_2, window_bounds = array<i64: 1, 128>}, {transform_indices = @transform_3, window_bounds = array<i64: 2, 128>}]} {
    %c0 = arith.constant 0 : index
    %c0_0 = arith.constant 0 : index
    %0 = vector.load %arg1[%c0, %c0_0] : memref<2x32xbf16, #tpu.memory_space<vmem>>, vector<2x32xbf16>
    %c0_1 = arith.constant 0 : index
    %c0_2 = arith.constant 0 : index
    %1 = vector.load %arg2[%c0_1, %c0_2] : memref<32x128xbf16, #tpu.memory_space<vmem>>, vector<32x128xbf16>
    %cst = arith.constant dense<0.000000e+00> : vector<2x128xf32>
    %2 = tpu.matmul %0, %1, %cst {dimension_numbers = #tpu.dot_dimension_numbers<[1], [0], [0], [1], [0, 0, 1, 1], [], []>} : vector<2x32xbf16>, vector<32x128xbf16>, vector<2x128xf32> -> vector<2x128xf32>
    %c0_3 = arith.constant 0 : index
    %c0_4 = arith.constant 0 : index
    %3 = vector.load %arg3[%c0_3, %c0_4] : memref<1x128xf32, #tpu.memory_space<vmem>>, vector<1x128xf32>
    %4 = vector.broadcast %3 : vector<1x128xf32> to vector<2x128xf32>
    %5 = arith.addf %2, %4 : vector<2x128xf32>
    %c0_5 = arith.constant 0 : index
    %c0_6 = arith.constant 0 : index
    %6 = vector.load %arg4[%c0_5, %c0_6] : memref<2x128xf32, #tpu.memory_space<vmem>>, vector<2x128xf32>
    tpu.vector_store %arg4[%c0_5, %c0_6], %5 {strides = array<i32>} : memref<2x128xf32, #tpu.memory_space<vmem>>, vector<2x128xf32>,
    return
  }
  func.func @transform_0(%arg0: i32) -> (i32, i32) {
    %c0_i32 = arith.constant 0 : i32
    %c0_i32_0 = arith.constant 0 : i32
    return %arg0, %c0_i32 : i32, i32
  }
  func.func @transform_1(%arg0: i32) -> (i32, i32) {
    %c0_i32 = arith.constant 0 : i32
    %c0_i32_0 = arith.constant 0 : i32
    %c0_i32_1 = arith.constant 0 : i32
    return %c0_i32, %c0_i32_0 : i32, i32
  }
  func.func @transform_2(%arg0: i32) -> (i32, i32) {
    %c0_i32 = arith.constant 0 : i32
    %c0_i32_0 = arith.constant 0 : i32
    %c0_i32_1 = arith.constant 0 : i32
    return %c0_i32, %c0_i32_0 : i32, i32
  }
  func.func @transform_3(%arg0: i32) -> (i32, i32) {
    %c0_i32 = arith.constant 0 : i32
    %c0_i32_0 = arith.constant 0 : i32
    return %arg0, %c0_i32 : i32, i32
  }
}

</mosaic_0001>

<llo_original>
// kernel: vision_transformer_forward.11
$region0: #{vision_transformer_forward.11}
  #allocation0 [shape = 'u32[]', space=smem, size = 0x4, offset = 0x4, fixed_abs, tag = 'smem constant byte address 0x4 - core index']
  #allocation1 [shape = 'u32[144,128]{1,0:T(1,128)}', space=vmem, size = 0x12000, scoped, tag = 'internal scratch']
  %s0 = inlined_call_operand.vmem [shape: bf16[48,32], index: 0, kind: input, shape index: {}]
  %s1 = inlined_call_operand.vmem [shape: bf16[32,96], index: 1, kind: input, shape index: {}]
  %s2 = inlined_call_operand.vmem [shape: f32[1,96], index: 2, kind: input, shape index: {}]
  %s3 = inlined_call_operand.vmem [shape: bf16[48,96], index: 3, kind: output, shape index: {}]
  %s4 = sld [smem:[#allocation0]]
  $region45: #{vision_transformer_forward.11} parent=0
    _
  %s6 = ssub.s32 1, %s4
  %s7 = scalar_select 0, %s6, %s4
  loop: start=0, step=1, limit=4
  $region2: #{vision_transformer_forward.11} parent=0 // loop_pre_header
    _
  $region3: #{vision_transformer_forward.11} parent=0 // loop_header
    %s9 = sphi 0, %s13
    %p10 = scmp.ge.s32.totalorder %s9, 4
    %s19 = sphi 0, %s21
    %s22 = sphi 0, %s19
    %s23 = sphi 0, %s22
    %s39 = sphi 0, %s23
    %s43 = sphi 0, %s43
    %s45 = sphi 0, %s43
    %s46 = sphi 0, %s45
    %s60 = sphi 0, %s46
    %s64 = sphi 0, %s64
    %s66 = sphi 0, %s64
    %s67 = sphi 0, %s66
    %s81 = sphi 0, %s67
    %s87 = sphi 0, %s89
    %s90 = sphi 0, %s87
    %s91 = sphi 0, %s90
    %s107 = sphi 0, %s91
  $region4: #{vision_transformer_forward.11} parent=0 // loop_header_branch
    %12 = sbr.rel (%p10) target = $region8
  $region5: #{vision_transformer_forward.11} parent=0 // loop_body
    %s14 = ssub.s32 %s9, 1
    %s15 = ssub.s32 %s9, 2
    %s16 = sadd.s32 %s9, 1
    %s17 = ssub.s32 %s9, %s16
    %p18 = scmp.eq.s32.totalorder %s17, 0
    %s20 = sadd.s32 %s19, 1
    %s21 = scalar_select %p18, %s19, %s20
    %p24 = pneg %p18
    %p25 = scmp.eq.s32.totalorder %s9, 1
    %p26 = por %p24, %p25
    %p27 = scmp.ne.s32.totalorder %s19, %s22
    %p28 = scmp.eq.s32.totalorder %s9, 0
    %p29 = por %p27, %p28
    %p30 = scmp.ne.s32.totalorder %s19, %s22
    %p31 = scmp.eq.s32.totalorder %s14, 1
    %p32 = por %p30, %p31
    %p33 = scmp.ne.s32.totalorder %s22, %s23
    %p34 = scmp.eq.s32.totalorder %s14, 0
    %p35 = por %p33, %p34
    %p36 = scmp.ne.s32.totalorder %s22, %s23
    %p37 = scmp.eq.s32.totalorder %s15, 1
    %p38 = por %p36, %p37
    %p40 = scmp.ne.s32.totalorder %s23, %s39
    %p41 = scmp.eq.s32.totalorder %s15, 0
    %p42 = por %p40, %p41
    %s44 = sadd.s32 %s43, 1
    %p47 = scmp.eq.s32.totalorder %s9, 1
    %p48 = scmp.ne.s32.totalorder %s43, %s45
    %p49 = scmp.eq.s32.totalorder %s9, 0
    %p50 = por %p48, %p49
    %p51 = scmp.ne.s32.totalorder %s43, %s45
    %p52 = scmp.eq.s32.totalorder %s14, 1
    %p53 = por %p51, %p52
    %p54 = scmp.ne.s32.totalorder %s45, %s46
    %p55 = scmp.eq.s32.totalorder %s14, 0
    %p56 = por %p54, %p55
    %p57 = scmp.ne.s32.totalorder %s45, %s46
    %p58 = scmp.eq.s32.totalorder %s15, 1
    %p59 = por %p57, %p58
    %p61 = scmp.ne.s32.totalorder %s46, %s60
    %p62 = scmp.eq.s32.totalorder %s15, 0
    %p63 = por %p61, %p62
    %s65 = sadd.s32 %s64, 1
    %p68 = scmp.eq.s32.totalorder %s9, 1
    %p69 = scmp.ne.s32.totalorder %s64, %s66
    %p70 = scmp.eq.s32.totalorder %s9, 0
    %p71 = por %p69, %p70
    %p72 = scmp.ne.s32.totalorder %s64, %s66
    %p73 = scmp.eq.s32.totalorder %s14, 1
    %p74 = por %p72, %p73
    %p75 = scmp.ne.s32.totalorder %s66, %s67
    %p76 = scmp.eq.s32.totalorder %s14, 0
    %p77 = por %p75, %p76
    %p78 = scmp.ne.s32.totalorder %s66, %s67
    %p79 = scmp.eq.s32.totalorder %s15, 1
    %p80 = por %p78, %p79
    %p82 = scmp.ne.s32.totalorder %s67, %s81
    %p83 = scmp.eq.s32.totalorder %s15, 0
    %p84 = por %p82, %p83
    %s85 = ssub.s32 %s9, %s16
    %p86 = scmp.eq.s32.totalorder %s85, 0
    %s88 = sadd.s32 %s87, 1
    %s89 = scalar_select %p86, %s87, %s88
    %p92 = pneg %p86
    %p93 = scmp.eq.s32.totalorder %s9, 1
    %p94 = por %p92, %p93
    %p95 = scmp.ne.s32.totalorder %s87, %s90
    %p96 = scmp.eq.s32.totalorder %s9, 0
    %p97 = por %p95, %p96
    %p98 = scmp.ne.s32.totalorder %s87, %s90
    %p99 = scmp.eq.s32.totalorder %s14, 1
    %p100 = por %p98, %p99
    %p101 = scmp.ne.s32.totalorder %s90, %s91
    %p102 = scmp.eq.s32.totalorder %s14, 0
    %p103 = por %p101, %p102
    %p104 = scmp.ne.s32.totalorder %s90, %s91
    %p105 = scmp.eq.s32.totalorder %s15, 1
    %p106 = por %p104, %p105
    %p108 = scmp.ne.s32.totalorder %s91, %s107
    %p109 = scmp.eq.s32.totalorder %s15, 0
    %p110 = por %p108, %p109
    %p111 = scmp.le.s32.totalorder 1, %s9
    %p112 = scmp.lt.s32.totalorder %s9, 3
    %p113 = pnand %p111, %p112
    %p114 = pneg %p113
    // Predicated region
    $region9: #{vision_transformer_forward.11} parent=5 // pred_check
      _
    $region10: #{vision_transformer_forward.11} parent=5 // pred_check_branch
      %116 = sbr.rel (%p113) target = $region12
    $region11: #{vision_transformer_forward.11} parent=5 // pred_region
      %s117 = ssub.s32 %s9, 1
      // Predicated region
      $region13: #{vision_transformer_forward.11} parent=11 // pred_check
        %p118 = pneg %p56
      $region14: #{vision_transformer_forward.11} parent=11 // pred_check_branch
        %120 = sbr.rel (%p118) target = $region16
      $region15: #{vision_transformer_forward.11} parent=11 // pred_region
        _
      $region16: #{vision_transformer_forward.11} parent=11 // pred_fallthru
        _
      // Predicated region
      $region17: #{vision_transformer_forward.11} parent=11 // pred_check
        %p121 = pneg %p77
      $region18: #{vision_transformer_forward.11} parent=11 // pred_check_branch
        %123 = sbr.rel (%p121) target = $region20
      $region19: #{vision_transformer_forward.11} parent=11 // pred_region
        _
      $region20: #{vision_transformer_forward.11} parent=11 // pred_fallthru
        _
    $region12: #{vision_transformer_forward.11} parent=5 // pred_fallthru
      _
    %p124 = scmp.lt.s32.totalorder %s9, 2
    // Predicated region
    $region21: #{vision_transformer_forward.11} parent=5 // pred_check
      %p125 = pneg %p124
    $region22: #{vision_transformer_forward.11} parent=5 // pred_check_branch
      %127 = sbr.rel (%p125) target = $region24
    $region23: #{vision_transformer_forward.11} parent=5 // pred_region
      // Predicated region
      $region25: #{vision_transformer_forward.11} parent=23 // pred_check
        %p128 = pneg %p29
      $region26: #{vision_transformer_forward.11} parent=23 // pred_check_branch
        %130 = sbr.rel (%p128) target = $region28
      $region27: #{vision_transformer_forward.11} parent=23 // pred_region
        %s131 = smul.u32 3, %s9
        %p132 = scmp.lt.s32.totalorder %s131, 5
        %s133 = scalar_select %p132, %s131, 5
        %s134 = smul.addr %s133, 4
        %s135 = scalar_lea.vmem %s0, %s134
        %s136 = smul.u32 3, %s9
      $region28: #{vision_transformer_forward.11} parent=23 // pred_fallthru
        _
    $region24: #{vision_transformer_forward.11} parent=5 // pred_fallthru
      _
    %p137 = scmp.le.s32.totalorder 1, %s9
    %p138 = scmp.lt.s32.totalorder %s9, 3
    %p139 = pnand %p137, %p138
    %p140 = pneg %p139
    // Predicated region
    $region29: #{vision_transformer_forward.11} parent=5 // pred_check
      _
    $region30: #{vision_transformer_forward.11} parent=5 // pred_check_branch
      %142 = sbr.rel (%p139) target = $region32
    $region31: #{vision_transformer_forward.11} parent=5 // pred_region
      %s143 = ssub.s32 %s9, 1
      %s144 = smul.u32 3, %s14
      %p145 = scmp.lt.s32.totalorder %s144, 5
      %s146 = scalar_select %p145, %s144, 5
      %s147 = smul.addr %s146, 4
      %s148 = scalar_lea.vmem %s0, %s147
      %p149 = pneg %p35
      %p150 = pneg %p32
      %p151 = pneg %p56
      %p152 = pneg %p53
      %p153 = pneg %p77
      %p154 = pneg %p74
      %p155 = pneg %p103
      %p156 = pneg %p100
      %s157 = smul.u32 3, %s14
      %p158 = scmp.lt.s32.totalorder %s157, 5
      %s159 = scalar_select %p158, %s157, 5
      %s160 = smul.addr %s159, 4
      %s161 = scalar_lea.vmem %s3, %s160
      %s162 = smul.u32 3, %s14
      %p163 = scmp.lt.s32.totalorder %s162, 5
      %s164 = scalar_select %p163, %s162, 5
      %s165 = smul.addr %s164, 4
      %s166 = scalar_lea.vmem %s0, %s165
      %s167 = smul.u32 3, %s14
      %s168 = smul.u32 3, %s14
      %p169 = scmp.lt.s32.totalorder %s168, 5
      %s170 = scalar_select %p169, %s168, 5
      %s171 = smul.addr %s170, 4
      %s172 = scalar_lea.vmem %s3, %s171
      %s173 = smul.u32 3, %s14
      %v175 = vld [vmem:[%s166] sm:$0xf]
      %v176 = vld [vmem:[%s166 + $0x4] sm:$0xf]
      %v177 = vld [vmem:[%s166 + $0x8] sm:$0xf]
      %v178 = vld [vmem:[%s1] sm:$0xf]
      %v179 = vld [vmem:[%s1 + $0x4] sm:$0xf]
      %v180 = vld [vmem:[%s1 + $0x8] sm:$0xf]
      %v181 = vld [vmem:[%s1 + $0xc] sm:$0xf]
      %v182 = vld [vmem:[%s2] sm:$0x1]
      %v184 = vlaneseq
      %v185 = vshrl.u32 %v184, 7
      %v186 = vsub.s32 0, %v185
      %v187 = vrot.slane %v182, %v186
      %v192 = vunpack.c.l.b16 %v175
      %v193 = vunpack.c.l.b16 %v176
      %v194 = vunpack.c.l.b16 %v177
      %v195 = vpack.c.b16 %v193, %v192
      %v196 = vpack.c.b16 %v194, %v194
      %v201 = vunpack.c.l.b16 %v178
      %v202 = vunpack.c.l.b16 %v179
      %v203 = vunpack.c.l.b16 %v180
      %v204 = vunpack.c.l.b16 %v181
      %v205 = vpack.c.b16 %v202, %v201
      %v206 = vpack.c.b16 %v204, %v203
      %vm209 = vcmask 261120
      %v211 = vsel %vm209, %v195, 0
      %v214 = vsel %vm209, %v196, 0
      %216 = vmatprep.subr.bf16.mxu0 0
      %217 = vmatpush1.bf16.msra.mxu0 0
      %218 = vmatprep.subr.bf16.mxu0 0
      %219 = vmatpush1.bf16.msra.mxu0 0
      %220 = vmatprep.subr.bf16.mxu0 0
      %221 = vmatpush1.bf16.msra.mxu0 0
      %222 = vmatprep.subr.bf16.mxu0 0
      %223 = vmatpush1.bf16.msra.mxu0 0
      %224 = vmatprep.subr.bf16.mxu0 0
      %225 = vmatpush1.bf16.msra.mxu0 0
      %226 = vmatprep.subr.bf16.mxu0 0
      %227 = vmatpush1.bf16.msra.mxu0 0
      %228 = vmatprep.subr.bf16.mxu0 0
      %229 = vmatpush1.bf16.msra.mxu0 %v206
      %230 = vmatprep.subr.bf16.mxu0 0
      %231 = vmatpush1.bf16.msra.mxu0 %v205
      %232 = vmatprep.subr.bf16.mxu0 0
      %233 = vmatpush2.bf16.msra.mxu0 0
      %234 = vmatprep.subr.bf16.mxu0 0
      %235 = vmatpush2.bf16.msra.mxu0 0
      %236 = vmatprep.subr.bf16.mxu0 0
      %237 = vmatpush2.bf16.msra.mxu0 0
      %238 = vmatprep.subr.bf16.mxu0 0
      %239 = vmatpush2.bf16.msra.mxu0 0
      %240 = vmatprep.subr.bf16.mxu0 0
      %241 = vmatpush2.bf16.msra.mxu0 0
      %242 = vmatprep.subr.bf16.mxu0 0
      %243 = vmatpush2.bf16.msra.mxu0 0
      %244 = vmatprep.subr.bf16.mxu0 0
      %245 = vmatpush2.bf16.msra.mxu0 0
      %246 = vmatprep.subr.bf16.mxu0 0
      %247 = vmatpush2.bf16.msra.mxu0 0
      %248 = vmatprep.mubr.bf16.mxu0 0
      %249 = vmatmul.mubr.bf16.gmra.mxu0 %v211
      %v250 = vpop.f32.mrf.mxu0
      %v251 = vadd.f32 %v187, %v250
      %v252 = vpop.f32.mrf.mxu0
      %v253 = vpop.f32.mrf.mxu0
      %v254 = vadd.f32 %v187, %v253
      %v255 = vpop.f32.mrf.mxu0
      %256 = vmatprep.mubr.bf16.mxu0 0
      %257 = vmatmul.mubr.bf16.gmra.mxu0 %v214
      %v258 = vpop.f32.mrf.mxu0
      %v259 = vadd.f32 %v187, %v258
      %v260 = vpop.f32.mrf.mxu0
      %v261 = vpop.f32.mrf.mxu0
      %v262 = vpop.f32.mrf.mxu0
      %263 = vdwg.mxu0
      %v264 = vpack.c.bf16 %v254, %v251
      %v265 = vpack.c.bf16 %v259, %v259
      %v268 = vunpack.c.l.b16 %v264
      %v269 = vunpack.c.h.b16 %v264
      %v270 = vunpack.c.l.b16 %v265
      %v271 = vpack.c.b16 %v268, %v268
      %v272 = vpack.c.b16 %v269, %v269
      %v273 = vpack.c.b16 %v270, %v270
      %vm277 = vcmask 781312
      %278 = vst.msk [vmem:[%s172] sm:$0xf] %vm277, %v271
      %279 = vst.msk [vmem:[%s172 + $0x4] sm:$0xf] %vm277, %v272
      %280 = vst.msk [vmem:[%s172 + $0x8] sm:$0xf] %vm277, %v273
      %s281 = smul.u32 3, %s14
      %p282 = scmp.lt.s32.totalorder %s281, 5
      %s283 = scalar_select %p282, %s281, 5
      %s284 = smul.addr %s283, 4
      %s285 = scalar_lea.vmem %s3, %s284
      // Predicated region
      $region33: #{vision_transformer_forward.11} parent=31 // pred_check
        %p286 = pneg %p100
      $region34: #{vision_transformer_forward.11} parent=31 // pred_check_branch
        %288 = sbr.rel (%p286) target = $region36
      $region35: #{vision_transformer_forward.11} parent=31 // pred_region
        %s289 = smul.u32 3, %s14
      $region36: #{vision_transformer_forward.11} parent=31 // pred_fallthru
        _
    $region32: #{vision_transformer_forward.11} parent=5 // pred_fallthru
      _
    %p290 = scmp.le.s32.totalorder 2, %s9
    // Predicated region
    $region37: #{vision_transformer_forward.11} parent=5 // pred_check
      %p291 = pneg %p290
    $region38: #{vision_transformer_forward.11} parent=5 // pred_check_branch
      %293 = sbr.rel (%p291) target = $region40
    $region39: #{vision_transformer_forward.11} parent=5 // pred_region
      %s294 = ssub.s32 %s9, 2
      // Predicated region
      $region41: #{vision_transformer_forward.11} parent=39 // pred_check
        %p295 = pneg %p106
      $region42: #{vision_transformer_forward.11} parent=39 // pred_check_branch
        %297 = sbr.rel (%p295) target = $region44
      $region43: #{vision_transformer_forward.11} parent=39 // pred_region
        %s298 = smul.u32 3, %s15
        %p299 = scmp.lt.s32.totalorder %s298, 5
        %s300 = scalar_select %p299, %s298, 5
        %s301 = smul.addr %s300, 4
        %s302 = scalar_lea.vmem %s3, %s301
      $region44: #{vision_transformer_forward.11} parent=39 // pred_fallthru
        _
    $region40: #{vision_transformer_forward.11} parent=5 // pred_fallthru
      _
  $region6: #{vision_transformer_forward.11} parent=0 // loop_footer
    %s13 = sadd.s32 1, %s9
  $region7: #{vision_transformer_forward.11} parent=0 // loop_footer_branch
    %8 = sbr.rel target = $region3
  $region8: #{vision_transformer_forward.11} parent=0 // loop_exit
    _

// kernel: vision_transformer_forward.10
$region0: #{vision_transformer_forward.10}
  #allocation0 [shape = 'u32[]', space=smem, size = 0x4, offset = 0x4, fixed_abs, tag = 'smem constant byte address 0x4 - core index']
  #allocation1 [shape = 'u32[144,128]{1,0:T(1,128)}', space=vmem, size = 0x12000, scoped, tag = 'internal scratch']
  %s0 = inlined_call_operand.vmem [shape: bf16[32,64], index: 0, kind: input, shape index: {}]
  %s1 = inlined_call_operand.vmem [shape: bf16[64,32], index: 1, kind: input, shape index: {}]
  %s2 = inlined_call_operand.vmem [shape: f32[1,32], index: 2, kind: input, shape index: {}]
  %s3 = inlined_call_operand.vmem [shape: bf16[32,32], index: 3, kind: output, shape index: {}]
  %s4 = sld [smem:[#allocation0]]
  $region45: #{vision_transformer_forward.10} parent=0
    _
  %s6 = ssub.s32 1, %s4
  %s7 = scalar_select 0, %s6, %s4
  loop: start=0, step=1, limit=4
  $region2: #{vision_transformer_forward.10} parent=0 // loop_pre_header
    _
  $region3: #{vision_transformer_forward.10} parent=0 // loop_header
    %s9 = sphi 0, %s13
    %p10 = scmp.ge.s32.totalorder %s9, 4
    %s19 = sphi 0, %s21
    %s22 = sphi 0, %s19
    %s23 = sphi 0, %s22
    %s39 = sphi 0, %s23
    %s43 = sphi 0, %s43
    %s45 = sphi 0, %s43
    %s46 = sphi 0, %s45
    %s60 = sphi 0, %s46
    %s64 = sphi 0, %s64
    %s66 = sphi 0, %s64
    %s67 = sphi 0, %s66
    %s81 = sphi 0, %s67
    %s87 = sphi 0, %s89
    %s90 = sphi 0, %s87
    %s91 = sphi 0, %s90
    %s107 = sphi 0, %s91
  $region4: #{vision_transformer_forward.10} parent=0 // loop_header_branch
    %12 = sbr.rel (%p10) target = $region8
  $region5: #{vision_transformer_forward.10} parent=0 // loop_body
    %s14 = ssub.s32 %s9, 1
    %s15 = ssub.s32 %s9, 2
    %s16 = sadd.s32 %s9, 1
    %s17 = ssub.s32 %s9, %s16
    %p18 = scmp.eq.s32.totalorder %s17, 0
    %s20 = sadd.s32 %s19, 1
    %s21 = scalar_select %p18, %s19, %s20
    %p24 = pneg %p18
    %p25 = scmp.eq.s32.totalorder %s9, 1
    %p26 = por %p24, %p25
    %p27 = scmp.ne.s32.totalorder %s19, %s22
    %p28 = scmp.eq.s32.totalorder %s9, 0
    %p29 = por %p27, %p28
    %p30 = scmp.ne.s32.totalorder %s19, %s22
    %p31 = scmp.eq.s32.totalorder %s14, 1
    %p32 = por %p30, %p31
    %p33 = scmp.ne.s32.totalorder %s22, %s23
    %p34 = scmp.eq.s32.totalorder %s14, 0
    %p35 = por %p33, %p34
    %p36 = scmp.ne.s32.totalorder %s22, %s23
    %p37 = scmp.eq.s32.totalorder %s15, 1
    %p38 = por %p36, %p37
    %p40 = scmp.ne.s32.totalorder %s23, %s39
    %p41 = scmp.eq.s32.totalorder %s15, 0
    %p42 = por %p40, %p41
    %s44 = sadd.s32 %s43, 1
    %p47 = scmp.eq.s32.totalorder %s9, 1
    %p48 = scmp.ne.s32.totalorder %s43, %s45
    %p49 = scmp.eq.s32.totalorder %s9, 0
    %p50 = por %p48, %p49
    %p51 = scmp.ne.s32.totalorder %s43, %s45
    %p52 = scmp.eq.s32.totalorder %s14, 1
    %p53 = por %p51, %p52
    %p54 = scmp.ne.s32.totalorder %s45, %s46
    %p55 = scmp.eq.s32.totalorder %s14, 0
    %p56 = por %p54, %p55
    %p57 = scmp.ne.s32.totalorder %s45, %s46
    %p58 = scmp.eq.s32.totalorder %s15, 1
    %p59 = por %p57, %p58
    %p61 = scmp.ne.s32.totalorder %s46, %s60
    %p62 = scmp.eq.s32.totalorder %s15, 0
    %p63 = por %p61, %p62
    %s65 = sadd.s32 %s64, 1
    %p68 = scmp.eq.s32.totalorder %s9, 1
    %p69 = scmp.ne.s32.totalorder %s64, %s66
    %p70 = scmp.eq.s32.totalorder %s9, 0
    %p71 = por %p69, %p70
    %p72 = scmp.ne.s32.totalorder %s64, %s66
    %p73 = scmp.eq.s32.totalorder %s14, 1
    %p74 = por %p72, %p73
    %p75 = scmp.ne.s32.totalorder %s66, %s67
    %p76 = scmp.eq.s32.totalorder %s14, 0
    %p77 = por %p75, %p76
    %p78 = scmp.ne.s32.totalorder %s66, %s67
    %p79 = scmp.eq.s32.totalorder %s15, 1
    %p80 = por %p78, %p79
    %p82 = scmp.ne.s32.totalorder %s67, %s81
    %p83 = scmp.eq.s32.totalorder %s15, 0
    %p84 = por %p82, %p83
    %s85 = ssub.s32 %s9, %s16
    %p86 = scmp.eq.s32.totalorder %s85, 0
    %s88 = sadd.s32 %s87, 1
    %s89 = scalar_select %p86, %s87, %s88
    %p92 = pneg %p86
    %p93 = scmp.eq.s32.totalorder %s9, 1
    %p94 = por %p92, %p93
    %p95 = scmp.ne.s32.totalorder %s87, %s90
    %p96 = scmp.eq.s32.totalorder %s9, 0
    %p97 = por %p95, %p96
    %p98 = scmp.ne.s32.totalorder %s87, %s90
    %p99 = scmp.eq.s32.totalorder %s14, 1
    %p100 = por %p98, %p99
    %p101 = scmp.ne.s32.totalorder %s90, %s91
    %p102 = scmp.eq.s32.totalorder %s14, 0
    %p103 = por %p101, %p102
    %p104 = scmp.ne.s32.totalorder %s90, %s91
    %p105 = scmp.eq.s32.totalorder %s15, 1
    %p106 = por %p104, %p105
    %p108 = scmp.ne.s32.totalorder %s91, %s107
    %p109 = scmp.eq.s32.totalorder %s15, 0
    %p110 = por %p108, %p109
    %p111 = scmp.le.s32.totalorder 1, %s9
    %p112 = scmp.lt.s32.totalorder %s9, 3
    %p113 = pnand %p111, %p112
    %p114 = pneg %p113
    // Predicated region
    $region9: #{vision_transformer_forward.10} parent=5 // pred_check
      _
    $region10: #{vision_transformer_forward.10} parent=5 // pred_check_branch
      %116 = sbr.rel (%p113) target = $region12
    $region11: #{vision_transformer_forward.10} parent=5 // pred_region
      %s117 = ssub.s32 %s9, 1
      // Predicated region
      $region13: #{vision_transformer_forward.10} parent=11 // pred_check
        %p118 = pneg %p56
      $region14: #{vision_transformer_forward.10} parent=11 // pred_check_branch
        %120 = sbr.rel (%p118) target = $region16
      $region15: #{vision_transformer_forward.10} parent=11 // pred_region
        _
      $region16: #{vision_transformer_forward.10} parent=11 // pred_fallthru
        _
      // Predicated region
      $region17: #{vision_transformer_forward.10} parent=11 // pred_check
        %p121 = pneg %p77
      $region18: #{vision_transformer_forward.10} parent=11 // pred_check_branch
        %123 = sbr.rel (%p121) target = $region20
      $region19: #{vision_transformer_forward.10} parent=11 // pred_region
        _
      $region20: #{vision_transformer_forward.10} parent=11 // pred_fallthru
        _
    $region12: #{vision_transformer_forward.10} parent=5 // pred_fallthru
      _
    %p124 = scmp.lt.s32.totalorder %s9, 2
    // Predicated region
    $region21: #{vision_transformer_forward.10} parent=5 // pred_check
      %p125 = pneg %p124
    $region22: #{vision_transformer_forward.10} parent=5 // pred_check_branch
      %127 = sbr.rel (%p125) target = $region24
    $region23: #{vision_transformer_forward.10} parent=5 // pred_region
      // Predicated region
      $region25: #{vision_transformer_forward.10} parent=23 // pred_check
        %p128 = pneg %p29
      $region26: #{vision_transformer_forward.10} parent=23 // pred_check_branch
        %130 = sbr.rel (%p128) target = $region28
      $region27: #{vision_transformer_forward.10} parent=23 // pred_region
        %s131 = smul.u32 2, %s9
        %p132 = scmp.lt.s32.totalorder %s131, 3
        %s133 = scalar_select %p132, %s131, 3
        %s134 = smul.addr %s133, 4
        %s135 = scalar_lea.vmem %s0, %s134
        %s136 = smul.u32 2, %s9
      $region28: #{vision_transformer_forward.10} parent=23 // pred_fallthru
        _
    $region24: #{vision_transformer_forward.10} parent=5 // pred_fallthru
      _
    %p137 = scmp.le.s32.totalorder 1, %s9
    %p138 = scmp.lt.s32.totalorder %s9, 3
    %p139 = pnand %p137, %p138
    %p140 = pneg %p139
    // Predicated region
    $region29: #{vision_transformer_forward.10} parent=5 // pred_check
      _
    $region30: #{vision_transformer_forward.10} parent=5 // pred_check_branch
      %142 = sbr.rel (%p139) target = $region32
    $region31: #{vision_transformer_forward.10} parent=5 // pred_region
      %s143 = ssub.s32 %s9, 1
      %s144 = smul.u32 2, %s14
      %p145 = scmp.lt.s32.totalorder %s144, 3
      %s146 = scalar_select %p145, %s144, 3
      %s147 = smul.addr %s146, 4
      %s148 = scalar_lea.vmem %s0, %s147
      %p149 = pneg %p35
      %p150 = pneg %p32
      %p151 = pneg %p56
      %p152 = pneg %p53
      %p153 = pneg %p77
      %p154 = pneg %p74
      %p155 = pneg %p103
      %p156 = pneg %p100
      %s157 = smul.u32 2, %s14
      %p158 = scmp.lt.s32.totalorder %s157, 3
      %s159 = scalar_select %p158, %s157, 3
      %s160 = smul.addr %s159, 4
      %s161 = scalar_lea.vmem %s3, %s160
      %s162 = smul.u32 2, %s14
      %p163 = scmp.lt.s32.totalorder %s162, 3
      %s164 = scalar_select %p163, %s162, 3
      %s165 = smul.addr %s164, 4
      %s166 = scalar_lea.vmem %s0, %s165
      %s167 = smul.u32 2, %s14
      %s168 = smul.u32 2, %s14
      %p169 = scmp.lt.s32.totalorder %s168, 3
      %s170 = scalar_select %p169, %s168, 3
      %s171 = smul.addr %s170, 4
      %s172 = scalar_lea.vmem %s3, %s171
      %s173 = smul.u32 2, %s14
      %v175 = vld [vmem:[%s166] sm:$0xf]
      %v176 = vld [vmem:[%s166 + $0x4] sm:$0xf]
      %v177 = vld [vmem:[%s1] sm:$0xf]
      %v178 = vld [vmem:[%s1 + $0x4] sm:$0xf]
      %v179 = vld [vmem:[%s1 + $0x8] sm:$0xf]
      %v180 = vld [vmem:[%s1 + $0xc] sm:$0xf]
      %v181 = vld [vmem:[%s1 + $0x10] sm:$0xf]
      %v182 = vld [vmem:[%s1 + $0x14] sm:$0xf]
      %v183 = vld [vmem:[%s1 + $0x18] sm:$0xf]
      %v184 = vld [vmem:[%s1 + $0x1c] sm:$0xf]
      %v185 = vld [vmem:[%s2] sm:$0x1]
      %v187 = vlaneseq
      %v188 = vshrl.u32 %v187, 7
      %v189 = vsub.s32 0, %v188
      %v190 = vrot.slane %v185, %v189
      %v194 = vunpack.c.l.b16 %v175
      %v195 = vunpack.c.l.b16 %v176
      %v196 = vpack.c.b16 %v195, %v194
      %v205 = vunpack.c.l.b16 %v177
      %v206 = vunpack.c.l.b16 %v178
      %v207 = vunpack.c.l.b16 %v179
      %v208 = vunpack.c.l.b16 %v180
      %v209 = vunpack.c.l.b16 %v181
      %v210 = vunpack.c.l.b16 %v182
      %v211 = vunpack.c.l.b16 %v183
      %v212 = vunpack.c.l.b16 %v184
      %v213 = vpack.c.b16 %v206, %v205
      %v214 = vpack.c.b16 %v208, %v207
      %v215 = vpack.c.b16 %v210, %v209
      %v216 = vpack.c.b16 %v212, %v211
      %vm221 = vcmask 523264
      %v223 = vsel %vm221, %v196, 0
      %225 = vmatprep.subr.bf16.mxu0 0
      %226 = vmatpush1.bf16.msra.mxu0 0
      %227 = vmatprep.subr.bf16.mxu0 0
      %228 = vmatpush1.bf16.msra.mxu0 0
      %229 = vmatprep.subr.bf16.mxu0 0
      %230 = vmatpush1.bf16.msra.mxu0 0
      %231 = vmatprep.subr.bf16.mxu0 0
      %232 = vmatpush1.bf16.msra.mxu0 0
      %233 = vmatprep.subr.bf16.mxu0 0
      %234 = vmatpush1.bf16.msra.mxu0 %v216
      %235 = vmatprep.subr.bf16.mxu0 0
      %236 = vmatpush1.bf16.msra.mxu0 %v215
      %237 = vmatprep.subr.bf16.mxu0 0
      %238 = vmatpush1.bf16.msra.mxu0 %v214
      %239 = vmatprep.subr.bf16.mxu0 0
      %240 = vmatpush1.bf16.msra.mxu0 %v213
      %241 = vmatprep.subr.bf16.mxu0 0
      %242 = vmatpush2.bf16.msra.mxu0 0
      %243 = vmatprep.subr.bf16.mxu0 0
      %244 = vmatpush2.bf16.msra.mxu0 0
      %245 = vmatprep.subr.bf16.mxu0 0
      %246 = vmatpush2.bf16.msra.mxu0 0
      %247 = vmatprep.subr.bf16.mxu0 0
      %248 = vmatpush2.bf16.msra.mxu0 0
      %249 = vmatprep.subr.bf16.mxu0 0
      %250 = vmatpush2.bf16.msra.mxu0 0
      %251 = vmatprep.subr.bf16.mxu0 0
      %252 = vmatpush2.bf16.msra.mxu0 0
      %253 = vmatprep.subr.bf16.mxu0 0
      %254 = vmatpush2.bf16.msra.mxu0 0
      %255 = vmatprep.subr.bf16.mxu0 0
      %256 = vmatpush2.bf16.msra.mxu0 0
      %257 = vmatprep.mubr.bf16.mxu0 0
      %258 = vmatmul.mubr.bf16.gmra.mxu0 %v223
      %v259 = vpop.f32.mrf.mxu0
      %v260 = vadd.f32 %v190, %v259
      %v261 = vpop.f32.mrf.mxu0
      %v262 = vpop.f32.mrf.mxu0
      %v263 = vadd.f32 %v190, %v262
      %v264 = vpop.f32.mrf.mxu0
      %265 = vdwg.mxu0
      %v266 = vpack.c.bf16 %v263, %v260
      %v268 = vunpack.c.l.b16 %v266
      %v269 = vunpack.c.h.b16 %v266
      %v270 = vpack.c.b16 %v268, %v268
      %v271 = vpack.c.b16 %v269, %v269
      %vm274 = vcmask 257024
      %275 = vst.msk [vmem:[%s172] sm:$0xf] %vm274, %v270
      %276 = vst.msk [vmem:[%s172 + $0x4] sm:$0xf] %vm274, %v271
      %s277 = smul.u32 2, %s14
      %p278 = scmp.lt.s32.totalorder %s277, 3
      %s279 = scalar_select %p278, %s277, 3
      %s280 = smul.addr %s279, 4
      %s281 = scalar_lea.vmem %s3, %s280
      // Predicated region
      $region33: #{vision_transformer_forward.10} parent=31 // pred_check
        %p282 = pneg %p100
      $region34: #{vision_transformer_forward.10} parent=31 // pred_check_branch
        %284 = sbr.rel (%p282) target = $region36
      $region35: #{vision_transformer_forward.10} parent=31 // pred_region
        %s285 = smul.u32 2, %s14
      $region36: #{vision_transformer_forward.10} parent=31 // pred_fallthru
        _
    $region32: #{vision_transformer_forward.10} parent=5 // pred_fallthru
      _
    %p286 = scmp.le.s32.totalorder 2, %s9
    // Predicated region
    $region37: #{vision_transformer_forward.10} parent=5 // pred_check
      %p287 = pneg %p286
    $region38: #{vision_transformer_forward.10} parent=5 // pred_check_branch
      %289 = sbr.rel (%p287) target = $region40
    $region39: #{vision_transformer_forward.10} parent=5 // pred_region
      %s290 = ssub.s32 %s9, 2
      // Predicated region
      $region41: #{vision_transformer_forward.10} parent=39 // pred_check
        %p291 = pneg %p106
      $region42: #{vision_transformer_forward.10} parent=39 // pred_check_branch
        %293 = sbr.rel (%p291) target = $region44
      $region43: #{vision_transformer_forward.10} parent=39 // pred_region
        %s294 = smul.u32 2, %s15
        %p295 = scmp.lt.s32.totalorder %s294, 3
        %s296 = scalar_select %p295, %s294, 3
        %s297 = smul.addr %s296, 4
        %s298 = scalar_lea.vmem %s3, %s297
      $region44: #{vision_transformer_forward.10} parent=39 // pred_fallthru
        _
    $region40: #{vision_transformer_forward.10} parent=5 // pred_fallthru
      _
  $region6: #{vision_transformer_forward.10} parent=0 // loop_footer
    %s13 = sadd.s32 1, %s9
  $region7: #{vision_transformer_forward.10} parent=0 // loop_footer_branch
    %8 = sbr.rel target = $region3
  $region8: #{vision_transformer_forward.10} parent=0 // loop_exit
    _

// kernel: vision_transformer_forward.13
$region0: #{vision_transformer_forward.13}
  #allocation0 [shape = 'u32[]', space=smem, size = 0x4, offset = 0x4, fixed_abs, tag = 'smem constant byte address 0x4 - core index']
  #allocation1 [shape = 'u32[144,128]{1,0:T(1,128)}', space=vmem, size = 0x12000, scoped, tag = 'internal scratch']
  %s0 = inlined_call_operand.vmem [shape: bf16[48,32], index: 0, kind: input, shape index: {}]
  %s1 = inlined_call_operand.vmem [shape: bf16[32,32], index: 1, kind: input, shape index: {}]
  %s2 = inlined_call_operand.vmem [shape: f32[1,32], index: 2, kind: input, shape index: {}]
  %s3 = inlined_call_operand.vmem [shape: bf16[48,32], index: 3, kind: input, shape index: {}]
  %s4 = inlined_call_operand.vmem [shape: f32[1,32], index: 4, kind: input, shape index: {}]
  %s5 = inlined_call_operand.vmem [shape: f32[1,32], index: 5, kind: input, shape index: {}]
  %s6 = inlined_call_operand.vmem [shape: bf16[48,32], index: 6, kind: output, shape index: {}]
  %s7 = sld [smem:[#allocation0]]
  $region57: #{vision_transformer_forward.13} parent=0
    _
  %s9 = ssub.s32 1, %s7
  %s10 = scalar_select 0, %s9, %s7
  loop: start=0, step=1, limit=4
  $region2: #{vision_transformer_forward.13} parent=0 // loop_pre_header
    _
  $region3: #{vision_transformer_forward.13} parent=0 // loop_header
    %s12 = sphi 0, %s16
    %p13 = scmp.ge.s32.totalorder %s12, 4
    %s22 = sphi 0, %s24
    %s25 = sphi 0, %s22
    %s26 = sphi 0, %s25
    %s42 = sphi 0, %s26
    %s46 = sphi 0, %s46
    %s48 = sphi 0, %s46
    %s49 = sphi 0, %s48
    %s63 = sphi 0, %s49
    %s67 = sphi 0, %s67
    %s69 = sphi 0, %s67
    %s70 = sphi 0, %s69
    %s84 = sphi 0, %s70
    %s90 = sphi 0, %s92
    %s93 = sphi 0, %s90
    %s94 = sphi 0, %s93
    %s110 = sphi 0, %s94
    %s114 = sphi 0, %s114
    %s116 = sphi 0, %s114
    %s117 = sphi 0, %s116
    %s131 = sphi 0, %s117
    %s135 = sphi 0, %s135
    %s137 = sphi 0, %s135
    %s138 = sphi 0, %s137
    %s152 = sphi 0, %s138
    %s158 = sphi 0, %s160
    %s161 = sphi 0, %s158
    %s162 = sphi 0, %s161
    %s178 = sphi 0, %s162
  $region4: #{vision_transformer_forward.13} parent=0 // loop_header_branch
    %15 = sbr.rel (%p13) target = $region8
  $region5: #{vision_transformer_forward.13} parent=0 // loop_body
    %s17 = ssub.s32 %s12, 1
    %s18 = ssub.s32 %s12, 2
    %s19 = sadd.s32 %s12, 1
    %s20 = ssub.s32 %s12, %s19
    %p21 = scmp.eq.s32.totalorder %s20, 0
    %s23 = sadd.s32 %s22, 1
    %s24 = scalar_select %p21, %s22, %s23
    %p27 = pneg %p21
    %p28 = scmp.eq.s32.totalorder %s12, 1
    %p29 = por %p27, %p28
    %p30 = scmp.ne.s32.totalorder %s22, %s25
    %p31 = scmp.eq.s32.totalorder %s12, 0
    %p32 = por %p30, %p31
    %p33 = scmp.ne.s32.totalorder %s22, %s25
    %p34 = scmp.eq.s32.totalorder %s17, 1
    %p35 = por %p33, %p34
    %p36 = scmp.ne.s32.totalorder %s25, %s26
    %p37 = scmp.eq.s32.totalorder %s17, 0
    %p38 = por %p36, %p37
    %p39 = scmp.ne.s32.totalorder %s25, %s26
    %p40 = scmp.eq.s32.totalorder %s18, 1
    %p41 = por %p39, %p40
    %p43 = scmp.ne.s32.totalorder %s26, %s42
    %p44 = scmp.eq.s32.totalorder %s18, 0
    %p45 = por %p43, %p44
    %s47 = sadd.s32 %s46, 1
    %p50 = scmp.eq.s32.totalorder %s12, 1
    %p51 = scmp.ne.s32.totalorder %s46, %s48
    %p52 = scmp.eq.s32.totalorder %s12, 0
    %p53 = por %p51, %p52
    %p54 = scmp.ne.s32.totalorder %s46, %s48
    %p55 = scmp.eq.s32.totalorder %s17, 1
    %p56 = por %p54, %p55
    %p57 = scmp.ne.s32.totalorder %s48, %s49
    %p58 = scmp.eq.s32.totalorder %s17, 0
    %p59 = por %p57, %p58
    %p60 = scmp.ne.s32.totalorder %s48, %s49
    %p61 = scmp.eq.s32.totalorder %s18, 1
    %p62 = por %p60, %p61
    %p64 = scmp.ne.s32.totalorder %s49, %s63
    %p65 = scmp.eq.s32.totalorder %s18, 0
    %p66 = por %p64, %p65
    %s68 = sadd.s32 %s67, 1
    %p71 = scmp.eq.s32.totalorder %s12, 1
    %p72 = scmp.ne.s32.totalorder %s67, %s69
    %p73 = scmp.eq.s32.totalorder %s12, 0
    %p74 = por %p72, %p73
    %p75 = scmp.ne.s32.totalorder %s67, %s69
    %p76 = scmp.eq.s32.totalorder %s17, 1
    %p77 = por %p75, %p76
    %p78 = scmp.ne.s32.totalorder %s69, %s70
    %p79 = scmp.eq.s32.totalorder %s17, 0
    %p80 = por %p78, %p79
    %p81 = scmp.ne.s32.totalorder %s69, %s70
    %p82 = scmp.eq.s32.totalorder %s18, 1
    %p83 = por %p81, %p82
    %p85 = scmp.ne.s32.totalorder %s70, %s84
    %p86 = scmp.eq.s32.totalorder %s18, 0
    %p87 = por %p85, %p86
    %s88 = ssub.s32 %s12, %s19
    %p89 = scmp.eq.s32.totalorder %s88, 0
    %s91 = sadd.s32 %s90, 1
    %s92 = scalar_select %p89, %s90, %s91
    %p95 = pneg %p89
    %p96 = scmp.eq.s32.totalorder %s12, 1
    %p97 = por %p95, %p96
    %p98 = scmp.ne.s32.totalorder %s90, %s93
    %p99 = scmp.eq.s32.totalorder %s12, 0
    %p100 = por %p98, %p99
    %p101 = scmp.ne.s32.totalorder %s90, %s93
    %p102 = scmp.eq.s32.totalorder %s17, 1
    %p103 = por %p101, %p102
    %p104 = scmp.ne.s32.totalorder %s93, %s94
    %p105 = scmp.eq.s32.totalorder %s17, 0
    %p106 = por %p104, %p105
    %p107 = scmp.ne.s32.totalorder %s93, %s94
    %p108 = scmp.eq.s32.totalorder %s18, 1
    %p109 = por %p107, %p108
    %p111 = scmp.ne.s32.totalorder %s94, %s110
    %p112 = scmp.eq.s32.totalorder %s18, 0
    %p113 = por %p111, %p112
    %s115 = sadd.s32 %s114, 1
    %p118 = scmp.eq.s32.totalorder %s12, 1
    %p119 = scmp.ne.s32.totalorder %s114, %s116
    %p120 = scmp.eq.s32.totalorder %s12, 0
    %p121 = por %p119, %p120
    %p122 = scmp.ne.s32.totalorder %s114, %s116
    %p123 = scmp.eq.s32.totalorder %s17, 1
    %p124 = por %p122, %p123
    %p125 = scmp.ne.s32.totalorder %s116, %s117
    %p126 = scmp.eq.s32.totalorder %s17, 0
    %p127 = por %p125, %p126
    %p128 = scmp.ne.s32.totalorder %s116, %s117
    %p129 = scmp.eq.s32.totalorder %s18, 1
    %p130 = por %p128, %p129
    %p132 = scmp.ne.s32.totalorder %s117, %s131
    %p133 = scmp.eq.s32.totalorder %s18, 0
    %p134 = por %p132, %p133
    %s136 = sadd.s32 %s135, 1
    %p139 = scmp.eq.s32.totalorder %s12, 1
    %p140 = scmp.ne.s32.totalorder %s135, %s137
    %p141 = scmp.eq.s32.totalorder %s12, 0
    %p142 = por %p140, %p141
    %p143 = scmp.ne.s32.totalorder %s135, %s137
    %p144 = scmp.eq.s32.totalorder %s17, 1
    %p145 = por %p143, %p144
    %p146 = scmp.ne.s32.totalorder %s137, %s138
    %p147 = scmp.eq.s32.totalorder %s17, 0
    %p148 = por %p146, %p147
    %p149 = scmp.ne.s32.totalorder %s137, %s138
    %p150 = scmp.eq.s32.totalorder %s18, 1
    %p151 = por %p149, %p150
    %p153 = scmp.ne.s32.totalorder %s138, %s152
    %p154 = scmp.eq.s32.totalorder %s18, 0
    %p155 = por %p153, %p154
    %s156 = ssub.s32 %s12, %s19
    %p157 = scmp.eq.s32.totalorder %s156, 0
    %s159 = sadd.s32 %s158, 1
    %s160 = scalar_select %p157, %s158, %s159
    %p163 = pneg %p157
    %p164 = scmp.eq.s32.totalorder %s12, 1
    %p165 = por %p163, %p164
    %p166 = scmp.ne.s32.totalorder %s158, %s161
    %p167 = scmp.eq.s32.totalorder %s12, 0
    %p168 = por %p166, %p167
    %p169 = scmp.ne.s32.totalorder %s158, %s161
    %p170 = scmp.eq.s32.totalorder %s17, 1
    %p171 = por %p169, %p170
    %p172 = scmp.ne.s32.totalorder %s161, %s162
    %p173 = scmp.eq.s32.totalorder %s17, 0
    %p174 = por %p172, %p173
    %p175 = scmp.ne.s32.totalorder %s161, %s162
    %p176 = scmp.eq.s32.totalorder %s18, 1
    %p177 = por %p175, %p176
    %p179 = scmp.ne.s32.totalorder %s162, %s178
    %p180 = scmp.eq.s32.totalorder %s18, 0
    %p181 = por %p179, %p180
    %p182 = scmp.le.s32.totalorder 1, %s12
    %p183 = scmp.lt.s32.totalorder %s12, 3
    %p184 = pnand %p182, %p183
    %p185 = pneg %p184
    // Predicated region
    $region9: #{vision_transformer_forward.13} parent=5 // pred_check
      _
    $region10: #{vision_transformer_forward.13} parent=5 // pred_check_branch
      %187 = sbr.rel (%p184) target = $region12
    $region11: #{vision_transformer_forward.13} parent=5 // pred_region
      %s188 = ssub.s32 %s12, 1
      // Predicated region
      $region13: #{vision_transformer_forward.13} parent=11 // pred_check
        %p189 = pneg %p59
      $region14: #{vision_transformer_forward.13} parent=11 // pred_check_branch
        %191 = sbr.rel (%p189) target = $region16
      $region15: #{vision_transformer_forward.13} parent=11 // pred_region
        _
      $region16: #{vision_transformer_forward.13} parent=11 // pred_fallthru
        _
      // Predicated region
      $region17: #{vision_transformer_forward.13} parent=11 // pred_check
        %p192 = pneg %p80
      $region18: #{vision_transformer_forward.13} parent=11 // pred_check_branch
        %194 = sbr.rel (%p192) target = $region20
      $region19: #{vision_transformer_forward.13} parent=11 // pred_region
        _
      $region20: #{vision_transformer_forward.13} parent=11 // pred_fallthru
        _
      // Predicated region
      $region21: #{vision_transformer_forward.13} parent=11 // pred_check
        %p195 = pneg %p127
      $region22: #{vision_transformer_forward.13} parent=11 // pred_check_branch
        %197 = sbr.rel (%p195) target = $region24
      $region23: #{vision_transformer_forward.13} parent=11 // pred_region
        _
      $region24: #{vision_transformer_forward.13} parent=11 // pred_fallthru
        _
      // Predicated region
      $region25: #{vision_transformer_forward.13} parent=11 // pred_check
        %p198 = pneg %p148
      $region26: #{vision_transformer_forward.13} parent=11 // pred_check_branch
        %200 = sbr.rel (%p198) target = $region28
      $region27: #{vision_transformer_forward.13} parent=11 // pred_region
        _
      $region28: #{vision_transformer_forward.13} parent=11 // pred_fallthru
        _
    $region12: #{vision_transformer_forward.13} parent=5 // pred_fallthru
      _
    %p201 = scmp.lt.s32.totalorder %s12, 2
    // Predicated region
    $region29: #{vision_transformer_forward.13} parent=5 // pred_check
      %p202 = pneg %p201
    $region30: #{vision_transformer_forward.13} parent=5 // pred_check_branch
      %204 = sbr.rel (%p202) target = $region32
    $region31: #{vision_transformer_forward.13} parent=5 // pred_region
      // Predicated region
      $region33: #{vision_transformer_forward.13} parent=31 // pred_check
        %p205 = pneg %p32
      $region34: #{vision_transformer_forward.13} parent=31 // pred_check_branch
        %207 = sbr.rel (%p205) target = $region36
      $region35: #{vision_transformer_forward.13} parent=31 // pred_region
        %s208 = smul.u32 3, %s12
        %p209 = scmp.lt.s32.totalorder %s208, 5
        %s210 = scalar_select %p209, %s208, 5
        %s211 = smul.addr %s210, 4
        %s212 = scalar_lea.vmem %s0, %s211
        %s213 = smul.u32 3, %s12
      $region36: #{vision_transformer_forward.13} parent=31 // pred_fallthru
        _
      // Predicated region
      $region37: #{vision_transformer_forward.13} parent=31 // pred_check
        %p214 = pneg %p100
      $region38: #{vision_transformer_forward.13} parent=31 // pred_check_branch
        %216 = sbr.rel (%p214) target = $region40
      $region39: #{vision_transformer_forward.13} parent=31 // pred_region
        %s217 = smul.u32 3, %s12
        %p218 = scmp.lt.s32.totalorder %s217, 5
        %s219 = scalar_select %p218, %s217, 5
        %s220 = smul.addr %s219, 4
        %s221 = scalar_lea.vmem %s3, %s220
        %s222 = smul.u32 3, %s12
      $region40: #{vision_transformer_forward.13} parent=31 // pred_fallthru
        _
    $region32: #{vision_transformer_forward.13} parent=5 // pred_fallthru
      _
    %p223 = scmp.le.s32.totalorder 1, %s12
    %p224 = scmp.lt.s32.totalorder %s12, 3
    %p225 = pnand %p223, %p224
    %p226 = pneg %p225
    // Predicated region
    $region41: #{vision_transformer_forward.13} parent=5 // pred_check
      _
    $region42: #{vision_transformer_forward.13} parent=5 // pred_check_branch
      %228 = sbr.rel (%p225) target = $region44
    $region43: #{vision_transformer_forward.13} parent=5 // pred_region
      %s229 = ssub.s32 %s12, 1
      %s230 = smul.u32 3, %s17
      %p231 = scmp.lt.s32.totalorder %s230, 5
      %s232 = scalar_select %p231, %s230, 5
      %s233 = smul.addr %s232, 4
      %s234 = scalar_lea.vmem %s0, %s233
      %p235 = pneg %p38
      %p236 = pneg %p35
      %p237 = pneg %p59
      %p238 = pneg %p56
      %p239 = pneg %p80
      %p240 = pneg %p77
      %s241 = smul.u32 3, %s17
      %p242 = scmp.lt.s32.totalorder %s241, 5
      %s243 = scalar_select %p242, %s241, 5
      %s244 = smul.addr %s243, 4
      %s245 = scalar_lea.vmem %s3, %s244
      %p246 = pneg %p106
      %p247 = pneg %p103
      %p248 = pneg %p127
      %p249 = pneg %p124
      %p250 = pneg %p148
      %p251 = pneg %p145
      %p252 = pneg %p174
      %p253 = pneg %p171
      %s254 = smul.u32 3, %s17
      %p255 = scmp.lt.s32.totalorder %s254, 5
      %s256 = scalar_select %p255, %s254, 5
      %s257 = smul.addr %s256, 4
      %s258 = scalar_lea.vmem %s6, %s257
      %s259 = smul.u32 3, %s17
      %p260 = scmp.lt.s32.totalorder %s259, 5
      %s261 = scalar_select %p260, %s259, 5
      %s262 = smul.addr %s261, 4
      %s263 = scalar_lea.vmem %s0, %s262
      %s264 = smul.u32 3, %s17
      %s265 = smul.u32 3, %s17
      %p266 = scmp.lt.s32.totalorder %s265, 5
      %s267 = scalar_select %p266, %s265, 5
      %s268 = smul.addr %s267, 4
      %s269 = scalar_lea.vmem %s3, %s268
      %s270 = smul.u32 3, %s17
      %s271 = smul.u32 3, %s17
      %p272 = scmp.lt.s32.totalorder %s271, 5
      %s273 = scalar_select %p272, %s271, 5
      %s274 = smul.addr %s273, 4
      %s275 = scalar_lea.vmem %s6, %s274
      %s276 = smul.u32 3, %s17
      %v278 = vld [vmem:[%s263] sm:$0xf]
      %v279 = vld [vmem:[%s263 + $0x4] sm:$0xf]
      %v280 = vld [vmem:[%s263 + $0x8] sm:$0xf]
      %v281 = vld [vmem:[%s1] sm:$0xf]
      %v282 = vld [vmem:[%s1 + $0x4] sm:$0xf]
      %v283 = vld [vmem:[%s1 + $0x8] sm:$0xf]
      %v284 = vld [vmem:[%s1 + $0xc] sm:$0xf]
      %v285 = vld [vmem:[%s2] sm:$0x1]
      %v287 = vlaneseq
      %v288 = vshrl.u32 %v287, 7
      %v289 = vsub.s32 0, %v288
      %v290 = vrot.slane %v285, %v289
      %v295 = vunpack.c.l.b16 %v278
      %v296 = vunpack.c.l.b16 %v279
      %v297 = vunpack.c.l.b16 %v280
      %v298 = vpack.c.b16 %v296, %v295
      %v299 = vpack.c.b16 %v297, %v297
      %v304 = vunpack.c.l.b16 %v281
      %v305 = vunpack.c.l.b16 %v282
      %v306 = vunpack.c.l.b16 %v283
      %v307 = vunpack.c.l.b16 %v284
      %v308 = vpack.c.b16 %v305, %v304
      %v309 = vpack.c.b16 %v307, %v306
      %vm312 = vcmask 261120
      %v314 = vsel %vm312, %v298, 0
      %v317 = vsel %vm312, %v299, 0
      %319 = vmatprep.subr.bf16.mxu0 0
      %320 = vmatpush1.bf16.msra.mxu0 0
      %321 = vmatprep.subr.bf16.mxu0 0
      %322 = vmatpush1.bf16.msra.mxu0 0
      %323 = vmatprep.subr.bf16.mxu0 0
      %324 = vmatpush1.bf16.msra.mxu0 0
      %325 = vmatprep.subr.bf16.mxu0 0
      %326 = vmatpush1.bf16.msra.mxu0 0
      %327 = vmatprep.subr.bf16.mxu0 0
      %328 = vmatpush1.bf16.msra.mxu0 0
      %329 = vmatprep.subr.bf16.mxu0 0
      %330 = vmatpush1.bf16.msra.mxu0 0
      %331 = vmatprep.subr.bf16.mxu0 0
      %332 = vmatpush1.bf16.msra.mxu0 %v309
      %333 = vmatprep.subr.bf16.mxu0 0
      %334 = vmatpush1.bf16.msra.mxu0 %v308
      %335 = vmatprep.subr.bf16.mxu0 0
      %336 = vmatpush2.bf16.msra.mxu0 0
      %337 = vmatprep.subr.bf16.mxu0 0
      %338 = vmatpush2.bf16.msra.mxu0 0
      %339 = vmatprep.subr.bf16.mxu0 0
      %340 = vmatpush2.bf16.msra.mxu0 0
      %341 = vmatprep.subr.bf16.mxu0 0
      %342 = vmatpush2.bf16.msra.mxu0 0
      %343 = vmatprep.subr.bf16.mxu0 0
      %344 = vmatpush2.bf16.msra.mxu0 0
      %345 = vmatprep.subr.bf16.mxu0 0
      %346 = vmatpush2.bf16.msra.mxu0 0
      %347 = vmatprep.subr.bf16.mxu0 0
      %348 = vmatpush2.bf16.msra.mxu0 0
      %349 = vmatprep.subr.bf16.mxu0 0
      %350 = vmatpush2.bf16.msra.mxu0 0
      %351 = vmatprep.mubr.bf16.mxu0 0
      %352 = vmatmul.mubr.bf16.gmra.mxu0 %v314
      %v353 = vpop.f32.mrf.mxu0
      %v354 = vadd.f32 %v290, %v353
      %v355 = vpop.f32.mrf.mxu0
      %v356 = vpop.f32.mrf.mxu0
      %v357 = vadd.f32 %v290, %v356
      %v358 = vpop.f32.mrf.mxu0
      %359 = vmatprep.mubr.bf16.mxu0 0
      %360 = vmatmul.mubr.bf16.gmra.mxu0 %v317
      %v361 = vpop.f32.mrf.mxu0
      %v362 = vadd.f32 %v290, %v361
      %v363 = vpop.f32.mrf.mxu0
      %v364 = vpop.f32.mrf.mxu0
      %v365 = vpop.f32.mrf.mxu0
      %366 = vdwg.mxu0
      %v367 = vld [vmem:[%s269] sm:$0xf]
      %v368 = vld [vmem:[%s269 + $0x4] sm:$0xf]
      %v369 = vld [vmem:[%s269 + $0x8] sm:$0xf]
      %v370 = vunpack.c.l.bf16 %v367
      %v371 = vunpack.c.l.bf16 %v368
      %v372 = vunpack.c.l.bf16 %v369
      %v373 = vadd.f32 %v354, %v370
      %v374 = vadd.f32 %v357, %v371
      %v375 = vadd.f32 %v362, %v372
      %v376 = vsel %vm312, %v373, 0.0
      %377 = vadd.xlane.f32.xlu0 %v376
      %v378 = vpop.xlane.xlu0 %377
      %v379 = vsel %vm312, %v374, 0.0
      %380 = vadd.xlane.f32.xlu0 %v379
      %v381 = vpop.xlane.xlu0 %380
      %v382 = vsel %vm312, %v375, 0.0
      %383 = vadd.xlane.f32.xlu0 %v382
      %v384 = vpop.xlane.xlu0 %383
      %v385 = vrcp.pop 32.0
      %v386 = vmul.f32 %v378, %v385
      %v387 = vmul.f32 %v381, %v385
      %v388 = vmul.f32 %v384, %v385
      %v389 = vsub.f32 %v373, %v386
      %v390 = vsub.f32 %v374, %v387
      %v391 = vsub.f32 %v375, %v388
      %v392 = vmul.f32 %v389, %v389
      %v393 = vmul.f32 %v390, %v390
      %v394 = vmul.f32 %v391, %v391
      %v395 = vsel %vm312, %v392, 0.0
      %396 = vadd.xlane.f32.xlu0 %v395
      %v397 = vpop.xlane.xlu0 %396
      %v398 = vsel %vm312, %v393, 0.0
      %399 = vadd.xlane.f32.xlu0 %v398
      %v400 = vpop.xlane.xlu0 %399
      %v401 = vsel %vm312, %v394, 0.0
      %402 = vadd.xlane.f32.xlu0 %v401
      %v403 = vpop.xlane.xlu0 %402
      %v404 = vmul.f32 %v397, %v385
      %v405 = vmul.f32 %v400, %v385
      %v406 = vmul.f32 %v403, %v385
      %v407 = vadd.f32 %v404, 1e-05
      %v408 = vadd.f32 %v405, 1e-05
      %v409 = vadd.f32 %v406, 1e-05
      %v410 = vrsqrt.pop %v407
      %v411 = vrsqrt.pop %v408
      %v412 = vrsqrt.pop %v409
      %v413 = vmul.f32 %v389, %v410
      %v414 = vmul.f32 %v390, %v411
      %v415 = vmul.f32 %v391, %v412
      %v416 = vld [vmem:[%s4] sm:$0x1]
      %v418 = vlaneseq
      %v419 = vshrl.u32 %v418, 7
      %v420 = vsub.s32 0, %v419
      %v421 = vrot.slane %v416, %v420
      %v423 = vmul.f32 %v413, %v421
      %v424 = vmul.f32 %v414, %v421
      %v425 = vmul.f32 %v415, %v421
      %v426 = vld [vmem:[%s5] sm:$0x1]
      %v428 = vlaneseq
      %v429 = vshrl.u32 %v428, 7
      %v430 = vsub.s32 0, %v429
      %v431 = vrot.slane %v426, %v430
      %v433 = vadd.f32 %v423, %v431
      %v434 = vadd.f32 %v424, %v431
      %v435 = vadd.f32 %v425, %v431
      %v436 = vpack.c.bf16 %v434, %v433
      %v437 = vpack.c.bf16 %v435, %v435
      %v440 = vunpack.c.l.b16 %v436
      %v441 = vunpack.c.h.b16 %v436
      %v442 = vunpack.c.l.b16 %v437
      %v443 = vpack.c.b16 %v440, %v440
      %v444 = vpack.c.b16 %v441, %v441
      %v445 = vpack.c.b16 %v442, %v442
      %vm449 = vcmask 257024
      %450 = vst.msk [vmem:[%s275] sm:$0xf] %vm449, %v443
      %451 = vst.msk [vmem:[%s275 + $0x4] sm:$0xf] %vm449, %v444
      %452 = vst.msk [vmem:[%s275 + $0x8] sm:$0xf] %vm449, %v445
      %s453 = smul.u32 3, %s17
      %p454 = scmp.lt.s32.totalorder %s453, 5
      %s455 = scalar_select %p454, %s453, 5
      %s456 = smul.addr %s455, 4
      %s457 = scalar_lea.vmem %s6, %s456
      // Predicated region
      $region45: #{vision_transformer_forward.13} parent=43 // pred_check
        %p458 = pneg %p171
      $region46: #{vision_transformer_forward.13} parent=43 // pred_check_branch
        %460 = sbr.rel (%p458) target = $region48
      $region47: #{vision_transformer_forward.13} parent=43 // pred_region
        %s461 = smul.u32 3, %s17
      $region48: #{vision_transformer_forward.13} parent=43 // pred_fallthru
        _
    $region44: #{vision_transformer_forward.13} parent=5 // pred_fallthru
      _
    %p462 = scmp.le.s32.totalorder 2, %s12
    // Predicated region
    $region49: #{vision_transformer_forward.13} parent=5 // pred_check
      %p463 = pneg %p462
    $region50: #{vision_transformer_forward.13} parent=5 // pred_check_branch
      %465 = sbr.rel (%p463) target = $region52
    $region51: #{vision_transformer_forward.13} parent=5 // pred_region
      %s466 = ssub.s32 %s12, 2
      // Predicated region
      $region53: #{vision_transformer_forward.13} parent=51 // pred_check
        %p467 = pneg %p177
      $region54: #{vision_transformer_forward.13} parent=51 // pred_check_branch
        %469 = sbr.rel (%p467) target = $region56
      $region55: #{vision_transformer_forward.13} parent=51 // pred_region
        %s470 = smul.u32 3, %s18
        %p471 = scmp.lt.s32.totalorder %s470, 5
        %s472 = scalar_select %p471, %s470, 5
        %s473 = smul.addr %s472, 4
        %s474 = scalar_lea.vmem %s6, %s473
      $region56: #{vision_transformer_forward.13} parent=51 // pred_fallthru
        _
    $region52: #{vision_transformer_forward.13} parent=5 // pred_fallthru
      _
  $region6: #{vision_transformer_forward.13} parent=0 // loop_footer
    %s16 = sadd.s32 1, %s12
  $region7: #{vision_transformer_forward.13} parent=0 // loop_footer_branch
    %11 = sbr.rel target = $region3
  $region8: #{vision_transformer_forward.13} parent=0 // loop_exit
    _

// kernel: vision_transformer_forward.19
$region0: #{vision_transformer_forward.19}
  #allocation0 [shape = 'u32[]', space=smem, size = 0x4, offset = 0x4, fixed_abs, tag = 'smem constant byte address 0x4 - core index']
  #allocation1 [shape = 'u32[144,128]{1,0:T(1,128)}', space=vmem, size = 0x12000, scoped, tag = 'internal scratch']
  %s0 = inlined_call_operand.vmem [shape: bf16[2,32], index: 0, kind: input, shape index: {}]
  %s1 = inlined_call_operand.vmem [shape: bf16[32,128], index: 1, kind: input, shape index: {}]
  %s2 = inlined_call_operand.vmem [shape: f32[1,128], index: 2, kind: input, shape index: {}]
  %s3 = inlined_call_operand.hbm [shape: f32[2,128], index: 3, kind: output, shape index: {}]
  %s4 = sld [smem:[#allocation0]]
  $region22: #{vision_transformer_forward.19} parent=0
    _
  %s6 = ssub.s32 1, %s4
  %s7 = scalar_select 0, %s6, %s4
  $region1: #{vision_transformer_forward.19} parent=0
    #allocation2 [shape = 'u8[1024]{0}', space=vmem, size = 0x400, scoped, tag = 'output window, operand 0, single buffered']
    #allocation3 [shape = 's32[1]{0}', space=sflag, size = 0x4, scoped, tag = 'scoped memory for vision_transformer_forward.19']
    %8 = vsyncpa [#allocation3], 0
    // Predicated region
    $region2: #{vision_transformer_forward.19} parent=1 // pred_check
      _
    $region3: #{vision_transformer_forward.19} parent=1 // pred_check_branch
      %10 = sbr.rel (0) target = $region5
    $region4: #{vision_transformer_forward.19} parent=1 // pred_region
      _
    $region5: #{vision_transformer_forward.19} parent=1 // pred_fallthru
      _
    // Predicated region
    $region6: #{vision_transformer_forward.19} parent=1 // pred_check
      _
    $region7: #{vision_transformer_forward.19} parent=1 // pred_check_branch
      %12 = sbr.rel (0) target = $region9
    $region8: #{vision_transformer_forward.19} parent=1 // pred_region
      _
    $region9: #{vision_transformer_forward.19} parent=1 // pred_fallthru
      _
    // Predicated region
    $region10: #{vision_transformer_forward.19} parent=1 // pred_check
      _
    $region11: #{vision_transformer_forward.19} parent=1 // pred_check_branch
      %14 = sbr.rel (0) target = $region13
    $region12: #{vision_transformer_forward.19} parent=1 // pred_region
      _
    $region13: #{vision_transformer_forward.19} parent=1 // pred_fallthru
      _
    %v16 = vld [vmem:[%s0] sm:$0x1]
    %v17 = vld [vmem:[%s1] sm:$0xf]
    %v18 = vld [vmem:[%s1 + $0x4] sm:$0xf]
    %v19 = vld [vmem:[%s1 + $0x8] sm:$0xf]
    %v20 = vld [vmem:[%s1 + $0xc] sm:$0xf]
    %v21 = vld [vmem:[%s2] sm:$0x1]
    %v23 = vlaneseq
    %v24 = vshrl.u32 %v23, 7
    %v25 = vsub.s32 0, %v24
    %v26 = vrot.slane %v21, %v25
    %v32 = vunpack.c.l.b16 %v17
    %v33 = vunpack.c.l.b16 %v18
    %v34 = vunpack.c.l.b16 %v19
    %v35 = vunpack.c.l.b16 %v20
    %v36 = vpack.c.b16 %v33, %v32
    %v37 = vpack.c.b16 %v35, %v34
    %vm40 = vcmask 261120
    %v42 = vsel %vm40, %v16, 0
    %44 = vmatprep.subr.bf16.mxu0 0
    %45 = vmatpush1.bf16.msra.mxu0 0
    %46 = vmatprep.subr.bf16.mxu0 0
    %47 = vmatpush1.bf16.msra.mxu0 0
    %48 = vmatprep.subr.bf16.mxu0 0
    %49 = vmatpush1.bf16.msra.mxu0 0
    %50 = vmatprep.subr.bf16.mxu0 0
    %51 = vmatpush1.bf16.msra.mxu0 0
    %52 = vmatprep.subr.bf16.mxu0 0
    %53 = vmatpush1.bf16.msra.mxu0 0
    %54 = vmatprep.subr.bf16.mxu0 0
    %55 = vmatpush1.bf16.msra.mxu0 0
    %56 = vmatprep.subr.bf16.mxu0 0
    %57 = vmatpush1.bf16.msra.mxu0 %v37
    %58 = vmatprep.subr.bf16.mxu0 0
    %59 = vmatpush1.bf16.msra.mxu0 %v36
    %60 = vmatprep.subr.bf16.mxu0 0
    %61 = vmatpush2.bf16.msra.mxu0 0
    %62 = vmatprep.subr.bf16.mxu0 0
    %63 = vmatpush2.bf16.msra.mxu0 0
    %64 = vmatprep.subr.bf16.mxu0 0
    %65 = vmatpush2.bf16.msra.mxu0 0
    %66 = vmatprep.subr.bf16.mxu0 0
    %67 = vmatpush2.bf16.msra.mxu0 0
    %68 = vmatprep.subr.bf16.mxu0 0
    %69 = vmatpush2.bf16.msra.mxu0 0
    %70 = vmatprep.subr.bf16.mxu0 0
    %71 = vmatpush2.bf16.msra.mxu0 0
    %72 = vmatprep.subr.bf16.mxu0 0
    %73 = vmatpush2.bf16.msra.mxu0 0
    %74 = vmatprep.subr.bf16.mxu0 0
    %75 = vmatpush2.bf16.msra.mxu0 0
    %76 = vmatprep.mubr.bf16.mxu0 0
    %77 = vmatmul.mubr.bf16.gmra.mxu0 %v42
    %v78 = vpop.f32.mrf.mxu0
    %v79 = vadd.f32 %v26, %v78
    %v80 = vpop.f32.mrf.mxu0
    %v81 = vpop.f32.mrf.mxu0
    %v82 = vpop.f32.mrf.mxu0
    %83 = vdwg.mxu0
    %84 = vst [vmem:[#allocation2] sm:$0x3] %v79
    // Predicated region
    $region14: #{vision_transformer_forward.19} parent=1 // pred_check
      _
    $region15: #{vision_transformer_forward.19} parent=1 // pred_check_branch
      %86 = sbr.rel (0) target = $region17
    $region16: #{vision_transformer_forward.19} parent=1 // pred_region
      %s88 = ssub.s32 32, 32
      %89 = vsyncadd [#allocation3], %s88
      %s91 = sshll.u32 [#allocation2], 4
      %s92 = int_to_ptr.vmem [resolvable:$true] %s91
      %94 = dma.vmem_to_hbm [thread:$0]  %s92, 32, %s3, [#allocation3]
    $region17: #{vision_transformer_forward.19} parent=1 // pred_fallthru
      _
    // Predicated region
    $region18: #{vision_transformer_forward.19} parent=1 // pred_check
      _
    $region19: #{vision_transformer_forward.19} parent=1 // pred_check_branch
      %96 = sbr.rel (0) target = $region21
    $region20: #{vision_transformer_forward.19} parent=1 // pred_region
      %97 = dma.done [#allocation3], 32
    $region21: #{vision_transformer_forward.19} parent=1 // pred_fallthru
      _
    %98 = vsyncpa [#allocation3], 1

// kernel: vision_transformer_forward.14
$region0: #{vision_transformer_forward.14}
  #allocation0 [shape = 'u32[]', space=smem, size = 0x4, offset = 0x4, fixed_abs, tag = 'smem constant byte address 0x4 - core index']
  #allocation1 [shape = 'u32[144,128]{1,0:T(1,128)}', space=vmem, size = 0x12000, scoped, tag = 'internal scratch']
  #allocation2 [shape = 'f32[24,32]{1,0:T(8,128)}', space=vmem, size = 0x3000, scoped, tag = 'scratch operand']
  %s0 = inlined_call_operand.vmem [shape: bf16[48,32], index: 0, kind: input, shape index: {}]
  %s1 = inlined_call_operand.vmem [shape: bf16[32,64], index: 1, kind: input, shape index: {}]
  %s2 = inlined_call_operand.vmem [shape: f32[1,64], index: 2, kind: input, shape index: {}]
  %s3 = inlined_call_operand.vmem [shape: bf16[64,32], index: 3, kind: input, shape index: {}]
  %s4 = inlined_call_operand.vmem [shape: f32[1,32], index: 4, kind: input, shape index: {}]
  %s5 = inlined_call_operand.vmem [shape: f32[1,32], index: 5, kind: input, shape index: {}]
  %s6 = inlined_call_operand.vmem [shape: f32[1,32], index: 6, kind: input, shape index: {}]
  %s7 = inlined_call_operand.vmem [shape: bf16[48,32], index: 7, kind: output, shape index: {}]
  %s8 = sld [smem:[#allocation0]]
  $region69: #{vision_transformer_forward.14} parent=0
    _
  %s10 = ssub.s32 1, %s8
  %s11 = scalar_select 0, %s10, %s8
  loop: start=0, step=1, limit=4
  $region2: #{vision_transformer_forward.14} parent=0 // loop_pre_header
    _
  $region3: #{vision_transformer_forward.14} parent=0 // loop_header
    %s13 = sphi 0, %s17
    %p14 = scmp.ge.s32.totalorder %s13, 4
    %s20 = sphi 0, %s32
    %s21 = sphi 0, %s28
    %s22 = sphi 0, %s20
    %s23 = sphi 0, %s21
    %s24 = sphi 0, %s22
    %s25 = sphi 0, %s23
    %s35 = sphi 0, %s37
    %s38 = sphi 0, %s35
    %s39 = sphi 0, %s38
    %s55 = sphi 0, %s39
    %s61 = sphi 0, %s63
    %s64 = sphi 0, %s61
    %s65 = sphi 0, %s64
    %s81 = sphi 0, %s65
    %s87 = sphi 0, %s89
    %s90 = sphi 0, %s87
    %s91 = sphi 0, %s90
    %s107 = sphi 0, %s91
    %s113 = sphi 0, %s115
    %s116 = sphi 0, %s113
    %s117 = sphi 0, %s116
    %s133 = sphi 0, %s117
    %s137 = sphi 0, %s137
    %s139 = sphi 0, %s137
    %s140 = sphi 0, %s139
    %s154 = sphi 0, %s140
    %s158 = sphi 0, %s158
    %s160 = sphi 0, %s158
    %s161 = sphi 0, %s160
    %s175 = sphi 0, %s161
    %s179 = sphi 0, %s179
    %s181 = sphi 0, %s179
    %s182 = sphi 0, %s181
    %s196 = sphi 0, %s182
    %s202 = sphi 0, %s204
    %s205 = sphi 0, %s202
    %s206 = sphi 0, %s205
    %s222 = sphi 0, %s206
  $region4: #{vision_transformer_forward.14} parent=0 // loop_header_branch
    %16 = sbr.rel (%p14) target = $region8
  $region5: #{vision_transformer_forward.14} parent=0 // loop_body
    %s18 = ssub.s32 %s13, 1
    %s19 = ssub.s32 %s13, 2
    %s26 = sadd.s32 1, %s21
    %p27 = scmp.ge.s32.totalorder %s26, 1
    %s28 = scalar_select %p27, 0, %s26
    %s29 = sadd.s32 1, %s20
    %s30 = scalar_select %p27, %s29, %s20
    %p31 = scmp.ge.s32.totalorder %s30, 2
    %s32 = scalar_select %p31, 0, %s30
    %s33 = ssub.s32 %s20, %s32
    %p34 = scmp.eq.s32.totalorder %s33, 0
    %s36 = sadd.s32 %s35, 1
    %s37 = scalar_select %p34, %s35, %s36
    %p40 = pneg %p34
    %p41 = scmp.eq.s32.totalorder %s13, 1
    %p42 = por %p40, %p41
    %p43 = scmp.ne.s32.totalorder %s35, %s38
    %p44 = scmp.eq.s32.totalorder %s13, 0
    %p45 = por %p43, %p44
    %p46 = scmp.ne.s32.totalorder %s35, %s38
    %p47 = scmp.eq.s32.totalorder %s18, 1
    %p48 = por %p46, %p47
    %p49 = scmp.ne.s32.totalorder %s38, %s39
    %p50 = scmp.eq.s32.totalorder %s18, 0
    %p51 = por %p49, %p50
    %p52 = scmp.ne.s32.totalorder %s38, %s39
    %p53 = scmp.eq.s32.totalorder %s19, 1
    %p54 = por %p52, %p53
    %p56 = scmp.ne.s32.totalorder %s39, %s55
    %p57 = scmp.eq.s32.totalorder %s19, 0
    %p58 = por %p56, %p57
    %s59 = ssub.s32 %s21, %s28
    %p60 = scmp.eq.s32.totalorder %s59, 0
    %s62 = sadd.s32 %s61, 1
    %s63 = scalar_select %p60, %s61, %s62
    %p66 = pneg %p60
    %p67 = scmp.eq.s32.totalorder %s13, 1
    %p68 = por %p66, %p67
    %p69 = scmp.ne.s32.totalorder %s61, %s64
    %p70 = scmp.eq.s32.totalorder %s13, 0
    %p71 = por %p69, %p70
    %p72 = scmp.ne.s32.totalorder %s61, %s64
    %p73 = scmp.eq.s32.totalorder %s18, 1
    %p74 = por %p72, %p73
    %p75 = scmp.ne.s32.totalorder %s64, %s65
    %p76 = scmp.eq.s32.totalorder %s18, 0
    %p77 = por %p75, %p76
    %p78 = scmp.ne.s32.totalorder %s64, %s65
    %p79 = scmp.eq.s32.totalorder %s19, 1
    %p80 = por %p78, %p79
    %p82 = scmp.ne.s32.totalorder %s65, %s81
    %p83 = scmp.eq.s32.totalorder %s19, 0
    %p84 = por %p82, %p83
    %s85 = ssub.s32 %s21, %s28
    %p86 = scmp.eq.s32.totalorder %s85, 0
    %s88 = sadd.s32 %s87, 1
    %s89 = scalar_select %p86, %s87, %s88
    %p92 = pneg %p86
    %p93 = scmp.eq.s32.totalorder %s13, 1
    %p94 = por %p92, %p93
    %p95 = scmp.ne.s32.totalorder %s87, %s90
    %p96 = scmp.eq.s32.totalorder %s13, 0
    %p97 = por %p95, %p96
    %p98 = scmp.ne.s32.totalorder %s87, %s90
    %p99 = scmp.eq.s32.totalorder %s18, 1
    %p100 = por %p98, %p99
    %p101 = scmp.ne.s32.totalorder %s90, %s91
    %p102 = scmp.eq.s32.totalorder %s18, 0
    %p103 = por %p101, %p102
    %p104 = scmp.ne.s32.totalorder %s90, %s91
    %p105 = scmp.eq.s32.totalorder %s19, 1
    %p106 = por %p104, %p105
    %p108 = scmp.ne.s32.totalorder %s91, %s107
    %p109 = scmp.eq.s32.totalorder %s19, 0
    %p110 = por %p108, %p109
    %s111 = ssub.s32 %s21, %s28
    %p112 = scmp.eq.s32.totalorder %s111, 0
    %s114 = sadd.s32 %s113, 1
    %s115 = scalar_select %p112, %s113, %s114
    %p118 = pneg %p112
    %p119 = scmp.eq.s32.totalorder %s13, 1
    %p120 = por %p118, %p119
    %p121 = scmp.ne.s32.totalorder %s113, %s116
    %p122 = scmp.eq.s32.totalorder %s13, 0
    %p123 = por %p121, %p122
    %p124 = scmp.ne.s32.totalorder %s113, %s116
    %p125 = scmp.eq.s32.totalorder %s18, 1
    %p126 = por %p124, %p125
    %p127 = scmp.ne.s32.totalorder %s116, %s117
    %p128 = scmp.eq.s32.totalorder %s18, 0
    %p129 = por %p127, %p128
    %p130 = scmp.ne.s32.totalorder %s116, %s117
    %p131 = scmp.eq.s32.totalorder %s19, 1
    %p132 = por %p130, %p131
    %p134 = scmp.ne.s32.totalorder %s117, %s133
    %p135 = scmp.eq.s32.totalorder %s19, 0
    %p136 = por %p134, %p135
    %s138 = sadd.s32 %s137, 1
    %p141 = scmp.eq.s32.totalorder %s13, 1
    %p142 = scmp.ne.s32.totalorder %s137, %s139
    %p143 = scmp.eq.s32.totalorder %s13, 0
    %p144 = por %p142, %p143
    %p145 = scmp.ne.s32.totalorder %s137, %s139
    %p146 = scmp.eq.s32.totalorder %s18, 1
    %p147 = por %p145, %p146
    %p148 = scmp.ne.s32.totalorder %s139, %s140
    %p149 = scmp.eq.s32.totalorder %s18, 0
    %p150 = por %p148, %p149
    %p151 = scmp.ne.s32.totalorder %s139, %s140
    %p152 = scmp.eq.s32.totalorder %s19, 1
    %p153 = por %p151, %p152
    %p155 = scmp.ne.s32.totalorder %s140, %s154
    %p156 = scmp.eq.s32.totalorder %s19, 0
    %p157 = por %p155, %p156
    %s159 = sadd.s32 %s158, 1
    %p162 = scmp.eq.s32.totalorder %s13, 1
    %p163 = scmp.ne.s32.totalorder %s158, %s160
    %p164 = scmp.eq.s32.totalorder %s13, 0
    %p165 = por %p163, %p164
    %p166 = scmp.ne.s32.totalorder %s158, %s160
    %p167 = scmp.eq.s32.totalorder %s18, 1
    %p168 = por %p166, %p167
    %p169 = scmp.ne.s32.totalorder %s160, %s161
    %p170 = scmp.eq.s32.totalorder %s18, 0
    %p171 = por %p169, %p170
    %p172 = scmp.ne.s32.totalorder %s160, %s161
    %p173 = scmp.eq.s32.totalorder %s19, 1
    %p174 = por %p172, %p173
    %p176 = scmp.ne.s32.totalorder %s161, %s175
    %p177 = scmp.eq.s32.totalorder %s19, 0
    %p178 = por %p176, %p177
    %s180 = sadd.s32 %s179, 1
    %p183 = scmp.eq.s32.totalorder %s13, 1
    %p184 = scmp.ne.s32.totalorder %s179, %s181
    %p185 = scmp.eq.s32.totalorder %s13, 0
    %p186 = por %p184, %p185
    %p187 = scmp.ne.s32.totalorder %s179, %s181
    %p188 = scmp.eq.s32.totalorder %s18, 1
    %p189 = por %p187, %p188
    %p190 = scmp.ne.s32.totalorder %s181, %s182
    %p191 = scmp.eq.s32.totalorder %s18, 0
    %p192 = por %p190, %p191
    %p193 = scmp.ne.s32.totalorder %s181, %s182
    %p194 = scmp.eq.s32.totalorder %s19, 1
    %p195 = por %p193, %p194
    %p197 = scmp.ne.s32.totalorder %s182, %s196
    %p198 = scmp.eq.s32.totalorder %s19, 0
    %p199 = por %p197, %p198
    %s200 = ssub.s32 %s20, %s32
    %p201 = scmp.eq.s32.totalorder %s200, 0
    %s203 = sadd.s32 %s202, 1
    %s204 = scalar_select %p201, %s202, %s203
    %p207 = pneg %p201
    %p208 = scmp.eq.s32.totalorder %s13, 1
    %p209 = por %p207, %p208
    %p210 = scmp.ne.s32.totalorder %s202, %s205
    %p211 = scmp.eq.s32.totalorder %s13, 0
    %p212 = por %p210, %p211
    %p213 = scmp.ne.s32.totalorder %s202, %s205
    %p214 = scmp.eq.s32.totalorder %s18, 1
    %p215 = por %p213, %p214
    %p216 = scmp.ne.s32.totalorder %s205, %s206
    %p217 = scmp.eq.s32.totalorder %s18, 0
    %p218 = por %p216, %p217
    %p219 = scmp.ne.s32.totalorder %s205, %s206
    %p220 = scmp.eq.s32.totalorder %s19, 1
    %p221 = por %p219, %p220
    %p223 = scmp.ne.s32.totalorder %s206, %s222
    %p224 = scmp.eq.s32.totalorder %s19, 0
    %p225 = por %p223, %p224
    %p226 = scmp.le.s32.totalorder 1, %s13
    %p227 = scmp.lt.s32.totalorder %s13, 3
    %p228 = pnand %p226, %p227
    %p229 = pneg %p228
    // Predicated region
    $region9: #{vision_transformer_forward.14} parent=5 // pred_check
      _
    $region10: #{vision_transformer_forward.14} parent=5 // pred_check_branch
      %231 = sbr.rel (%p228) target = $region12
    $region11: #{vision_transformer_forward.14} parent=5 // pred_region
      %s232 = ssub.s32 %s13, 1
      // Predicated region
      $region13: #{vision_transformer_forward.14} parent=11 // pred_check
        %p233 = pneg %p77
      $region14: #{vision_transformer_forward.14} parent=11 // pred_check_branch
        %235 = sbr.rel (%p233) target = $region16
      $region15: #{vision_transformer_forward.14} parent=11 // pred_region
        %p236 = scmp.lt.s32.totalorder %s23, 0
        %s237 = scalar_select %p236, %s23, 0
        %s238 = smul.addr %s237, 4
        %s239 = scalar_lea.vmem %s1, %s238
      $region16: #{vision_transformer_forward.14} parent=11 // pred_fallthru
        _
      // Predicated region
      $region17: #{vision_transformer_forward.14} parent=11 // pred_check
        %p240 = pneg %p103
      $region18: #{vision_transformer_forward.14} parent=11 // pred_check_branch
        %242 = sbr.rel (%p240) target = $region20
      $region19: #{vision_transformer_forward.14} parent=11 // pred_region
        %p243 = scmp.lt.s32.totalorder %s23, 0
        %s244 = scalar_select %p243, %s23, 0
        %s245 = scalar_lea.vmem %s2, %s244
      $region20: #{vision_transformer_forward.14} parent=11 // pred_fallthru
        _
      // Predicated region
      $region21: #{vision_transformer_forward.14} parent=11 // pred_check
        %p246 = pneg %p129
      $region22: #{vision_transformer_forward.14} parent=11 // pred_check_branch
        %248 = sbr.rel (%p246) target = $region24
      $region23: #{vision_transformer_forward.14} parent=11 // pred_region
        %s249 = smul.u32 8, %s23
        %p250 = scmp.lt.s32.totalorder %s249, 7
        %s251 = scalar_select %p250, %s249, 7
        %s252 = smul.addr %s251, 4
        %s253 = scalar_lea.vmem %s3, %s252
        %s254 = smul.u32 8, %s23
      $region24: #{vision_transformer_forward.14} parent=11 // pred_fallthru
        _
      // Predicated region
      $region25: #{vision_transformer_forward.14} parent=11 // pred_check
        %p255 = pneg %p150
      $region26: #{vision_transformer_forward.14} parent=11 // pred_check_branch
        %257 = sbr.rel (%p255) target = $region28
      $region27: #{vision_transformer_forward.14} parent=11 // pred_region
        _
      $region28: #{vision_transformer_forward.14} parent=11 // pred_fallthru
        _
      // Predicated region
      $region29: #{vision_transformer_forward.14} parent=11 // pred_check
        %p258 = pneg %p171
      $region30: #{vision_transformer_forward.14} parent=11 // pred_check_branch
        %260 = sbr.rel (%p258) target = $region32
      $region31: #{vision_transformer_forward.14} parent=11 // pred_region
        _
      $region32: #{vision_transformer_forward.14} parent=11 // pred_fallthru
        _
      // Predicated region
      $region33: #{vision_transformer_forward.14} parent=11 // pred_check
        %p261 = pneg %p192
      $region34: #{vision_transformer_forward.14} parent=11 // pred_check_branch
        %263 = sbr.rel (%p261) target = $region36
      $region35: #{vision_transformer_forward.14} parent=11 // pred_region
        _
      $region36: #{vision_transformer_forward.14} parent=11 // pred_fallthru
        _
    $region12: #{vision_transformer_forward.14} parent=5 // pred_fallthru
      _
    %p264 = scmp.lt.s32.totalorder %s13, 2
    // Predicated region
    $region37: #{vision_transformer_forward.14} parent=5 // pred_check
      %p265 = pneg %p264
    $region38: #{vision_transformer_forward.14} parent=5 // pred_check_branch
      %267 = sbr.rel (%p265) target = $region40
    $region39: #{vision_transformer_forward.14} parent=5 // pred_region
      // Predicated region
      $region41: #{vision_transformer_forward.14} parent=39 // pred_check
        %p268 = pneg %p45
      $region42: #{vision_transformer_forward.14} parent=39 // pred_check_branch
        %270 = sbr.rel (%p268) target = $region44
      $region43: #{vision_transformer_forward.14} parent=39 // pred_region
        %s271 = smul.u32 3, %s20
        %p272 = scmp.lt.s32.totalorder %s271, 5
        %s273 = scalar_select %p272, %s271, 5
        %s274 = smul.addr %s273, 4
        %s275 = scalar_lea.vmem %s0, %s274
        %s276 = smul.u32 3, %s20
      $region44: #{vision_transformer_forward.14} parent=39 // pred_fallthru
        _
    $region40: #{vision_transformer_forward.14} parent=5 // pred_fallthru
      _
    %p277 = scmp.le.s32.totalorder 1, %s13
    %p278 = scmp.lt.s32.totalorder %s13, 3
    %p279 = pnand %p277, %p278
    %p280 = pneg %p279
    // Predicated region
    $region45: #{vision_transformer_forward.14} parent=5 // pred_check
      _
    $region46: #{vision_transformer_forward.14} parent=5 // pred_check_branch
      %282 = sbr.rel (%p279) target = $region48
    $region47: #{vision_transformer_forward.14} parent=5 // pred_region
      %s283 = ssub.s32 %s13, 1
      %s284 = smul.u32 3, %s22
      %p285 = scmp.lt.s32.totalorder %s284, 5
      %s286 = scalar_select %p285, %s284, 5
      %s287 = smul.addr %s286, 4
      %s288 = scalar_lea.vmem %s0, %s287
      %p289 = pneg %p51
      %p290 = pneg %p48
      %p291 = scmp.lt.s32.totalorder %s23, 0
      %s292 = scalar_select %p291, %s23, 0
      %s293 = smul.addr %s292, 4
      %s294 = scalar_lea.vmem %s1, %s293
      %p295 = pneg %p77
      %p296 = pneg %p74
      %p297 = scmp.lt.s32.totalorder %s23, 0
      %s298 = scalar_select %p297, %s23, 0
      %s299 = scalar_lea.vmem %s2, %s298
      %p300 = pneg %p103
      %p301 = pneg %p100
      %s302 = smul.u32 8, %s23
      %p303 = scmp.lt.s32.totalorder %s302, 7
      %s304 = scalar_select %p303, %s302, 7
      %s305 = smul.addr %s304, 4
      %s306 = scalar_lea.vmem %s3, %s305
      %p307 = pneg %p129
      %p308 = pneg %p126
      %p309 = pneg %p150
      %p310 = pneg %p147
      %p311 = pneg %p171
      %p312 = pneg %p168
      %p313 = pneg %p192
      %p314 = pneg %p189
      %p315 = pneg %p218
      %p316 = pneg %p215
      %s317 = smul.u32 3, %s22
      %p318 = scmp.lt.s32.totalorder %s317, 5
      %s319 = scalar_select %p318, %s317, 5
      %s320 = smul.addr %s319, 4
      %s321 = scalar_lea.vmem %s7, %s320
      %s322 = smul.u32 3, %s22
      %p323 = scmp.lt.s32.totalorder %s322, 5
      %s324 = scalar_select %p323, %s322, 5
      %s325 = smul.addr %s324, 4
      %s326 = scalar_lea.vmem %s0, %s325
      %s327 = smul.u32 3, %s22
      %p328 = scmp.lt.s32.totalorder %s23, 0
      %s329 = scalar_select %p328, %s23, 0
      %s330 = smul.addr %s329, 4
      %s331 = scalar_lea.vmem %s1, %s330
      %p332 = scmp.lt.s32.totalorder %s23, 0
      %s333 = scalar_select %p332, %s23, 0
      %s334 = scalar_lea.vmem %s2, %s333
      %s335 = smul.u32 8, %s23
      %p336 = scmp.lt.s32.totalorder %s335, 7
      %s337 = scalar_select %p336, %s335, 7
      %s338 = smul.addr %s337, 4
      %s339 = scalar_lea.vmem %s3, %s338
      %s340 = smul.u32 8, %s23
      %s341 = smul.u32 3, %s22
      %p342 = scmp.lt.s32.totalorder %s341, 5
      %s343 = scalar_select %p342, %s341, 5
      %s344 = smul.addr %s343, 4
      %s345 = scalar_lea.vmem %s7, %s344
      %s346 = smul.u32 3, %s22
      %p348 = scmp.eq.s32.totalorder %s23, 0
      // Predicated region
      $region49: #{vision_transformer_forward.14} parent=47 // pred_check
        %p349 = pneg %p348
      $region50: #{vision_transformer_forward.14} parent=47 // pred_check_branch
        %351 = sbr.rel (%p349) target = $region52
      $region51: #{vision_transformer_forward.14} parent=47 // pred_region
        %vm352 = vcmask 261120
        %353 = vst.msk [vmem:[#allocation2] sm:$0xff] %vm352, 0.0
        %354 = vst.msk [vmem:[#allocation2 + $0x8] sm:$0xff] %vm352, 0.0
        %355 = vst.msk [vmem:[#allocation2 + $0x10] sm:$0xff] %vm352, 0.0
      $region52: #{vision_transformer_forward.14} parent=47 // pred_fallthru
        _
      %v356 = vld [vmem:[%s326] sm:$0xf]
      %v357 = vld [vmem:[%s326 + $0x4] sm:$0xf]
      %v358 = vld [vmem:[%s326 + $0x8] sm:$0xf]
      %v359 = vld [vmem:[%s331] sm:$0xf]
      %v360 = vld [vmem:[%s331 + $0x4] sm:$0xf]
      %v361 = vld [vmem:[%s331 + $0x8] sm:$0xf]
      %v362 = vld [vmem:[%s331 + $0xc] sm:$0xf]
      %v363 = vld [vmem:[%s334] sm:$0x1]
      %v365 = vlaneseq
      %v366 = vshrl.u32 %v365, 7
      %v367 = vsub.s32 0, %v366
      %v368 = vrot.slane %v363, %v367
      %v373 = vunpack.c.l.b16 %v356
      %v374 = vunpack.c.l.b16 %v357
      %v375 = vunpack.c.l.b16 %v358
      %v376 = vpack.c.b16 %v374, %v373
      %v377 = vpack.c.b16 %v375, %v375
      %v382 = vunpack.c.l.b16 %v359
      %v383 = vunpack.c.l.b16 %v360
      %v384 = vunpack.c.l.b16 %v361
      %v385 = vunpack.c.l.b16 %v362
      %v386 = vpack.c.b16 %v383, %v382
      %v387 = vpack.c.b16 %v385, %v384
      %vm390 = vcmask 261120
      %v392 = vsel %vm390, %v376, 0
      %v395 = vsel %vm390, %v377, 0
      %397 = vmatprep.subr.bf16.mxu0 0
      %398 = vmatpush1.bf16.msra.mxu0 0
      %399 = vmatprep.subr.bf16.mxu0 0
      %400 = vmatpush1.bf16.msra.mxu0 0
      %401 = vmatprep.subr.bf16.mxu0 0
      %402 = vmatpush1.bf16.msra.mxu0 0
      %403 = vmatprep.subr.bf16.mxu0 0
      %404 = vmatpush1.bf16.msra.mxu0 0
      %405 = vmatprep.subr.bf16.mxu0 0
      %406 = vmatpush1.bf16.msra.mxu0 0
      %407 = vmatprep.subr.bf16.mxu0 0
      %408 = vmatpush1.bf16.msra.mxu0 0
      %409 = vmatprep.subr.bf16.mxu0 0
      %410 = vmatpush1.bf16.msra.mxu0 %v387
      %411 = vmatprep.subr.bf16.mxu0 0
      %412 = vmatpush1.bf16.msra.mxu0 %v386
      %413 = vmatprep.subr.bf16.mxu0 0
      %414 = vmatpush2.bf16.msra.mxu0 0
      %415 = vmatprep.subr.bf16.mxu0 0
      %416 = vmatpush2.bf16.msra.mxu0 0
      %417 = vmatprep.subr.bf16.mxu0 0
      %418 = vmatpush2.bf16.msra.mxu0 0
      %419 = vmatprep.subr.bf16.mxu0 0
      %420 = vmatpush2.bf16.msra.mxu0 0
      %421 = vmatprep.subr.bf16.mxu0 0
      %422 = vmatpush2.bf16.msra.mxu0 0
      %423 = vmatprep.subr.bf16.mxu0 0
      %424 = vmatpush2.bf16.msra.mxu0 0
      %425 = vmatprep.subr.bf16.mxu0 0
      %426 = vmatpush2.bf16.msra.mxu0 0
      %427 = vmatprep.subr.bf16.mxu0 0
      %428 = vmatpush2.bf16.msra.mxu0 0
      %429 = vmatprep.mubr.bf16.mxu0 0
      %430 = vmatmul.mubr.bf16.gmra.mxu0 %v392
      %v431 = vpop.f32.mrf.mxu0
      %v432 = vadd.f32 %v368, %v431
      %v433 = vpop.f32.mrf.mxu0
      %v434 = vpop.f32.mrf.mxu0
      %v435 = vadd.f32 %v368, %v434
      %v436 = vpop.f32.mrf.mxu0
      %437 = vmatprep.mubr.bf16.mxu0 0
      %438 = vmatmul.mubr.bf16.gmra.mxu0 %v395
      %v439 = vpop.f32.mrf.mxu0
      %v440 = vadd.f32 %v368, %v439
      %v441 = vpop.f32.mrf.mxu0
      %v442 = vpop.f32.mrf.mxu0
      %v443 = vpop.f32.mrf.mxu0
      %444 = vdwg.mxu0
      %v445 = vmax.f32 %v432, 0.0
      %v446 = vmax.f32 %v435, 0.0
      %v447 = vmax.f32 %v440, 0.0
      %v448 = vpack.c.bf16 %v446, %v445
      %v449 = vpack.c.bf16 %v447, %v447
      %v450 = vld [vmem:[#allocation2] sm:$0xff]
      %v451 = vld [vmem:[#allocation2 + $0x8] sm:$0xff]
      %v452 = vld [vmem:[#allocation2 + $0x10] sm:$0xff]
      %v453 = vld [vmem:[%s339] sm:$0xf]
      %v454 = vld [vmem:[%s339 + $0x4] sm:$0xf]
      %v455 = vld [vmem:[%s339 + $0x8] sm:$0xf]
      %v456 = vld [vmem:[%s339 + $0xc] sm:$0xf]
      %v457 = vld [vmem:[%s339 + $0x10] sm:$0xf]
      %v458 = vld [vmem:[%s339 + $0x14] sm:$0xf]
      %v459 = vld [vmem:[%s339 + $0x18] sm:$0xf]
      %v460 = vld [vmem:[%s339 + $0x1c] sm:$0xf]
      %v469 = vunpack.c.l.b16 %v453
      %v470 = vunpack.c.l.b16 %v454
      %v471 = vunpack.c.l.b16 %v455
      %v472 = vunpack.c.l.b16 %v456
      %v473 = vunpack.c.l.b16 %v457
      %v474 = vunpack.c.l.b16 %v458
      %v475 = vunpack.c.l.b16 %v459
      %v476 = vunpack.c.l.b16 %v460
      %v477 = vpack.c.b16 %v470, %v469
      %v478 = vpack.c.b16 %v472, %v471
      %v479 = vpack.c.b16 %v474, %v473
      %v480 = vpack.c.b16 %v476, %v475
      %vm485 = vcmask 523264
      %v487 = vsel %vm485, %v448, 0
      %v490 = vsel %vm485, %v449, 0
      %492 = vmatprep.subr.bf16.mxu0 0
      %493 = vmatpush1.bf16.msra.mxu0 0
      %494 = vmatprep.subr.bf16.mxu0 0
      %495 = vmatpush1.bf16.msra.mxu0 0
      %496 = vmatprep.subr.bf16.mxu0 0
      %497 = vmatpush1.bf16.msra.mxu0 0
      %498 = vmatprep.subr.bf16.mxu0 0
      %499 = vmatpush1.bf16.msra.mxu0 0
      %500 = vmatprep.subr.bf16.mxu0 0
      %501 = vmatpush1.bf16.msra.mxu0 %v480
      %502 = vmatprep.subr.bf16.mxu0 0
      %503 = vmatpush1.bf16.msra.mxu0 %v479
      %504 = vmatprep.subr.bf16.mxu0 0
      %505 = vmatpush1.bf16.msra.mxu0 %v478
      %506 = vmatprep.subr.bf16.mxu0 0
      %507 = vmatpush1.bf16.msra.mxu0 %v477
      %508 = vmatprep.subr.bf16.mxu0 0
      %509 = vmatpush2.bf16.msra.mxu0 0
      %510 = vmatprep.subr.bf16.mxu0 0
      %511 = vmatpush2.bf16.msra.mxu0 0
      %512 = vmatprep.subr.bf16.mxu0 0
      %513 = vmatpush2.bf16.msra.mxu0 0
      %514 = vmatprep.subr.bf16.mxu0 0
      %515 = vmatpush2.bf16.msra.mxu0 0
      %516 = vmatprep.subr.bf16.mxu0 0
      %517 = vmatpush2.bf16.msra.mxu0 0
      %518 = vmatprep.subr.bf16.mxu0 0
      %519 = vmatpush2.bf16.msra.mxu0 0
      %520 = vmatprep.subr.bf16.mxu0 0
      %521 = vmatpush2.bf16.msra.mxu0 0
      %522 = vmatprep.subr.bf16.mxu0 0
      %523 = vmatpush2.bf16.msra.mxu0 0
      %524 = vmatprep.mubr.bf16.mxu0 0
      %525 = vmatmul.mubr.bf16.gmra.mxu0 %v487
      %v526 = vpop.f32.mrf.mxu0
      %v527 = vadd.f32 0.0, %v526
      %v528 = vpop.f32.mrf.mxu0
      %v529 = vpop.f32.mrf.mxu0
      %v530 = vadd.f32 0.0, %v529
      %v531 = vpop.f32.mrf.mxu0
      %532 = vmatprep.mubr.bf16.mxu0 0
      %533 = vmatmul.mubr.bf16.gmra.mxu0 %v490
      %v534 = vpop.f32.mrf.mxu0
      %v535 = vadd.f32 0.0, %v534
      %v536 = vpop.f32.mrf.mxu0
      %v537 = vpop.f32.mrf.mxu0
      %v538 = vpop.f32.mrf.mxu0
      %539 = vdwg.mxu0
      %v540 = vadd.f32 %v450, %v527
      %v541 = vadd.f32 %v451, %v530
      %v542 = vadd.f32 %v452, %v535
      %543 = vst.msk [vmem:[#allocation2] sm:$0xff] %vm390, %v540
      %544 = vst.msk [vmem:[#allocation2 + $0x8] sm:$0xff] %vm390, %v541
      %545 = vst.msk [vmem:[#allocation2 + $0x10] sm:$0xff] %vm390, %v542
      // Predicated region
      $region53: #{vision_transformer_forward.14} parent=47 // pred_check
        %p546 = pneg %p348
      $region54: #{vision_transformer_forward.14} parent=47 // pred_check_branch
        %548 = sbr.rel (%p546) target = $region56
      $region55: #{vision_transformer_forward.14} parent=47 // pred_region
        %v549 = vld [vmem:[#allocation2] sm:$0xff]
        %v550 = vld [vmem:[#allocation2 + $0x8] sm:$0xff]
        %v551 = vld [vmem:[#allocation2 + $0x10] sm:$0xff]
        %v552 = vld [vmem:[%s4] sm:$0x1]
        %v554 = vlaneseq
        %v555 = vshrl.u32 %v554, 7
        %v556 = vsub.s32 0, %v555
        %v557 = vrot.slane %v552, %v556
        %v559 = vadd.f32 %v549, %v557
        %v560 = vadd.f32 %v550, %v557
        %v561 = vadd.f32 %v551, %v557
        %v562 = vunpack.c.l.bf16 %v356
        %v563 = vunpack.c.l.bf16 %v357
        %v564 = vunpack.c.l.bf16 %v358
        %v565 = vadd.f32 %v559, %v562
        %v566 = vadd.f32 %v560, %v563
        %v567 = vadd.f32 %v561, %v564
        %v568 = vsel %vm390, %v565, 0.0
        %569 = vadd.xlane.f32.xlu0 %v568
        %v570 = vpop.xlane.xlu0 %569
        %v571 = vsel %vm390, %v566, 0.0
        %572 = vadd.xlane.f32.xlu0 %v571
        %v573 = vpop.xlane.xlu0 %572
        %v574 = vsel %vm390, %v567, 0.0
        %575 = vadd.xlane.f32.xlu0 %v574
        %v576 = vpop.xlane.xlu0 %575
        %v577 = vrcp.pop 32.0
        %v578 = vmul.f32 %v570, %v577
        %v579 = vmul.f32 %v573, %v577
        %v580 = vmul.f32 %v576, %v577
        %v581 = vsub.f32 %v565, %v578
        %v582 = vsub.f32 %v566, %v579
        %v583 = vsub.f32 %v567, %v580
        %v584 = vmul.f32 %v581, %v581
        %v585 = vmul.f32 %v582, %v582
        %v586 = vmul.f32 %v583, %v583
        %v587 = vsel %vm390, %v584, 0.0
        %588 = vadd.xlane.f32.xlu0 %v587
        %v589 = vpop.xlane.xlu0 %588
        %v590 = vsel %vm390, %v585, 0.0
        %591 = vadd.xlane.f32.xlu0 %v590
        %v592 = vpop.xlane.xlu0 %591
        %v593 = vsel %vm390, %v586, 0.0
        %594 = vadd.xlane.f32.xlu0 %v593
        %v595 = vpop.xlane.xlu0 %594
        %v596 = vmul.f32 %v589, %v577
        %v597 = vmul.f32 %v592, %v577
        %v598 = vmul.f32 %v595, %v577
        %v599 = vadd.f32 %v596, 1e-05
        %v600 = vadd.f32 %v597, 1e-05
        %v601 = vadd.f32 %v598, 1e-05
        %v602 = vrsqrt.pop %v599
        %v603 = vrsqrt.pop %v600
        %v604 = vrsqrt.pop %v601
        %v605 = vmul.f32 %v581, %v602
        %v606 = vmul.f32 %v582, %v603
        %v607 = vmul.f32 %v583, %v604
        %v608 = vld [vmem:[%s5] sm:$0x1]
        %v610 = vlaneseq
        %v611 = vshrl.u32 %v610, 7
        %v612 = vsub.s32 0, %v611
        %v613 = vrot.slane %v608, %v612
        %v615 = vmul.f32 %v605, %v613
        %v616 = vmul.f32 %v606, %v613
        %v617 = vmul.f32 %v607, %v613
        %v618 = vld [vmem:[%s6] sm:$0x1]
        %v620 = vlaneseq
        %v621 = vshrl.u32 %v620, 7
        %v622 = vsub.s32 0, %v621
        %v623 = vrot.slane %v618, %v622
        %v625 = vadd.f32 %v615, %v623
        %v626 = vadd.f32 %v616, %v623
        %v627 = vadd.f32 %v617, %v623
        %v628 = vpack.c.bf16 %v626, %v625
        %v629 = vpack.c.bf16 %v627, %v627
        %v632 = vunpack.c.l.b16 %v628
        %v633 = vunpack.c.h.b16 %v628
        %v634 = vunpack.c.l.b16 %v629
        %v635 = vpack.c.b16 %v632, %v632
        %v636 = vpack.c.b16 %v633, %v633
        %v637 = vpack.c.b16 %v634, %v634
        %vm641 = vcmask 257024
        %642 = vst.msk [vmem:[%s345] sm:$0xf] %vm641, %v635
        %643 = vst.msk [vmem:[%s345 + $0x4] sm:$0xf] %vm641, %v636
        %644 = vst.msk [vmem:[%s345 + $0x8] sm:$0xf] %vm641, %v637
      $region56: #{vision_transformer_forward.14} parent=47 // pred_fallthru
        _
      %s645 = smul.u32 3, %s22
      %p646 = scmp.lt.s32.totalorder %s645, 5
      %s647 = scalar_select %p646, %s645, 5
      %s648 = smul.addr %s647, 4
      %s649 = scalar_lea.vmem %s7, %s648
      // Predicated region
      $region57: #{vision_transformer_forward.14} parent=47 // pred_check
        %p650 = pneg %p215
      $region58: #{vision_transformer_forward.14} parent=47 // pred_check_branch
        %652 = sbr.rel (%p650) target = $region60
      $region59: #{vision_transformer_forward.14} parent=47 // pred_region
        %s653 = smul.u32 3, %s22
      $region60: #{vision_transformer_forward.14} parent=47 // pred_fallthru
        _
    $region48: #{vision_transformer_forward.14} parent=5 // pred_fallthru
      _
    %p654 = scmp.le.s32.totalorder 2, %s13
    // Predicated region
    $region61: #{vision_transformer_forward.14} parent=5 // pred_check
      %p655 = pneg %p654
    $region62: #{vision_transformer_forward.14} parent=5 // pred_check_branch
      %657 = sbr.rel (%p655) target = $region64
    $region63: #{vision_transformer_forward.14} parent=5 // pred_region
      %s658 = ssub.s32 %s13, 2
      // Predicated region
      $region65: #{vision_transformer_forward.14} parent=63 // pred_check
        %p659 = pneg %p221
      $region66: #{vision_transformer_forward.14} parent=63 // pred_check_branch
        %661 = sbr.rel (%p659) target = $region68
      $region67: #{vision_transformer_forward.14} parent=63 // pred_region
        %s662 = smul.u32 3, %s24
        %p663 = scmp.lt.s32.totalorder %s662, 5
        %s664 = scalar_select %p663, %s662, 5
        %s665 = smul.addr %s664, 4
        %s666 = scalar_lea.vmem %s7, %s665
      $region68: #{vision_transformer_forward.14} parent=63 // pred_fallthru
        _
    $region64: #{vision_transformer_forward.14} parent=5 // pred_fallthru
      _
  $region6: #{vision_transformer_forward.14} parent=0 // loop_footer
    %s17 = sadd.s32 1, %s13
  $region7: #{vision_transformer_forward.14} parent=0 // loop_footer_branch
    %12 = sbr.rel target = $region3
  $region8: #{vision_transformer_forward.14} parent=0 // loop_exit
    _

// kernel: vision_transformer_forward.12
$region0: #{vision_transformer_forward.12}
  #allocation0 [shape = 'u32[]', space=smem, size = 0x4, offset = 0x4, fixed_abs, tag = 'smem constant byte address 0x4 - core index']
  #allocation1 [shape = 'u32[144,128]{1,0:T(1,128)}', space=vmem, size = 0x12000, scoped, tag = 'internal scratch']
  %s0 = inlined_call_operand.vmem [shape: bf16[2,24,96], index: 0, kind: input, shape index: {}]
  %s1 = inlined_call_operand.vmem [shape: bf16[2,24,32], index: 1, kind: output, shape index: {}]
  %s2 = sld [smem:[#allocation0]]
  $region115: #{vision_transformer_forward.12} parent=0
    _
  %s4 = ssub.s32 1, %s2
  %s5 = scalar_select 0, %s4, %s2
  $region1: #{vision_transformer_forward.12} parent=0
    #allocation2 [shape = 'u8[8192]{0}', space=vmem, size = 0x2000, scoped, tag = 'input window, operand 0']
    #allocation3 [shape = 'u8[8192]{0}', space=vmem, size = 0x2000, scoped, tag = 'output window, operand 0']
    loop: start=0, step=1, limit=5
    $region2: #{vision_transformer_forward.12} parent=1 // loop_pre_header
      _
    $region3: #{vision_transformer_forward.12} parent=1 // loop_header
      %s7 = sphi 0, %s11
      %p8 = scmp.ge.s32.totalorder %s7, 5
      %s17 = sphi 0, %s19
      %s20 = sphi 0, %s17
      %s21 = sphi 0, %s20
      %s37 = sphi 0, %s21
      %s43 = sphi 0, %s45
      %s46 = sphi 0, %s43
      %s47 = sphi 0, %s46
      %s63 = sphi 0, %s47
    $region4: #{vision_transformer_forward.12} parent=1 // loop_header_branch
      %10 = sbr.rel (%p8) target = $region8
    $region5: #{vision_transformer_forward.12} parent=1 // loop_body
      %s12 = ssub.s32 %s7, 1
      %s13 = ssub.s32 %s7, 2
      %s14 = sadd.s32 %s7, 1
      %s15 = ssub.s32 %s7, %s14
      %p16 = scmp.eq.s32.totalorder %s15, 0
      %s18 = sadd.s32 %s17, 1
      %s19 = scalar_select %p16, %s17, %s18
      %p22 = pneg %p16
      %p23 = scmp.eq.s32.totalorder %s7, 2
      %p24 = por %p22, %p23
      %p25 = scmp.ne.s32.totalorder %s17, %s20
      %p26 = scmp.eq.s32.totalorder %s7, 0
      %p27 = por %p25, %p26
      %p28 = scmp.ne.s32.totalorder %s17, %s20
      %p29 = scmp.eq.s32.totalorder %s12, 2
      %p30 = por %p28, %p29
      %p31 = scmp.ne.s32.totalorder %s20, %s21
      %p32 = scmp.eq.s32.totalorder %s12, 0
      %p33 = por %p31, %p32
      %p34 = scmp.ne.s32.totalorder %s20, %s21
      %p35 = scmp.eq.s32.totalorder %s13, 2
      %p36 = por %p34, %p35
      %p38 = scmp.ne.s32.totalorder %s21, %s37
      %p39 = scmp.eq.s32.totalorder %s13, 0
      %p40 = por %p38, %p39
      %s41 = ssub.s32 %s7, %s14
      %p42 = scmp.eq.s32.totalorder %s41, 0
      %s44 = sadd.s32 %s43, 1
      %s45 = scalar_select %p42, %s43, %s44
      %p48 = pneg %p42
      %p49 = scmp.eq.s32.totalorder %s7, 2
      %p50 = por %p48, %p49
      %p51 = scmp.ne.s32.totalorder %s43, %s46
      %p52 = scmp.eq.s32.totalorder %s7, 0
      %p53 = por %p51, %p52
      %p54 = scmp.ne.s32.totalorder %s43, %s46
      %p55 = scmp.eq.s32.totalorder %s12, 2
      %p56 = por %p54, %p55
      %p57 = scmp.ne.s32.totalorder %s46, %s47
      %p58 = scmp.eq.s32.totalorder %s12, 0
      %p59 = por %p57, %p58
      %p60 = scmp.ne.s32.totalorder %s46, %s47
      %p61 = scmp.eq.s32.totalorder %s13, 2
      %p62 = por %p60, %p61
      %p64 = scmp.ne.s32.totalorder %s47, %s63
      %p65 = scmp.eq.s32.totalorder %s13, 0
      %p66 = por %p64, %p65
      %p67 = scmp.le.s32.totalorder 1, %s7
      %p68 = scmp.lt.s32.totalorder %s7, 4
      %p69 = pnand %p67, %p68
      %p70 = pneg %p69
      // Predicated region
      $region9: #{vision_transformer_forward.12} parent=5 // pred_check
        _
      $region10: #{vision_transformer_forward.12} parent=5 // pred_check_branch
        %72 = sbr.rel (%p69) target = $region12
      $region11: #{vision_transformer_forward.12} parent=5 // pred_region
        %s73 = ssub.s32 %s7, 1
      $region12: #{vision_transformer_forward.12} parent=5 // pred_fallthru
        _
      %p74 = scmp.lt.s32.totalorder %s7, 3
      // Predicated region
      $region13: #{vision_transformer_forward.12} parent=5 // pred_check
        %p75 = pneg %p74
      $region14: #{vision_transformer_forward.12} parent=5 // pred_check_branch
        %77 = sbr.rel (%p75) target = $region16
      $region15: #{vision_transformer_forward.12} parent=5 // pred_region
        // Predicated region
        $region17: #{vision_transformer_forward.12} parent=15 // pred_check
          %p78 = pneg %p27
        $region18: #{vision_transformer_forward.12} parent=15 // pred_check_branch
          %80 = sbr.rel (%p78) target = $region20
        $region19: #{vision_transformer_forward.12} parent=15 // pred_region
          %s81 = sand.u32 %s17, 1
          %s82 = sand.u32 %s17, 1
          %s83 = smul.addr %s82, 8
          %s84 = scalar_lea.vmem [#allocation2], %s83
          %s85 = smul.addr %s7, 4
          %s86 = scalar_lea.vmem %s0, %s85
          // Predicated region
          $region21: #{vision_transformer_forward.12} parent=19 // pred_check
            _
          $region22: #{vision_transformer_forward.12} parent=19 // pred_check_branch
            %88 = sbr.rel (0) target = $region24
          $region23: #{vision_transformer_forward.12} parent=19 // pred_region
            // Predicated region
            $region25: #{vision_transformer_forward.12} parent=23 // pred_check
              _
            $region26: #{vision_transformer_forward.12} parent=23 // pred_check_branch
              %90 = sbr.rel target = $region28
            $region27: #{vision_transformer_forward.12} parent=23 // pred_region
              // Predicated region
              $region40: #{vision_transformer_forward.12} parent=27 // pred_check
                _
              $region41: #{vision_transformer_forward.12} parent=27 // pred_check_branch
                %108 = sbr.rel (0) target = $region43
              $region42: #{vision_transformer_forward.12} parent=27 // pred_region
                loop: start=0, step=1, limit=1
                $region44: #{vision_transformer_forward.12} parent=42 // loop_pre_header
                  _
                $region45: #{vision_transformer_forward.12} parent=42 // loop_header
                  %s110 = sphi 0, %s114
                  %p111 = scmp.ge.s32.totalorder %s110, 1
                  %s115 = sphi %s86, %s86
                  %s116 = sphi %s84, %s84
                $region46: #{vision_transformer_forward.12} parent=42 // loop_header_branch
                  %113 = sbr.rel (%p111) target = $region50
                $region47: #{vision_transformer_forward.12} parent=42 // loop_body
                  _
                $region48: #{vision_transformer_forward.12} parent=42 // loop_footer
                  %s114 = sadd.s32 1, %s110
                $region49: #{vision_transformer_forward.12} parent=42 // loop_footer_branch
                  %109 = sbr.rel target = $region45
                $region50: #{vision_transformer_forward.12} parent=42 // loop_exit
                  _
                %s118 = ssub.s32 16, 1
                loop: start=0, step=1, limit=1
                $region51: #{vision_transformer_forward.12} parent=42 // loop_pre_header
                  _
                $region52: #{vision_transformer_forward.12} parent=42 // loop_header
                  %s120 = sphi 0, %s124
                  %p121 = scmp.ge.s32.totalorder %s120, 1
                  %s125 = sphi %s86, %s86
                  %s126 = sphi %s84, %s84
                $region53: #{vision_transformer_forward.12} parent=42 // loop_header_branch
                  %123 = sbr.rel (%p121) target = $region57
                $region54: #{vision_transformer_forward.12} parent=42 // loop_body
                  %v127 = vld [vmem:[%s125] sm:%s118]
                  %128 = vst [vmem:[%s126] sm:%s118] %v127
                  %v129 = vld [vmem:[%s125 + $0xc] sm:%s118]
                  %130 = vst [vmem:[%s126 + $0x4] sm:%s118] %v129
                $region55: #{vision_transformer_forward.12} parent=42 // loop_footer
                  %s124 = sadd.s32 1, %s120
                $region56: #{vision_transformer_forward.12} parent=42 // loop_footer_branch
                  %119 = sbr.rel target = $region52
                $region57: #{vision_transformer_forward.12} parent=42 // loop_exit
                  _
              $region43: #{vision_transformer_forward.12} parent=27 // pred_fallthru
                _
            $region28: #{vision_transformer_forward.12} parent=23 // pred_fallthru
              _
            // Predicated region
            $region29: #{vision_transformer_forward.12} parent=23 // pred_check
              _
            $region30: #{vision_transformer_forward.12} parent=23 // pred_check_branch
              %92 = sbr.rel (0) target = $region32
            $region31: #{vision_transformer_forward.12} parent=23 // pred_region
              %s94 = ssub.s32 16, 1
              loop: start=0, step=1, limit=1
              $region33: #{vision_transformer_forward.12} parent=31 // loop_pre_header
                _
              $region34: #{vision_transformer_forward.12} parent=31 // loop_header
                %s96 = sphi 0, %s100
                %p97 = scmp.ge.s32.totalorder %s96, 1
                %s101 = sphi %s86, %s86
                %s102 = sphi %s84, %s84
              $region35: #{vision_transformer_forward.12} parent=31 // loop_header_branch
                %99 = sbr.rel (%p97) target = $region39
              $region36: #{vision_transformer_forward.12} parent=31 // loop_body
                %v103 = vld [vmem:[%s101] sm:%s94]
                %104 = vst [vmem:[%s102] sm:%s94] %v103
                %v105 = vld [vmem:[%s101 + $0xc] sm:%s94]
                %106 = vst [vmem:[%s102 + $0x4] sm:%s94] %v105
              $region37: #{vision_transformer_forward.12} parent=31 // loop_footer
                %s100 = sadd.s32 1, %s96
              $region38: #{vision_transformer_forward.12} parent=31 // loop_footer_branch
                %95 = sbr.rel target = $region34
              $region39: #{vision_transformer_forward.12} parent=31 // loop_exit
                _
            $region32: #{vision_transformer_forward.12} parent=23 // pred_fallthru
              _
          $region24: #{vision_transformer_forward.12} parent=19 // pred_fallthru
            _
          %131 = vnop
        $region20: #{vision_transformer_forward.12} parent=15 // pred_fallthru
          _
      $region16: #{vision_transformer_forward.12} parent=5 // pred_fallthru
        _
      %p132 = scmp.le.s32.totalorder 1, %s7
      %p133 = scmp.lt.s32.totalorder %s7, 4
      %p134 = pnand %p132, %p133
      %p135 = pneg %p134
      // Predicated region
      $region58: #{vision_transformer_forward.12} parent=5 // pred_check
        _
      $region59: #{vision_transformer_forward.12} parent=5 // pred_check_branch
        %137 = sbr.rel (%p134) target = $region61
      $region60: #{vision_transformer_forward.12} parent=5 // pred_region
        %s138 = ssub.s32 %s7, 1
        %s139 = sand.u32 %s20, 1
        %s140 = sand.u32 %s20, 1
        %s141 = smul.addr %s140, 8
        %s142 = scalar_lea.vmem [#allocation2], %s141
        // Predicated region
        $region62: #{vision_transformer_forward.12} parent=60 // pred_check
          %p143 = pneg %p33
        $region63: #{vision_transformer_forward.12} parent=60 // pred_check_branch
          %145 = sbr.rel (%p143) target = $region65
        $region64: #{vision_transformer_forward.12} parent=60 // pred_region
          _
        $region65: #{vision_transformer_forward.12} parent=60 // pred_fallthru
          _
        %s146 = sand.u32 %s20, 1
        %s147 = sand.u32 %s20, 1
        %s148 = smul.addr %s147, 8
        %s149 = scalar_lea.vmem [#allocation2], %s148
        %p150 = pneg %p33
        %p151 = pneg %p30
        %p152 = pneg %p59
        %p153 = pneg %p56
        %s154 = sand.u32 %s46, 1
        %s155 = sand.u32 %s46, 1
        %s156 = smul.addr %s155, 8
        %s157 = scalar_lea.vmem [#allocation3], %s156
        %v159 = vld [vmem:[%s142] sm:$0x1]
        %v160 = vld [vmem:[%s142 + $0x4] sm:$0x1]
        %v163 = vunpack.c.l.b16 %v159
        %v164 = vunpack.c.l.b16 %v160
        %v165 = vpack.c.b16 %v163, %v163
        %v166 = vpack.c.b16 %v164, %v164
        %v167 = vunpack.c.l.b16 %v165
        %v168 = vunpack.c.l.b16 %v166
        %v169 = vrot.slane %v168, 7
        %vm170 = vcmask 1041409
        %v171 = vsel %vm170, %v169, %v167
        %v172 = vpack.c.b16 %v171, %v171
        %173 = vrot.lane.b32.xlu0 %v172, 96
        %v174 = vpop.permute.xlu0 %173
        %vm175 = vcmask 64512
        %v177 = vsel %vm175, %v172, 0
        %v180 = vsel %vm175, %v174, 0
        %182 = vmatprep.subr.bf16.mxu0 0
        %183 = vmatpush1.bf16.xpose.msra.mxu0 0
        %184 = vmatprep.subr.bf16.mxu0 0
        %185 = vmatpush1.bf16.xpose.msra.mxu0 0
        %186 = vmatprep.subr.bf16.mxu0 0
        %187 = vmatpush1.bf16.xpose.msra.mxu0 0
        %188 = vmatprep.subr.bf16.mxu0 0
        %189 = vmatpush1.bf16.xpose.msra.mxu0 0
        %190 = vmatprep.subr.bf16.mxu0 0
        %191 = vmatpush1.bf16.xpose.msra.mxu0 0
        %192 = vmatprep.subr.bf16.mxu0 0
        %193 = vmatpush1.bf16.xpose.msra.mxu0 0
        %194 = vmatprep.subr.bf16.mxu0 0
        %195 = vmatpush1.bf16.xpose.msra.mxu0 0
        %196 = vmatprep.subr.bf16.mxu0 0
        %197 = vmatpush1.bf16.xpose.msra.mxu0 %v180
        %198 = vmatprep.subr.bf16.mxu0 0
        %199 = vmatpush2.bf16.xpose.msra.mxu0 0
        %200 = vmatprep.subr.bf16.mxu0 0
        %201 = vmatpush2.bf16.xpose.msra.mxu0 0
        %202 = vmatprep.subr.bf16.mxu0 0
        %203 = vmatpush2.bf16.xpose.msra.mxu0 0
        %204 = vmatprep.subr.bf16.mxu0 0
        %205 = vmatpush2.bf16.xpose.msra.mxu0 0
        %206 = vmatprep.subr.bf16.mxu0 0
        %207 = vmatpush2.bf16.xpose.msra.mxu0 0
        %208 = vmatprep.subr.bf16.mxu0 0
        %209 = vmatpush2.bf16.xpose.msra.mxu0 0
        %210 = vmatprep.subr.bf16.mxu0 0
        %211 = vmatpush2.bf16.xpose.msra.mxu0 0
        %212 = vmatprep.subr.bf16.mxu0 0
        %213 = vmatpush2.bf16.xpose.msra.mxu0 0
        %214 = vmatprep.mubr.bf16.mxu0 0
        %215 = vmatmul.mubr.bf16.gmra.mxu0 %v177
        %v216 = vpop.f32.mrf.mxu0
        %v217 = vadd.f32 0.0, %v216
        %v218 = vpop.f32.mrf.mxu0
        %v219 = vpop.f32.mrf.mxu0
        %v220 = vpop.f32.mrf.mxu0
        %221 = vdwg.mxu0
        %v222 = vmul.f32 %v217, 0.35355338
        %vm223 = vcmask 9216
        %v224 = vsel %vm223, %v222, -inf
        %225 = vmax.xlane.f32.xlu0 %v224
        %v226 = vpop.xlane.xlu0 %225
        %v227 = vsub.f32 %v222, %v226
        %v228 = vmul.f32 %v227, 1.442695
        %v229 = vpow.pop %v228
        %v230 = vsel %vm223, %v229, 0.0
        %231 = vadd.xlane.f32.xlu0 %v230
        %v232 = vpop.xlane.xlu0 %231
        %v233 = vrcp.pop %v232
        %v234 = vmul.f32 %v229, %v233
        %v235 = vpack.c.bf16 %v234, %v234
        %236 = vrot.lane.b32.xlu0 %v172, 64
        %v237 = vpop.permute.xlu0 %236
        %vm238 = vcmask 15360
        %v240 = vsel %vm238, %v235, 0
        %vm242 = vcmask 1040384
        %v244 = vsel %vm242, %v237, 0
        %246 = vmatprep.subr.bf16.mxu0 0
        %247 = vmatpush1.bf16.msra.mxu0 0
        %248 = vmatprep.subr.bf16.mxu0 0
        %249 = vmatpush1.bf16.msra.mxu0 0
        %250 = vmatprep.subr.bf16.mxu0 0
        %251 = vmatpush1.bf16.msra.mxu0 0
        %252 = vmatprep.subr.bf16.mxu0 0
        %253 = vmatpush1.bf16.msra.mxu0 0
        %254 = vmatprep.subr.bf16.mxu0 0
        %255 = vmatpush1.bf16.msra.mxu0 0
        %256 = vmatprep.subr.bf16.mxu0 0
        %257 = vmatpush1.bf16.msra.mxu0 0
        %258 = vmatprep.subr.bf16.mxu0 0
        %259 = vmatpush1.bf16.msra.mxu0 0
        %260 = vmatprep.subr.bf16.mxu0 0
        %261 = vmatpush1.bf16.msra.mxu0 %v244
        %262 = vmatprep.subr.bf16.mxu0 0
        %263 = vmatpush2.bf16.msra.mxu0 0
        %264 = vmatprep.subr.bf16.mxu0 0
        %265 = vmatpush2.bf16.msra.mxu0 0
        %266 = vmatprep.subr.bf16.mxu0 0
        %267 = vmatpush2.bf16.msra.mxu0 0
        %268 = vmatprep.subr.bf16.mxu0 0
        %269 = vmatpush2.bf16.msra.mxu0 0
        %270 = vmatprep.subr.bf16.mxu0 0
        %271 = vmatpush2.bf16.msra.mxu0 0
        %272 = vmatprep.subr.bf16.mxu0 0
        %273 = vmatpush2.bf16.msra.mxu0 0
        %274 = vmatprep.subr.bf16.mxu0 0
        %275 = vmatpush2.bf16.msra.mxu0 0
        %276 = vmatprep.subr.bf16.mxu0 0
        %277 = vmatpush2.bf16.msra.mxu0 0
        %278 = vmatprep.mubr.bf16.mxu0 0
        %279 = vmatmul.mubr.bf16.gmra.mxu0 %v240
        %v280 = vpop.f32.mrf.mxu0
        %v281 = vadd.f32 0.0, %v280
        %v282 = vpop.f32.mrf.mxu0
        %v283 = vpop.f32.mrf.mxu0
        %v284 = vpop.f32.mrf.mxu0
        %285 = vdwg.mxu0
        %v286 = vpack.c.bf16 %v281, %v281
        %v289 = vunpack.c.l.s4 1966171168
        %v290 = vunpack.c.0.s8 %v289
        %v291 = vlaneseq
        %v292 = vshrl.u32 %v291, 7
        %v293 = vsub.s32 %v290, %v292
        %v294 = vrot.slane %v286, %v293
        %v296 = vunpack.c.l.s4 1966171168
        %v297 = vunpack.c.0.s8 %v296
        %v298 = vlaneseq
        %v299 = vshrl.u32 %v298, 7
        %v300 = vsub.s32 %v297, %v299
        %v301 = vrot.slane %v294, %v300
        %v302 = vunpack.i.l.s16 %v301
        %v303 = vunpack.i.h.s16 %v301
        %v304 = vpack.i.b16 %v302, %v302
        %v305 = vpack.i.b16 %v303, %v303
        %v307 = vunpack.c.l.s4 286326784
        %v308 = vunpack.c.0.s8 %v307
        %v309 = vlaneseq
        %v310 = vshrl.u32 %v309, 7
        %v311 = vsub.s32 %v308, %v310
        %v312 = vrot.slane %v304, %v311
        %v314 = vunpack.c.l.s4 286326784
        %v315 = vunpack.c.0.s8 %v314
        %v316 = vlaneseq
        %v317 = vshrl.u32 %v316, 7
        %v318 = vsub.s32 %v315, %v317
        %v319 = vrot.slane %v305, %v318
        %vm322 = vcmask 57344
        %vm323 = vsmask.f32 256
        %vm324 = vmand %vm322, %vm323
        %v325 = vld [vmem:[%s157] sm:$0x1]
        %v326 = vsel %vm324, %v312, %v325
        %327 = vst [vmem:[%s157] sm:$0x1] %v326
        %v328 = vld [vmem:[%s157 + $0x4] sm:$0x1]
        %v329 = vsel %vm324, %v319, %v328
        %330 = vst [vmem:[%s157 + $0x4] sm:$0x1] %v329
        %331 = vrot.lane.b32.xlu0 %v172, 120
        %v332 = vpop.permute.xlu0 %331
        %333 = vrot.lane.b32.xlu0 %v172, 88
        %v334 = vpop.permute.xlu0 %333
        %v336 = vsel %vm175, %v332, 0
        %v339 = vsel %vm175, %v334, 0
        %341 = vmatprep.subr.bf16.mxu0 0
        %342 = vmatpush1.bf16.xpose.msra.mxu0 0
        %343 = vmatprep.subr.bf16.mxu0 0
        %344 = vmatpush1.bf16.xpose.msra.mxu0 0
        %345 = vmatprep.subr.bf16.mxu0 0
        %346 = vmatpush1.bf16.xpose.msra.mxu0 0
        %347 = vmatprep.subr.bf16.mxu0 0
        %348 = vmatpush1.bf16.xpose.msra.mxu0 0
        %349 = vmatprep.subr.bf16.mxu0 0
        %350 = vmatpush1.bf16.xpose.msra.mxu0 0
        %351 = vmatprep.subr.bf16.mxu0 0
        %352 = vmatpush1.bf16.xpose.msra.mxu0 0
        %353 = vmatprep.subr.bf16.mxu0 0
        %354 = vmatpush1.bf16.xpose.msra.mxu0 0
        %355 = vmatprep.subr.bf16.mxu0 0
        %356 = vmatpush1.bf16.xpose.msra.mxu0 %v339
        %357 = vmatprep.subr.bf16.mxu0 0
        %358 = vmatpush2.bf16.xpose.msra.mxu0 0
        %359 = vmatprep.subr.bf16.mxu0 0
        %360 = vmatpush2.bf16.xpose.msra.mxu0 0
        %361 = vmatprep.subr.bf16.mxu0 0
        %362 = vmatpush2.bf16.xpose.msra.mxu0 0
        %363 = vmatprep.subr.bf16.mxu0 0
        %364 = vmatpush2.bf16.xpose.msra.mxu0 0
        %365 = vmatprep.subr.bf16.mxu0 0
        %366 = vmatpush2.bf16.xpose.msra.mxu0 0
        %367 = vmatprep.subr.bf16.mxu0 0
        %368 = vmatpush2.bf16.xpose.msra.mxu0 0
        %369 = vmatprep.subr.bf16.mxu0 0
        %370 = vmatpush2.bf16.xpose.msra.mxu0 0
        %371 = vmatprep.subr.bf16.mxu0 0
        %372 = vmatpush2.bf16.xpose.msra.mxu0 0
        %373 = vmatprep.mubr.bf16.mxu0 0
        %374 = vmatmul.mubr.bf16.gmra.mxu0 %v336
        %v375 = vpop.f32.mrf.mxu0
        %v376 = vadd.f32 0.0, %v375
        %v377 = vpop.f32.mrf.mxu0
        %v378 = vpop.f32.mrf.mxu0
        %v379 = vpop.f32.mrf.mxu0
        %380 = vdwg.mxu0
        %v381 = vmul.f32 %v376, 0.35355338
        %v382 = vsel %vm223, %v381, -inf
        %383 = vmax.xlane.f32.xlu0 %v382
        %v384 = vpop.xlane.xlu0 %383
        %v385 = vsub.f32 %v381, %v384
        %v386 = vmul.f32 %v385, 1.442695
        %v387 = vpow.pop %v386
        %v388 = vsel %vm223, %v387, 0.0
        %389 = vadd.xlane.f32.xlu0 %v388
        %v390 = vpop.xlane.xlu0 %389
        %v391 = vrcp.pop %v390
        %v392 = vmul.f32 %v387, %v391
        %v393 = vpack.c.bf16 %v392, %v392
        %394 = vrot.lane.b32.xlu0 %v172, 56
        %v395 = vpop.permute.xlu0 %394
        %v397 = vsel %vm238, %v393, 0
        %v400 = vsel %vm242, %v395, 0
        %402 = vmatprep.subr.bf16.mxu0 0
        %403 = vmatpush1.bf16.msra.mxu0 0
        %404 = vmatprep.subr.bf16.mxu0 0
        %405 = vmatpush1.bf16.msra.mxu0 0
        %406 = vmatprep.subr.bf16.mxu0 0
        %407 = vmatpush1.bf16.msra.mxu0 0
        %408 = vmatprep.subr.bf16.mxu0 0
        %409 = vmatpush1.bf16.msra.mxu0 0
        %410 = vmatprep.subr.bf16.mxu0 0
        %411 = vmatpush1.bf16.msra.mxu0 0
        %412 = vmatprep.subr.bf16.mxu0 0
        %413 = vmatpush1.bf16.msra.mxu0 0
        %414 = vmatprep.subr.bf16.mxu0 0
        %415 = vmatpush1.bf16.msra.mxu0 0
        %416 = vmatprep.subr.bf16.mxu0 0
        %417 = vmatpush1.bf16.msra.mxu0 %v400
        %418 = vmatprep.subr.bf16.mxu0 0
        %419 = vmatpush2.bf16.msra.mxu0 0
        %420 = vmatprep.subr.bf16.mxu0 0
        %421 = vmatpush2.bf16.msra.mxu0 0
        %422 = vmatprep.subr.bf16.mxu0 0
        %423 = vmatpush2.bf16.msra.mxu0 0
        %424 = vmatprep.subr.bf16.mxu0 0
        %425 = vmatpush2.bf16.msra.mxu0 0
        %426 = vmatprep.subr.bf16.mxu0 0
        %427 = vmatpush2.bf16.msra.mxu0 0
        %428 = vmatprep.subr.bf16.mxu0 0
        %429 = vmatpush2.bf16.msra.mxu0 0
        %430 = vmatprep.subr.bf16.mxu0 0
        %431 = vmatpush2.bf16.msra.mxu0 0
        %432 = vmatprep.subr.bf16.mxu0 0
        %433 = vmatpush2.bf16.msra.mxu0 0
        %434 = vmatprep.mubr.bf16.mxu0 0
        %435 = vmatmul.mubr.bf16.gmra.mxu0 %v397
        %v436 = vpop.f32.mrf.mxu0
        %v437 = vadd.f32 0.0, %v436
        %v438 = vpop.f32.mrf.mxu0
        %v439 = vpop.f32.mrf.mxu0
        %v440 = vpop.f32.mrf.mxu0
        %441 = vdwg.mxu0
        %v442 = vpack.c.bf16 %v437, %v437
        %v445 = vunpack.c.l.s4 1966171168
        %v446 = vunpack.c.0.s8 %v445
        %v447 = vlaneseq
        %v448 = vshrl.u32 %v447, 7
        %v449 = vsub.s32 %v446, %v448
        %v450 = vrot.slane %v442, %v449
        %v452 = vunpack.c.l.s4 1966171168
        %v453 = vunpack.c.0.s8 %v452
        %v454 = vlaneseq
        %v455 = vshrl.u32 %v454, 7
        %v456 = vsub.s32 %v453, %v455
        %v457 = vrot.slane %v450, %v456
        %v458 = vunpack.i.l.s16 %v457
        %v459 = vunpack.i.h.s16 %v457
        %v460 = vpack.i.b16 %v458, %v458
        %v461 = vpack.i.b16 %v459, %v459
        %v463 = vunpack.c.l.s4 286326784
        %v464 = vunpack.c.0.s8 %v463
        %v465 = vlaneseq
        %v466 = vshrl.u32 %v465, 7
        %v467 = vsub.s32 %v464, %v466
        %v468 = vrot.slane %v460, %v467
        %v470 = vunpack.c.l.s4 286326784
        %v471 = vunpack.c.0.s8 %v470
        %v472 = vlaneseq
        %v473 = vshrl.u32 %v472, 7
        %v474 = vsub.s32 %v471, %v473
        %v475 = vrot.slane %v461, %v474
        %476 = vrot.lane.b32.xlu0 %v468, 8
        %v477 = vpop.permute.xlu0 %476
        %478 = vrot.lane.b32.xlu0 %v475, 8
        %v479 = vpop.permute.xlu0 %478
        %vm482 = vcmask 122944
        %vm483 = vmand %vm482, %vm323
        %v484 = vld [vmem:[%s157] sm:$0x1]
        %v485 = vsel %vm483, %v477, %v484
        %486 = vst [vmem:[%s157] sm:$0x1] %v485
        %v487 = vld [vmem:[%s157 + $0x4] sm:$0x1]
        %v488 = vsel %vm483, %v479, %v487
        %489 = vst [vmem:[%s157 + $0x4] sm:$0x1] %v488
        %490 = vrot.lane.b32.xlu0 %v172, 112
        %v491 = vpop.permute.xlu0 %490
        %492 = vrot.lane.b32.xlu0 %v172, 80
        %v493 = vpop.permute.xlu0 %492
        %v495 = vsel %vm175, %v491, 0
        %v498 = vsel %vm175, %v493, 0
        %500 = vmatprep.subr.bf16.mxu0 0
        %501 = vmatpush1.bf16.xpose.msra.mxu0 0
        %502 = vmatprep.subr.bf16.mxu0 0
        %503 = vmatpush1.bf16.xpose.msra.mxu0 0
        %504 = vmatprep.subr.bf16.mxu0 0
        %505 = vmatpush1.bf16.xpose.msra.mxu0 0
        %506 = vmatprep.subr.bf16.mxu0 0
        %507 = vmatpush1.bf16.xpose.msra.mxu0 0
        %508 = vmatprep.subr.bf16.mxu0 0
        %509 = vmatpush1.bf16.xpose.msra.mxu0 0
        %510 = vmatprep.subr.bf16.mxu0 0
        %511 = vmatpush1.bf16.xpose.msra.mxu0 0
        %512 = vmatprep.subr.bf16.mxu0 0
        %513 = vmatpush1.bf16.xpose.msra.mxu0 0
        %514 = vmatprep.subr.bf16.mxu0 0
        %515 = vmatpush1.bf16.xpose.msra.mxu0 %v498
        %516 = vmatprep.subr.bf16.mxu0 0
        %517 = vmatpush2.bf16.xpose.msra.mxu0 0
        %518 = vmatprep.subr.bf16.mxu0 0
        %519 = vmatpush2.bf16.xpose.msra.mxu0 0
        %520 = vmatprep.subr.bf16.mxu0 0
        %521 = vmatpush2.bf16.xpose.msra.mxu0 0
        %522 = vmatprep.subr.bf16.mxu0 0
        %523 = vmatpush2.bf16.xpose.msra.mxu0 0
        %524 = vmatprep.subr.bf16.mxu0 0
        %525 = vmatpush2.bf16.xpose.msra.mxu0 0
        %526 = vmatprep.subr.bf16.mxu0 0
        %527 = vmatpush2.bf16.xpose.msra.mxu0 0
        %528 = vmatprep.subr.bf16.mxu0 0
        %529 = vmatpush2.bf16.xpose.msra.mxu0 0
        %530 = vmatprep.subr.bf16.mxu0 0
        %531 = vmatpush2.bf16.xpose.msra.mxu0 0
        %532 = vmatprep.mubr.bf16.mxu0 0
        %533 = vmatmul.mubr.bf16.gmra.mxu0 %v495
        %v534 = vpop.f32.mrf.mxu0
        %v535 = vadd.f32 0.0, %v534
        %v536 = vpop.f32.mrf.mxu0
        %v537 = vpop.f32.mrf.mxu0
        %v538 = vpop.f32.mrf.mxu0
        %539 = vdwg.mxu0
        %v540 = vmul.f32 %v535, 0.35355338
        %v541 = vsel %vm223, %v540, -inf
        %542 = vmax.xlane.f32.xlu0 %v541
        %v543 = vpop.xlane.xlu0 %542
        %v544 = vsub.f32 %v540, %v543
        %v545 = vmul.f32 %v544, 1.442695
        %v546 = vpow.pop %v545
        %v547 = vsel %vm223, %v546, 0.0
        %548 = vadd.xlane.f32.xlu0 %v547
        %v549 = vpop.xlane.xlu0 %548
        %v550 = vrcp.pop %v549
        %v551 = vmul.f32 %v546, %v550
        %v552 = vpack.c.bf16 %v551, %v551
        %553 = vrot.lane.b32.xlu0 %v172, 48
        %v554 = vpop.permute.xlu0 %553
        %v556 = vsel %vm238, %v552, 0
        %v559 = vsel %vm242, %v554, 0
        %561 = vmatprep.subr.bf16.mxu0 0
        %562 = vmatpush1.bf16.msra.mxu0 0
        %563 = vmatprep.subr.bf16.mxu0 0
        %564 = vmatpush1.bf16.msra.mxu0 0
        %565 = vmatprep.subr.bf16.mxu0 0
        %566 = vmatpush1.bf16.msra.mxu0 0
        %567 = vmatprep.subr.bf16.mxu0 0
        %568 = vmatpush1.bf16.msra.mxu0 0
        %569 = vmatprep.subr.bf16.mxu0 0
        %570 = vmatpush1.bf16.msra.mxu0 0
        %571 = vmatprep.subr.bf16.mxu0 0
        %572 = vmatpush1.bf16.msra.mxu0 0
        %573 = vmatprep.subr.bf16.mxu0 0
        %574 = vmatpush1.bf16.msra.mxu0 0
        %575 = vmatprep.subr.bf16.mxu0 0
        %576 = vmatpush1.bf16.msra.mxu0 %v559
        %577 = vmatprep.subr.bf16.mxu0 0
        %578 = vmatpush2.bf16.msra.mxu0 0
        %579 = vmatprep.subr.bf16.mxu0 0
        %580 = vmatpush2.bf16.msra.mxu0 0
        %581 = vmatprep.subr.bf16.mxu0 0
        %582 = vmatpush2.bf16.msra.mxu0 0
        %583 = vmatprep.subr.bf16.mxu0 0
        %584 = vmatpush2.bf16.msra.mxu0 0
        %585 = vmatprep.subr.bf16.mxu0 0
        %586 = vmatpush2.bf16.msra.mxu0 0
        %587 = vmatprep.subr.bf16.mxu0 0
        %588 = vmatpush2.bf16.msra.mxu0 0
        %589 = vmatprep.subr.bf16.mxu0 0
        %590 = vmatpush2.bf16.msra.mxu0 0
        %591 = vmatprep.subr.bf16.mxu0 0
        %592 = vmatpush2.bf16.msra.mxu0 0
        %593 = vmatprep.mubr.bf16.mxu0 0
        %594 = vmatmul.mubr.bf16.gmra.mxu0 %v556
        %v595 = vpop.f32.mrf.mxu0
        %v596 = vadd.f32 0.0, %v595
        %v597 = vpop.f32.mrf.mxu0
        %v598 = vpop.f32.mrf.mxu0
        %v599 = vpop.f32.mrf.mxu0
        %600 = vdwg.mxu0
        %v601 = vpack.c.bf16 %v596, %v596
        %v604 = vunpack.c.l.s4 1966171168
        %v605 = vunpack.c.0.s8 %v604
        %v606 = vlaneseq
        %v607 = vshrl.u32 %v606, 7
        %v608 = vsub.s32 %v605, %v607
        %v609 = vrot.slane %v601, %v608
        %v611 = vunpack.c.l.s4 1966171168
        %v612 = vunpack.c.0.s8 %v611
        %v613 = vlaneseq
        %v614 = vshrl.u32 %v613, 7
        %v615 = vsub.s32 %v612, %v614
        %v616 = vrot.slane %v609, %v615
        %v617 = vunpack.i.l.s16 %v616
        %v618 = vunpack.i.h.s16 %v616
        %v619 = vpack.i.b16 %v617, %v617
        %v620 = vpack.i.b16 %v618, %v618
        %v622 = vunpack.c.l.s4 286326784
        %v623 = vunpack.c.0.s8 %v622
        %v624 = vlaneseq
        %v625 = vshrl.u32 %v624, 7
        %v626 = vsub.s32 %v623, %v625
        %v627 = vrot.slane %v619, %v626
        %v629 = vunpack.c.l.s4 286326784
        %v630 = vunpack.c.0.s8 %v629
        %v631 = vlaneseq
        %v632 = vshrl.u32 %v631, 7
        %v633 = vsub.s32 %v630, %v632
        %v634 = vrot.slane %v620, %v633
        %635 = vrot.lane.b32.xlu0 %v627, 16
        %v636 = vpop.permute.xlu0 %635
        %637 = vrot.lane.b32.xlu0 %v634, 16
        %v638 = vpop.permute.xlu0 %637
        %vm641 = vcmask 188544
        %vm642 = vmand %vm641, %vm323
        %v643 = vld [vmem:[%s157] sm:$0x1]
        %v644 = vsel %vm642, %v636, %v643
        %645 = vst [vmem:[%s157] sm:$0x1] %v644
        %v646 = vld [vmem:[%s157 + $0x4] sm:$0x1]
        %v647 = vsel %vm642, %v638, %v646
        %648 = vst [vmem:[%s157 + $0x4] sm:$0x1] %v647
        %649 = vrot.lane.b32.xlu0 %v172, 104
        %v650 = vpop.permute.xlu0 %649
        %651 = vrot.lane.b32.xlu0 %v172, 72
        %v652 = vpop.permute.xlu0 %651
        %v654 = vsel %vm175, %v650, 0
        %v657 = vsel %vm175, %v652, 0
        %659 = vmatprep.subr.bf16.mxu0 0
        %660 = vmatpush1.bf16.xpose.msra.mxu0 0
        %661 = vmatprep.subr.bf16.mxu0 0
        %662 = vmatpush1.bf16.xpose.msra.mxu0 0
        %663 = vmatprep.subr.bf16.mxu0 0
        %664 = vmatpush1.bf16.xpose.msra.mxu0 0
        %665 = vmatprep.subr.bf16.mxu0 0
        %666 = vmatpush1.bf16.xpose.msra.mxu0 0
        %667 = vmatprep.subr.bf16.mxu0 0
        %668 = vmatpush1.bf16.xpose.msra.mxu0 0
        %669 = vmatprep.subr.bf16.mxu0 0
        %670 = vmatpush1.bf16.xpose.msra.mxu0 0
        %671 = vmatprep.subr.bf16.mxu0 0
        %672 = vmatpush1.bf16.xpose.msra.mxu0 0
        %673 = vmatprep.subr.bf16.mxu0 0
        %674 = vmatpush1.bf16.xpose.msra.mxu0 %v657
        %675 = vmatprep.subr.bf16.mxu0 0
        %676 = vmatpush2.bf16.xpose.msra.mxu0 0
        %677 = vmatprep.subr.bf16.mxu0 0
        %678 = vmatpush2.bf16.xpose.msra.mxu0 0
        %679 = vmatprep.subr.bf16.mxu0 0
        %680 = vmatpush2.bf16.xpose.msra.mxu0 0
        %681 = vmatprep.subr.bf16.mxu0 0
        %682 = vmatpush2.bf16.xpose.msra.mxu0 0
        %683 = vmatprep.subr.bf16.mxu0 0
        %684 = vmatpush2.bf16.xpose.msra.mxu0 0
        %685 = vmatprep.subr.bf16.mxu0 0
        %686 = vmatpush2.bf16.xpose.msra.mxu0 0
        %687 = vmatprep.subr.bf16.mxu0 0
        %688 = vmatpush2.bf16.xpose.msra.mxu0 0
        %689 = vmatprep.subr.bf16.mxu0 0
        %690 = vmatpush2.bf16.xpose.msra.mxu0 0
        %691 = vmatprep.mubr.bf16.mxu0 0
        %692 = vmatmul.mubr.bf16.gmra.mxu0 %v654
        %v693 = vpop.f32.mrf.mxu0
        %v694 = vadd.f32 0.0, %v693
        %v695 = vpop.f32.mrf.mxu0
        %v696 = vpop.f32.mrf.mxu0
        %v697 = vpop.f32.mrf.mxu0
        %698 = vdwg.mxu0
        %v699 = vmul.f32 %v694, 0.35355338
        %v700 = vsel %vm223, %v699, -inf
        %701 = vmax.xlane.f32.xlu0 %v700
        %v702 = vpop.xlane.xlu0 %701
        %v703 = vsub.f32 %v699, %v702
        %v704 = vmul.f32 %v703, 1.442695
        %v705 = vpow.pop %v704
        %v706 = vsel %vm223, %v705, 0.0
        %707 = vadd.xlane.f32.xlu0 %v706
        %v708 = vpop.xlane.xlu0 %707
        %v709 = vrcp.pop %v708
        %v710 = vmul.f32 %v705, %v709
        %v711 = vpack.c.bf16 %v710, %v710
        %712 = vrot.lane.b32.xlu0 %v172, 40
        %v713 = vpop.permute.xlu0 %712
        %v715 = vsel %vm238, %v711, 0
        %v718 = vsel %vm242, %v713, 0
        %720 = vmatprep.subr.bf16.mxu0 0
        %721 = vmatpush1.bf16.msra.mxu0 0
        %722 = vmatprep.subr.bf16.mxu0 0
        %723 = vmatpush1.bf16.msra.mxu0 0
        %724 = vmatprep.subr.bf16.mxu0 0
        %725 = vmatpush1.bf16.msra.mxu0 0
        %726 = vmatprep.subr.bf16.mxu0 0
        %727 = vmatpush1.bf16.msra.mxu0 0
        %728 = vmatprep.subr.bf16.mxu0 0
        %729 = vmatpush1.bf16.msra.mxu0 0
        %730 = vmatprep.subr.bf16.mxu0 0
        %731 = vmatpush1.bf16.msra.mxu0 0
        %732 = vmatprep.subr.bf16.mxu0 0
        %733 = vmatpush1.bf16.msra.mxu0 0
        %734 = vmatprep.subr.bf16.mxu0 0
        %735 = vmatpush1.bf16.msra.mxu0 %v718
        %736 = vmatprep.subr.bf16.mxu0 0
        %737 = vmatpush2.bf16.msra.mxu0 0
        %738 = vmatprep.subr.bf16.mxu0 0
        %739 = vmatpush2.bf16.msra.mxu0 0
        %740 = vmatprep.subr.bf16.mxu0 0
        %741 = vmatpush2.bf16.msra.mxu0 0
        %742 = vmatprep.subr.bf16.mxu0 0
        %743 = vmatpush2.bf16.msra.mxu0 0
        %744 = vmatprep.subr.bf16.mxu0 0
        %745 = vmatpush2.bf16.msra.mxu0 0
        %746 = vmatprep.subr.bf16.mxu0 0
        %747 = vmatpush2.bf16.msra.mxu0 0
        %748 = vmatprep.subr.bf16.mxu0 0
        %749 = vmatpush2.bf16.msra.mxu0 0
        %750 = vmatprep.subr.bf16.mxu0 0
        %751 = vmatpush2.bf16.msra.mxu0 0
        %752 = vmatprep.mubr.bf16.mxu0 0
        %753 = vmatmul.mubr.bf16.gmra.mxu0 %v715
        %v754 = vpop.f32.mrf.mxu0
        %v755 = vadd.f32 0.0, %v754
        %v756 = vpop.f32.mrf.mxu0
        %v757 = vpop.f32.mrf.mxu0
        %v758 = vpop.f32.mrf.mxu0
        %759 = vdwg.mxu0
        %v760 = vpack.c.bf16 %v755, %v755
        %v763 = vunpack.c.l.s4 1966171168
        %v764 = vunpack.c.0.s8 %v763
        %v765 = vlaneseq
        %v766 = vshrl.u32 %v765, 7
        %v767 = vsub.s32 %v764, %v766
        %v768 = vrot.slane %v760, %v767
        %v770 = vunpack.c.l.s4 1966171168
        %v771 = vunpack.c.0.s8 %v770
        %v772 = vlaneseq
        %v773 = vshrl.u32 %v772, 7
        %v774 = vsub.s32 %v771, %v773
        %v775 = vrot.slane %v768, %v774
        %v776 = vunpack.i.l.s16 %v775
        %v777 = vunpack.i.h.s16 %v775
        %v778 = vpack.i.b16 %v776, %v776
        %v779 = vpack.i.b16 %v777, %v777
        %v781 = vunpack.c.l.s4 286326784
        %v782 = vunpack.c.0.s8 %v781
        %v783 = vlaneseq
        %v784 = vshrl.u32 %v783, 7
        %v785 = vsub.s32 %v782, %v784
        %v786 = vrot.slane %v778, %v785
        %v788 = vunpack.c.l.s4 286326784
        %v789 = vunpack.c.0.s8 %v788
        %v790 = vlaneseq
        %v791 = vshrl.u32 %v790, 7
        %v792 = vsub.s32 %v789, %v791
        %v793 = vrot.slane %v779, %v792
        %794 = vrot.lane.b32.xlu0 %v786, 24
        %v795 = vpop.permute.xlu0 %794
        %796 = vrot.lane.b32.xlu0 %v793, 24
        %v797 = vpop.permute.xlu0 %796
        %vm800 = vcmask 254144
        %vm801 = vmand %vm800, %vm323
        %v802 = vld [vmem:[%s157] sm:$0x1]
        %v803 = vsel %vm801, %v795, %v802
        %804 = vst [vmem:[%s157] sm:$0x1] %v803
        %v805 = vld [vmem:[%s157 + $0x4] sm:$0x1]
        %v806 = vsel %vm801, %v797, %v805
        %807 = vst [vmem:[%s157 + $0x4] sm:$0x1] %v806
        %v808 = vld [vmem:[%s142] sm:$0x1]
        %v809 = vld [vmem:[%s142 + $0x4] sm:$0x1]
        %v812 = vunpack.c.l.b16 %v808
        %v813 = vunpack.c.l.b16 %v809
        %v814 = vpack.c.b16 %v812, %v812
        %v815 = vpack.c.b16 %v813, %v813
        %v816 = vunpack.c.l.b16 %v814
        %v817 = vunpack.c.l.b16 %v815
        %v818 = vrot.slane %v816, 1
        %v819 = vsel %vm170, %v817, %v818
        %v820 = vpack.c.b16 %v819, %v819
        %821 = vrot.lane.b32.xlu0 %v820, 96
        %v822 = vpop.permute.xlu0 %821
        %v824 = vsel %vm175, %v820, 0
        %v827 = vsel %vm175, %v822, 0
        %829 = vmatprep.subr.bf16.mxu0 0
        %830 = vmatpush1.bf16.xpose.msra.mxu0 0
        %831 = vmatprep.subr.bf16.mxu0 0
        %832 = vmatpush1.bf16.xpose.msra.mxu0 0
        %833 = vmatprep.subr.bf16.mxu0 0
        %834 = vmatpush1.bf16.xpose.msra.mxu0 0
        %835 = vmatprep.subr.bf16.mxu0 0
        %836 = vmatpush1.bf16.xpose.msra.mxu0 0
        %837 = vmatprep.subr.bf16.mxu0 0
        %838 = vmatpush1.bf16.xpose.msra.mxu0 0
        %839 = vmatprep.subr.bf16.mxu0 0
        %840 = vmatpush1.bf16.xpose.msra.mxu0 0
        %841 = vmatprep.subr.bf16.mxu0 0
        %842 = vmatpush1.bf16.xpose.msra.mxu0 0
        %843 = vmatprep.subr.bf16.mxu0 0
        %844 = vmatpush1.bf16.xpose.msra.mxu0 %v827
        %845 = vmatprep.subr.bf16.mxu0 0
        %846 = vmatpush2.bf16.xpose.msra.mxu0 0
        %847 = vmatprep.subr.bf16.mxu0 0
        %848 = vmatpush2.bf16.xpose.msra.mxu0 0
        %849 = vmatprep.subr.bf16.mxu0 0
        %850 = vmatpush2.bf16.xpose.msra.mxu0 0
        %851 = vmatprep.subr.bf16.mxu0 0
        %852 = vmatpush2.bf16.xpose.msra.mxu0 0
        %853 = vmatprep.subr.bf16.mxu0 0
        %854 = vmatpush2.bf16.xpose.msra.mxu0 0
        %855 = vmatprep.subr.bf16.mxu0 0
        %856 = vmatpush2.bf16.xpose.msra.mxu0 0
        %857 = vmatprep.subr.bf16.mxu0 0
        %858 = vmatpush2.bf16.xpose.msra.mxu0 0
        %859 = vmatprep.subr.bf16.mxu0 0
        %860 = vmatpush2.bf16.xpose.msra.mxu0 0
        %861 = vmatprep.mubr.bf16.mxu0 0
        %862 = vmatmul.mubr.bf16.gmra.mxu0 %v824
        %v863 = vpop.f32.mrf.mxu0
        %v864 = vadd.f32 0.0, %v863
        %v865 = vpop.f32.mrf.mxu0
        %v866 = vpop.f32.mrf.mxu0
        %v867 = vpop.f32.mrf.mxu0
        %868 = vdwg.mxu0
        %v869 = vmul.f32 %v864, 0.35355338
        %v870 = vsel %vm223, %v869, -inf
        %871 = vmax.xlane.f32.xlu0 %v870
        %v872 = vpop.xlane.xlu0 %871
        %v873 = vsub.f32 %v869, %v872
        %v874 = vmul.f32 %v873, 1.442695
        %v875 = vpow.pop %v874
        %v876 = vsel %vm223, %v875, 0.0
        %877 = vadd.xlane.f32.xlu0 %v876
        %v878 = vpop.xlane.xlu0 %877
        %v879 = vrcp.pop %v878
        %v880 = vmul.f32 %v875, %v879
        %v881 = vpack.c.bf16 %v880, %v880
        %882 = vrot.lane.b32.xlu0 %v820, 64
        %v883 = vpop.permute.xlu0 %882
        %v885 = vsel %vm238, %v881, 0
        %v888 = vsel %vm242, %v883, 0
        %890 = vmatprep.subr.bf16.mxu0 0
        %891 = vmatpush1.bf16.msra.mxu0 0
        %892 = vmatprep.subr.bf16.mxu0 0
        %893 = vmatpush1.bf16.msra.mxu0 0
        %894 = vmatprep.subr.bf16.mxu0 0
        %895 = vmatpush1.bf16.msra.mxu0 0
        %896 = vmatprep.subr.bf16.mxu0 0
        %897 = vmatpush1.bf16.msra.mxu0 0
        %898 = vmatprep.subr.bf16.mxu0 0
        %899 = vmatpush1.bf16.msra.mxu0 0
        %900 = vmatprep.subr.bf16.mxu0 0
        %901 = vmatpush1.bf16.msra.mxu0 0
        %902 = vmatprep.subr.bf16.mxu0 0
        %903 = vmatpush1.bf16.msra.mxu0 0
        %904 = vmatprep.subr.bf16.mxu0 0
        %905 = vmatpush1.bf16.msra.mxu0 %v888
        %906 = vmatprep.subr.bf16.mxu0 0
        %907 = vmatpush2.bf16.msra.mxu0 0
        %908 = vmatprep.subr.bf16.mxu0 0
        %909 = vmatpush2.bf16.msra.mxu0 0
        %910 = vmatprep.subr.bf16.mxu0 0
        %911 = vmatpush2.bf16.msra.mxu0 0
        %912 = vmatprep.subr.bf16.mxu0 0
        %913 = vmatpush2.bf16.msra.mxu0 0
        %914 = vmatprep.subr.bf16.mxu0 0
        %915 = vmatpush2.bf16.msra.mxu0 0
        %916 = vmatprep.subr.bf16.mxu0 0
        %917 = vmatpush2.bf16.msra.mxu0 0
        %918 = vmatprep.subr.bf16.mxu0 0
        %919 = vmatpush2.bf16.msra.mxu0 0
        %920 = vmatprep.subr.bf16.mxu0 0
        %921 = vmatpush2.bf16.msra.mxu0 0
        %922 = vmatprep.mubr.bf16.mxu0 0
        %923 = vmatmul.mubr.bf16.gmra.mxu0 %v885
        %v924 = vpop.f32.mrf.mxu0
        %v925 = vadd.f32 0.0, %v924
        %v926 = vpop.f32.mrf.mxu0
        %v927 = vpop.f32.mrf.mxu0
        %v928 = vpop.f32.mrf.mxu0
        %929 = vdwg.mxu0
        %v930 = vpack.c.bf16 %v925, %v925
        %v933 = vunpack.c.l.s4 1966171168
        %v934 = vunpack.c.0.s8 %v933
        %v935 = vlaneseq
        %v936 = vshrl.u32 %v935, 7
        %v937 = vsub.s32 %v934, %v936
        %v938 = vrot.slane %v930, %v937
        %v940 = vunpack.c.l.s4 1966171168
        %v941 = vunpack.c.0.s8 %v940
        %v942 = vlaneseq
        %v943 = vshrl.u32 %v942, 7
        %v944 = vsub.s32 %v941, %v943
        %v945 = vrot.slane %v938, %v944
        %v946 = vunpack.i.l.s16 %v945
        %v947 = vunpack.i.h.s16 %v945
        %v948 = vpack.i.b16 %v946, %v946
        %v949 = vpack.i.b16 %v947, %v947
        %v951 = vunpack.c.l.s4 286326784
        %v952 = vunpack.c.0.s8 %v951
        %v953 = vlaneseq
        %v954 = vshrl.u32 %v953, 7
        %v955 = vsub.s32 %v952, %v954
        %v956 = vrot.slane %v948, %v955
        %v958 = vunpack.c.l.s4 286326784
        %v959 = vunpack.c.0.s8 %v958
        %v960 = vlaneseq
        %v961 = vshrl.u32 %v960, 7
        %v962 = vsub.s32 %v959, %v961
        %v963 = vrot.slane %v949, %v962
        %vm966 = vsmask.f32 7938
        %vm967 = vmand %vm322, %vm966
        %v968 = vld [vmem:[%s157] sm:$0x1]
        %v969 = vsel %vm967, %v956, %v968
        %970 = vst [vmem:[%s157] sm:$0x1] %v969
        %v971 = vld [vmem:[%s157 + $0x4] sm:$0x1]
        %v972 = vsel %vm967, %v963, %v971
        %973 = vst [vmem:[%s157 + $0x4] sm:$0x1] %v972
        %974 = vrot.lane.b32.xlu0 %v820, 120
        %v975 = vpop.permute.xlu0 %974
        %976 = vrot.lane.b32.xlu0 %v820, 88
        %v977 = vpop.permute.xlu0 %976
        %v979 = vsel %vm175, %v975, 0
        %v982 = vsel %vm175, %v977, 0
        %984 = vmatprep.subr.bf16.mxu0 0
        %985 = vmatpush1.bf16.xpose.msra.mxu0 0
        %986 = vmatprep.subr.bf16.mxu0 0
        %987 = vmatpush1.bf16.xpose.msra.mxu0 0
        %988 = vmatprep.subr.bf16.mxu0 0
        %989 = vmatpush1.bf16.xpose.msra.mxu0 0
        %990 = vmatprep.subr.bf16.mxu0 0
        %991 = vmatpush1.bf16.xpose.msra.mxu0 0
        %992 = vmatprep.subr.bf16.mxu0 0
        %993 = vmatpush1.bf16.xpose.msra.mxu0 0
        %994 = vmatprep.subr.bf16.mxu0 0
        %995 = vmatpush1.bf16.xpose.msra.mxu0 0
        %996 = vmatprep.subr.bf16.mxu0 0
        %997 = vmatpush1.bf16.xpose.msra.mxu0 0
        %998 = vmatprep.subr.bf16.mxu0 0
        %999 = vmatpush1.bf16.xpose.msra.mxu0 %v982
        %1000 = vmatprep.subr.bf16.mxu0 0
        %1001 = vmatpush2.bf16.xpose.msra.mxu0 0
        %1002 = vmatprep.subr.bf16.mxu0 0
        %1003 = vmatpush2.bf16.xpose.msra.mxu0 0
        %1004 = vmatprep.subr.bf16.mxu0 0
        %1005 = vmatpush2.bf16.xpose.msra.mxu0 0
        %1006 = vmatprep.subr.bf16.mxu0 0
        %1007 = vmatpush2.bf16.xpose.msra.mxu0 0
        %1008 = vmatprep.subr.bf16.mxu0 0
        %1009 = vmatpush2.bf16.xpose.msra.mxu0 0
        %1010 = vmatprep.subr.bf16.mxu0 0
        %1011 = vmatpush2.bf16.xpose.msra.mxu0 0
        %1012 = vmatprep.subr.bf16.mxu0 0
        %1013 = vmatpush2.bf16.xpose.msra.mxu0 0
        %1014 = vmatprep.subr.bf16.mxu0 0
        %1015 = vmatpush2.bf16.xpose.msra.mxu0 0
        %1016 = vmatprep.mubr.bf16.mxu0 0
        %1017 = vmatmul.mubr.bf16.gmra.mxu0 %v979
        %v1018 = vpop.f32.mrf.mxu0
        %v1019 = vadd.f32 0.0, %v1018
        %v1020 = vpop.f32.mrf.mxu0
        %v1021 = vpop.f32.mrf.mxu0
        %v1022 = vpop.f32.mrf.mxu0
        %1023 = vdwg.mxu0
        %v1024 = vmul.f32 %v1019, 0.35355338
        %v1025 = vsel %vm223, %v1024, -inf
        %1026 = vmax.xlane.f32.xlu0 %v1025
        %v1027 = vpop.xlane.xlu0 %1026
        %v1028 = vsub.f32 %v1024, %v1027
        %v1029 = vmul.f32 %v1028, 1.442695
        %v1030 = vpow.pop %v1029
        %v1031 = vsel %vm223, %v1030, 0.0
        %1032 = vadd.xlane.f32.xlu0 %v1031
        %v1033 = vpop.xlane.xlu0 %1032
        %v1034 = vrcp.pop %v1033
        %v1035 = vmul.f32 %v1030, %v1034
        %v1036 = vpack.c.bf16 %v1035, %v1035
        %1037 = vrot.lane.b32.xlu0 %v820, 56
        %v1038 = vpop.permute.xlu0 %1037
        %v1040 = vsel %vm238, %v1036, 0
        %v1043 = vsel %vm242, %v1038, 0
        %1045 = vmatprep.subr.bf16.mxu0 0
        %1046 = vmatpush1.bf16.msra.mxu0 0
        %1047 = vmatprep.subr.bf16.mxu0 0
        %1048 = vmatpush1.bf16.msra.mxu0 0
        %1049 = vmatprep.subr.bf16.mxu0 0
        %1050 = vmatpush1.bf16.msra.mxu0 0
        %1051 = vmatprep.subr.bf16.mxu0 0
        %1052 = vmatpush1.bf16.msra.mxu0 0
        %1053 = vmatprep.subr.bf16.mxu0 0
        %1054 = vmatpush1.bf16.msra.mxu0 0
        %1055 = vmatprep.subr.bf16.mxu0 0
        %1056 = vmatpush1.bf16.msra.mxu0 0
        %1057 = vmatprep.subr.bf16.mxu0 0
        %1058 = vmatpush1.bf16.msra.mxu0 0
        %1059 = vmatprep.subr.bf16.mxu0 0
        %1060 = vmatpush1.bf16.msra.mxu0 %v1043
        %1061 = vmatprep.subr.bf16.mxu0 0
        %1062 = vmatpush2.bf16.msra.mxu0 0
        %1063 = vmatprep.subr.bf16.mxu0 0
        %1064 = vmatpush2.bf16.msra.mxu0 0
        %1065 = vmatprep.subr.bf16.mxu0 0
        %1066 = vmatpush2.bf16.msra.mxu0 0
        %1067 = vmatprep.subr.bf16.mxu0 0
        %1068 = vmatpush2.bf16.msra.mxu0 0
        %1069 = vmatprep.subr.bf16.mxu0 0
        %1070 = vmatpush2.bf16.msra.mxu0 0
        %1071 = vmatprep.subr.bf16.mxu0 0
        %1072 = vmatpush2.bf16.msra.mxu0 0
        %1073 = vmatprep.subr.bf16.mxu0 0
        %1074 = vmatpush2.bf16.msra.mxu0 0
        %1075 = vmatprep.subr.bf16.mxu0 0
        %1076 = vmatpush2.bf16.msra.mxu0 0
        %1077 = vmatprep.mubr.bf16.mxu0 0
        %1078 = vmatmul.mubr.bf16.gmra.mxu0 %v1040
        %v1079 = vpop.f32.mrf.mxu0
        %v1080 = vadd.f32 0.0, %v1079
        %v1081 = vpop.f32.mrf.mxu0
        %v1082 = vpop.f32.mrf.mxu0
        %v1083 = vpop.f32.mrf.mxu0
        %1084 = vdwg.mxu0
        %v1085 = vpack.c.bf16 %v1080, %v1080
        %v1088 = vunpack.c.l.s4 1966171168
        %v1089 = vunpack.c.0.s8 %v1088
        %v1090 = vlaneseq
        %v1091 = vshrl.u32 %v1090, 7
        %v1092 = vsub.s32 %v1089, %v1091
        %v1093 = vrot.slane %v1085, %v1092
        %v1095 = vunpack.c.l.s4 1966171168
        %v1096 = vunpack.c.0.s8 %v1095
        %v1097 = vlaneseq
        %v1098 = vshrl.u32 %v1097, 7
        %v1099 = vsub.s32 %v1096, %v1098
        %v1100 = vrot.slane %v1093, %v1099
        %v1101 = vunpack.i.l.s16 %v1100
        %v1102 = vunpack.i.h.s16 %v1100
        %v1103 = vpack.i.b16 %v1101, %v1101
        %v1104 = vpack.i.b16 %v1102, %v1102
        %v1106 = vunpack.c.l.s4 286326784
        %v1107 = vunpack.c.0.s8 %v1106
        %v1108 = vlaneseq
        %v1109 = vshrl.u32 %v1108, 7
        %v1110 = vsub.s32 %v1107, %v1109
        %v1111 = vrot.slane %v1103, %v1110
        %v1113 = vunpack.c.l.s4 286326784
        %v1114 = vunpack.c.0.s8 %v1113
        %v1115 = vlaneseq
        %v1116 = vshrl.u32 %v1115, 7
        %v1117 = vsub.s32 %v1114, %v1116
        %v1118 = vrot.slane %v1104, %v1117
        %1119 = vrot.lane.b32.xlu0 %v1111, 8
        %v1120 = vpop.permute.xlu0 %1119
        %1121 = vrot.lane.b32.xlu0 %v1118, 8
        %v1122 = vpop.permute.xlu0 %1121
        %vm1125 = vmand %vm482, %vm966
        %v1126 = vld [vmem:[%s157] sm:$0x1]
        %v1127 = vsel %vm1125, %v1120, %v1126
        %1128 = vst [vmem:[%s157] sm:$0x1] %v1127
        %v1129 = vld [vmem:[%s157 + $0x4] sm:$0x1]
        %v1130 = vsel %vm1125, %v1122, %v1129
        %1131 = vst [vmem:[%s157 + $0x4] sm:$0x1] %v1130
        %1132 = vrot.lane.b32.xlu0 %v820, 112
        %v1133 = vpop.permute.xlu0 %1132
        %1134 = vrot.lane.b32.xlu0 %v820, 80
        %v1135 = vpop.permute.xlu0 %1134
        %v1137 = vsel %vm175, %v1133, 0
        %v1140 = vsel %vm175, %v1135, 0
        %1142 = vmatprep.subr.bf16.mxu0 0
        %1143 = vmatpush1.bf16.xpose.msra.mxu0 0
        %1144 = vmatprep.subr.bf16.mxu0 0
        %1145 = vmatpush1.bf16.xpose.msra.mxu0 0
        %1146 = vmatprep.subr.bf16.mxu0 0
        %1147 = vmatpush1.bf16.xpose.msra.mxu0 0
        %1148 = vmatprep.subr.bf16.mxu0 0
        %1149 = vmatpush1.bf16.xpose.msra.mxu0 0
        %1150 = vmatprep.subr.bf16.mxu0 0
        %1151 = vmatpush1.bf16.xpose.msra.mxu0 0
        %1152 = vmatprep.subr.bf16.mxu0 0
        %1153 = vmatpush1.bf16.xpose.msra.mxu0 0
        %1154 = vmatprep.subr.bf16.mxu0 0
        %1155 = vmatpush1.bf16.xpose.msra.mxu0 0
        %1156 = vmatprep.subr.bf16.mxu0 0
        %1157 = vmatpush1.bf16.xpose.msra.mxu0 %v1140
        %1158 = vmatprep.subr.bf16.mxu0 0
        %1159 = vmatpush2.bf16.xpose.msra.mxu0 0
        %1160 = vmatprep.subr.bf16.mxu0 0
        %1161 = vmatpush2.bf16.xpose.msra.mxu0 0
        %1162 = vmatprep.subr.bf16.mxu0 0
        %1163 = vmatpush2.bf16.xpose.msra.mxu0 0
        %1164 = vmatprep.subr.bf16.mxu0 0
        %1165 = vmatpush2.bf16.xpose.msra.mxu0 0
        %1166 = vmatprep.subr.bf16.mxu0 0
        %1167 = vmatpush2.bf16.xpose.msra.mxu0 0
        %1168 = vmatprep.subr.bf16.mxu0 0
        %1169 = vmatpush2.bf16.xpose.msra.mxu0 0
        %1170 = vmatprep.subr.bf16.mxu0 0
        %1171 = vmatpush2.bf16.xpose.msra.mxu0 0
        %1172 = vmatprep.subr.bf16.mxu0 0
        %1173 = vmatpush2.bf16.xpose.msra.mxu0 0
        %1174 = vmatprep.mubr.bf16.mxu0 0
        %1175 = vmatmul.mubr.bf16.gmra.mxu0 %v1137
        %v1176 = vpop.f32.mrf.mxu0
        %v1177 = vadd.f32 0.0, %v1176
        %v1178 = vpop.f32.mrf.mxu0
        %v1179 = vpop.f32.mrf.mxu0
        %v1180 = vpop.f32.mrf.mxu0
        %1181 = vdwg.mxu0
        %v1182 = vmul.f32 %v1177, 0.35355338
        %v1183 = vsel %vm223, %v1182, -inf
        %1184 = vmax.xlane.f32.xlu0 %v1183
        %v1185 = vpop.xlane.xlu0 %1184
        %v1186 = vsub.f32 %v1182, %v1185
        %v1187 = vmul.f32 %v1186, 1.442695
        %v1188 = vpow.pop %v1187
        %v1189 = vsel %vm223, %v1188, 0.0
        %1190 = vadd.xlane.f32.xlu0 %v1189
        %v1191 = vpop.xlane.xlu0 %1190
        %v1192 = vrcp.pop %v1191
        %v1193 = vmul.f32 %v1188, %v1192
        %v1194 = vpack.c.bf16 %v1193, %v1193
        %1195 = vrot.lane.b32.xlu0 %v820, 48
        %v1196 = vpop.permute.xlu0 %1195
        %v1198 = vsel %vm238, %v1194, 0
        %v1201 = vsel %vm242, %v1196, 0
        %1203 = vmatprep.subr.bf16.mxu0 0
        %1204 = vmatpush1.bf16.msra.mxu0 0
        %1205 = vmatprep.subr.bf16.mxu0 0
        %1206 = vmatpush1.bf16.msra.mxu0 0
        %1207 = vmatprep.subr.bf16.mxu0 0
        %1208 = vmatpush1.bf16.msra.mxu0 0
        %1209 = vmatprep.subr.bf16.mxu0 0
        %1210 = vmatpush1.bf16.msra.mxu0 0
        %1211 = vmatprep.subr.bf16.mxu0 0
        %1212 = vmatpush1.bf16.msra.mxu0 0
        %1213 = vmatprep.subr.bf16.mxu0 0
        %1214 = vmatpush1.bf16.msra.mxu0 0
        %1215 = vmatprep.subr.bf16.mxu0 0
        %1216 = vmatpush1.bf16.msra.mxu0 0
        %1217 = vmatprep.subr.bf16.mxu0 0
        %1218 = vmatpush1.bf16.msra.mxu0 %v1201
        %1219 = vmatprep.subr.bf16.mxu0 0
        %1220 = vmatpush2.bf16.msra.mxu0 0
        %1221 = vmatprep.subr.bf16.mxu0 0
        %1222 = vmatpush2.bf16.msra.mxu0 0
        %1223 = vmatprep.subr.bf16.mxu0 0
        %1224 = vmatpush2.bf16.msra.mxu0 0
        %1225 = vmatprep.subr.bf16.mxu0 0
        %1226 = vmatpush2.bf16.msra.mxu0 0
        %1227 = vmatprep.subr.bf16.mxu0 0
        %1228 = vmatpush2.bf16.msra.mxu0 0
        %1229 = vmatprep.subr.bf16.mxu0 0
        %1230 = vmatpush2.bf16.msra.mxu0 0
        %1231 = vmatprep.subr.bf16.mxu0 0
        %1232 = vmatpush2.bf16.msra.mxu0 0
        %1233 = vmatprep.subr.bf16.mxu0 0
        %1234 = vmatpush2.bf16.msra.mxu0 0
        %1235 = vmatprep.mubr.bf16.mxu0 0
        %1236 = vmatmul.mubr.bf16.gmra.mxu0 %v1198
        %v1237 = vpop.f32.mrf.mxu0
        %v1238 = vadd.f32 0.0, %v1237
        %v1239 = vpop.f32.mrf.mxu0
        %v1240 = vpop.f32.mrf.mxu0
        %v1241 = vpop.f32.mrf.mxu0
        %1242 = vdwg.mxu0
        %v1243 = vpack.c.bf16 %v1238, %v1238
        %v1246 = vunpack.c.l.s4 1966171168
        %v1247 = vunpack.c.0.s8 %v1246
        %v1248 = vlaneseq
        %v1249 = vshrl.u32 %v1248, 7
        %v1250 = vsub.s32 %v1247, %v1249
        %v1251 = vrot.slane %v1243, %v1250
        %v1253 = vunpack.c.l.s4 1966171168
        %v1254 = vunpack.c.0.s8 %v1253
        %v1255 = vlaneseq
        %v1256 = vshrl.u32 %v1255, 7
        %v1257 = vsub.s32 %v1254, %v1256
        %v1258 = vrot.slane %v1251, %v1257
        %v1259 = vunpack.i.l.s16 %v1258
        %v1260 = vunpack.i.h.s16 %v1258
        %v1261 = vpack.i.b16 %v1259, %v1259
        %v1262 = vpack.i.b16 %v1260, %v1260
        %v1264 = vunpack.c.l.s4 286326784
        %v1265 = vunpack.c.0.s8 %v1264
        %v1266 = vlaneseq
        %v1267 = vshrl.u32 %v1266, 7
        %v1268 = vsub.s32 %v1265, %v1267
        %v1269 = vrot.slane %v1261, %v1268
        %v1271 = vunpack.c.l.s4 286326784
        %v1272 = vunpack.c.0.s8 %v1271
        %v1273 = vlaneseq
        %v1274 = vshrl.u32 %v1273, 7
        %v1275 = vsub.s32 %v1272, %v1274
        %v1276 = vrot.slane %v1262, %v1275
        %1277 = vrot.lane.b32.xlu0 %v1269, 16
        %v1278 = vpop.permute.xlu0 %1277
        %1279 = vrot.lane.b32.xlu0 %v1276, 16
        %v1280 = vpop.permute.xlu0 %1279
        %vm1283 = vmand %vm641, %vm966
        %v1284 = vld [vmem:[%s157] sm:$0x1]
        %v1285 = vsel %vm1283, %v1278, %v1284
        %1286 = vst [vmem:[%s157] sm:$0x1] %v1285
        %v1287 = vld [vmem:[%s157 + $0x4] sm:$0x1]
        %v1288 = vsel %vm1283, %v1280, %v1287
        %1289 = vst [vmem:[%s157 + $0x4] sm:$0x1] %v1288
        %1290 = vrot.lane.b32.xlu0 %v820, 104
        %v1291 = vpop.permute.xlu0 %1290
        %1292 = vrot.lane.b32.xlu0 %v820, 72
        %v1293 = vpop.permute.xlu0 %1292
        %v1295 = vsel %vm175, %v1291, 0
        %v1298 = vsel %vm175, %v1293, 0
        %1300 = vmatprep.subr.bf16.mxu0 0
        %1301 = vmatpush1.bf16.xpose.msra.mxu0 0
        %1302 = vmatprep.subr.bf16.mxu0 0
        %1303 = vmatpush1.bf16.xpose.msra.mxu0 0
        %1304 = vmatprep.subr.bf16.mxu0 0
        %1305 = vmatpush1.bf16.xpose.msra.mxu0 0
        %1306 = vmatprep.subr.bf16.mxu0 0
        %1307 = vmatpush1.bf16.xpose.msra.mxu0 0
        %1308 = vmatprep.subr.bf16.mxu0 0
        %1309 = vmatpush1.bf16.xpose.msra.mxu0 0
        %1310 = vmatprep.subr.bf16.mxu0 0
        %1311 = vmatpush1.bf16.xpose.msra.mxu0 0
        %1312 = vmatprep.subr.bf16.mxu0 0
        %1313 = vmatpush1.bf16.xpose.msra.mxu0 0
        %1314 = vmatprep.subr.bf16.mxu0 0
        %1315 = vmatpush1.bf16.xpose.msra.mxu0 %v1298
        %1316 = vmatprep.subr.bf16.mxu0 0
        %1317 = vmatpush2.bf16.xpose.msra.mxu0 0
        %1318 = vmatprep.subr.bf16.mxu0 0
        %1319 = vmatpush2.bf16.xpose.msra.mxu0 0
        %1320 = vmatprep.subr.bf16.mxu0 0
        %1321 = vmatpush2.bf16.xpose.msra.mxu0 0
        %1322 = vmatprep.subr.bf16.mxu0 0
        %1323 = vmatpush2.bf16.xpose.msra.mxu0 0
        %1324 = vmatprep.subr.bf16.mxu0 0
        %1325 = vmatpush2.bf16.xpose.msra.mxu0 0
        %1326 = vmatprep.subr.bf16.mxu0 0
        %1327 = vmatpush2.bf16.xpose.msra.mxu0 0
        %1328 = vmatprep.subr.bf16.mxu0 0
        %1329 = vmatpush2.bf16.xpose.msra.mxu0 0
        %1330 = vmatprep.subr.bf16.mxu0 0
        %1331 = vmatpush2.bf16.xpose.msra.mxu0 0
        %1332 = vmatprep.mubr.bf16.mxu0 0
        %1333 = vmatmul.mubr.bf16.gmra.mxu0 %v1295
        %v1334 = vpop.f32.mrf.mxu0
        %v1335 = vadd.f32 0.0, %v1334
        %v1336 = vpop.f32.mrf.mxu0
        %v1337 = vpop.f32.mrf.mxu0
        %v1338 = vpop.f32.mrf.mxu0
        %1339 = vdwg.mxu0
        %v1340 = vmul.f32 %v1335, 0.35355338
        %v1341 = vsel %vm223, %v1340, -inf
        %1342 = vmax.xlane.f32.xlu0 %v1341
        %v1343 = vpop.xlane.xlu0 %1342
        %v1344 = vsub.f32 %v1340, %v1343
        %v1345 = vmul.f32 %v1344, 1.442695
        %v1346 = vpow.pop %v1345
        %v1347 = vsel %vm223, %v1346, 0.0
        %1348 = vadd.xlane.f32.xlu0 %v1347
        %v1349 = vpop.xlane.xlu0 %1348
        %v1350 = vrcp.pop %v1349
        %v1351 = vmul.f32 %v1346, %v1350
        %v1352 = vpack.c.bf16 %v1351, %v1351
        %1353 = vrot.lane.b32.xlu0 %v820, 40
        %v1354 = vpop.permute.xlu0 %1353
        %v1356 = vsel %vm238, %v1352, 0
        %v1359 = vsel %vm242, %v1354, 0
        %1361 = vmatprep.subr.bf16.mxu0 0
        %1362 = vmatpush1.bf16.msra.mxu0 0
        %1363 = vmatprep.subr.bf16.mxu0 0
        %1364 = vmatpush1.bf16.msra.mxu0 0
        %1365 = vmatprep.subr.bf16.mxu0 0
        %1366 = vmatpush1.bf16.msra.mxu0 0
        %1367 = vmatprep.subr.bf16.mxu0 0
        %1368 = vmatpush1.bf16.msra.mxu0 0
        %1369 = vmatprep.subr.bf16.mxu0 0
        %1370 = vmatpush1.bf16.msra.mxu0 0
        %1371 = vmatprep.subr.bf16.mxu0 0
        %1372 = vmatpush1.bf16.msra.mxu0 0
        %1373 = vmatprep.subr.bf16.mxu0 0
        %1374 = vmatpush1.bf16.msra.mxu0 0
        %1375 = vmatprep.subr.bf16.mxu0 0
        %1376 = vmatpush1.bf16.msra.mxu0 %v1359
        %1377 = vmatprep.subr.bf16.mxu0 0
        %1378 = vmatpush2.bf16.msra.mxu0 0
        %1379 = vmatprep.subr.bf16.mxu0 0
        %1380 = vmatpush2.bf16.msra.mxu0 0
        %1381 = vmatprep.subr.bf16.mxu0 0
        %1382 = vmatpush2.bf16.msra.mxu0 0
        %1383 = vmatprep.subr.bf16.mxu0 0
        %1384 = vmatpush2.bf16.msra.mxu0 0
        %1385 = vmatprep.subr.bf16.mxu0 0
        %1386 = vmatpush2.bf16.msra.mxu0 0
        %1387 = vmatprep.subr.bf16.mxu0 0
        %1388 = vmatpush2.bf16.msra.mxu0 0
        %1389 = vmatprep.subr.bf16.mxu0 0
        %1390 = vmatpush2.bf16.msra.mxu0 0
        %1391 = vmatprep.subr.bf16.mxu0 0
        %1392 = vmatpush2.bf16.msra.mxu0 0
        %1393 = vmatprep.mubr.bf16.mxu0 0
        %1394 = vmatmul.mubr.bf16.gmra.mxu0 %v1356
        %v1395 = vpop.f32.mrf.mxu0
        %v1396 = vadd.f32 0.0, %v1395
        %v1397 = vpop.f32.mrf.mxu0
        %v1398 = vpop.f32.mrf.mxu0
        %v1399 = vpop.f32.mrf.mxu0
        %1400 = vdwg.mxu0
        %v1401 = vpack.c.bf16 %v1396, %v1396
        %v1404 = vunpack.c.l.s4 1966171168
        %v1405 = vunpack.c.0.s8 %v1404
        %v1406 = vlaneseq
        %v1407 = vshrl.u32 %v1406, 7
        %v1408 = vsub.s32 %v1405, %v1407
        %v1409 = vrot.slane %v1401, %v1408
        %v1411 = vunpack.c.l.s4 1966171168
        %v1412 = vunpack.c.0.s8 %v1411
        %v1413 = vlaneseq
        %v1414 = vshrl.u32 %v1413, 7
        %v1415 = vsub.s32 %v1412, %v1414
        %v1416 = vrot.slane %v1409, %v1415
        %v1417 = vunpack.i.l.s16 %v1416
        %v1418 = vunpack.i.h.s16 %v1416
        %v1419 = vpack.i.b16 %v1417, %v1417
        %v1420 = vpack.i.b16 %v1418, %v1418
        %v1422 = vunpack.c.l.s4 286326784
        %v1423 = vunpack.c.0.s8 %v1422
        %v1424 = vlaneseq
        %v1425 = vshrl.u32 %v1424, 7
        %v1426 = vsub.s32 %v1423, %v1425
        %v1427 = vrot.slane %v1419, %v1426
        %v1429 = vunpack.c.l.s4 286326784
        %v1430 = vunpack.c.0.s8 %v1429
        %v1431 = vlaneseq
        %v1432 = vshrl.u32 %v1431, 7
        %v1433 = vsub.s32 %v1430, %v1432
        %v1434 = vrot.slane %v1420, %v1433
        %1435 = vrot.lane.b32.xlu0 %v1427, 24
        %v1436 = vpop.permute.xlu0 %1435
        %1437 = vrot.lane.b32.xlu0 %v1434, 24
        %v1438 = vpop.permute.xlu0 %1437
        %vm1441 = vmand %vm800, %vm966
        %v1442 = vld [vmem:[%s157] sm:$0x1]
        %v1443 = vsel %vm1441, %v1436, %v1442
        %1444 = vst [vmem:[%s157] sm:$0x1] %v1443
        %v1445 = vld [vmem:[%s157 + $0x4] sm:$0x1]
        %v1446 = vsel %vm1441, %v1438, %v1445
        %1447 = vst [vmem:[%s157 + $0x4] sm:$0x1] %v1446
        %v1448 = vld [vmem:[%s142] sm:$0x2]
        %v1449 = vld [vmem:[%s142 + $0x4] sm:$0x2]
        %v1452 = vunpack.c.l.b16 %v1448
        %v1453 = vunpack.c.l.b16 %v1449
        %v1454 = vpack.c.b16 %v1452, %v1452
        %v1455 = vpack.c.b16 %v1453, %v1453
        %v1456 = vunpack.c.l.b16 %v1454
        %v1457 = vunpack.c.l.b16 %v1455
        %v1458 = vrot.slane %v1456, 2
        %v1459 = vrot.slane %v1457, 1
        %v1460 = vsel %vm170, %v1459, %v1458
        %v1461 = vpack.c.b16 %v1460, %v1460
        %1462 = vrot.lane.b32.xlu0 %v1461, 96
        %v1463 = vpop.permute.xlu0 %1462
        %v1465 = vsel %vm175, %v1461, 0
        %v1468 = vsel %vm175, %v1463, 0
        %1470 = vmatprep.subr.bf16.mxu0 0
        %1471 = vmatpush1.bf16.xpose.msra.mxu0 0
        %1472 = vmatprep.subr.bf16.mxu0 0
        %1473 = vmatpush1.bf16.xpose.msra.mxu0 0
        %1474 = vmatprep.subr.bf16.mxu0 0
        %1475 = vmatpush1.bf16.xpose.msra.mxu0 0
        %1476 = vmatprep.subr.bf16.mxu0 0
        %1477 = vmatpush1.bf16.xpose.msra.mxu0 0
        %1478 = vmatprep.subr.bf16.mxu0 0
        %1479 = vmatpush1.bf16.xpose.msra.mxu0 0
        %1480 = vmatprep.subr.bf16.mxu0 0
        %1481 = vmatpush1.bf16.xpose.msra.mxu0 0
        %1482 = vmatprep.subr.bf16.mxu0 0
        %1483 = vmatpush1.bf16.xpose.msra.mxu0 0
        %1484 = vmatprep.subr.bf16.mxu0 0
        %1485 = vmatpush1.bf16.xpose.msra.mxu0 %v1468
        %1486 = vmatprep.subr.bf16.mxu0 0
        %1487 = vmatpush2.bf16.xpose.msra.mxu0 0
        %1488 = vmatprep.subr.bf16.mxu0 0
        %1489 = vmatpush2.bf16.xpose.msra.mxu0 0
        %1490 = vmatprep.subr.bf16.mxu0 0
        %1491 = vmatpush2.bf16.xpose.msra.mxu0 0
        %1492 = vmatprep.subr.bf16.mxu0 0
        %1493 = vmatpush2.bf16.xpose.msra.mxu0 0
        %1494 = vmatprep.subr.bf16.mxu0 0
        %1495 = vmatpush2.bf16.xpose.msra.mxu0 0
        %1496 = vmatprep.subr.bf16.mxu0 0
        %1497 = vmatpush2.bf16.xpose.msra.mxu0 0
        %1498 = vmatprep.subr.bf16.mxu0 0
        %1499 = vmatpush2.bf16.xpose.msra.mxu0 0
        %1500 = vmatprep.subr.bf16.mxu0 0
        %1501 = vmatpush2.bf16.xpose.msra.mxu0 0
        %1502 = vmatprep.mubr.bf16.mxu0 0
        %1503 = vmatmul.mubr.bf16.gmra.mxu0 %v1465
        %v1504 = vpop.f32.mrf.mxu0
        %v1505 = vadd.f32 0.0, %v1504
        %v1506 = vpop.f32.mrf.mxu0
        %v1507 = vpop.f32.mrf.mxu0
        %v1508 = vpop.f32.mrf.mxu0
        %1509 = vdwg.mxu0
        %v1510 = vmul.f32 %v1505, 0.35355338
        %v1511 = vsel %vm223, %v1510, -inf
        %1512 = vmax.xlane.f32.xlu0 %v1511
        %v1513 = vpop.xlane.xlu0 %1512
        %v1514 = vsub.f32 %v1510, %v1513
        %v1515 = vmul.f32 %v1514, 1.442695
        %v1516 = vpow.pop %v1515
        %v1517 = vsel %vm223, %v1516, 0.0
        %1518 = vadd.xlane.f32.xlu0 %v1517
        %v1519 = vpop.xlane.xlu0 %1518
        %v1520 = vrcp.pop %v1519
        %v1521 = vmul.f32 %v1516, %v1520
        %v1522 = vpack.c.bf16 %v1521, %v1521
        %1523 = vrot.lane.b32.xlu0 %v1461, 64
        %v1524 = vpop.permute.xlu0 %1523
        %v1526 = vsel %vm238, %v1522, 0
        %v1529 = vsel %vm242, %v1524, 0
        %1531 = vmatprep.subr.bf16.mxu0 0
        %1532 = vmatpush1.bf16.msra.mxu0 0
        %1533 = vmatprep.subr.bf16.mxu0 0
        %1534 = vmatpush1.bf16.msra.mxu0 0
        %1535 = vmatprep.subr.bf16.mxu0 0
        %1536 = vmatpush1.bf16.msra.mxu0 0
        %1537 = vmatprep.subr.bf16.mxu0 0
        %1538 = vmatpush1.bf16.msra.mxu0 0
        %1539 = vmatprep.subr.bf16.mxu0 0
        %1540 = vmatpush1.bf16.msra.mxu0 0
        %1541 = vmatprep.subr.bf16.mxu0 0
        %1542 = vmatpush1.bf16.msra.mxu0 0
        %1543 = vmatprep.subr.bf16.mxu0 0
        %1544 = vmatpush1.bf16.msra.mxu0 0
        %1545 = vmatprep.subr.bf16.mxu0 0
        %1546 = vmatpush1.bf16.msra.mxu0 %v1529
        %1547 = vmatprep.subr.bf16.mxu0 0
        %1548 = vmatpush2.bf16.msra.mxu0 0
        %1549 = vmatprep.subr.bf16.mxu0 0
        %1550 = vmatpush2.bf16.msra.mxu0 0
        %1551 = vmatprep.subr.bf16.mxu0 0
        %1552 = vmatpush2.bf16.msra.mxu0 0
        %1553 = vmatprep.subr.bf16.mxu0 0
        %1554 = vmatpush2.bf16.msra.mxu0 0
        %1555 = vmatprep.subr.bf16.mxu0 0
        %1556 = vmatpush2.bf16.msra.mxu0 0
        %1557 = vmatprep.subr.bf16.mxu0 0
        %1558 = vmatpush2.bf16.msra.mxu0 0
        %1559 = vmatprep.subr.bf16.mxu0 0
        %1560 = vmatpush2.bf16.msra.mxu0 0
        %1561 = vmatprep.subr.bf16.mxu0 0
        %1562 = vmatpush2.bf16.msra.mxu0 0
        %1563 = vmatprep.mubr.bf16.mxu0 0
        %1564 = vmatmul.mubr.bf16.gmra.mxu0 %v1526
        %v1565 = vpop.f32.mrf.mxu0
        %v1566 = vadd.f32 0.0, %v1565
        %v1567 = vpop.f32.mrf.mxu0
        %v1568 = vpop.f32.mrf.mxu0
        %v1569 = vpop.f32.mrf.mxu0
        %1570 = vdwg.mxu0
        %v1571 = vpack.c.bf16 %v1566, %v1566
        %v1574 = vunpack.c.l.s4 1966171168
        %v1575 = vunpack.c.0.s8 %v1574
        %v1576 = vlaneseq
        %v1577 = vshrl.u32 %v1576, 7
        %v1578 = vsub.s32 %v1575, %v1577
        %v1579 = vrot.slane %v1571, %v1578
        %v1581 = vunpack.c.l.s4 1966171168
        %v1582 = vunpack.c.0.s8 %v1581
        %v1583 = vlaneseq
        %v1584 = vshrl.u32 %v1583, 7
        %v1585 = vsub.s32 %v1582, %v1584
        %v1586 = vrot.slane %v1579, %v1585
        %v1587 = vunpack.i.l.s16 %v1586
        %v1588 = vunpack.i.h.s16 %v1586
        %v1589 = vpack.i.b16 %v1587, %v1587
        %v1590 = vpack.i.b16 %v1588, %v1588
        %v1592 = vunpack.c.l.s4 286326784
        %v1593 = vunpack.c.0.s8 %v1592
        %v1594 = vlaneseq
        %v1595 = vshrl.u32 %v1594, 7
        %v1596 = vsub.s32 %v1593, %v1595
        %v1597 = vrot.slane %v1589, %v1596
        %v1599 = vunpack.c.l.s4 286326784
        %v1600 = vunpack.c.0.s8 %v1599
        %v1601 = vlaneseq
        %v1602 = vshrl.u32 %v1601, 7
        %v1603 = vsub.s32 %v1600, %v1602
        %v1604 = vrot.slane %v1590, %v1603
        %vm1607 = vcmask 58369
        %vm1608 = vsmask.f32 1280
        %vm1609 = vmand %vm1607, %vm1608
        %v1610 = vld [vmem:[%s157] sm:$0x2]
        %v1611 = vsel %vm1609, %v1597, %v1610
        %1612 = vst [vmem:[%s157] sm:$0x2] %v1611
        %v1613 = vld [vmem:[%s157 + $0x4] sm:$0x2]
        %v1614 = vsel %vm1609, %v1604, %v1613
        %1615 = vst [vmem:[%s157 + $0x4] sm:$0x2] %v1614
        %1616 = vrot.lane.b32.xlu0 %v1461, 120
        %v1617 = vpop.permute.xlu0 %1616
        %1618 = vrot.lane.b32.xlu0 %v1461, 88
        %v1619 = vpop.permute.xlu0 %1618
        %v1621 = vsel %vm175, %v1617, 0
        %v1624 = vsel %vm175, %v1619, 0
        %1626 = vmatprep.subr.bf16.mxu0 0
        %1627 = vmatpush1.bf16.xpose.msra.mxu0 0
        %1628 = vmatprep.subr.bf16.mxu0 0
        %1629 = vmatpush1.bf16.xpose.msra.mxu0 0
        %1630 = vmatprep.subr.bf16.mxu0 0
        %1631 = vmatpush1.bf16.xpose.msra.mxu0 0
        %1632 = vmatprep.subr.bf16.mxu0 0
        %1633 = vmatpush1.bf16.xpose.msra.mxu0 0
        %1634 = vmatprep.subr.bf16.mxu0 0
        %1635 = vmatpush1.bf16.xpose.msra.mxu0 0
        %1636 = vmatprep.subr.bf16.mxu0 0
        %1637 = vmatpush1.bf16.xpose.msra.mxu0 0
        %1638 = vmatprep.subr.bf16.mxu0 0
        %1639 = vmatpush1.bf16.xpose.msra.mxu0 0
        %1640 = vmatprep.subr.bf16.mxu0 0
        %1641 = vmatpush1.bf16.xpose.msra.mxu0 %v1624
        %1642 = vmatprep.subr.bf16.mxu0 0
        %1643 = vmatpush2.bf16.xpose.msra.mxu0 0
        %1644 = vmatprep.subr.bf16.mxu0 0
        %1645 = vmatpush2.bf16.xpose.msra.mxu0 0
        %1646 = vmatprep.subr.bf16.mxu0 0
        %1647 = vmatpush2.bf16.xpose.msra.mxu0 0
        %1648 = vmatprep.subr.bf16.mxu0 0
        %1649 = vmatpush2.bf16.xpose.msra.mxu0 0
        %1650 = vmatprep.subr.bf16.mxu0 0
        %1651 = vmatpush2.bf16.xpose.msra.mxu0 0
        %1652 = vmatprep.subr.bf16.mxu0 0
        %1653 = vmatpush2.bf16.xpose.msra.mxu0 0
        %1654 = vmatprep.subr.bf16.mxu0 0
        %1655 = vmatpush2.bf16.xpose.msra.mxu0 0
        %1656 = vmatprep.subr.bf16.mxu0 0
        %1657 = vmatpush2.bf16.xpose.msra.mxu0 0
        %1658 = vmatprep.mubr.bf16.mxu0 0
        %1659 = vmatmul.mubr.bf16.gmra.mxu0 %v1621
        %v1660 = vpop.f32.mrf.mxu0
        %v1661 = vadd.f32 0.0, %v1660
        %v1662 = vpop.f32.mrf.mxu0
        %v1663 = vpop.f32.mrf.mxu0
        %v1664 = vpop.f32.mrf.mxu0
        %1665 = vdwg.mxu0
        %v1666 = vmul.f32 %v1661, 0.35355338
        %v1667 = vsel %vm223, %v1666, -inf
        %1668 = vmax.xlane.f32.xlu0 %v1667
        %v1669 = vpop.xlane.xlu0 %1668
        %v1670 = vsub.f32 %v1666, %v1669
        %v1671 = vmul.f32 %v1670, 1.442695
        %v1672 = vpow.pop %v1671
        %v1673 = vsel %vm223, %v1672, 0.0
        %1674 = vadd.xlane.f32.xlu0 %v1673
        %v1675 = vpop.xlane.xlu0 %1674
        %v1676 = vrcp.pop %v1675
        %v1677 = vmul.f32 %v1672, %v1676
        %v1678 = vpack.c.bf16 %v1677, %v1677
        %1679 = vrot.lane.b32.xlu0 %v1461, 56
        %v1680 = vpop.permute.xlu0 %1679
        %v1682 = vsel %vm238, %v1678, 0
        %v1685 = vsel %vm242, %v1680, 0
        %1687 = vmatprep.subr.bf16.mxu0 0
        %1688 = vmatpush1.bf16.msra.mxu0 0
        %1689 = vmatprep.subr.bf16.mxu0 0
        %1690 = vmatpush1.bf16.msra.mxu0 0
        %1691 = vmatprep.subr.bf16.mxu0 0
        %1692 = vmatpush1.bf16.msra.mxu0 0
        %1693 = vmatprep.subr.bf16.mxu0 0
        %1694 = vmatpush1.bf16.msra.mxu0 0
        %1695 = vmatprep.subr.bf16.mxu0 0
        %1696 = vmatpush1.bf16.msra.mxu0 0
        %1697 = vmatprep.subr.bf16.mxu0 0
        %1698 = vmatpush1.bf16.msra.mxu0 0
        %1699 = vmatprep.subr.bf16.mxu0 0
        %1700 = vmatpush1.bf16.msra.mxu0 0
        %1701 = vmatprep.subr.bf16.mxu0 0
        %1702 = vmatpush1.bf16.msra.mxu0 %v1685
        %1703 = vmatprep.subr.bf16.mxu0 0
        %1704 = vmatpush2.bf16.msra.mxu0 0
        %1705 = vmatprep.subr.bf16.mxu0 0
        %1706 = vmatpush2.bf16.msra.mxu0 0
        %1707 = vmatprep.subr.bf16.mxu0 0
        %1708 = vmatpush2.bf16.msra.mxu0 0
        %1709 = vmatprep.subr.bf16.mxu0 0
        %1710 = vmatpush2.bf16.msra.mxu0 0
        %1711 = vmatprep.subr.bf16.mxu0 0
        %1712 = vmatpush2.bf16.msra.mxu0 0
        %1713 = vmatprep.subr.bf16.mxu0 0
        %1714 = vmatpush2.bf16.msra.mxu0 0
        %1715 = vmatprep.subr.bf16.mxu0 0
        %1716 = vmatpush2.bf16.msra.mxu0 0
        %1717 = vmatprep.subr.bf16.mxu0 0
        %1718 = vmatpush2.bf16.msra.mxu0 0
        %1719 = vmatprep.mubr.bf16.mxu0 0
        %1720 = vmatmul.mubr.bf16.gmra.mxu0 %v1682
        %v1721 = vpop.f32.mrf.mxu0
        %v1722 = vadd.f32 0.0, %v1721
        %v1723 = vpop.f32.mrf.mxu0
        %v1724 = vpop.f32.mrf.mxu0
        %v1725 = vpop.f32.mrf.mxu0
        %1726 = vdwg.mxu0
        %v1727 = vpack.c.bf16 %v1722, %v1722
        %v1730 = vunpack.c.l.s4 1966171168
        %v1731 = vunpack.c.0.s8 %v1730
        %v1732 = vlaneseq
        %v1733 = vshrl.u32 %v1732, 7
        %v1734 = vsub.s32 %v1731, %v1733
        %v1735 = vrot.slane %v1727, %v1734
        %v1737 = vunpack.c.l.s4 1966171168
        %v1738 = vunpack.c.0.s8 %v1737
        %v1739 = vlaneseq
        %v1740 = vshrl.u32 %v1739, 7
        %v1741 = vsub.s32 %v1738, %v1740
        %v1742 = vrot.slane %v1735, %v1741
        %v1743 = vunpack.i.l.s16 %v1742
        %v1744 = vunpack.i.h.s16 %v1742
        %v1745 = vpack.i.b16 %v1743, %v1743
        %v1746 = vpack.i.b16 %v1744, %v1744
        %v1748 = vunpack.c.l.s4 286326784
        %v1749 = vunpack.c.0.s8 %v1748
        %v1750 = vlaneseq
        %v1751 = vshrl.u32 %v1750, 7
        %v1752 = vsub.s32 %v1749, %v1751
        %v1753 = vrot.slane %v1745, %v1752
        %v1755 = vunpack.c.l.s4 286326784
        %v1756 = vunpack.c.0.s8 %v1755
        %v1757 = vlaneseq
        %v1758 = vshrl.u32 %v1757, 7
        %v1759 = vsub.s32 %v1756, %v1758
        %v1760 = vrot.slane %v1746, %v1759
        %1761 = vrot.lane.b32.xlu0 %v1753, 8
        %v1762 = vpop.permute.xlu0 %1761
        %1763 = vrot.lane.b32.xlu0 %v1760, 8
        %v1764 = vpop.permute.xlu0 %1763
        %vm1767 = vcmask 123969
        %vm1768 = vmand %vm1767, %vm1608
        %v1769 = vld [vmem:[%s157] sm:$0x2]
        %v1770 = vsel %vm1768, %v1762, %v1769
        %1771 = vst [vmem:[%s157] sm:$0x2] %v1770
        %v1772 = vld [vmem:[%s157 + $0x4] sm:$0x2]
        %v1773 = vsel %vm1768, %v1764, %v1772
        %1774 = vst [vmem:[%s157 + $0x4] sm:$0x2] %v1773
        %1775 = vrot.lane.b32.xlu0 %v1461, 112
        %v1776 = vpop.permute.xlu0 %1775
        %1777 = vrot.lane.b32.xlu0 %v1461, 80
        %v1778 = vpop.permute.xlu0 %1777
        %v1780 = vsel %vm175, %v1776, 0
        %v1783 = vsel %vm175, %v1778, 0
        %1785 = vmatprep.subr.bf16.mxu0 0
        %1786 = vmatpush1.bf16.xpose.msra.mxu0 0
        %1787 = vmatprep.subr.bf16.mxu0 0
        %1788 = vmatpush1.bf16.xpose.msra.mxu0 0
        %1789 = vmatprep.subr.bf16.mxu0 0
        %1790 = vmatpush1.bf16.xpose.msra.mxu0 0
        %1791 = vmatprep.subr.bf16.mxu0 0
        %1792 = vmatpush1.bf16.xpose.msra.mxu0 0
        %1793 = vmatprep.subr.bf16.mxu0 0
        %1794 = vmatpush1.bf16.xpose.msra.mxu0 0
        %1795 = vmatprep.subr.bf16.mxu0 0
        %1796 = vmatpush1.bf16.xpose.msra.mxu0 0
        %1797 = vmatprep.subr.bf16.mxu0 0
        %1798 = vmatpush1.bf16.xpose.msra.mxu0 0
        %1799 = vmatprep.subr.bf16.mxu0 0
        %1800 = vmatpush1.bf16.xpose.msra.mxu0 %v1783
        %1801 = vmatprep.subr.bf16.mxu0 0
        %1802 = vmatpush2.bf16.xpose.msra.mxu0 0
        %1803 = vmatprep.subr.bf16.mxu0 0
        %1804 = vmatpush2.bf16.xpose.msra.mxu0 0
        %1805 = vmatprep.subr.bf16.mxu0 0
        %1806 = vmatpush2.bf16.xpose.msra.mxu0 0
        %1807 = vmatprep.subr.bf16.mxu0 0
        %1808 = vmatpush2.bf16.xpose.msra.mxu0 0
        %1809 = vmatprep.subr.bf16.mxu0 0
        %1810 = vmatpush2.bf16.xpose.msra.mxu0 0
        %1811 = vmatprep.subr.bf16.mxu0 0
        %1812 = vmatpush2.bf16.xpose.msra.mxu0 0
        %1813 = vmatprep.subr.bf16.mxu0 0
        %1814 = vmatpush2.bf16.xpose.msra.mxu0 0
        %1815 = vmatprep.subr.bf16.mxu0 0
        %1816 = vmatpush2.bf16.xpose.msra.mxu0 0
        %1817 = vmatprep.mubr.bf16.mxu0 0
        %1818 = vmatmul.mubr.bf16.gmra.mxu0 %v1780
        %v1819 = vpop.f32.mrf.mxu0
        %v1820 = vadd.f32 0.0, %v1819
        %v1821 = vpop.f32.mrf.mxu0
        %v1822 = vpop.f32.mrf.mxu0
        %v1823 = vpop.f32.mrf.mxu0
        %1824 = vdwg.mxu0
        %v1825 = vmul.f32 %v1820, 0.35355338
        %v1826 = vsel %vm223, %v1825, -inf
        %1827 = vmax.xlane.f32.xlu0 %v1826
        %v1828 = vpop.xlane.xlu0 %1827
        %v1829 = vsub.f32 %v1825, %v1828
        %v1830 = vmul.f32 %v1829, 1.442695
        %v1831 = vpow.pop %v1830
        %v1832 = vsel %vm223, %v1831, 0.0
        %1833 = vadd.xlane.f32.xlu0 %v1832
        %v1834 = vpop.xlane.xlu0 %1833
        %v1835 = vrcp.pop %v1834
        %v1836 = vmul.f32 %v1831, %v1835
        %v1837 = vpack.c.bf16 %v1836, %v1836
        %1838 = vrot.lane.b32.xlu0 %v1461, 48
        %v1839 = vpop.permute.xlu0 %1838
        %v1841 = vsel %vm238, %v1837, 0
        %v1844 = vsel %vm242, %v1839, 0
        %1846 = vmatprep.subr.bf16.mxu0 0
        %1847 = vmatpush1.bf16.msra.mxu0 0
        %1848 = vmatprep.subr.bf16.mxu0 0
        %1849 = vmatpush1.bf16.msra.mxu0 0
        %1850 = vmatprep.subr.bf16.mxu0 0
        %1851 = vmatpush1.bf16.msra.mxu0 0
        %1852 = vmatprep.subr.bf16.mxu0 0
        %1853 = vmatpush1.bf16.msra.mxu0 0
        %1854 = vmatprep.subr.bf16.mxu0 0
        %1855 = vmatpush1.bf16.msra.mxu0 0
        %1856 = vmatprep.subr.bf16.mxu0 0
        %1857 = vmatpush1.bf16.msra.mxu0 0
        %1858 = vmatprep.subr.bf16.mxu0 0
        %1859 = vmatpush1.bf16.msra.mxu0 0
        %1860 = vmatprep.subr.bf16.mxu0 0
        %1861 = vmatpush1.bf16.msra.mxu0 %v1844
        %1862 = vmatprep.subr.bf16.mxu0 0
        %1863 = vmatpush2.bf16.msra.mxu0 0
        %1864 = vmatprep.subr.bf16.mxu0 0
        %1865 = vmatpush2.bf16.msra.mxu0 0
        %1866 = vmatprep.subr.bf16.mxu0 0
        %1867 = vmatpush2.bf16.msra.mxu0 0
        %1868 = vmatprep.subr.bf16.mxu0 0
        %1869 = vmatpush2.bf16.msra.mxu0 0
        %1870 = vmatprep.subr.bf16.mxu0 0
        %1871 = vmatpush2.bf16.msra.mxu0 0
        %1872 = vmatprep.subr.bf16.mxu0 0
        %1873 = vmatpush2.bf16.msra.mxu0 0
        %1874 = vmatprep.subr.bf16.mxu0 0
        %1875 = vmatpush2.bf16.msra.mxu0 0
        %1876 = vmatprep.subr.bf16.mxu0 0
        %1877 = vmatpush2.bf16.msra.mxu0 0
        %1878 = vmatprep.mubr.bf16.mxu0 0
        %1879 = vmatmul.mubr.bf16.gmra.mxu0 %v1841
        %v1880 = vpop.f32.mrf.mxu0
        %v1881 = vadd.f32 0.0, %v1880
        %v1882 = vpop.f32.mrf.mxu0
        %v1883 = vpop.f32.mrf.mxu0
        %v1884 = vpop.f32.mrf.mxu0
        %1885 = vdwg.mxu0
        %v1886 = vpack.c.bf16 %v1881, %v1881
        %v1889 = vunpack.c.l.s4 1966171168
        %v1890 = vunpack.c.0.s8 %v1889
        %v1891 = vlaneseq
        %v1892 = vshrl.u32 %v1891, 7
        %v1893 = vsub.s32 %v1890, %v1892
        %v1894 = vrot.slane %v1886, %v1893
        %v1896 = vunpack.c.l.s4 1966171168
        %v1897 = vunpack.c.0.s8 %v1896
        %v1898 = vlaneseq
        %v1899 = vshrl.u32 %v1898, 7
        %v1900 = vsub.s32 %v1897, %v1899
        %v1901 = vrot.slane %v1894, %v1900
        %v1902 = vunpack.i.l.s16 %v1901
        %v1903 = vunpack.i.h.s16 %v1901
        %v1904 = vpack.i.b16 %v1902, %v1902
        %v1905 = vpack.i.b16 %v1903, %v1903
        %v1907 = vunpack.c.l.s4 286326784
        %v1908 = vunpack.c.0.s8 %v1907
        %v1909 = vlaneseq
        %v1910 = vshrl.u32 %v1909, 7
        %v1911 = vsub.s32 %v1908, %v1910
        %v1912 = vrot.slane %v1904, %v1911
        %v1914 = vunpack.c.l.s4 286326784
        %v1915 = vunpack.c.0.s8 %v1914
        %v1916 = vlaneseq
        %v1917 = vshrl.u32 %v1916, 7
        %v1918 = vsub.s32 %v1915, %v1917
        %v1919 = vrot.slane %v1905, %v1918
        %1920 = vrot.lane.b32.xlu0 %v1912, 16
        %v1921 = vpop.permute.xlu0 %1920
        %1922 = vrot.lane.b32.xlu0 %v1919, 16
        %v1923 = vpop.permute.xlu0 %1922
        %vm1926 = vcmask 189569
        %vm1927 = vmand %vm1926, %vm1608
        %v1928 = vld [vmem:[%s157] sm:$0x2]
        %v1929 = vsel %vm1927, %v1921, %v1928
        %1930 = vst [vmem:[%s157] sm:$0x2] %v1929
        %v1931 = vld [vmem:[%s157 + $0x4] sm:$0x2]
        %v1932 = vsel %vm1927, %v1923, %v1931
        %1933 = vst [vmem:[%s157 + $0x4] sm:$0x2] %v1932
        %1934 = vrot.lane.b32.xlu0 %v1461, 104
        %v1935 = vpop.permute.xlu0 %1934
        %1936 = vrot.lane.b32.xlu0 %v1461, 72
        %v1937 = vpop.permute.xlu0 %1936
        %v1939 = vsel %vm175, %v1935, 0
        %v1942 = vsel %vm175, %v1937, 0
        %1944 = vmatprep.subr.bf16.mxu0 0
        %1945 = vmatpush1.bf16.xpose.msra.mxu0 0
        %1946 = vmatprep.subr.bf16.mxu0 0
        %1947 = vmatpush1.bf16.xpose.msra.mxu0 0
        %1948 = vmatprep.subr.bf16.mxu0 0
        %1949 = vmatpush1.bf16.xpose.msra.mxu0 0
        %1950 = vmatprep.subr.bf16.mxu0 0
        %1951 = vmatpush1.bf16.xpose.msra.mxu0 0
        %1952 = vmatprep.subr.bf16.mxu0 0
        %1953 = vmatpush1.bf16.xpose.msra.mxu0 0
        %1954 = vmatprep.subr.bf16.mxu0 0
        %1955 = vmatpush1.bf16.xpose.msra.mxu0 0
        %1956 = vmatprep.subr.bf16.mxu0 0
        %1957 = vmatpush1.bf16.xpose.msra.mxu0 0
        %1958 = vmatprep.subr.bf16.mxu0 0
        %1959 = vmatpush1.bf16.xpose.msra.mxu0 %v1942
        %1960 = vmatprep.subr.bf16.mxu0 0
        %1961 = vmatpush2.bf16.xpose.msra.mxu0 0
        %1962 = vmatprep.subr.bf16.mxu0 0
        %1963 = vmatpush2.bf16.xpose.msra.mxu0 0
        %1964 = vmatprep.subr.bf16.mxu0 0
        %1965 = vmatpush2.bf16.xpose.msra.mxu0 0
        %1966 = vmatprep.subr.bf16.mxu0 0
        %1967 = vmatpush2.bf16.xpose.msra.mxu0 0
        %1968 = vmatprep.subr.bf16.mxu0 0
        %1969 = vmatpush2.bf16.xpose.msra.mxu0 0
        %1970 = vmatprep.subr.bf16.mxu0 0
        %1971 = vmatpush2.bf16.xpose.msra.mxu0 0
        %1972 = vmatprep.subr.bf16.mxu0 0
        %1973 = vmatpush2.bf16.xpose.msra.mxu0 0
        %1974 = vmatprep.subr.bf16.mxu0 0
        %1975 = vmatpush2.bf16.xpose.msra.mxu0 0
        %1976 = vmatprep.mubr.bf16.mxu0 0
        %1977 = vmatmul.mubr.bf16.gmra.mxu0 %v1939
        %v1978 = vpop.f32.mrf.mxu0
        %v1979 = vadd.f32 0.0, %v1978
        %v1980 = vpop.f32.mrf.mxu0
        %v1981 = vpop.f32.mrf.mxu0
        %v1982 = vpop.f32.mrf.mxu0
        %1983 = vdwg.mxu0
        %v1984 = vmul.f32 %v1979, 0.35355338
        %v1985 = vsel %vm223, %v1984, -inf
        %1986 = vmax.xlane.f32.xlu0 %v1985
        %v1987 = vpop.xlane.xlu0 %1986
        %v1988 = vsub.f32 %v1984, %v1987
        %v1989 = vmul.f32 %v1988, 1.442695
        %v1990 = vpow.pop %v1989
        %v1991 = vsel %vm223, %v1990, 0.0
        %1992 = vadd.xlane.f32.xlu0 %v1991
        %v1993 = vpop.xlane.xlu0 %1992
        %v1994 = vrcp.pop %v1993
        %v1995 = vmul.f32 %v1990, %v1994
        %v1996 = vpack.c.bf16 %v1995, %v1995
        %1997 = vrot.lane.b32.xlu0 %v1461, 40
        %v1998 = vpop.permute.xlu0 %1997
        %v2000 = vsel %vm238, %v1996, 0
        %v2003 = vsel %vm242, %v1998, 0
        %2005 = vmatprep.subr.bf16.mxu0 0
        %2006 = vmatpush1.bf16.msra.mxu0 0
        %2007 = vmatprep.subr.bf16.mxu0 0
        %2008 = vmatpush1.bf16.msra.mxu0 0
        %2009 = vmatprep.subr.bf16.mxu0 0
        %2010 = vmatpush1.bf16.msra.mxu0 0
        %2011 = vmatprep.subr.bf16.mxu0 0
        %2012 = vmatpush1.bf16.msra.mxu0 0
        %2013 = vmatprep.subr.bf16.mxu0 0
        %2014 = vmatpush1.bf16.msra.mxu0 0
        %2015 = vmatprep.subr.bf16.mxu0 0
        %2016 = vmatpush1.bf16.msra.mxu0 0
        %2017 = vmatprep.subr.bf16.mxu0 0
        %2018 = vmatpush1.bf16.msra.mxu0 0
        %2019 = vmatprep.subr.bf16.mxu0 0
        %2020 = vmatpush1.bf16.msra.mxu0 %v2003
        %2021 = vmatprep.subr.bf16.mxu0 0
        %2022 = vmatpush2.bf16.msra.mxu0 0
        %2023 = vmatprep.subr.bf16.mxu0 0
        %2024 = vmatpush2.bf16.msra.mxu0 0
        %2025 = vmatprep.subr.bf16.mxu0 0
        %2026 = vmatpush2.bf16.msra.mxu0 0
        %2027 = vmatprep.subr.bf16.mxu0 0
        %2028 = vmatpush2.bf16.msra.mxu0 0
        %2029 = vmatprep.subr.bf16.mxu0 0
        %2030 = vmatpush2.bf16.msra.mxu0 0
        %2031 = vmatprep.subr.bf16.mxu0 0
        %2032 = vmatpush2.bf16.msra.mxu0 0
        %2033 = vmatprep.subr.bf16.mxu0 0
        %2034 = vmatpush2.bf16.msra.mxu0 0
        %2035 = vmatprep.subr.bf16.mxu0 0
        %2036 = vmatpush2.bf16.msra.mxu0 0
        %2037 = vmatprep.mubr.bf16.mxu0 0
        %2038 = vmatmul.mubr.bf16.gmra.mxu0 %v2000
        %v2039 = vpop.f32.mrf.mxu0
        %v2040 = vadd.f32 0.0, %v2039
        %v2041 = vpop.f32.mrf.mxu0
        %v2042 = vpop.f32.mrf.mxu0
        %v2043 = vpop.f32.mrf.mxu0
        %2044 = vdwg.mxu0
        %v2045 = vpack.c.bf16 %v2040, %v2040
        %v2048 = vunpack.c.l.s4 1966171168
        %v2049 = vunpack.c.0.s8 %v2048
        %v2050 = vlaneseq
        %v2051 = vshrl.u32 %v2050, 7
        %v2052 = vsub.s32 %v2049, %v2051
        %v2053 = vrot.slane %v2045, %v2052
        %v2055 = vunpack.c.l.s4 1966171168
        %v2056 = vunpack.c.0.s8 %v2055
        %v2057 = vlaneseq
        %v2058 = vshrl.u32 %v2057, 7
        %v2059 = vsub.s32 %v2056, %v2058
        %v2060 = vrot.slane %v2053, %v2059
        %v2061 = vunpack.i.l.s16 %v2060
        %v2062 = vunpack.i.h.s16 %v2060
        %v2063 = vpack.i.b16 %v2061, %v2061
        %v2064 = vpack.i.b16 %v2062, %v2062
        %v2066 = vunpack.c.l.s4 286326784
        %v2067 = vunpack.c.0.s8 %v2066
        %v2068 = vlaneseq
        %v2069 = vshrl.u32 %v2068, 7
        %v2070 = vsub.s32 %v2067, %v2069
        %v2071 = vrot.slane %v2063, %v2070
        %v2073 = vunpack.c.l.s4 286326784
        %v2074 = vunpack.c.0.s8 %v2073
        %v2075 = vlaneseq
        %v2076 = vshrl.u32 %v2075, 7
        %v2077 = vsub.s32 %v2074, %v2076
        %v2078 = vrot.slane %v2064, %v2077
        %2079 = vrot.lane.b32.xlu0 %v2071, 24
        %v2080 = vpop.permute.xlu0 %2079
        %2081 = vrot.lane.b32.xlu0 %v2078, 24
        %v2082 = vpop.permute.xlu0 %2081
        %vm2085 = vcmask 255169
        %vm2086 = vmand %vm2085, %vm1608
        %v2087 = vld [vmem:[%s157] sm:$0x2]
        %v2088 = vsel %vm2086, %v2080, %v2087
        %2089 = vst [vmem:[%s157] sm:$0x2] %v2088
        %v2090 = vld [vmem:[%s157 + $0x4] sm:$0x2]
        %v2091 = vsel %vm2086, %v2082, %v2090
        %2092 = vst [vmem:[%s157 + $0x4] sm:$0x2] %v2091
        %v2093 = vld [vmem:[%s142] sm:$0x2]
        %v2094 = vld [vmem:[%s142 + $0x4] sm:$0x2]
        %v2097 = vunpack.c.l.b16 %v2093
        %v2098 = vunpack.c.l.b16 %v2094
        %v2099 = vpack.c.b16 %v2097, %v2097
        %v2100 = vpack.c.b16 %v2098, %v2098
        %v2101 = vunpack.c.l.b16 %v2099
        %v2102 = vunpack.c.l.b16 %v2100
        %v2103 = vrot.slane %v2101, 3
        %v2104 = vrot.slane %v2102, 2
        %v2105 = vsel %vm170, %v2104, %v2103
        %v2106 = vpack.c.b16 %v2105, %v2105
        %2107 = vrot.lane.b32.xlu0 %v2106, 96
        %v2108 = vpop.permute.xlu0 %2107
        %v2110 = vsel %vm175, %v2106, 0
        %v2113 = vsel %vm175, %v2108, 0
        %2115 = vmatprep.subr.bf16.mxu0 0
        %2116 = vmatpush1.bf16.xpose.msra.mxu0 0
        %2117 = vmatprep.subr.bf16.mxu0 0
        %2118 = vmatpush1.bf16.xpose.msra.mxu0 0
        %2119 = vmatprep.subr.bf16.mxu0 0
        %2120 = vmatpush1.bf16.xpose.msra.mxu0 0
        %2121 = vmatprep.subr.bf16.mxu0 0
        %2122 = vmatpush1.bf16.xpose.msra.mxu0 0
        %2123 = vmatprep.subr.bf16.mxu0 0
        %2124 = vmatpush1.bf16.xpose.msra.mxu0 0
        %2125 = vmatprep.subr.bf16.mxu0 0
        %2126 = vmatpush1.bf16.xpose.msra.mxu0 0
        %2127 = vmatprep.subr.bf16.mxu0 0
        %2128 = vmatpush1.bf16.xpose.msra.mxu0 0
        %2129 = vmatprep.subr.bf16.mxu0 0
        %2130 = vmatpush1.bf16.xpose.msra.mxu0 %v2113
        %2131 = vmatprep.subr.bf16.mxu0 0
        %2132 = vmatpush2.bf16.xpose.msra.mxu0 0
        %2133 = vmatprep.subr.bf16.mxu0 0
        %2134 = vmatpush2.bf16.xpose.msra.mxu0 0
        %2135 = vmatprep.subr.bf16.mxu0 0
        %2136 = vmatpush2.bf16.xpose.msra.mxu0 0
        %2137 = vmatprep.subr.bf16.mxu0 0
        %2138 = vmatpush2.bf16.xpose.msra.mxu0 0
        %2139 = vmatprep.subr.bf16.mxu0 0
        %2140 = vmatpush2.bf16.xpose.msra.mxu0 0
        %2141 = vmatprep.subr.bf16.mxu0 0
        %2142 = vmatpush2.bf16.xpose.msra.mxu0 0
        %2143 = vmatprep.subr.bf16.mxu0 0
        %2144 = vmatpush2.bf16.xpose.msra.mxu0 0
        %2145 = vmatprep.subr.bf16.mxu0 0
        %2146 = vmatpush2.bf16.xpose.msra.mxu0 0
        %2147 = vmatprep.mubr.bf16.mxu0 0
        %2148 = vmatmul.mubr.bf16.gmra.mxu0 %v2110
        %v2149 = vpop.f32.mrf.mxu0
        %v2150 = vadd.f32 0.0, %v2149
        %v2151 = vpop.f32.mrf.mxu0
        %v2152 = vpop.f32.mrf.mxu0
        %v2153 = vpop.f32.mrf.mxu0
        %2154 = vdwg.mxu0
        %v2155 = vmul.f32 %v2150, 0.35355338
        %v2156 = vsel %vm223, %v2155, -inf
        %2157 = vmax.xlane.f32.xlu0 %v2156
        %v2158 = vpop.xlane.xlu0 %2157
        %v2159 = vsub.f32 %v2155, %v2158
        %v2160 = vmul.f32 %v2159, 1.442695
        %v2161 = vpow.pop %v2160
        %v2162 = vsel %vm223, %v2161, 0.0
        %2163 = vadd.xlane.f32.xlu0 %v2162
        %v2164 = vpop.xlane.xlu0 %2163
        %v2165 = vrcp.pop %v2164
        %v2166 = vmul.f32 %v2161, %v2165
        %v2167 = vpack.c.bf16 %v2166, %v2166
        %2168 = vrot.lane.b32.xlu0 %v2106, 64
        %v2169 = vpop.permute.xlu0 %2168
        %v2171 = vsel %vm238, %v2167, 0
        %v2174 = vsel %vm242, %v2169, 0
        %2176 = vmatprep.subr.bf16.mxu0 0
        %2177 = vmatpush1.bf16.msra.mxu0 0
        %2178 = vmatprep.subr.bf16.mxu0 0
        %2179 = vmatpush1.bf16.msra.mxu0 0
        %2180 = vmatprep.subr.bf16.mxu0 0
        %2181 = vmatpush1.bf16.msra.mxu0 0
        %2182 = vmatprep.subr.bf16.mxu0 0
        %2183 = vmatpush1.bf16.msra.mxu0 0
        %2184 = vmatprep.subr.bf16.mxu0 0
        %2185 = vmatpush1.bf16.msra.mxu0 0
        %2186 = vmatprep.subr.bf16.mxu0 0
        %2187 = vmatpush1.bf16.msra.mxu0 0
        %2188 = vmatprep.subr.bf16.mxu0 0
        %2189 = vmatpush1.bf16.msra.mxu0 0
        %2190 = vmatprep.subr.bf16.mxu0 0
        %2191 = vmatpush1.bf16.msra.mxu0 %v2174
        %2192 = vmatprep.subr.bf16.mxu0 0
        %2193 = vmatpush2.bf16.msra.mxu0 0
        %2194 = vmatprep.subr.bf16.mxu0 0
        %2195 = vmatpush2.bf16.msra.mxu0 0
        %2196 = vmatprep.subr.bf16.mxu0 0
        %2197 = vmatpush2.bf16.msra.mxu0 0
        %2198 = vmatprep.subr.bf16.mxu0 0
        %2199 = vmatpush2.bf16.msra.mxu0 0
        %2200 = vmatprep.subr.bf16.mxu0 0
        %2201 = vmatpush2.bf16.msra.mxu0 0
        %2202 = vmatprep.subr.bf16.mxu0 0
        %2203 = vmatpush2.bf16.msra.mxu0 0
        %2204 = vmatprep.subr.bf16.mxu0 0
        %2205 = vmatpush2.bf16.msra.mxu0 0
        %2206 = vmatprep.subr.bf16.mxu0 0
        %2207 = vmatpush2.bf16.msra.mxu0 0
        %2208 = vmatprep.mubr.bf16.mxu0 0
        %2209 = vmatmul.mubr.bf16.gmra.mxu0 %v2171
        %v2210 = vpop.f32.mrf.mxu0
        %v2211 = vadd.f32 0.0, %v2210
        %v2212 = vpop.f32.mrf.mxu0
        %v2213 = vpop.f32.mrf.mxu0
        %v2214 = vpop.f32.mrf.mxu0
        %2215 = vdwg.mxu0
        %v2216 = vpack.c.bf16 %v2211, %v2211
        %v2219 = vunpack.c.l.s4 1966171168
        %v2220 = vunpack.c.0.s8 %v2219
        %v2221 = vlaneseq
        %v2222 = vshrl.u32 %v2221, 7
        %v2223 = vsub.s32 %v2220, %v2222
        %v2224 = vrot.slane %v2216, %v2223
        %v2226 = vunpack.c.l.s4 1966171168
        %v2227 = vunpack.c.0.s8 %v2226
        %v2228 = vlaneseq
        %v2229 = vshrl.u32 %v2228, 7
        %v2230 = vsub.s32 %v2227, %v2229
        %v2231 = vrot.slane %v2224, %v2230
        %v2232 = vunpack.i.l.s16 %v2231
        %v2233 = vunpack.i.h.s16 %v2231
        %v2234 = vpack.i.b16 %v2232, %v2232
        %v2235 = vpack.i.b16 %v2233, %v2233
        %v2237 = vunpack.c.l.s4 286326784
        %v2238 = vunpack.c.0.s8 %v2237
        %v2239 = vlaneseq
        %v2240 = vshrl.u32 %v2239, 7
        %v2241 = vsub.s32 %v2238, %v2240
        %v2242 = vrot.slane %v2234, %v2241
        %v2244 = vunpack.c.l.s4 286326784
        %v2245 = vunpack.c.0.s8 %v2244
        %v2246 = vlaneseq
        %v2247 = vshrl.u32 %v2246, 7
        %v2248 = vsub.s32 %v2245, %v2247
        %v2249 = vrot.slane %v2235, %v2248
        %vm2252 = vsmask.f32 7942
        %vm2253 = vmand %vm1607, %vm2252
        %v2254 = vld [vmem:[%s157] sm:$0x2]
        %v2255 = vsel %vm2253, %v2242, %v2254
        %2256 = vst [vmem:[%s157] sm:$0x2] %v2255
        %v2257 = vld [vmem:[%s157 + $0x4] sm:$0x2]
        %v2258 = vsel %vm2253, %v2249, %v2257
        %2259 = vst [vmem:[%s157 + $0x4] sm:$0x2] %v2258
        %2260 = vrot.lane.b32.xlu0 %v2106, 120
        %v2261 = vpop.permute.xlu0 %2260
        %2262 = vrot.lane.b32.xlu0 %v2106, 88
        %v2263 = vpop.permute.xlu0 %2262
        %v2265 = vsel %vm175, %v2261, 0
        %v2268 = vsel %vm175, %v2263, 0
        %2270 = vmatprep.subr.bf16.mxu0 0
        %2271 = vmatpush1.bf16.xpose.msra.mxu0 0
        %2272 = vmatprep.subr.bf16.mxu0 0
        %2273 = vmatpush1.bf16.xpose.msra.mxu0 0
        %2274 = vmatprep.subr.bf16.mxu0 0
        %2275 = vmatpush1.bf16.xpose.msra.mxu0 0
        %2276 = vmatprep.subr.bf16.mxu0 0
        %2277 = vmatpush1.bf16.xpose.msra.mxu0 0
        %2278 = vmatprep.subr.bf16.mxu0 0
        %2279 = vmatpush1.bf16.xpose.msra.mxu0 0
        %2280 = vmatprep.subr.bf16.mxu0 0
        %2281 = vmatpush1.bf16.xpose.msra.mxu0 0
        %2282 = vmatprep.subr.bf16.mxu0 0
        %2283 = vmatpush1.bf16.xpose.msra.mxu0 0
        %2284 = vmatprep.subr.bf16.mxu0 0
        %2285 = vmatpush1.bf16.xpose.msra.mxu0 %v2268
        %2286 = vmatprep.subr.bf16.mxu0 0
        %2287 = vmatpush2.bf16.xpose.msra.mxu0 0
        %2288 = vmatprep.subr.bf16.mxu0 0
        %2289 = vmatpush2.bf16.xpose.msra.mxu0 0
        %2290 = vmatprep.subr.bf16.mxu0 0
        %2291 = vmatpush2.bf16.xpose.msra.mxu0 0
        %2292 = vmatprep.subr.bf16.mxu0 0
        %2293 = vmatpush2.bf16.xpose.msra.mxu0 0
        %2294 = vmatprep.subr.bf16.mxu0 0
        %2295 = vmatpush2.bf16.xpose.msra.mxu0 0
        %2296 = vmatprep.subr.bf16.mxu0 0
        %2297 = vmatpush2.bf16.xpose.msra.mxu0 0
        %2298 = vmatprep.subr.bf16.mxu0 0
        %2299 = vmatpush2.bf16.xpose.msra.mxu0 0
        %2300 = vmatprep.subr.bf16.mxu0 0
        %2301 = vmatpush2.bf16.xpose.msra.mxu0 0
        %2302 = vmatprep.mubr.bf16.mxu0 0
        %2303 = vmatmul.mubr.bf16.gmra.mxu0 %v2265
        %v2304 = vpop.f32.mrf.mxu0
        %v2305 = vadd.f32 0.0, %v2304
        %v2306 = vpop.f32.mrf.mxu0
        %v2307 = vpop.f32.mrf.mxu0
        %v2308 = vpop.f32.mrf.mxu0
        %2309 = vdwg.mxu0
        %v2310 = vmul.f32 %v2305, 0.35355338
        %v2311 = vsel %vm223, %v2310, -inf
        %2312 = vmax.xlane.f32.xlu0 %v2311
        %v2313 = vpop.xlane.xlu0 %2312
        %v2314 = vsub.f32 %v2310, %v2313
        %v2315 = vmul.f32 %v2314, 1.442695
        %v2316 = vpow.pop %v2315
        %v2317 = vsel %vm223, %v2316, 0.0
        %2318 = vadd.xlane.f32.xlu0 %v2317
        %v2319 = vpop.xlane.xlu0 %2318
        %v2320 = vrcp.pop %v2319
        %v2321 = vmul.f32 %v2316, %v2320
        %v2322 = vpack.c.bf16 %v2321, %v2321
        %2323 = vrot.lane.b32.xlu0 %v2106, 56
        %v2324 = vpop.permute.xlu0 %2323
        %v2326 = vsel %vm238, %v2322, 0
        %v2329 = vsel %vm242, %v2324, 0
        %2331 = vmatprep.subr.bf16.mxu0 0
        %2332 = vmatpush1.bf16.msra.mxu0 0
        %2333 = vmatprep.subr.bf16.mxu0 0
        %2334 = vmatpush1.bf16.msra.mxu0 0
        %2335 = vmatprep.subr.bf16.mxu0 0
        %2336 = vmatpush1.bf16.msra.mxu0 0
        %2337 = vmatprep.subr.bf16.mxu0 0
        %2338 = vmatpush1.bf16.msra.mxu0 0
        %2339 = vmatprep.subr.bf16.mxu0 0
        %2340 = vmatpush1.bf16.msra.mxu0 0
        %2341 = vmatprep.subr.bf16.mxu0 0
        %2342 = vmatpush1.bf16.msra.mxu0 0
        %2343 = vmatprep.subr.bf16.mxu0 0
        %2344 = vmatpush1.bf16.msra.mxu0 0
        %2345 = vmatprep.subr.bf16.mxu0 0
        %2346 = vmatpush1.bf16.msra.mxu0 %v2329
        %2347 = vmatprep.subr.bf16.mxu0 0
        %2348 = vmatpush2.bf16.msra.mxu0 0
        %2349 = vmatprep.subr.bf16.mxu0 0
        %2350 = vmatpush2.bf16.msra.mxu0 0
        %2351 = vmatprep.subr.bf16.mxu0 0
        %2352 = vmatpush2.bf16.msra.mxu0 0
        %2353 = vmatprep.subr.bf16.mxu0 0
        %2354 = vmatpush2.bf16.msra.mxu0 0
        %2355 = vmatprep.subr.bf16.mxu0 0
        %2356 = vmatpush2.bf16.msra.mxu0 0
        %2357 = vmatprep.subr.bf16.mxu0 0
        %2358 = vmatpush2.bf16.msra.mxu0 0
        %2359 = vmatprep.subr.bf16.mxu0 0
        %2360 = vmatpush2.bf16.msra.mxu0 0
        %2361 = vmatprep.subr.bf16.mxu0 0
        %2362 = vmatpush2.bf16.msra.mxu0 0
        %2363 = vmatprep.mubr.bf16.mxu0 0
        %2364 = vmatmul.mubr.bf16.gmra.mxu0 %v2326
        %v2365 = vpop.f32.mrf.mxu0
        %v2366 = vadd.f32 0.0, %v2365
        %v2367 = vpop.f32.mrf.mxu0
        %v2368 = vpop.f32.mrf.mxu0
        %v2369 = vpop.f32.mrf.mxu0
        %2370 = vdwg.mxu0
        %v2371 = vpack.c.bf16 %v2366, %v2366
        %v2374 = vunpack.c.l.s4 1966171168
        %v2375 = vunpack.c.0.s8 %v2374
        %v2376 = vlaneseq
        %v2377 = vshrl.u32 %v2376, 7
        %v2378 = vsub.s32 %v2375, %v2377
        %v2379 = vrot.slane %v2371, %v2378
        %v2381 = vunpack.c.l.s4 1966171168
        %v2382 = vunpack.c.0.s8 %v2381
        %v2383 = vlaneseq
        %v2384 = vshrl.u32 %v2383, 7
        %v2385 = vsub.s32 %v2382, %v2384
        %v2386 = vrot.slane %v2379, %v2385
        %v2387 = vunpack.i.l.s16 %v2386
        %v2388 = vunpack.i.h.s16 %v2386
        %v2389 = vpack.i.b16 %v2387, %v2387
        %v2390 = vpack.i.b16 %v2388, %v2388
        %v2392 = vunpack.c.l.s4 286326784
        %v2393 = vunpack.c.0.s8 %v2392
        %v2394 = vlaneseq
        %v2395 = vshrl.u32 %v2394, 7
        %v2396 = vsub.s32 %v2393, %v2395
        %v2397 = vrot.slane %v2389, %v2396
        %v2399 = vunpack.c.l.s4 286326784
        %v2400 = vunpack.c.0.s8 %v2399
        %v2401 = vlaneseq
        %v2402 = vshrl.u32 %v2401, 7
        %v2403 = vsub.s32 %v2400, %v2402
        %v2404 = vrot.slane %v2390, %v2403
        %2405 = vrot.lane.b32.xlu0 %v2397, 8
        %v2406 = vpop.permute.xlu0 %2405
        %2407 = vrot.lane.b32.xlu0 %v2404, 8
        %v2408 = vpop.permute.xlu0 %2407
        %vm2411 = vmand %vm1767, %vm2252
        %v2412 = vld [vmem:[%s157] sm:$0x2]
        %v2413 = vsel %vm2411, %v2406, %v2412
        %2414 = vst [vmem:[%s157] sm:$0x2] %v2413
        %v2415 = vld [vmem:[%s157 + $0x4] sm:$0x2]
        %v2416 = vsel %vm2411, %v2408, %v2415
        %2417 = vst [vmem:[%s157 + $0x4] sm:$0x2] %v2416
        %2418 = vrot.lane.b32.xlu0 %v2106, 112
        %v2419 = vpop.permute.xlu0 %2418
        %2420 = vrot.lane.b32.xlu0 %v2106, 80
        %v2421 = vpop.permute.xlu0 %2420
        %v2423 = vsel %vm175, %v2419, 0
        %v2426 = vsel %vm175, %v2421, 0
        %2428 = vmatprep.subr.bf16.mxu0 0
        %2429 = vmatpush1.bf16.xpose.msra.mxu0 0
        %2430 = vmatprep.subr.bf16.mxu0 0
        %2431 = vmatpush1.bf16.xpose.msra.mxu0 0
        %2432 = vmatprep.subr.bf16.mxu0 0
        %2433 = vmatpush1.bf16.xpose.msra.mxu0 0
        %2434 = vmatprep.subr.bf16.mxu0 0
        %2435 = vmatpush1.bf16.xpose.msra.mxu0 0
        %2436 = vmatprep.subr.bf16.mxu0 0
        %2437 = vmatpush1.bf16.xpose.msra.mxu0 0
        %2438 = vmatprep.subr.bf16.mxu0 0
        %2439 = vmatpush1.bf16.xpose.msra.mxu0 0
        %2440 = vmatprep.subr.bf16.mxu0 0
        %2441 = vmatpush1.bf16.xpose.msra.mxu0 0
        %2442 = vmatprep.subr.bf16.mxu0 0
        %2443 = vmatpush1.bf16.xpose.msra.mxu0 %v2426
        %2444 = vmatprep.subr.bf16.mxu0 0
        %2445 = vmatpush2.bf16.xpose.msra.mxu0 0
        %2446 = vmatprep.subr.bf16.mxu0 0
        %2447 = vmatpush2.bf16.xpose.msra.mxu0 0
        %2448 = vmatprep.subr.bf16.mxu0 0
        %2449 = vmatpush2.bf16.xpose.msra.mxu0 0
        %2450 = vmatprep.subr.bf16.mxu0 0
        %2451 = vmatpush2.bf16.xpose.msra.mxu0 0
        %2452 = vmatprep.subr.bf16.mxu0 0
        %2453 = vmatpush2.bf16.xpose.msra.mxu0 0
        %2454 = vmatprep.subr.bf16.mxu0 0
        %2455 = vmatpush2.bf16.xpose.msra.mxu0 0
        %2456 = vmatprep.subr.bf16.mxu0 0
        %2457 = vmatpush2.bf16.xpose.msra.mxu0 0
        %2458 = vmatprep.subr.bf16.mxu0 0
        %2459 = vmatpush2.bf16.xpose.msra.mxu0 0
        %2460 = vmatprep.mubr.bf16.mxu0 0
        %2461 = vmatmul.mubr.bf16.gmra.mxu0 %v2423
        %v2462 = vpop.f32.mrf.mxu0
        %v2463 = vadd.f32 0.0, %v2462
        %v2464 = vpop.f32.mrf.mxu0
        %v2465 = vpop.f32.mrf.mxu0
        %v2466 = vpop.f32.mrf.mxu0
        %2467 = vdwg.mxu0
        %v2468 = vmul.f32 %v2463, 0.35355338
        %v2469 = vsel %vm223, %v2468, -inf
        %2470 = vmax.xlane.f32.xlu0 %v2469
        %v2471 = vpop.xlane.xlu0 %2470
        %v2472 = vsub.f32 %v2468, %v2471
        %v2473 = vmul.f32 %v2472, 1.442695
        %v2474 = vpow.pop %v2473
        %v2475 = vsel %vm223, %v2474, 0.0
        %2476 = vadd.xlane.f32.xlu0 %v2475
        %v2477 = vpop.xlane.xlu0 %2476
        %v2478 = vrcp.pop %v2477
        %v2479 = vmul.f32 %v2474, %v2478
        %v2480 = vpack.c.bf16 %v2479, %v2479
        %2481 = vrot.lane.b32.xlu0 %v2106, 48
        %v2482 = vpop.permute.xlu0 %2481
        %v2484 = vsel %vm238, %v2480, 0
        %v2487 = vsel %vm242, %v2482, 0
        %2489 = vmatprep.subr.bf16.mxu0 0
        %2490 = vmatpush1.bf16.msra.mxu0 0
        %2491 = vmatprep.subr.bf16.mxu0 0
        %2492 = vmatpush1.bf16.msra.mxu0 0
        %2493 = vmatprep.subr.bf16.mxu0 0
        %2494 = vmatpush1.bf16.msra.mxu0 0
        %2495 = vmatprep.subr.bf16.mxu0 0
        %2496 = vmatpush1.bf16.msra.mxu0 0
        %2497 = vmatprep.subr.bf16.mxu0 0
        %2498 = vmatpush1.bf16.msra.mxu0 0
        %2499 = vmatprep.subr.bf16.mxu0 0
        %2500 = vmatpush1.bf16.msra.mxu0 0
        %2501 = vmatprep.subr.bf16.mxu0 0
        %2502 = vmatpush1.bf16.msra.mxu0 0
        %2503 = vmatprep.subr.bf16.mxu0 0
        %2504 = vmatpush1.bf16.msra.mxu0 %v2487
        %2505 = vmatprep.subr.bf16.mxu0 0
        %2506 = vmatpush2.bf16.msra.mxu0 0
        %2507 = vmatprep.subr.bf16.mxu0 0
        %2508 = vmatpush2.bf16.msra.mxu0 0
        %2509 = vmatprep.subr.bf16.mxu0 0
        %2510 = vmatpush2.bf16.msra.mxu0 0
        %2511 = vmatprep.subr.bf16.mxu0 0
        %2512 = vmatpush2.bf16.msra.mxu0 0
        %2513 = vmatprep.subr.bf16.mxu0 0
        %2514 = vmatpush2.bf16.msra.mxu0 0
        %2515 = vmatprep.subr.bf16.mxu0 0
        %2516 = vmatpush2.bf16.msra.mxu0 0
        %2517 = vmatprep.subr.bf16.mxu0 0
        %2518 = vmatpush2.bf16.msra.mxu0 0
        %2519 = vmatprep.subr.bf16.mxu0 0
        %2520 = vmatpush2.bf16.msra.mxu0 0
        %2521 = vmatprep.mubr.bf16.mxu0 0
        %2522 = vmatmul.mubr.bf16.gmra.mxu0 %v2484
        %v2523 = vpop.f32.mrf.mxu0
        %v2524 = vadd.f32 0.0, %v2523
        %v2525 = vpop.f32.mrf.mxu0
        %v2526 = vpop.f32.mrf.mxu0
        %v2527 = vpop.f32.mrf.mxu0
        %2528 = vdwg.mxu0
        %v2529 = vpack.c.bf16 %v2524, %v2524
        %v2532 = vunpack.c.l.s4 1966171168
        %v2533 = vunpack.c.0.s8 %v2532
        %v2534 = vlaneseq
        %v2535 = vshrl.u32 %v2534, 7
        %v2536 = vsub.s32 %v2533, %v2535
        %v2537 = vrot.slane %v2529, %v2536
        %v2539 = vunpack.c.l.s4 1966171168
        %v2540 = vunpack.c.0.s8 %v2539
        %v2541 = vlaneseq
        %v2542 = vshrl.u32 %v2541, 7
        %v2543 = vsub.s32 %v2540, %v2542
        %v2544 = vrot.slane %v2537, %v2543
        %v2545 = vunpack.i.l.s16 %v2544
        %v2546 = vunpack.i.h.s16 %v2544
        %v2547 = vpack.i.b16 %v2545, %v2545
        %v2548 = vpack.i.b16 %v2546, %v2546
        %v2550 = vunpack.c.l.s4 286326784
        %v2551 = vunpack.c.0.s8 %v2550
        %v2552 = vlaneseq
        %v2553 = vshrl.u32 %v2552, 7
        %v2554 = vsub.s32 %v2551, %v2553
        %v2555 = vrot.slane %v2547, %v2554
        %v2557 = vunpack.c.l.s4 286326784
        %v2558 = vunpack.c.0.s8 %v2557
        %v2559 = vlaneseq
        %v2560 = vshrl.u32 %v2559, 7
        %v2561 = vsub.s32 %v2558, %v2560
        %v2562 = vrot.slane %v2548, %v2561
        %2563 = vrot.lane.b32.xlu0 %v2555, 16
        %v2564 = vpop.permute.xlu0 %2563
        %2565 = vrot.lane.b32.xlu0 %v2562, 16
        %v2566 = vpop.permute.xlu0 %2565
        %vm2569 = vmand %vm1926, %vm2252
        %v2570 = vld [vmem:[%s157] sm:$0x2]
        %v2571 = vsel %vm2569, %v2564, %v2570
        %2572 = vst [vmem:[%s157] sm:$0x2] %v2571
        %v2573 = vld [vmem:[%s157 + $0x4] sm:$0x2]
        %v2574 = vsel %vm2569, %v2566, %v2573
        %2575 = vst [vmem:[%s157 + $0x4] sm:$0x2] %v2574
        %2576 = vrot.lane.b32.xlu0 %v2106, 104
        %v2577 = vpop.permute.xlu0 %2576
        %2578 = vrot.lane.b32.xlu0 %v2106, 72
        %v2579 = vpop.permute.xlu0 %2578
        %v2581 = vsel %vm175, %v2577, 0
        %v2584 = vsel %vm175, %v2579, 0
        %2586 = vmatprep.subr.bf16.mxu0 0
        %2587 = vmatpush1.bf16.xpose.msra.mxu0 0
        %2588 = vmatprep.subr.bf16.mxu0 0
        %2589 = vmatpush1.bf16.xpose.msra.mxu0 0
        %2590 = vmatprep.subr.bf16.mxu0 0
        %2591 = vmatpush1.bf16.xpose.msra.mxu0 0
        %2592 = vmatprep.subr.bf16.mxu0 0
        %2593 = vmatpush1.bf16.xpose.msra.mxu0 0
        %2594 = vmatprep.subr.bf16.mxu0 0
        %2595 = vmatpush1.bf16.xpose.msra.mxu0 0
        %2596 = vmatprep.subr.bf16.mxu0 0
        %2597 = vmatpush1.bf16.xpose.msra.mxu0 0
        %2598 = vmatprep.subr.bf16.mxu0 0
        %2599 = vmatpush1.bf16.xpose.msra.mxu0 0
        %2600 = vmatprep.subr.bf16.mxu0 0
        %2601 = vmatpush1.bf16.xpose.msra.mxu0 %v2584
        %2602 = vmatprep.subr.bf16.mxu0 0
        %2603 = vmatpush2.bf16.xpose.msra.mxu0 0
        %2604 = vmatprep.subr.bf16.mxu0 0
        %2605 = vmatpush2.bf16.xpose.msra.mxu0 0
        %2606 = vmatprep.subr.bf16.mxu0 0
        %2607 = vmatpush2.bf16.xpose.msra.mxu0 0
        %2608 = vmatprep.subr.bf16.mxu0 0
        %2609 = vmatpush2.bf16.xpose.msra.mxu0 0
        %2610 = vmatprep.subr.bf16.mxu0 0
        %2611 = vmatpush2.bf16.xpose.msra.mxu0 0
        %2612 = vmatprep.subr.bf16.mxu0 0
        %2613 = vmatpush2.bf16.xpose.msra.mxu0 0
        %2614 = vmatprep.subr.bf16.mxu0 0
        %2615 = vmatpush2.bf16.xpose.msra.mxu0 0
        %2616 = vmatprep.subr.bf16.mxu0 0
        %2617 = vmatpush2.bf16.xpose.msra.mxu0 0
        %2618 = vmatprep.mubr.bf16.mxu0 0
        %2619 = vmatmul.mubr.bf16.gmra.mxu0 %v2581
        %v2620 = vpop.f32.mrf.mxu0
        %v2621 = vadd.f32 0.0, %v2620
        %v2622 = vpop.f32.mrf.mxu0
        %v2623 = vpop.f32.mrf.mxu0
        %v2624 = vpop.f32.mrf.mxu0
        %2625 = vdwg.mxu0
        %v2626 = vmul.f32 %v2621, 0.35355338
        %v2627 = vsel %vm223, %v2626, -inf
        %2628 = vmax.xlane.f32.xlu0 %v2627
        %v2629 = vpop.xlane.xlu0 %2628
        %v2630 = vsub.f32 %v2626, %v2629
        %v2631 = vmul.f32 %v2630, 1.442695
        %v2632 = vpow.pop %v2631
        %v2633 = vsel %vm223, %v2632, 0.0
        %2634 = vadd.xlane.f32.xlu0 %v2633
        %v2635 = vpop.xlane.xlu0 %2634
        %v2636 = vrcp.pop %v2635
        %v2637 = vmul.f32 %v2632, %v2636
        %v2638 = vpack.c.bf16 %v2637, %v2637
        %2639 = vrot.lane.b32.xlu0 %v2106, 40
        %v2640 = vpop.permute.xlu0 %2639
        %v2642 = vsel %vm238, %v2638, 0
        %v2645 = vsel %vm242, %v2640, 0
        %2647 = vmatprep.subr.bf16.mxu0 0
        %2648 = vmatpush1.bf16.msra.mxu0 0
        %2649 = vmatprep.subr.bf16.mxu0 0
        %2650 = vmatpush1.bf16.msra.mxu0 0
        %2651 = vmatprep.subr.bf16.mxu0 0
        %2652 = vmatpush1.bf16.msra.mxu0 0
        %2653 = vmatprep.subr.bf16.mxu0 0
        %2654 = vmatpush1.bf16.msra.mxu0 0
        %2655 = vmatprep.subr.bf16.mxu0 0
        %2656 = vmatpush1.bf16.msra.mxu0 0
        %2657 = vmatprep.subr.bf16.mxu0 0
        %2658 = vmatpush1.bf16.msra.mxu0 0
        %2659 = vmatprep.subr.bf16.mxu0 0
        %2660 = vmatpush1.bf16.msra.mxu0 0
        %2661 = vmatprep.subr.bf16.mxu0 0
        %2662 = vmatpush1.bf16.msra.mxu0 %v2645
        %2663 = vmatprep.subr.bf16.mxu0 0
        %2664 = vmatpush2.bf16.msra.mxu0 0
        %2665 = vmatprep.subr.bf16.mxu0 0
        %2666 = vmatpush2.bf16.msra.mxu0 0
        %2667 = vmatprep.subr.bf16.mxu0 0
        %2668 = vmatpush2.bf16.msra.mxu0 0
        %2669 = vmatprep.subr.bf16.mxu0 0
        %2670 = vmatpush2.bf16.msra.mxu0 0
        %2671 = vmatprep.subr.bf16.mxu0 0
        %2672 = vmatpush2.bf16.msra.mxu0 0
        %2673 = vmatprep.subr.bf16.mxu0 0
        %2674 = vmatpush2.bf16.msra.mxu0 0
        %2675 = vmatprep.subr.bf16.mxu0 0
        %2676 = vmatpush2.bf16.msra.mxu0 0
        %2677 = vmatprep.subr.bf16.mxu0 0
        %2678 = vmatpush2.bf16.msra.mxu0 0
        %2679 = vmatprep.mubr.bf16.mxu0 0
        %2680 = vmatmul.mubr.bf16.gmra.mxu0 %v2642
        %v2681 = vpop.f32.mrf.mxu0
        %v2682 = vadd.f32 0.0, %v2681
        %v2683 = vpop.f32.mrf.mxu0
        %v2684 = vpop.f32.mrf.mxu0
        %v2685 = vpop.f32.mrf.mxu0
        %2686 = vdwg.mxu0
        %v2687 = vpack.c.bf16 %v2682, %v2682
        %v2690 = vunpack.c.l.s4 1966171168
        %v2691 = vunpack.c.0.s8 %v2690
        %v2692 = vlaneseq
        %v2693 = vshrl.u32 %v2692, 7
        %v2694 = vsub.s32 %v2691, %v2693
        %v2695 = vrot.slane %v2687, %v2694
        %v2697 = vunpack.c.l.s4 1966171168
        %v2698 = vunpack.c.0.s8 %v2697
        %v2699 = vlaneseq
        %v2700 = vshrl.u32 %v2699, 7
        %v2701 = vsub.s32 %v2698, %v2700
        %v2702 = vrot.slane %v2695, %v2701
        %v2703 = vunpack.i.l.s16 %v2702
        %v2704 = vunpack.i.h.s16 %v2702
        %v2705 = vpack.i.b16 %v2703, %v2703
        %v2706 = vpack.i.b16 %v2704, %v2704
        %v2708 = vunpack.c.l.s4 286326784
        %v2709 = vunpack.c.0.s8 %v2708
        %v2710 = vlaneseq
        %v2711 = vshrl.u32 %v2710, 7
        %v2712 = vsub.s32 %v2709, %v2711
        %v2713 = vrot.slane %v2705, %v2712
        %v2715 = vunpack.c.l.s4 286326784
        %v2716 = vunpack.c.0.s8 %v2715
        %v2717 = vlaneseq
        %v2718 = vshrl.u32 %v2717, 7
        %v2719 = vsub.s32 %v2716, %v2718
        %v2720 = vrot.slane %v2706, %v2719
        %2721 = vrot.lane.b32.xlu0 %v2713, 24
        %v2722 = vpop.permute.xlu0 %2721
        %2723 = vrot.lane.b32.xlu0 %v2720, 24
        %v2724 = vpop.permute.xlu0 %2723
        %vm2727 = vmand %vm2085, %vm2252
        %v2728 = vld [vmem:[%s157] sm:$0x2]
        %v2729 = vsel %vm2727, %v2722, %v2728
        %2730 = vst [vmem:[%s157] sm:$0x2] %v2729
        %v2731 = vld [vmem:[%s157 + $0x4] sm:$0x2]
        %v2732 = vsel %vm2727, %v2724, %v2731
        %2733 = vst [vmem:[%s157 + $0x4] sm:$0x2] %v2732
        %v2734 = vld [vmem:[%s142] sm:$0x4]
        %v2735 = vld [vmem:[%s142 + $0x4] sm:$0x4]
        %v2738 = vunpack.c.l.b16 %v2734
        %v2739 = vunpack.c.l.b16 %v2735
        %v2740 = vpack.c.b16 %v2738, %v2738
        %v2741 = vpack.c.b16 %v2739, %v2739
        %v2742 = vunpack.c.l.b16 %v2740
        %v2743 = vunpack.c.l.b16 %v2741
        %v2744 = vrot.slane %v2742, 4
        %v2745 = vrot.slane %v2743, 3
        %v2746 = vsel %vm170, %v2745, %v2744
        %v2747 = vpack.c.b16 %v2746, %v2746
        %2748 = vrot.lane.b32.xlu0 %v2747, 96
        %v2749 = vpop.permute.xlu0 %2748
        %v2751 = vsel %vm175, %v2747, 0
        %v2754 = vsel %vm175, %v2749, 0
        %2756 = vmatprep.subr.bf16.mxu0 0
        %2757 = vmatpush1.bf16.xpose.msra.mxu0 0
        %2758 = vmatprep.subr.bf16.mxu0 0
        %2759 = vmatpush1.bf16.xpose.msra.mxu0 0
        %2760 = vmatprep.subr.bf16.mxu0 0
        %2761 = vmatpush1.bf16.xpose.msra.mxu0 0
        %2762 = vmatprep.subr.bf16.mxu0 0
        %2763 = vmatpush1.bf16.xpose.msra.mxu0 0
        %2764 = vmatprep.subr.bf16.mxu0 0
        %2765 = vmatpush1.bf16.xpose.msra.mxu0 0
        %2766 = vmatprep.subr.bf16.mxu0 0
        %2767 = vmatpush1.bf16.xpose.msra.mxu0 0
        %2768 = vmatprep.subr.bf16.mxu0 0
        %2769 = vmatpush1.bf16.xpose.msra.mxu0 0
        %2770 = vmatprep.subr.bf16.mxu0 0
        %2771 = vmatpush1.bf16.xpose.msra.mxu0 %v2754
        %2772 = vmatprep.subr.bf16.mxu0 0
        %2773 = vmatpush2.bf16.xpose.msra.mxu0 0
        %2774 = vmatprep.subr.bf16.mxu0 0
        %2775 = vmatpush2.bf16.xpose.msra.mxu0 0
        %2776 = vmatprep.subr.bf16.mxu0 0
        %2777 = vmatpush2.bf16.xpose.msra.mxu0 0
        %2778 = vmatprep.subr.bf16.mxu0 0
        %2779 = vmatpush2.bf16.xpose.msra.mxu0 0
        %2780 = vmatprep.subr.bf16.mxu0 0
        %2781 = vmatpush2.bf16.xpose.msra.mxu0 0
        %2782 = vmatprep.subr.bf16.mxu0 0
        %2783 = vmatpush2.bf16.xpose.msra.mxu0 0
        %2784 = vmatprep.subr.bf16.mxu0 0
        %2785 = vmatpush2.bf16.xpose.msra.mxu0 0
        %2786 = vmatprep.subr.bf16.mxu0 0
        %2787 = vmatpush2.bf16.xpose.msra.mxu0 0
        %2788 = vmatprep.mubr.bf16.mxu0 0
        %2789 = vmatmul.mubr.bf16.gmra.mxu0 %v2751
        %v2790 = vpop.f32.mrf.mxu0
        %v2791 = vadd.f32 0.0, %v2790
        %v2792 = vpop.f32.mrf.mxu0
        %v2793 = vpop.f32.mrf.mxu0
        %v2794 = vpop.f32.mrf.mxu0
        %2795 = vdwg.mxu0
        %v2796 = vmul.f32 %v2791, 0.35355338
        %v2797 = vsel %vm223, %v2796, -inf
        %2798 = vmax.xlane.f32.xlu0 %v2797
        %v2799 = vpop.xlane.xlu0 %2798
        %v2800 = vsub.f32 %v2796, %v2799
        %v2801 = vmul.f32 %v2800, 1.442695
        %v2802 = vpow.pop %v2801
        %v2803 = vsel %vm223, %v2802, 0.0
        %2804 = vadd.xlane.f32.xlu0 %v2803
        %v2805 = vpop.xlane.xlu0 %2804
        %v2806 = vrcp.pop %v2805
        %v2807 = vmul.f32 %v2802, %v2806
        %v2808 = vpack.c.bf16 %v2807, %v2807
        %2809 = vrot.lane.b32.xlu0 %v2747, 64
        %v2810 = vpop.permute.xlu0 %2809
        %v2812 = vsel %vm238, %v2808, 0
        %v2815 = vsel %vm242, %v2810, 0
        %2817 = vmatprep.subr.bf16.mxu0 0
        %2818 = vmatpush1.bf16.msra.mxu0 0
        %2819 = vmatprep.subr.bf16.mxu0 0
        %2820 = vmatpush1.bf16.msra.mxu0 0
        %2821 = vmatprep.subr.bf16.mxu0 0
        %2822 = vmatpush1.bf16.msra.mxu0 0
        %2823 = vmatprep.subr.bf16.mxu0 0
        %2824 = vmatpush1.bf16.msra.mxu0 0
        %2825 = vmatprep.subr.bf16.mxu0 0
        %2826 = vmatpush1.bf16.msra.mxu0 0
        %2827 = vmatprep.subr.bf16.mxu0 0
        %2828 = vmatpush1.bf16.msra.mxu0 0
        %2829 = vmatprep.subr.bf16.mxu0 0
        %2830 = vmatpush1.bf16.msra.mxu0 0
        %2831 = vmatprep.subr.bf16.mxu0 0
        %2832 = vmatpush1.bf16.msra.mxu0 %v2815
        %2833 = vmatprep.subr.bf16.mxu0 0
        %2834 = vmatpush2.bf16.msra.mxu0 0
        %2835 = vmatprep.subr.bf16.mxu0 0
        %2836 = vmatpush2.bf16.msra.mxu0 0
        %2837 = vmatprep.subr.bf16.mxu0 0
        %2838 = vmatpush2.bf16.msra.mxu0 0
        %2839 = vmatprep.subr.bf16.mxu0 0
        %2840 = vmatpush2.bf16.msra.mxu0 0
        %2841 = vmatprep.subr.bf16.mxu0 0
        %2842 = vmatpush2.bf16.msra.mxu0 0
        %2843 = vmatprep.subr.bf16.mxu0 0
        %2844 = vmatpush2.bf16.msra.mxu0 0
        %2845 = vmatprep.subr.bf16.mxu0 0
        %2846 = vmatpush2.bf16.msra.mxu0 0
        %2847 = vmatprep.subr.bf16.mxu0 0
        %2848 = vmatpush2.bf16.msra.mxu0 0
        %2849 = vmatprep.mubr.bf16.mxu0 0
        %2850 = vmatmul.mubr.bf16.gmra.mxu0 %v2812
        %v2851 = vpop.f32.mrf.mxu0
        %v2852 = vadd.f32 0.0, %v2851
        %v2853 = vpop.f32.mrf.mxu0
        %v2854 = vpop.f32.mrf.mxu0
        %v2855 = vpop.f32.mrf.mxu0
        %2856 = vdwg.mxu0
        %v2857 = vpack.c.bf16 %v2852, %v2852
        %v2860 = vunpack.c.l.s4 1966171168
        %v2861 = vunpack.c.0.s8 %v2860
        %v2862 = vlaneseq
        %v2863 = vshrl.u32 %v2862, 7
        %v2864 = vsub.s32 %v2861, %v2863
        %v2865 = vrot.slane %v2857, %v2864
        %v2867 = vunpack.c.l.s4 1966171168
        %v2868 = vunpack.c.0.s8 %v2867
        %v2869 = vlaneseq
        %v2870 = vshrl.u32 %v2869, 7
        %v2871 = vsub.s32 %v2868, %v2870
        %v2872 = vrot.slane %v2865, %v2871
        %v2873 = vunpack.i.l.s16 %v2872
        %v2874 = vunpack.i.h.s16 %v2872
        %v2875 = vpack.i.b16 %v2873, %v2873
        %v2876 = vpack.i.b16 %v2874, %v2874
        %v2878 = vunpack.c.l.s4 286326784
        %v2879 = vunpack.c.0.s8 %v2878
        %v2880 = vlaneseq
        %v2881 = vshrl.u32 %v2880, 7
        %v2882 = vsub.s32 %v2879, %v2881
        %v2883 = vrot.slane %v2875, %v2882
        %v2885 = vunpack.c.l.s4 286326784
        %v2886 = vunpack.c.0.s8 %v2885
        %v2887 = vlaneseq
        %v2888 = vshrl.u32 %v2887, 7
        %v2889 = vsub.s32 %v2886, %v2888
        %v2890 = vrot.slane %v2876, %v2889
        %vm2893 = vcmask 59394
        %vm2894 = vsmask.f32 2304
        %vm2895 = vmand %vm2893, %vm2894
        %v2896 = vld [vmem:[%s157] sm:$0x4]
        %v2897 = vsel %vm2895, %v2883, %v2896
        %2898 = vst [vmem:[%s157] sm:$0x4] %v2897
        %v2899 = vld [vmem:[%s157 + $0x4] sm:$0x4]
        %v2900 = vsel %vm2895, %v2890, %v2899
        %2901 = vst [vmem:[%s157 + $0x4] sm:$0x4] %v2900
        %2902 = vrot.lane.b32.xlu0 %v2747, 120
        %v2903 = vpop.permute.xlu0 %2902
        %2904 = vrot.lane.b32.xlu0 %v2747, 88
        %v2905 = vpop.permute.xlu0 %2904
        %v2907 = vsel %vm175, %v2903, 0
        %v2910 = vsel %vm175, %v2905, 0
        %2912 = vmatprep.subr.bf16.mxu0 0
        %2913 = vmatpush1.bf16.xpose.msra.mxu0 0
        %2914 = vmatprep.subr.bf16.mxu0 0
        %2915 = vmatpush1.bf16.xpose.msra.mxu0 0
        %2916 = vmatprep.subr.bf16.mxu0 0
        %2917 = vmatpush1.bf16.xpose.msra.mxu0 0
        %2918 = vmatprep.subr.bf16.mxu0 0
        %2919 = vmatpush1.bf16.xpose.msra.mxu0 0
        %2920 = vmatprep.subr.bf16.mxu0 0
        %2921 = vmatpush1.bf16.xpose.msra.mxu0 0
        %2922 = vmatprep.subr.bf16.mxu0 0
        %2923 = vmatpush1.bf16.xpose.msra.mxu0 0
        %2924 = vmatprep.subr.bf16.mxu0 0
        %2925 = vmatpush1.bf16.xpose.msra.mxu0 0
        %2926 = vmatprep.subr.bf16.mxu0 0
        %2927 = vmatpush1.bf16.xpose.msra.mxu0 %v2910
        %2928 = vmatprep.subr.bf16.mxu0 0
        %2929 = vmatpush2.bf16.xpose.msra.mxu0 0
        %2930 = vmatprep.subr.bf16.mxu0 0
        %2931 = vmatpush2.bf16.xpose.msra.mxu0 0
        %2932 = vmatprep.subr.bf16.mxu0 0
        %2933 = vmatpush2.bf16.xpose.msra.mxu0 0
        %2934 = vmatprep.subr.bf16.mxu0 0
        %2935 = vmatpush2.bf16.xpose.msra.mxu0 0
        %2936 = vmatprep.subr.bf16.mxu0 0
        %2937 = vmatpush2.bf16.xpose.msra.mxu0 0
        %2938 = vmatprep.subr.bf16.mxu0 0
        %2939 = vmatpush2.bf16.xpose.msra.mxu0 0
        %2940 = vmatprep.subr.bf16.mxu0 0
        %2941 = vmatpush2.bf16.xpose.msra.mxu0 0
        %2942 = vmatprep.subr.bf16.mxu0 0
        %2943 = vmatpush2.bf16.xpose.msra.mxu0 0
        %2944 = vmatprep.mubr.bf16.mxu0 0
        %2945 = vmatmul.mubr.bf16.gmra.mxu0 %v2907
        %v2946 = vpop.f32.mrf.mxu0
        %v2947 = vadd.f32 0.0, %v2946
        %v2948 = vpop.f32.mrf.mxu0
        %v2949 = vpop.f32.mrf.mxu0
        %v2950 = vpop.f32.mrf.mxu0
        %2951 = vdwg.mxu0
        %v2952 = vmul.f32 %v2947, 0.35355338
        %v2953 = vsel %vm223, %v2952, -inf
        %2954 = vmax.xlane.f32.xlu0 %v2953
        %v2955 = vpop.xlane.xlu0 %2954
        %v2956 = vsub.f32 %v2952, %v2955
        %v2957 = vmul.f32 %v2956, 1.442695
        %v2958 = vpow.pop %v2957
        %v2959 = vsel %vm223, %v2958, 0.0
        %2960 = vadd.xlane.f32.xlu0 %v2959
        %v2961 = vpop.xlane.xlu0 %2960
        %v2962 = vrcp.pop %v2961
        %v2963 = vmul.f32 %v2958, %v2962
        %v2964 = vpack.c.bf16 %v2963, %v2963
        %2965 = vrot.lane.b32.xlu0 %v2747, 56
        %v2966 = vpop.permute.xlu0 %2965
        %v2968 = vsel %vm238, %v2964, 0
        %v2971 = vsel %vm242, %v2966, 0
        %2973 = vmatprep.subr.bf16.mxu0 0
        %2974 = vmatpush1.bf16.msra.mxu0 0
        %2975 = vmatprep.subr.bf16.mxu0 0
        %2976 = vmatpush1.bf16.msra.mxu0 0
        %2977 = vmatprep.subr.bf16.mxu0 0
        %2978 = vmatpush1.bf16.msra.mxu0 0
        %2979 = vmatprep.subr.bf16.mxu0 0
        %2980 = vmatpush1.bf16.msra.mxu0 0
        %2981 = vmatprep.subr.bf16.mxu0 0
        %2982 = vmatpush1.bf16.msra.mxu0 0
        %2983 = vmatprep.subr.bf16.mxu0 0
        %2984 = vmatpush1.bf16.msra.mxu0 0
        %2985 = vmatprep.subr.bf16.mxu0 0
        %2986 = vmatpush1.bf16.msra.mxu0 0
        %2987 = vmatprep.subr.bf16.mxu0 0
        %2988 = vmatpush1.bf16.msra.mxu0 %v2971
        %2989 = vmatprep.subr.bf16.mxu0 0
        %2990 = vmatpush2.bf16.msra.mxu0 0
        %2991 = vmatprep.subr.bf16.mxu0 0
        %2992 = vmatpush2.bf16.msra.mxu0 0
        %2993 = vmatprep.subr.bf16.mxu0 0
        %2994 = vmatpush2.bf16.msra.mxu0 0
        %2995 = vmatprep.subr.bf16.mxu0 0
        %2996 = vmatpush2.bf16.msra.mxu0 0
        %2997 = vmatprep.subr.bf16.mxu0 0
        %2998 = vmatpush2.bf16.msra.mxu0 0
        %2999 = vmatprep.subr.bf16.mxu0 0
        %3000 = vmatpush2.bf16.msra.mxu0 0
        %3001 = vmatprep.subr.bf16.mxu0 0
        %3002 = vmatpush2.bf16.msra.mxu0 0
        %3003 = vmatprep.subr.bf16.mxu0 0
        %3004 = vmatpush2.bf16.msra.mxu0 0
        %3005 = vmatprep.mubr.bf16.mxu0 0
        %3006 = vmatmul.mubr.bf16.gmra.mxu0 %v2968
        %v3007 = vpop.f32.mrf.mxu0
        %v3008 = vadd.f32 0.0, %v3007
        %v3009 = vpop.f32.mrf.mxu0
        %v3010 = vpop.f32.mrf.mxu0
        %v3011 = vpop.f32.mrf.mxu0
        %3012 = vdwg.mxu0
        %v3013 = vpack.c.bf16 %v3008, %v3008
        %v3016 = vunpack.c.l.s4 1966171168
        %v3017 = vunpack.c.0.s8 %v3016
        %v3018 = vlaneseq
        %v3019 = vshrl.u32 %v3018, 7
        %v3020 = vsub.s32 %v3017, %v3019
        %v3021 = vrot.slane %v3013, %v3020
        %v3023 = vunpack.c.l.s4 1966171168
        %v3024 = vunpack.c.0.s8 %v3023
        %v3025 = vlaneseq
        %v3026 = vshrl.u32 %v3025, 7
        %v3027 = vsub.s32 %v3024, %v3026
        %v3028 = vrot.slane %v3021, %v3027
        %v3029 = vunpack.i.l.s16 %v3028
        %v3030 = vunpack.i.h.s16 %v3028
        %v3031 = vpack.i.b16 %v3029, %v3029
        %v3032 = vpack.i.b16 %v3030, %v3030
        %v3034 = vunpack.c.l.s4 286326784
        %v3035 = vunpack.c.0.s8 %v3034
        %v3036 = vlaneseq
        %v3037 = vshrl.u32 %v3036, 7
        %v3038 = vsub.s32 %v3035, %v3037
        %v3039 = vrot.slane %v3031, %v3038
        %v3041 = vunpack.c.l.s4 286326784
        %v3042 = vunpack.c.0.s8 %v3041
        %v3043 = vlaneseq
        %v3044 = vshrl.u32 %v3043, 7
        %v3045 = vsub.s32 %v3042, %v3044
        %v3046 = vrot.slane %v3032, %v3045
        %3047 = vrot.lane.b32.xlu0 %v3039, 8
        %v3048 = vpop.permute.xlu0 %3047
        %3049 = vrot.lane.b32.xlu0 %v3046, 8
        %v3050 = vpop.permute.xlu0 %3049
        %vm3053 = vcmask 124994
        %vm3054 = vmand %vm3053, %vm2894
        %v3055 = vld [vmem:[%s157] sm:$0x4]
        %v3056 = vsel %vm3054, %v3048, %v3055
        %3057 = vst [vmem:[%s157] sm:$0x4] %v3056
        %v3058 = vld [vmem:[%s157 + $0x4] sm:$0x4]
        %v3059 = vsel %vm3054, %v3050, %v3058
        %3060 = vst [vmem:[%s157 + $0x4] sm:$0x4] %v3059
        %3061 = vrot.lane.b32.xlu0 %v2747, 112
        %v3062 = vpop.permute.xlu0 %3061
        %3063 = vrot.lane.b32.xlu0 %v2747, 80
        %v3064 = vpop.permute.xlu0 %3063
        %v3066 = vsel %vm175, %v3062, 0
        %v3069 = vsel %vm175, %v3064, 0
        %3071 = vmatprep.subr.bf16.mxu0 0
        %3072 = vmatpush1.bf16.xpose.msra.mxu0 0
        %3073 = vmatprep.subr.bf16.mxu0 0
        %3074 = vmatpush1.bf16.xpose.msra.mxu0 0
        %3075 = vmatprep.subr.bf16.mxu0 0
        %3076 = vmatpush1.bf16.xpose.msra.mxu0 0
        %3077 = vmatprep.subr.bf16.mxu0 0
        %3078 = vmatpush1.bf16.xpose.msra.mxu0 0
        %3079 = vmatprep.subr.bf16.mxu0 0
        %3080 = vmatpush1.bf16.xpose.msra.mxu0 0
        %3081 = vmatprep.subr.bf16.mxu0 0
        %3082 = vmatpush1.bf16.xpose.msra.mxu0 0
        %3083 = vmatprep.subr.bf16.mxu0 0
        %3084 = vmatpush1.bf16.xpose.msra.mxu0 0
        %3085 = vmatprep.subr.bf16.mxu0 0
        %3086 = vmatpush1.bf16.xpose.msra.mxu0 %v3069
        %3087 = vmatprep.subr.bf16.mxu0 0
        %3088 = vmatpush2.bf16.xpose.msra.mxu0 0
        %3089 = vmatprep.subr.bf16.mxu0 0
        %3090 = vmatpush2.bf16.xpose.msra.mxu0 0
        %3091 = vmatprep.subr.bf16.mxu0 0
        %3092 = vmatpush2.bf16.xpose.msra.mxu0 0
        %3093 = vmatprep.subr.bf16.mxu0 0
        %3094 = vmatpush2.bf16.xpose.msra.mxu0 0
        %3095 = vmatprep.subr.bf16.mxu0 0
        %3096 = vmatpush2.bf16.xpose.msra.mxu0 0
        %3097 = vmatprep.subr.bf16.mxu0 0
        %3098 = vmatpush2.bf16.xpose.msra.mxu0 0
        %3099 = vmatprep.subr.bf16.mxu0 0
        %3100 = vmatpush2.bf16.xpose.msra.mxu0 0
        %3101 = vmatprep.subr.bf16.mxu0 0
        %3102 = vmatpush2.bf16.xpose.msra.mxu0 0
        %3103 = vmatprep.mubr.bf16.mxu0 0
        %3104 = vmatmul.mubr.bf16.gmra.mxu0 %v3066
        %v3105 = vpop.f32.mrf.mxu0
        %v3106 = vadd.f32 0.0, %v3105
        %v3107 = vpop.f32.mrf.mxu0
        %v3108 = vpop.f32.mrf.mxu0
        %v3109 = vpop.f32.mrf.mxu0
        %3110 = vdwg.mxu0
        %v3111 = vmul.f32 %v3106, 0.35355338
        %v3112 = vsel %vm223, %v3111, -inf
        %3113 = vmax.xlane.f32.xlu0 %v3112
        %v3114 = vpop.xlane.xlu0 %3113
        %v3115 = vsub.f32 %v3111, %v3114
        %v3116 = vmul.f32 %v3115, 1.442695
        %v3117 = vpow.pop %v3116
        %v3118 = vsel %vm223, %v3117, 0.0
        %3119 = vadd.xlane.f32.xlu0 %v3118
        %v3120 = vpop.xlane.xlu0 %3119
        %v3121 = vrcp.pop %v3120
        %v3122 = vmul.f32 %v3117, %v3121
        %v3123 = vpack.c.bf16 %v3122, %v3122
        %3124 = vrot.lane.b32.xlu0 %v2747, 48
        %v3125 = vpop.permute.xlu0 %3124
        %v3127 = vsel %vm238, %v3123, 0
        %v3130 = vsel %vm242, %v3125, 0
        %3132 = vmatprep.subr.bf16.mxu0 0
        %3133 = vmatpush1.bf16.msra.mxu0 0
        %3134 = vmatprep.subr.bf16.mxu0 0
        %3135 = vmatpush1.bf16.msra.mxu0 0
        %3136 = vmatprep.subr.bf16.mxu0 0
        %3137 = vmatpush1.bf16.msra.mxu0 0
        %3138 = vmatprep.subr.bf16.mxu0 0
        %3139 = vmatpush1.bf16.msra.mxu0 0
        %3140 = vmatprep.subr.bf16.mxu0 0
        %3141 = vmatpush1.bf16.msra.mxu0 0
        %3142 = vmatprep.subr.bf16.mxu0 0
        %3143 = vmatpush1.bf16.msra.mxu0 0
        %3144 = vmatprep.subr.bf16.mxu0 0
        %3145 = vmatpush1.bf16.msra.mxu0 0
        %3146 = vmatprep.subr.bf16.mxu0 0
        %3147 = vmatpush1.bf16.msra.mxu0 %v3130
        %3148 = vmatprep.subr.bf16.mxu0 0
        %3149 = vmatpush2.bf16.msra.mxu0 0
        %3150 = vmatprep.subr.bf16.mxu0 0
        %3151 = vmatpush2.bf16.msra.mxu0 0
        %3152 = vmatprep.subr.bf16.mxu0 0
        %3153 = vmatpush2.bf16.msra.mxu0 0
        %3154 = vmatprep.subr.bf16.mxu0 0
        %3155 = vmatpush2.bf16.msra.mxu0 0
        %3156 = vmatprep.subr.bf16.mxu0 0
        %3157 = vmatpush2.bf16.msra.mxu0 0
        %3158 = vmatprep.subr.bf16.mxu0 0
        %3159 = vmatpush2.bf16.msra.mxu0 0
        %3160 = vmatprep.subr.bf16.mxu0 0
        %3161 = vmatpush2.bf16.msra.mxu0 0
        %3162 = vmatprep.subr.bf16.mxu0 0
        %3163 = vmatpush2.bf16.msra.mxu0 0
        %3164 = vmatprep.mubr.bf16.mxu0 0
        %3165 = vmatmul.mubr.bf16.gmra.mxu0 %v3127
        %v3166 = vpop.f32.mrf.mxu0
        %v3167 = vadd.f32 0.0, %v3166
        %v3168 = vpop.f32.mrf.mxu0
        %v3169 = vpop.f32.mrf.mxu0
        %v3170 = vpop.f32.mrf.mxu0
        %3171 = vdwg.mxu0
        %v3172 = vpack.c.bf16 %v3167, %v3167
        %v3175 = vunpack.c.l.s4 1966171168
        %v3176 = vunpack.c.0.s8 %v3175
        %v3177 = vlaneseq
        %v3178 = vshrl.u32 %v3177, 7
        %v3179 = vsub.s32 %v3176, %v3178
        %v3180 = vrot.slane %v3172, %v3179
        %v3182 = vunpack.c.l.s4 1966171168
        %v3183 = vunpack.c.0.s8 %v3182
        %v3184 = vlaneseq
        %v3185 = vshrl.u32 %v3184, 7
        %v3186 = vsub.s32 %v3183, %v3185
        %v3187 = vrot.slane %v3180, %v3186
        %v3188 = vunpack.i.l.s16 %v3187
        %v3189 = vunpack.i.h.s16 %v3187
        %v3190 = vpack.i.b16 %v3188, %v3188
        %v3191 = vpack.i.b16 %v3189, %v3189
        %v3193 = vunpack.c.l.s4 286326784
        %v3194 = vunpack.c.0.s8 %v3193
        %v3195 = vlaneseq
        %v3196 = vshrl.u32 %v3195, 7
        %v3197 = vsub.s32 %v3194, %v3196
        %v3198 = vrot.slane %v3190, %v3197
        %v3200 = vunpack.c.l.s4 286326784
        %v3201 = vunpack.c.0.s8 %v3200
        %v3202 = vlaneseq
        %v3203 = vshrl.u32 %v3202, 7
        %v3204 = vsub.s32 %v3201, %v3203
        %v3205 = vrot.slane %v3191, %v3204
        %3206 = vrot.lane.b32.xlu0 %v3198, 16
        %v3207 = vpop.permute.xlu0 %3206
        %3208 = vrot.lane.b32.xlu0 %v3205, 16
        %v3209 = vpop.permute.xlu0 %3208
        %vm3212 = vcmask 190594
        %vm3213 = vmand %vm3212, %vm2894
        %v3214 = vld [vmem:[%s157] sm:$0x4]
        %v3215 = vsel %vm3213, %v3207, %v3214
        %3216 = vst [vmem:[%s157] sm:$0x4] %v3215
        %v3217 = vld [vmem:[%s157 + $0x4] sm:$0x4]
        %v3218 = vsel %vm3213, %v3209, %v3217
        %3219 = vst [vmem:[%s157 + $0x4] sm:$0x4] %v3218
        %3220 = vrot.lane.b32.xlu0 %v2747, 104
        %v3221 = vpop.permute.xlu0 %3220
        %3222 = vrot.lane.b32.xlu0 %v2747, 72
        %v3223 = vpop.permute.xlu0 %3222
        %v3225 = vsel %vm175, %v3221, 0
        %v3228 = vsel %vm175, %v3223, 0
        %3230 = vmatprep.subr.bf16.mxu0 0
        %3231 = vmatpush1.bf16.xpose.msra.mxu0 0
        %3232 = vmatprep.subr.bf16.mxu0 0
        %3233 = vmatpush1.bf16.xpose.msra.mxu0 0
        %3234 = vmatprep.subr.bf16.mxu0 0
        %3235 = vmatpush1.bf16.xpose.msra.mxu0 0
        %3236 = vmatprep.subr.bf16.mxu0 0
        %3237 = vmatpush1.bf16.xpose.msra.mxu0 0
        %3238 = vmatprep.subr.bf16.mxu0 0
        %3239 = vmatpush1.bf16.xpose.msra.mxu0 0
        %3240 = vmatprep.subr.bf16.mxu0 0
        %3241 = vmatpush1.bf16.xpose.msra.mxu0 0
        %3242 = vmatprep.subr.bf16.mxu0 0
        %3243 = vmatpush1.bf16.xpose.msra.mxu0 0
        %3244 = vmatprep.subr.bf16.mxu0 0
        %3245 = vmatpush1.bf16.xpose.msra.mxu0 %v3228
        %3246 = vmatprep.subr.bf16.mxu0 0
        %3247 = vmatpush2.bf16.xpose.msra.mxu0 0
        %3248 = vmatprep.subr.bf16.mxu0 0
        %3249 = vmatpush2.bf16.xpose.msra.mxu0 0
        %3250 = vmatprep.subr.bf16.mxu0 0
        %3251 = vmatpush2.bf16.xpose.msra.mxu0 0
        %3252 = vmatprep.subr.bf16.mxu0 0
        %3253 = vmatpush2.bf16.xpose.msra.mxu0 0
        %3254 = vmatprep.subr.bf16.mxu0 0
        %3255 = vmatpush2.bf16.xpose.msra.mxu0 0
        %3256 = vmatprep.subr.bf16.mxu0 0
        %3257 = vmatpush2.bf16.xpose.msra.mxu0 0
        %3258 = vmatprep.subr.bf16.mxu0 0
        %3259 = vmatpush2.bf16.xpose.msra.mxu0 0
        %3260 = vmatprep.subr.bf16.mxu0 0
        %3261 = vmatpush2.bf16.xpose.msra.mxu0 0
        %3262 = vmatprep.mubr.bf16.mxu0 0
        %3263 = vmatmul.mubr.bf16.gmra.mxu0 %v3225
        %v3264 = vpop.f32.mrf.mxu0
        %v3265 = vadd.f32 0.0, %v3264
        %v3266 = vpop.f32.mrf.mxu0
        %v3267 = vpop.f32.mrf.mxu0
        %v3268 = vpop.f32.mrf.mxu0
        %3269 = vdwg.mxu0
        %v3270 = vmul.f32 %v3265, 0.35355338
        %v3271 = vsel %vm223, %v3270, -inf
        %3272 = vmax.xlane.f32.xlu0 %v3271
        %v3273 = vpop.xlane.xlu0 %3272
        %v3274 = vsub.f32 %v3270, %v3273
        %v3275 = vmul.f32 %v3274, 1.442695
        %v3276 = vpow.pop %v3275
        %v3277 = vsel %vm223, %v3276, 0.0
        %3278 = vadd.xlane.f32.xlu0 %v3277
        %v3279 = vpop.xlane.xlu0 %3278
        %v3280 = vrcp.pop %v3279
        %v3281 = vmul.f32 %v3276, %v3280
        %v3282 = vpack.c.bf16 %v3281, %v3281
        %3283 = vrot.lane.b32.xlu0 %v2747, 40
        %v3284 = vpop.permute.xlu0 %3283
        %v3286 = vsel %vm238, %v3282, 0
        %v3289 = vsel %vm242, %v3284, 0
        %3291 = vmatprep.subr.bf16.mxu0 0
        %3292 = vmatpush1.bf16.msra.mxu0 0
        %3293 = vmatprep.subr.bf16.mxu0 0
        %3294 = vmatpush1.bf16.msra.mxu0 0
        %3295 = vmatprep.subr.bf16.mxu0 0
        %3296 = vmatpush1.bf16.msra.mxu0 0
        %3297 = vmatprep.subr.bf16.mxu0 0
        %3298 = vmatpush1.bf16.msra.mxu0 0
        %3299 = vmatprep.subr.bf16.mxu0 0
        %3300 = vmatpush1.bf16.msra.mxu0 0
        %3301 = vmatprep.subr.bf16.mxu0 0
        %3302 = vmatpush1.bf16.msra.mxu0 0
        %3303 = vmatprep.subr.bf16.mxu0 0
        %3304 = vmatpush1.bf16.msra.mxu0 0
        %3305 = vmatprep.subr.bf16.mxu0 0
        %3306 = vmatpush1.bf16.msra.mxu0 %v3289
        %3307 = vmatprep.subr.bf16.mxu0 0
        %3308 = vmatpush2.bf16.msra.mxu0 0
        %3309 = vmatprep.subr.bf16.mxu0 0
        %3310 = vmatpush2.bf16.msra.mxu0 0
        %3311 = vmatprep.subr.bf16.mxu0 0
        %3312 = vmatpush2.bf16.msra.mxu0 0
        %3313 = vmatprep.subr.bf16.mxu0 0
        %3314 = vmatpush2.bf16.msra.mxu0 0
        %3315 = vmatprep.subr.bf16.mxu0 0
        %3316 = vmatpush2.bf16.msra.mxu0 0
        %3317 = vmatprep.subr.bf16.mxu0 0
        %3318 = vmatpush2.bf16.msra.mxu0 0
        %3319 = vmatprep.subr.bf16.mxu0 0
        %3320 = vmatpush2.bf16.msra.mxu0 0
        %3321 = vmatprep.subr.bf16.mxu0 0
        %3322 = vmatpush2.bf16.msra.mxu0 0
        %3323 = vmatprep.mubr.bf16.mxu0 0
        %3324 = vmatmul.mubr.bf16.gmra.mxu0 %v3286
        %v3325 = vpop.f32.mrf.mxu0
        %v3326 = vadd.f32 0.0, %v3325
        %v3327 = vpop.f32.mrf.mxu0
        %v3328 = vpop.f32.mrf.mxu0
        %v3329 = vpop.f32.mrf.mxu0
        %3330 = vdwg.mxu0
        %v3331 = vpack.c.bf16 %v3326, %v3326
        %v3334 = vunpack.c.l.s4 1966171168
        %v3335 = vunpack.c.0.s8 %v3334
        %v3336 = vlaneseq
        %v3337 = vshrl.u32 %v3336, 7
        %v3338 = vsub.s32 %v3335, %v3337
        %v3339 = vrot.slane %v3331, %v3338
        %v3341 = vunpack.c.l.s4 1966171168
        %v3342 = vunpack.c.0.s8 %v3341
        %v3343 = vlaneseq
        %v3344 = vshrl.u32 %v3343, 7
        %v3345 = vsub.s32 %v3342, %v3344
        %v3346 = vrot.slane %v3339, %v3345
        %v3347 = vunpack.i.l.s16 %v3346
        %v3348 = vunpack.i.h.s16 %v3346
        %v3349 = vpack.i.b16 %v3347, %v3347
        %v3350 = vpack.i.b16 %v3348, %v3348
        %v3352 = vunpack.c.l.s4 286326784
        %v3353 = vunpack.c.0.s8 %v3352
        %v3354 = vlaneseq
        %v3355 = vshrl.u32 %v3354, 7
        %v3356 = vsub.s32 %v3353, %v3355
        %v3357 = vrot.slane %v3349, %v3356
        %v3359 = vunpack.c.l.s4 286326784
        %v3360 = vunpack.c.0.s8 %v3359
        %v3361 = vlaneseq
        %v3362 = vshrl.u32 %v3361, 7
        %v3363 = vsub.s32 %v3360, %v3362
        %v3364 = vrot.slane %v3350, %v3363
        %3365 = vrot.lane.b32.xlu0 %v3357, 24
        %v3366 = vpop.permute.xlu0 %3365
        %3367 = vrot.lane.b32.xlu0 %v3364, 24
        %v3368 = vpop.permute.xlu0 %3367
        %vm3371 = vcmask 256194
        %vm3372 = vmand %vm3371, %vm2894
        %v3373 = vld [vmem:[%s157] sm:$0x4]
        %v3374 = vsel %vm3372, %v3366, %v3373
        %3375 = vst [vmem:[%s157] sm:$0x4] %v3374
        %v3376 = vld [vmem:[%s157 + $0x4] sm:$0x4]
        %v3377 = vsel %vm3372, %v3368, %v3376
        %3378 = vst [vmem:[%s157 + $0x4] sm:$0x4] %v3377
        %v3379 = vld [vmem:[%s142] sm:$0x4]
        %v3380 = vld [vmem:[%s142 + $0x4] sm:$0x4]
        %v3383 = vunpack.c.l.b16 %v3379
        %v3384 = vunpack.c.l.b16 %v3380
        %v3385 = vpack.c.b16 %v3383, %v3383
        %v3386 = vpack.c.b16 %v3384, %v3384
        %v3387 = vunpack.c.l.b16 %v3385
        %v3388 = vunpack.c.l.b16 %v3386
        %v3389 = vrot.slane %v3387, 5
        %v3390 = vrot.slane %v3388, 4
        %v3391 = vsel %vm170, %v3390, %v3389
        %v3392 = vpack.c.b16 %v3391, %v3391
        %3393 = vrot.lane.b32.xlu0 %v3392, 96
        %v3394 = vpop.permute.xlu0 %3393
        %v3396 = vsel %vm175, %v3392, 0
        %v3399 = vsel %vm175, %v3394, 0
        %3401 = vmatprep.subr.bf16.mxu0 0
        %3402 = vmatpush1.bf16.xpose.msra.mxu0 0
        %3403 = vmatprep.subr.bf16.mxu0 0
        %3404 = vmatpush1.bf16.xpose.msra.mxu0 0
        %3405 = vmatprep.subr.bf16.mxu0 0
        %3406 = vmatpush1.bf16.xpose.msra.mxu0 0
        %3407 = vmatprep.subr.bf16.mxu0 0
        %3408 = vmatpush1.bf16.xpose.msra.mxu0 0
        %3409 = vmatprep.subr.bf16.mxu0 0
        %3410 = vmatpush1.bf16.xpose.msra.mxu0 0
        %3411 = vmatprep.subr.bf16.mxu0 0
        %3412 = vmatpush1.bf16.xpose.msra.mxu0 0
        %3413 = vmatprep.subr.bf16.mxu0 0
        %3414 = vmatpush1.bf16.xpose.msra.mxu0 0
        %3415 = vmatprep.subr.bf16.mxu0 0
        %3416 = vmatpush1.bf16.xpose.msra.mxu0 %v3399
        %3417 = vmatprep.subr.bf16.mxu0 0
        %3418 = vmatpush2.bf16.xpose.msra.mxu0 0
        %3419 = vmatprep.subr.bf16.mxu0 0
        %3420 = vmatpush2.bf16.xpose.msra.mxu0 0
        %3421 = vmatprep.subr.bf16.mxu0 0
        %3422 = vmatpush2.bf16.xpose.msra.mxu0 0
        %3423 = vmatprep.subr.bf16.mxu0 0
        %3424 = vmatpush2.bf16.xpose.msra.mxu0 0
        %3425 = vmatprep.subr.bf16.mxu0 0
        %3426 = vmatpush2.bf16.xpose.msra.mxu0 0
        %3427 = vmatprep.subr.bf16.mxu0 0
        %3428 = vmatpush2.bf16.xpose.msra.mxu0 0
        %3429 = vmatprep.subr.bf16.mxu0 0
        %3430 = vmatpush2.bf16.xpose.msra.mxu0 0
        %3431 = vmatprep.subr.bf16.mxu0 0
        %3432 = vmatpush2.bf16.xpose.msra.mxu0 0
        %3433 = vmatprep.mubr.bf16.mxu0 0
        %3434 = vmatmul.mubr.bf16.gmra.mxu0 %v3396
        %v3435 = vpop.f32.mrf.mxu0
        %v3436 = vadd.f32 0.0, %v3435
        %v3437 = vpop.f32.mrf.mxu0
        %v3438 = vpop.f32.mrf.mxu0
        %v3439 = vpop.f32.mrf.mxu0
        %3440 = vdwg.mxu0
        %v3441 = vmul.f32 %v3436, 0.35355338
        %v3442 = vsel %vm223, %v3441, -inf
        %3443 = vmax.xlane.f32.xlu0 %v3442
        %v3444 = vpop.xlane.xlu0 %3443
        %v3445 = vsub.f32 %v3441, %v3444
        %v3446 = vmul.f32 %v3445, 1.442695
        %v3447 = vpow.pop %v3446
        %v3448 = vsel %vm223, %v3447, 0.0
        %3449 = vadd.xlane.f32.xlu0 %v3448
        %v3450 = vpop.xlane.xlu0 %3449
        %v3451 = vrcp.pop %v3450
        %v3452 = vmul.f32 %v3447, %v3451
        %v3453 = vpack.c.bf16 %v3452, %v3452
        %3454 = vrot.lane.b32.xlu0 %v3392, 64
        %v3455 = vpop.permute.xlu0 %3454
        %v3457 = vsel %vm238, %v3453, 0
        %v3460 = vsel %vm242, %v3455, 0
        %3462 = vmatprep.subr.bf16.mxu0 0
        %3463 = vmatpush1.bf16.msra.mxu0 0
        %3464 = vmatprep.subr.bf16.mxu0 0
        %3465 = vmatpush1.bf16.msra.mxu0 0
        %3466 = vmatprep.subr.bf16.mxu0 0
        %3467 = vmatpush1.bf16.msra.mxu0 0
        %3468 = vmatprep.subr.bf16.mxu0 0
        %3469 = vmatpush1.bf16.msra.mxu0 0
        %3470 = vmatprep.subr.bf16.mxu0 0
        %3471 = vmatpush1.bf16.msra.mxu0 0
        %3472 = vmatprep.subr.bf16.mxu0 0
        %3473 = vmatpush1.bf16.msra.mxu0 0
        %3474 = vmatprep.subr.bf16.mxu0 0
        %3475 = vmatpush1.bf16.msra.mxu0 0
        %3476 = vmatprep.subr.bf16.mxu0 0
        %3477 = vmatpush1.bf16.msra.mxu0 %v3460
        %3478 = vmatprep.subr.bf16.mxu0 0
        %3479 = vmatpush2.bf16.msra.mxu0 0
        %3480 = vmatprep.subr.bf16.mxu0 0
        %3481 = vmatpush2.bf16.msra.mxu0 0
        %3482 = vmatprep.subr.bf16.mxu0 0
        %3483 = vmatpush2.bf16.msra.mxu0 0
        %3484 = vmatprep.subr.bf16.mxu0 0
        %3485 = vmatpush2.bf16.msra.mxu0 0
        %3486 = vmatprep.subr.bf16.mxu0 0
        %3487 = vmatpush2.bf16.msra.mxu0 0
        %3488 = vmatprep.subr.bf16.mxu0 0
        %3489 = vmatpush2.bf16.msra.mxu0 0
        %3490 = vmatprep.subr.bf16.mxu0 0
        %3491 = vmatpush2.bf16.msra.mxu0 0
        %3492 = vmatprep.subr.bf16.mxu0 0
        %3493 = vmatpush2.bf16.msra.mxu0 0
        %3494 = vmatprep.mubr.bf16.mxu0 0
        %3495 = vmatmul.mubr.bf16.gmra.mxu0 %v3457
        %v3496 = vpop.f32.mrf.mxu0
        %v3497 = vadd.f32 0.0, %v3496
        %v3498 = vpop.f32.mrf.mxu0
        %v3499 = vpop.f32.mrf.mxu0
        %v3500 = vpop.f32.mrf.mxu0
        %3501 = vdwg.mxu0
        %v3502 = vpack.c.bf16 %v3497, %v3497
        %v3505 = vunpack.c.l.s4 1966171168
        %v3506 = vunpack.c.0.s8 %v3505
        %v3507 = vlaneseq
        %v3508 = vshrl.u32 %v3507, 7
        %v3509 = vsub.s32 %v3506, %v3508
        %v3510 = vrot.slane %v3502, %v3509
        %v3512 = vunpack.c.l.s4 1966171168
        %v3513 = vunpack.c.0.s8 %v3512
        %v3514 = vlaneseq
        %v3515 = vshrl.u32 %v3514, 7
        %v3516 = vsub.s32 %v3513, %v3515
        %v3517 = vrot.slane %v3510, %v3516
        %v3518 = vunpack.i.l.s16 %v3517
        %v3519 = vunpack.i.h.s16 %v3517
        %v3520 = vpack.i.b16 %v3518, %v3518
        %v3521 = vpack.i.b16 %v3519, %v3519
        %v3523 = vunpack.c.l.s4 286326784
        %v3524 = vunpack.c.0.s8 %v3523
        %v3525 = vlaneseq
        %v3526 = vshrl.u32 %v3525, 7
        %v3527 = vsub.s32 %v3524, %v3526
        %v3528 = vrot.slane %v3520, %v3527
        %v3530 = vunpack.c.l.s4 286326784
        %v3531 = vunpack.c.0.s8 %v3530
        %v3532 = vlaneseq
        %v3533 = vshrl.u32 %v3532, 7
        %v3534 = vsub.s32 %v3531, %v3533
        %v3535 = vrot.slane %v3521, %v3534
        %vm3538 = vsmask.f32 7946
        %vm3539 = vmand %vm2893, %vm3538
        %v3540 = vld [vmem:[%s157] sm:$0x4]
        %v3541 = vsel %vm3539, %v3528, %v3540
        %3542 = vst [vmem:[%s157] sm:$0x4] %v3541
        %v3543 = vld [vmem:[%s157 + $0x4] sm:$0x4]
        %v3544 = vsel %vm3539, %v3535, %v3543
        %3545 = vst [vmem:[%s157 + $0x4] sm:$0x4] %v3544
        %3546 = vrot.lane.b32.xlu0 %v3392, 120
        %v3547 = vpop.permute.xlu0 %3546
        %3548 = vrot.lane.b32.xlu0 %v3392, 88
        %v3549 = vpop.permute.xlu0 %3548
        %v3551 = vsel %vm175, %v3547, 0
        %v3554 = vsel %vm175, %v3549, 0
        %3556 = vmatprep.subr.bf16.mxu0 0
        %3557 = vmatpush1.bf16.xpose.msra.mxu0 0
        %3558 = vmatprep.subr.bf16.mxu0 0
        %3559 = vmatpush1.bf16.xpose.msra.mxu0 0
        %3560 = vmatprep.subr.bf16.mxu0 0
        %3561 = vmatpush1.bf16.xpose.msra.mxu0 0
        %3562 = vmatprep.subr.bf16.mxu0 0
        %3563 = vmatpush1.bf16.xpose.msra.mxu0 0
        %3564 = vmatprep.subr.bf16.mxu0 0
        %3565 = vmatpush1.bf16.xpose.msra.mxu0 0
        %3566 = vmatprep.subr.bf16.mxu0 0
        %3567 = vmatpush1.bf16.xpose.msra.mxu0 0
        %3568 = vmatprep.subr.bf16.mxu0 0
        %3569 = vmatpush1.bf16.xpose.msra.mxu0 0
        %3570 = vmatprep.subr.bf16.mxu0 0
        %3571 = vmatpush1.bf16.xpose.msra.mxu0 %v3554
        %3572 = vmatprep.subr.bf16.mxu0 0
        %3573 = vmatpush2.bf16.xpose.msra.mxu0 0
        %3574 = vmatprep.subr.bf16.mxu0 0
        %3575 = vmatpush2.bf16.xpose.msra.mxu0 0
        %3576 = vmatprep.subr.bf16.mxu0 0
        %3577 = vmatpush2.bf16.xpose.msra.mxu0 0
        %3578 = vmatprep.subr.bf16.mxu0 0
        %3579 = vmatpush2.bf16.xpose.msra.mxu0 0
        %3580 = vmatprep.subr.bf16.mxu0 0
        %3581 = vmatpush2.bf16.xpose.msra.mxu0 0
        %3582 = vmatprep.subr.bf16.mxu0 0
        %3583 = vmatpush2.bf16.xpose.msra.mxu0 0
        %3584 = vmatprep.subr.bf16.mxu0 0
        %3585 = vmatpush2.bf16.xpose.msra.mxu0 0
        %3586 = vmatprep.subr.bf16.mxu0 0
        %3587 = vmatpush2.bf16.xpose.msra.mxu0 0
        %3588 = vmatprep.mubr.bf16.mxu0 0
        %3589 = vmatmul.mubr.bf16.gmra.mxu0 %v3551
        %v3590 = vpop.f32.mrf.mxu0
        %v3591 = vadd.f32 0.0, %v3590
        %v3592 = vpop.f32.mrf.mxu0
        %v3593 = vpop.f32.mrf.mxu0
        %v3594 = vpop.f32.mrf.mxu0
        %3595 = vdwg.mxu0
        %v3596 = vmul.f32 %v3591, 0.35355338
        %v3597 = vsel %vm223, %v3596, -inf
        %3598 = vmax.xlane.f32.xlu0 %v3597
        %v3599 = vpop.xlane.xlu0 %3598
        %v3600 = vsub.f32 %v3596, %v3599
        %v3601 = vmul.f32 %v3600, 1.442695
        %v3602 = vpow.pop %v3601
        %v3603 = vsel %vm223, %v3602, 0.0
        %3604 = vadd.xlane.f32.xlu0 %v3603
        %v3605 = vpop.xlane.xlu0 %3604
        %v3606 = vrcp.pop %v3605
        %v3607 = vmul.f32 %v3602, %v3606
        %v3608 = vpack.c.bf16 %v3607, %v3607
        %3609 = vrot.lane.b32.xlu0 %v3392, 56
        %v3610 = vpop.permute.xlu0 %3609
        %v3612 = vsel %vm238, %v3608, 0
        %v3615 = vsel %vm242, %v3610, 0
        %3617 = vmatprep.subr.bf16.mxu0 0
        %3618 = vmatpush1.bf16.msra.mxu0 0
        %3619 = vmatprep.subr.bf16.mxu0 0
        %3620 = vmatpush1.bf16.msra.mxu0 0
        %3621 = vmatprep.subr.bf16.mxu0 0
        %3622 = vmatpush1.bf16.msra.mxu0 0
        %3623 = vmatprep.subr.bf16.mxu0 0
        %3624 = vmatpush1.bf16.msra.mxu0 0
        %3625 = vmatprep.subr.bf16.mxu0 0
        %3626 = vmatpush1.bf16.msra.mxu0 0
        %3627 = vmatprep.subr.bf16.mxu0 0
        %3628 = vmatpush1.bf16.msra.mxu0 0
        %3629 = vmatprep.subr.bf16.mxu0 0
        %3630 = vmatpush1.bf16.msra.mxu0 0
        %3631 = vmatprep.subr.bf16.mxu0 0
        %3632 = vmatpush1.bf16.msra.mxu0 %v3615
        %3633 = vmatprep.subr.bf16.mxu0 0
        %3634 = vmatpush2.bf16.msra.mxu0 0
        %3635 = vmatprep.subr.bf16.mxu0 0
        %3636 = vmatpush2.bf16.msra.mxu0 0
        %3637 = vmatprep.subr.bf16.mxu0 0
        %3638 = vmatpush2.bf16.msra.mxu0 0
        %3639 = vmatprep.subr.bf16.mxu0 0
        %3640 = vmatpush2.bf16.msra.mxu0 0
        %3641 = vmatprep.subr.bf16.mxu0 0
        %3642 = vmatpush2.bf16.msra.mxu0 0
        %3643 = vmatprep.subr.bf16.mxu0 0
        %3644 = vmatpush2.bf16.msra.mxu0 0
        %3645 = vmatprep.subr.bf16.mxu0 0
        %3646 = vmatpush2.bf16.msra.mxu0 0
        %3647 = vmatprep.subr.bf16.mxu0 0
        %3648 = vmatpush2.bf16.msra.mxu0 0
        %3649 = vmatprep.mubr.bf16.mxu0 0
        %3650 = vmatmul.mubr.bf16.gmra.mxu0 %v3612
        %v3651 = vpop.f32.mrf.mxu0
        %v3652 = vadd.f32 0.0, %v3651
        %v3653 = vpop.f32.mrf.mxu0
        %v3654 = vpop.f32.mrf.mxu0
        %v3655 = vpop.f32.mrf.mxu0
        %3656 = vdwg.mxu0
        %v3657 = vpack.c.bf16 %v3652, %v3652
        %v3660 = vunpack.c.l.s4 1966171168
        %v3661 = vunpack.c.0.s8 %v3660
        %v3662 = vlaneseq
        %v3663 = vshrl.u32 %v3662, 7
        %v3664 = vsub.s32 %v3661, %v3663
        %v3665 = vrot.slane %v3657, %v3664
        %v3667 = vunpack.c.l.s4 1966171168
        %v3668 = vunpack.c.0.s8 %v3667
        %v3669 = vlaneseq
        %v3670 = vshrl.u32 %v3669, 7
        %v3671 = vsub.s32 %v3668, %v3670
        %v3672 = vrot.slane %v3665, %v3671
        %v3673 = vunpack.i.l.s16 %v3672
        %v3674 = vunpack.i.h.s16 %v3672
        %v3675 = vpack.i.b16 %v3673, %v3673
        %v3676 = vpack.i.b16 %v3674, %v3674
        %v3678 = vunpack.c.l.s4 286326784
        %v3679 = vunpack.c.0.s8 %v3678
        %v3680 = vlaneseq
        %v3681 = vshrl.u32 %v3680, 7
        %v3682 = vsub.s32 %v3679, %v3681
        %v3683 = vrot.slane %v3675, %v3682
        %v3685 = vunpack.c.l.s4 286326784
        %v3686 = vunpack.c.0.s8 %v3685
        %v3687 = vlaneseq
        %v3688 = vshrl.u32 %v3687, 7
        %v3689 = vsub.s32 %v3686, %v3688
        %v3690 = vrot.slane %v3676, %v3689
        %3691 = vrot.lane.b32.xlu0 %v3683, 8
        %v3692 = vpop.permute.xlu0 %3691
        %3693 = vrot.lane.b32.xlu0 %v3690, 8
        %v3694 = vpop.permute.xlu0 %3693
        %vm3697 = vmand %vm3053, %vm3538
        %v3698 = vld [vmem:[%s157] sm:$0x4]
        %v3699 = vsel %vm3697, %v3692, %v3698
        %3700 = vst [vmem:[%s157] sm:$0x4] %v3699
        %v3701 = vld [vmem:[%s157 + $0x4] sm:$0x4]
        %v3702 = vsel %vm3697, %v3694, %v3701
        %3703 = vst [vmem:[%s157 + $0x4] sm:$0x4] %v3702
        %3704 = vrot.lane.b32.xlu0 %v3392, 112
        %v3705 = vpop.permute.xlu0 %3704
        %3706 = vrot.lane.b32.xlu0 %v3392, 80
        %v3707 = vpop.permute.xlu0 %3706
        %v3709 = vsel %vm175, %v3705, 0
        %v3712 = vsel %vm175, %v3707, 0
        %3714 = vmatprep.subr.bf16.mxu0 0
        %3715 = vmatpush1.bf16.xpose.msra.mxu0 0
        %3716 = vmatprep.subr.bf16.mxu0 0
        %3717 = vmatpush1.bf16.xpose.msra.mxu0 0
        %3718 = vmatprep.subr.bf16.mxu0 0
        %3719 = vmatpush1.bf16.xpose.msra.mxu0 0
        %3720 = vmatprep.subr.bf16.mxu0 0
        %3721 = vmatpush1.bf16.xpose.msra.mxu0 0
        %3722 = vmatprep.subr.bf16.mxu0 0
        %3723 = vmatpush1.bf16.xpose.msra.mxu0 0
        %3724 = vmatprep.subr.bf16.mxu0 0
        %3725 = vmatpush1.bf16.xpose.msra.mxu0 0
        %3726 = vmatprep.subr.bf16.mxu0 0
        %3727 = vmatpush1.bf16.xpose.msra.mxu0 0
        %3728 = vmatprep.subr.bf16.mxu0 0
        %3729 = vmatpush1.bf16.xpose.msra.mxu0 %v3712
        %3730 = vmatprep.subr.bf16.mxu0 0
        %3731 = vmatpush2.bf16.xpose.msra.mxu0 0
        %3732 = vmatprep.subr.bf16.mxu0 0
        %3733 = vmatpush2.bf16.xpose.msra.mxu0 0
        %3734 = vmatprep.subr.bf16.mxu0 0
        %3735 = vmatpush2.bf16.xpose.msra.mxu0 0
        %3736 = vmatprep.subr.bf16.mxu0 0
        %3737 = vmatpush2.bf16.xpose.msra.mxu0 0
        %3738 = vmatprep.subr.bf16.mxu0 0
        %3739 = vmatpush2.bf16.xpose.msra.mxu0 0
        %3740 = vmatprep.subr.bf16.mxu0 0
        %3741 = vmatpush2.bf16.xpose.msra.mxu0 0
        %3742 = vmatprep.subr.bf16.mxu0 0
        %3743 = vmatpush2.bf16.xpose.msra.mxu0 0
        %3744 = vmatprep.subr.bf16.mxu0 0
        %3745 = vmatpush2.bf16.xpose.msra.mxu0 0
        %3746 = vmatprep.mubr.bf16.mxu0 0
        %3747 = vmatmul.mubr.bf16.gmra.mxu0 %v3709
        %v3748 = vpop.f32.mrf.mxu0
        %v3749 = vadd.f32 0.0, %v3748
        %v3750 = vpop.f32.mrf.mxu0
        %v3751 = vpop.f32.mrf.mxu0
        %v3752 = vpop.f32.mrf.mxu0
        %3753 = vdwg.mxu0
        %v3754 = vmul.f32 %v3749, 0.35355338
        %v3755 = vsel %vm223, %v3754, -inf
        %3756 = vmax.xlane.f32.xlu0 %v3755
        %v3757 = vpop.xlane.xlu0 %3756
        %v3758 = vsub.f32 %v3754, %v3757
        %v3759 = vmul.f32 %v3758, 1.442695
        %v3760 = vpow.pop %v3759
        %v3761 = vsel %vm223, %v3760, 0.0
        %3762 = vadd.xlane.f32.xlu0 %v3761
        %v3763 = vpop.xlane.xlu0 %3762
        %v3764 = vrcp.pop %v3763
        %v3765 = vmul.f32 %v3760, %v3764
        %v3766 = vpack.c.bf16 %v3765, %v3765
        %3767 = vrot.lane.b32.xlu0 %v3392, 48
        %v3768 = vpop.permute.xlu0 %3767
        %v3770 = vsel %vm238, %v3766, 0
        %v3773 = vsel %vm242, %v3768, 0
        %3775 = vmatprep.subr.bf16.mxu0 0
        %3776 = vmatpush1.bf16.msra.mxu0 0
        %3777 = vmatprep.subr.bf16.mxu0 0
        %3778 = vmatpush1.bf16.msra.mxu0 0
        %3779 = vmatprep.subr.bf16.mxu0 0
        %3780 = vmatpush1.bf16.msra.mxu0 0
        %3781 = vmatprep.subr.bf16.mxu0 0
        %3782 = vmatpush1.bf16.msra.mxu0 0
        %3783 = vmatprep.subr.bf16.mxu0 0
        %3784 = vmatpush1.bf16.msra.mxu0 0
        %3785 = vmatprep.subr.bf16.mxu0 0
        %3786 = vmatpush1.bf16.msra.mxu0 0
        %3787 = vmatprep.subr.bf16.mxu0 0
        %3788 = vmatpush1.bf16.msra.mxu0 0
        %3789 = vmatprep.subr.bf16.mxu0 0
        %3790 = vmatpush1.bf16.msra.mxu0 %v3773
        %3791 = vmatprep.subr.bf16.mxu0 0
        %3792 = vmatpush2.bf16.msra.mxu0 0
        %3793 = vmatprep.subr.bf16.mxu0 0
        %3794 = vmatpush2.bf16.msra.mxu0 0
        %3795 = vmatprep.subr.bf16.mxu0 0
        %3796 = vmatpush2.bf16.msra.mxu0 0
        %3797 = vmatprep.subr.bf16.mxu0 0
        %3798 = vmatpush2.bf16.msra.mxu0 0
        %3799 = vmatprep.subr.bf16.mxu0 0
        %3800 = vmatpush2.bf16.msra.mxu0 0
        %3801 = vmatprep.subr.bf16.mxu0 0
        %3802 = vmatpush2.bf16.msra.mxu0 0
        %3803 = vmatprep.subr.bf16.mxu0 0
        %3804 = vmatpush2.bf16.msra.mxu0 0
        %3805 = vmatprep.subr.bf16.mxu0 0
        %3806 = vmatpush2.bf16.msra.mxu0 0
        %3807 = vmatprep.mubr.bf16.mxu0 0
        %3808 = vmatmul.mubr.bf16.gmra.mxu0 %v3770
        %v3809 = vpop.f32.mrf.mxu0
        %v3810 = vadd.f32 0.0, %v3809
        %v3811 = vpop.f32.mrf.mxu0
        %v3812 = vpop.f32.mrf.mxu0
        %v3813 = vpop.f32.mrf.mxu0
        %3814 = vdwg.mxu0
        %v3815 = vpack.c.bf16 %v3810, %v3810
        %v3818 = vunpack.c.l.s4 1966171168
        %v3819 = vunpack.c.0.s8 %v3818
        %v3820 = vlaneseq
        %v3821 = vshrl.u32 %v3820, 7
        %v3822 = vsub.s32 %v3819, %v3821
        %v3823 = vrot.slane %v3815, %v3822
        %v3825 = vunpack.c.l.s4 1966171168
        %v3826 = vunpack.c.0.s8 %v3825
        %v3827 = vlaneseq
        %v3828 = vshrl.u32 %v3827, 7
        %v3829 = vsub.s32 %v3826, %v3828
        %v3830 = vrot.slane %v3823, %v3829
        %v3831 = vunpack.i.l.s16 %v3830
        %v3832 = vunpack.i.h.s16 %v3830
        %v3833 = vpack.i.b16 %v3831, %v3831
        %v3834 = vpack.i.b16 %v3832, %v3832
        %v3836 = vunpack.c.l.s4 286326784
        %v3837 = vunpack.c.0.s8 %v3836
        %v3838 = vlaneseq
        %v3839 = vshrl.u32 %v3838, 7
        %v3840 = vsub.s32 %v3837, %v3839
        %v3841 = vrot.slane %v3833, %v3840
        %v3843 = vunpack.c.l.s4 286326784
        %v3844 = vunpack.c.0.s8 %v3843
        %v3845 = vlaneseq
        %v3846 = vshrl.u32 %v3845, 7
        %v3847 = vsub.s32 %v3844, %v3846
        %v3848 = vrot.slane %v3834, %v3847
        %3849 = vrot.lane.b32.xlu0 %v3841, 16
        %v3850 = vpop.permute.xlu0 %3849
        %3851 = vrot.lane.b32.xlu0 %v3848, 16
        %v3852 = vpop.permute.xlu0 %3851
        %vm3855 = vmand %vm3212, %vm3538
        %v3856 = vld [vmem:[%s157] sm:$0x4]
        %v3857 = vsel %vm3855, %v3850, %v3856
        %3858 = vst [vmem:[%s157] sm:$0x4] %v3857
        %v3859 = vld [vmem:[%s157 + $0x4] sm:$0x4]
        %v3860 = vsel %vm3855, %v3852, %v3859
        %3861 = vst [vmem:[%s157 + $0x4] sm:$0x4] %v3860
        %3862 = vrot.lane.b32.xlu0 %v3392, 104
        %v3863 = vpop.permute.xlu0 %3862
        %3864 = vrot.lane.b32.xlu0 %v3392, 72
        %v3865 = vpop.permute.xlu0 %3864
        %v3867 = vsel %vm175, %v3863, 0
        %v3870 = vsel %vm175, %v3865, 0
        %3872 = vmatprep.subr.bf16.mxu0 0
        %3873 = vmatpush1.bf16.xpose.msra.mxu0 0
        %3874 = vmatprep.subr.bf16.mxu0 0
        %3875 = vmatpush1.bf16.xpose.msra.mxu0 0
        %3876 = vmatprep.subr.bf16.mxu0 0
        %3877 = vmatpush1.bf16.xpose.msra.mxu0 0
        %3878 = vmatprep.subr.bf16.mxu0 0
        %3879 = vmatpush1.bf16.xpose.msra.mxu0 0
        %3880 = vmatprep.subr.bf16.mxu0 0
        %3881 = vmatpush1.bf16.xpose.msra.mxu0 0
        %3882 = vmatprep.subr.bf16.mxu0 0
        %3883 = vmatpush1.bf16.xpose.msra.mxu0 0
        %3884 = vmatprep.subr.bf16.mxu0 0
        %3885 = vmatpush1.bf16.xpose.msra.mxu0 0
        %3886 = vmatprep.subr.bf16.mxu0 0
        %3887 = vmatpush1.bf16.xpose.msra.mxu0 %v3870
        %3888 = vmatprep.subr.bf16.mxu0 0
        %3889 = vmatpush2.bf16.xpose.msra.mxu0 0
        %3890 = vmatprep.subr.bf16.mxu0 0
        %3891 = vmatpush2.bf16.xpose.msra.mxu0 0
        %3892 = vmatprep.subr.bf16.mxu0 0
        %3893 = vmatpush2.bf16.xpose.msra.mxu0 0
        %3894 = vmatprep.subr.bf16.mxu0 0
        %3895 = vmatpush2.bf16.xpose.msra.mxu0 0
        %3896 = vmatprep.subr.bf16.mxu0 0
        %3897 = vmatpush2.bf16.xpose.msra.mxu0 0
        %3898 = vmatprep.subr.bf16.mxu0 0
        %3899 = vmatpush2.bf16.xpose.msra.mxu0 0
        %3900 = vmatprep.subr.bf16.mxu0 0
        %3901 = vmatpush2.bf16.xpose.msra.mxu0 0
        %3902 = vmatprep.subr.bf16.mxu0 0
        %3903 = vmatpush2.bf16.xpose.msra.mxu0 0
        %3904 = vmatprep.mubr.bf16.mxu0 0
        %3905 = vmatmul.mubr.bf16.gmra.mxu0 %v3867
        %v3906 = vpop.f32.mrf.mxu0
        %v3907 = vadd.f32 0.0, %v3906
        %v3908 = vpop.f32.mrf.mxu0
        %v3909 = vpop.f32.mrf.mxu0
        %v3910 = vpop.f32.mrf.mxu0
        %3911 = vdwg.mxu0
        %v3912 = vmul.f32 %v3907, 0.35355338
        %v3913 = vsel %vm223, %v3912, -inf
        %3914 = vmax.xlane.f32.xlu0 %v3913
        %v3915 = vpop.xlane.xlu0 %3914
        %v3916 = vsub.f32 %v3912, %v3915
        %v3917 = vmul.f32 %v3916, 1.442695
        %v3918 = vpow.pop %v3917
        %v3919 = vsel %vm223, %v3918, 0.0
        %3920 = vadd.xlane.f32.xlu0 %v3919
        %v3921 = vpop.xlane.xlu0 %3920
        %v3922 = vrcp.pop %v3921
        %v3923 = vmul.f32 %v3918, %v3922
        %v3924 = vpack.c.bf16 %v3923, %v3923
        %3925 = vrot.lane.b32.xlu0 %v3392, 40
        %v3926 = vpop.permute.xlu0 %3925
        %v3928 = vsel %vm238, %v3924, 0
        %v3931 = vsel %vm242, %v3926, 0
        %3933 = vmatprep.subr.bf16.mxu0 0
        %3934 = vmatpush1.bf16.msra.mxu0 0
        %3935 = vmatprep.subr.bf16.mxu0 0
        %3936 = vmatpush1.bf16.msra.mxu0 0
        %3937 = vmatprep.subr.bf16.mxu0 0
        %3938 = vmatpush1.bf16.msra.mxu0 0
        %3939 = vmatprep.subr.bf16.mxu0 0
        %3940 = vmatpush1.bf16.msra.mxu0 0
        %3941 = vmatprep.subr.bf16.mxu0 0
        %3942 = vmatpush1.bf16.msra.mxu0 0
        %3943 = vmatprep.subr.bf16.mxu0 0
        %3944 = vmatpush1.bf16.msra.mxu0 0
        %3945 = vmatprep.subr.bf16.mxu0 0
        %3946 = vmatpush1.bf16.msra.mxu0 0
        %3947 = vmatprep.subr.bf16.mxu0 0
        %3948 = vmatpush1.bf16.msra.mxu0 %v3931
        %3949 = vmatprep.subr.bf16.mxu0 0
        %3950 = vmatpush2.bf16.msra.mxu0 0
        %3951 = vmatprep.subr.bf16.mxu0 0
        %3952 = vmatpush2.bf16.msra.mxu0 0
        %3953 = vmatprep.subr.bf16.mxu0 0
        %3954 = vmatpush2.bf16.msra.mxu0 0
        %3955 = vmatprep.subr.bf16.mxu0 0
        %3956 = vmatpush2.bf16.msra.mxu0 0
        %3957 = vmatprep.subr.bf16.mxu0 0
        %3958 = vmatpush2.bf16.msra.mxu0 0
        %3959 = vmatprep.subr.bf16.mxu0 0
        %3960 = vmatpush2.bf16.msra.mxu0 0
        %3961 = vmatprep.subr.bf16.mxu0 0
        %3962 = vmatpush2.bf16.msra.mxu0 0
        %3963 = vmatprep.subr.bf16.mxu0 0
        %3964 = vmatpush2.bf16.msra.mxu0 0
        %3965 = vmatprep.mubr.bf16.mxu0 0
        %3966 = vmatmul.mubr.bf16.gmra.mxu0 %v3928
        %v3967 = vpop.f32.mrf.mxu0
        %v3968 = vadd.f32 0.0, %v3967
        %v3969 = vpop.f32.mrf.mxu0
        %v3970 = vpop.f32.mrf.mxu0
        %v3971 = vpop.f32.mrf.mxu0
        %3972 = vdwg.mxu0
        %v3973 = vpack.c.bf16 %v3968, %v3968
        %v3976 = vunpack.c.l.s4 1966171168
        %v3977 = vunpack.c.0.s8 %v3976
        %v3978 = vlaneseq
        %v3979 = vshrl.u32 %v3978, 7
        %v3980 = vsub.s32 %v3977, %v3979
        %v3981 = vrot.slane %v3973, %v3980
        %v3983 = vunpack.c.l.s4 1966171168
        %v3984 = vunpack.c.0.s8 %v3983
        %v3985 = vlaneseq
        %v3986 = vshrl.u32 %v3985, 7
        %v3987 = vsub.s32 %v3984, %v3986
        %v3988 = vrot.slane %v3981, %v3987
        %v3989 = vunpack.i.l.s16 %v3988
        %v3990 = vunpack.i.h.s16 %v3988
        %v3991 = vpack.i.b16 %v3989, %v3989
        %v3992 = vpack.i.b16 %v3990, %v3990
        %v3994 = vunpack.c.l.s4 286326784
        %v3995 = vunpack.c.0.s8 %v3994
        %v3996 = vlaneseq
        %v3997 = vshrl.u32 %v3996, 7
        %v3998 = vsub.s32 %v3995, %v3997
        %v3999 = vrot.slane %v3991, %v3998
        %v4001 = vunpack.c.l.s4 286326784
        %v4002 = vunpack.c.0.s8 %v4001
        %v4003 = vlaneseq
        %v4004 = vshrl.u32 %v4003, 7
        %v4005 = vsub.s32 %v4002, %v4004
        %v4006 = vrot.slane %v3992, %v4005
        %4007 = vrot.lane.b32.xlu0 %v3999, 24
        %v4008 = vpop.permute.xlu0 %4007
        %4009 = vrot.lane.b32.xlu0 %v4006, 24
        %v4010 = vpop.permute.xlu0 %4009
        %vm4013 = vmand %vm3371, %vm3538
        %v4014 = vld [vmem:[%s157] sm:$0x4]
        %v4015 = vsel %vm4013, %v4008, %v4014
        %4016 = vst [vmem:[%s157] sm:$0x4] %v4015
        %v4017 = vld [vmem:[%s157 + $0x4] sm:$0x4]
        %v4018 = vsel %vm4013, %v4010, %v4017
        %4019 = vst [vmem:[%s157 + $0x4] sm:$0x4] %v4018
        %v4020 = vld [vmem:[%s142] sm:$0x8]
        %v4021 = vld [vmem:[%s142 + $0x4] sm:$0x8]
        %v4024 = vunpack.c.l.b16 %v4020
        %v4025 = vunpack.c.l.b16 %v4021
        %v4026 = vpack.c.b16 %v4024, %v4024
        %v4027 = vpack.c.b16 %v4025, %v4025
        %v4028 = vunpack.c.l.b16 %v4026
        %v4029 = vunpack.c.l.b16 %v4027
        %v4030 = vrot.slane %v4028, 6
        %v4031 = vrot.slane %v4029, 5
        %v4032 = vsel %vm170, %v4031, %v4030
        %v4033 = vpack.c.b16 %v4032, %v4032
        %4034 = vrot.lane.b32.xlu0 %v4033, 96
        %v4035 = vpop.permute.xlu0 %4034
        %v4037 = vsel %vm175, %v4033, 0
        %v4040 = vsel %vm175, %v4035, 0
        %4042 = vmatprep.subr.bf16.mxu0 0
        %4043 = vmatpush1.bf16.xpose.msra.mxu0 0
        %4044 = vmatprep.subr.bf16.mxu0 0
        %4045 = vmatpush1.bf16.xpose.msra.mxu0 0
        %4046 = vmatprep.subr.bf16.mxu0 0
        %4047 = vmatpush1.bf16.xpose.msra.mxu0 0
        %4048 = vmatprep.subr.bf16.mxu0 0
        %4049 = vmatpush1.bf16.xpose.msra.mxu0 0
        %4050 = vmatprep.subr.bf16.mxu0 0
        %4051 = vmatpush1.bf16.xpose.msra.mxu0 0
        %4052 = vmatprep.subr.bf16.mxu0 0
        %4053 = vmatpush1.bf16.xpose.msra.mxu0 0
        %4054 = vmatprep.subr.bf16.mxu0 0
        %4055 = vmatpush1.bf16.xpose.msra.mxu0 0
        %4056 = vmatprep.subr.bf16.mxu0 0
        %4057 = vmatpush1.bf16.xpose.msra.mxu0 %v4040
        %4058 = vmatprep.subr.bf16.mxu0 0
        %4059 = vmatpush2.bf16.xpose.msra.mxu0 0
        %4060 = vmatprep.subr.bf16.mxu0 0
        %4061 = vmatpush2.bf16.xpose.msra.mxu0 0
        %4062 = vmatprep.subr.bf16.mxu0 0
        %4063 = vmatpush2.bf16.xpose.msra.mxu0 0
        %4064 = vmatprep.subr.bf16.mxu0 0
        %4065 = vmatpush2.bf16.xpose.msra.mxu0 0
        %4066 = vmatprep.subr.bf16.mxu0 0
        %4067 = vmatpush2.bf16.xpose.msra.mxu0 0
        %4068 = vmatprep.subr.bf16.mxu0 0
        %4069 = vmatpush2.bf16.xpose.msra.mxu0 0
        %4070 = vmatprep.subr.bf16.mxu0 0
        %4071 = vmatpush2.bf16.xpose.msra.mxu0 0
        %4072 = vmatprep.subr.bf16.mxu0 0
        %4073 = vmatpush2.bf16.xpose.msra.mxu0 0
        %4074 = vmatprep.mubr.bf16.mxu0 0
        %4075 = vmatmul.mubr.bf16.gmra.mxu0 %v4037
        %v4076 = vpop.f32.mrf.mxu0
        %v4077 = vadd.f32 0.0, %v4076
        %v4078 = vpop.f32.mrf.mxu0
        %v4079 = vpop.f32.mrf.mxu0
        %v4080 = vpop.f32.mrf.mxu0
        %4081 = vdwg.mxu0
        %v4082 = vmul.f32 %v4077, 0.35355338
        %v4083 = vsel %vm223, %v4082, -inf
        %4084 = vmax.xlane.f32.xlu0 %v4083
        %v4085 = vpop.xlane.xlu0 %4084
        %v4086 = vsub.f32 %v4082, %v4085
        %v4087 = vmul.f32 %v4086, 1.442695
        %v4088 = vpow.pop %v4087
        %v4089 = vsel %vm223, %v4088, 0.0
        %4090 = vadd.xlane.f32.xlu0 %v4089
        %v4091 = vpop.xlane.xlu0 %4090
        %v4092 = vrcp.pop %v4091
        %v4093 = vmul.f32 %v4088, %v4092
        %v4094 = vpack.c.bf16 %v4093, %v4093
        %4095 = vrot.lane.b32.xlu0 %v4033, 64
        %v4096 = vpop.permute.xlu0 %4095
        %v4098 = vsel %vm238, %v4094, 0
        %v4101 = vsel %vm242, %v4096, 0
        %4103 = vmatprep.subr.bf16.mxu0 0
        %4104 = vmatpush1.bf16.msra.mxu0 0
        %4105 = vmatprep.subr.bf16.mxu0 0
        %4106 = vmatpush1.bf16.msra.mxu0 0
        %4107 = vmatprep.subr.bf16.mxu0 0
        %4108 = vmatpush1.bf16.msra.mxu0 0
        %4109 = vmatprep.subr.bf16.mxu0 0
        %4110 = vmatpush1.bf16.msra.mxu0 0
        %4111 = vmatprep.subr.bf16.mxu0 0
        %4112 = vmatpush1.bf16.msra.mxu0 0
        %4113 = vmatprep.subr.bf16.mxu0 0
        %4114 = vmatpush1.bf16.msra.mxu0 0
        %4115 = vmatprep.subr.bf16.mxu0 0
        %4116 = vmatpush1.bf16.msra.mxu0 0
        %4117 = vmatprep.subr.bf16.mxu0 0
        %4118 = vmatpush1.bf16.msra.mxu0 %v4101
        %4119 = vmatprep.subr.bf16.mxu0 0
        %4120 = vmatpush2.bf16.msra.mxu0 0
        %4121 = vmatprep.subr.bf16.mxu0 0
        %4122 = vmatpush2.bf16.msra.mxu0 0
        %4123 = vmatprep.subr.bf16.mxu0 0
        %4124 = vmatpush2.bf16.msra.mxu0 0
        %4125 = vmatprep.subr.bf16.mxu0 0
        %4126 = vmatpush2.bf16.msra.mxu0 0
        %4127 = vmatprep.subr.bf16.mxu0 0
        %4128 = vmatpush2.bf16.msra.mxu0 0
        %4129 = vmatprep.subr.bf16.mxu0 0
        %4130 = vmatpush2.bf16.msra.mxu0 0
        %4131 = vmatprep.subr.bf16.mxu0 0
        %4132 = vmatpush2.bf16.msra.mxu0 0
        %4133 = vmatprep.subr.bf16.mxu0 0
        %4134 = vmatpush2.bf16.msra.mxu0 0
        %4135 = vmatprep.mubr.bf16.mxu0 0
        %4136 = vmatmul.mubr.bf16.gmra.mxu0 %v4098
        %v4137 = vpop.f32.mrf.mxu0
        %v4138 = vadd.f32 0.0, %v4137
        %v4139 = vpop.f32.mrf.mxu0
        %v4140 = vpop.f32.mrf.mxu0
        %v4141 = vpop.f32.mrf.mxu0
        %4142 = vdwg.mxu0
        %v4143 = vpack.c.bf16 %v4138, %v4138
        %v4146 = vunpack.c.l.s4 1966171168
        %v4147 = vunpack.c.0.s8 %v4146
        %v4148 = vlaneseq
        %v4149 = vshrl.u32 %v4148, 7
        %v4150 = vsub.s32 %v4147, %v4149
        %v4151 = vrot.slane %v4143, %v4150
        %v4153 = vunpack.c.l.s4 1966171168
        %v4154 = vunpack.c.0.s8 %v4153
        %v4155 = vlaneseq
        %v4156 = vshrl.u32 %v4155, 7
        %v4157 = vsub.s32 %v4154, %v4156
        %v4158 = vrot.slane %v4151, %v4157
        %v4159 = vunpack.i.l.s16 %v4158
        %v4160 = vunpack.i.h.s16 %v4158
        %v4161 = vpack.i.b16 %v4159, %v4159
        %v4162 = vpack.i.b16 %v4160, %v4160
        %v4164 = vunpack.c.l.s4 286326784
        %v4165 = vunpack.c.0.s8 %v4164
        %v4166 = vlaneseq
        %v4167 = vshrl.u32 %v4166, 7
        %v4168 = vsub.s32 %v4165, %v4167
        %v4169 = vrot.slane %v4161, %v4168
        %v4171 = vunpack.c.l.s4 286326784
        %v4172 = vunpack.c.0.s8 %v4171
        %v4173 = vlaneseq
        %v4174 = vshrl.u32 %v4173, 7
        %v4175 = vsub.s32 %v4172, %v4174
        %v4176 = vrot.slane %v4162, %v4175
        %vm4179 = vcmask 60419
        %vm4180 = vsmask.f32 3328
        %vm4181 = vmand %vm4179, %vm4180
        %v4182 = vld [vmem:[%s157] sm:$0x8]
        %v4183 = vsel %vm4181, %v4169, %v4182
        %4184 = vst [vmem:[%s157] sm:$0x8] %v4183
        %v4185 = vld [vmem:[%s157 + $0x4] sm:$0x8]
        %v4186 = vsel %vm4181, %v4176, %v4185
        %4187 = vst [vmem:[%s157 + $0x4] sm:$0x8] %v4186
        %4188 = vrot.lane.b32.xlu0 %v4033, 120
        %v4189 = vpop.permute.xlu0 %4188
        %4190 = vrot.lane.b32.xlu0 %v4033, 88
        %v4191 = vpop.permute.xlu0 %4190
        %v4193 = vsel %vm175, %v4189, 0
        %v4196 = vsel %vm175, %v4191, 0
        %4198 = vmatprep.subr.bf16.mxu0 0
        %4199 = vmatpush1.bf16.xpose.msra.mxu0 0
        %4200 = vmatprep.subr.bf16.mxu0 0
        %4201 = vmatpush1.bf16.xpose.msra.mxu0 0
        %4202 = vmatprep.subr.bf16.mxu0 0
        %4203 = vmatpush1.bf16.xpose.msra.mxu0 0
        %4204 = vmatprep.subr.bf16.mxu0 0
        %4205 = vmatpush1.bf16.xpose.msra.mxu0 0
        %4206 = vmatprep.subr.bf16.mxu0 0
        %4207 = vmatpush1.bf16.xpose.msra.mxu0 0
        %4208 = vmatprep.subr.bf16.mxu0 0
        %4209 = vmatpush1.bf16.xpose.msra.mxu0 0
        %4210 = vmatprep.subr.bf16.mxu0 0
        %4211 = vmatpush1.bf16.xpose.msra.mxu0 0
        %4212 = vmatprep.subr.bf16.mxu0 0
        %4213 = vmatpush1.bf16.xpose.msra.mxu0 %v4196
        %4214 = vmatprep.subr.bf16.mxu0 0
        %4215 = vmatpush2.bf16.xpose.msra.mxu0 0
        %4216 = vmatprep.subr.bf16.mxu0 0
        %4217 = vmatpush2.bf16.xpose.msra.mxu0 0
        %4218 = vmatprep.subr.bf16.mxu0 0
        %4219 = vmatpush2.bf16.xpose.msra.mxu0 0
        %4220 = vmatprep.subr.bf16.mxu0 0
        %4221 = vmatpush2.bf16.xpose.msra.mxu0 0
        %4222 = vmatprep.subr.bf16.mxu0 0
        %4223 = vmatpush2.bf16.xpose.msra.mxu0 0
        %4224 = vmatprep.subr.bf16.mxu0 0
        %4225 = vmatpush2.bf16.xpose.msra.mxu0 0
        %4226 = vmatprep.subr.bf16.mxu0 0
        %4227 = vmatpush2.bf16.xpose.msra.mxu0 0
        %4228 = vmatprep.subr.bf16.mxu0 0
        %4229 = vmatpush2.bf16.xpose.msra.mxu0 0
        %4230 = vmatprep.mubr.bf16.mxu0 0
        %4231 = vmatmul.mubr.bf16.gmra.mxu0 %v4193
        %v4232 = vpop.f32.mrf.mxu0
        %v4233 = vadd.f32 0.0, %v4232
        %v4234 = vpop.f32.mrf.mxu0
        %v4235 = vpop.f32.mrf.mxu0
        %v4236 = vpop.f32.mrf.mxu0
        %4237 = vdwg.mxu0
        %v4238 = vmul.f32 %v4233, 0.35355338
        %v4239 = vsel %vm223, %v4238, -inf
        %4240 = vmax.xlane.f32.xlu0 %v4239
        %v4241 = vpop.xlane.xlu0 %4240
        %v4242 = vsub.f32 %v4238, %v4241
        %v4243 = vmul.f32 %v4242, 1.442695
        %v4244 = vpow.pop %v4243
        %v4245 = vsel %vm223, %v4244, 0.0
        %4246 = vadd.xlane.f32.xlu0 %v4245
        %v4247 = vpop.xlane.xlu0 %4246
        %v4248 = vrcp.pop %v4247
        %v4249 = vmul.f32 %v4244, %v4248
        %v4250 = vpack.c.bf16 %v4249, %v4249
        %4251 = vrot.lane.b32.xlu0 %v4033, 56
        %v4252 = vpop.permute.xlu0 %4251
        %v4254 = vsel %vm238, %v4250, 0
        %v4257 = vsel %vm242, %v4252, 0
        %4259 = vmatprep.subr.bf16.mxu0 0
        %4260 = vmatpush1.bf16.msra.mxu0 0
        %4261 = vmatprep.subr.bf16.mxu0 0
        %4262 = vmatpush1.bf16.msra.mxu0 0
        %4263 = vmatprep.subr.bf16.mxu0 0
        %4264 = vmatpush1.bf16.msra.mxu0 0
        %4265 = vmatprep.subr.bf16.mxu0 0
        %4266 = vmatpush1.bf16.msra.mxu0 0
        %4267 = vmatprep.subr.bf16.mxu0 0
        %4268 = vmatpush1.bf16.msra.mxu0 0
        %4269 = vmatprep.subr.bf16.mxu0 0
        %4270 = vmatpush1.bf16.msra.mxu0 0
        %4271 = vmatprep.subr.bf16.mxu0 0
        %4272 = vmatpush1.bf16.msra.mxu0 0
        %4273 = vmatprep.subr.bf16.mxu0 0
        %4274 = vmatpush1.bf16.msra.mxu0 %v4257
        %4275 = vmatprep.subr.bf16.mxu0 0
        %4276 = vmatpush2.bf16.msra.mxu0 0
        %4277 = vmatprep.subr.bf16.mxu0 0
        %4278 = vmatpush2.bf16.msra.mxu0 0
        %4279 = vmatprep.subr.bf16.mxu0 0
        %4280 = vmatpush2.bf16.msra.mxu0 0
        %4281 = vmatprep.subr.bf16.mxu0 0
        %4282 = vmatpush2.bf16.msra.mxu0 0
        %4283 = vmatprep.subr.bf16.mxu0 0
        %4284 = vmatpush2.bf16.msra.mxu0 0
        %4285 = vmatprep.subr.bf16.mxu0 0
        %4286 = vmatpush2.bf16.msra.mxu0 0
        %4287 = vmatprep.subr.bf16.mxu0 0
        %4288 = vmatpush2.bf16.msra.mxu0 0
        %4289 = vmatprep.subr.bf16.mxu0 0
        %4290 = vmatpush2.bf16.msra.mxu0 0
        %4291 = vmatprep.mubr.bf16.mxu0 0
        %4292 = vmatmul.mubr.bf16.gmra.mxu0 %v4254
        %v4293 = vpop.f32.mrf.mxu0
        %v4294 = vadd.f32 0.0, %v4293
        %v4295 = vpop.f32.mrf.mxu0
        %v4296 = vpop.f32.mrf.mxu0
        %v4297 = vpop.f32.mrf.mxu0
        %4298 = vdwg.mxu0
        %v4299 = vpack.c.bf16 %v4294, %v4294
        %v4302 = vunpack.c.l.s4 1966171168
        %v4303 = vunpack.c.0.s8 %v4302
        %v4304 = vlaneseq
        %v4305 = vshrl.u32 %v4304, 7
        %v4306 = vsub.s32 %v4303, %v4305
        %v4307 = vrot.slane %v4299, %v4306
        %v4309 = vunpack.c.l.s4 1966171168
        %v4310 = vunpack.c.0.s8 %v4309
        %v4311 = vlaneseq
        %v4312 = vshrl.u32 %v4311, 7
        %v4313 = vsub.s32 %v4310, %v4312
        %v4314 = vrot.slane %v4307, %v4313
        %v4315 = vunpack.i.l.s16 %v4314
        %v4316 = vunpack.i.h.s16 %v4314
        %v4317 = vpack.i.b16 %v4315, %v4315
        %v4318 = vpack.i.b16 %v4316, %v4316
        %v4320 = vunpack.c.l.s4 286326784
        %v4321 = vunpack.c.0.s8 %v4320
        %v4322 = vlaneseq
        %v4323 = vshrl.u32 %v4322, 7
        %v4324 = vsub.s32 %v4321, %v4323
        %v4325 = vrot.slane %v4317, %v4324
        %v4327 = vunpack.c.l.s4 286326784
        %v4328 = vunpack.c.0.s8 %v4327
        %v4329 = vlaneseq
        %v4330 = vshrl.u32 %v4329, 7
        %v4331 = vsub.s32 %v4328, %v4330
        %v4332 = vrot.slane %v4318, %v4331
        %4333 = vrot.lane.b32.xlu0 %v4325, 8
        %v4334 = vpop.permute.xlu0 %4333
        %4335 = vrot.lane.b32.xlu0 %v4332, 8
        %v4336 = vpop.permute.xlu0 %4335
        %vm4339 = vcmask 126019
        %vm4340 = vmand %vm4339, %vm4180
        %v4341 = vld [vmem:[%s157] sm:$0x8]
        %v4342 = vsel %vm4340, %v4334, %v4341
        %4343 = vst [vmem:[%s157] sm:$0x8] %v4342
        %v4344 = vld [vmem:[%s157 + $0x4] sm:$0x8]
        %v4345 = vsel %vm4340, %v4336, %v4344
        %4346 = vst [vmem:[%s157 + $0x4] sm:$0x8] %v4345
        %4347 = vrot.lane.b32.xlu0 %v4033, 112
        %v4348 = vpop.permute.xlu0 %4347
        %4349 = vrot.lane.b32.xlu0 %v4033, 80
        %v4350 = vpop.permute.xlu0 %4349
        %v4352 = vsel %vm175, %v4348, 0
        %v4355 = vsel %vm175, %v4350, 0
        %4357 = vmatprep.subr.bf16.mxu0 0
        %4358 = vmatpush1.bf16.xpose.msra.mxu0 0
        %4359 = vmatprep.subr.bf16.mxu0 0
        %4360 = vmatpush1.bf16.xpose.msra.mxu0 0
        %4361 = vmatprep.subr.bf16.mxu0 0
        %4362 = vmatpush1.bf16.xpose.msra.mxu0 0
        %4363 = vmatprep.subr.bf16.mxu0 0
        %4364 = vmatpush1.bf16.xpose.msra.mxu0 0
        %4365 = vmatprep.subr.bf16.mxu0 0
        %4366 = vmatpush1.bf16.xpose.msra.mxu0 0
        %4367 = vmatprep.subr.bf16.mxu0 0
        %4368 = vmatpush1.bf16.xpose.msra.mxu0 0
        %4369 = vmatprep.subr.bf16.mxu0 0
        %4370 = vmatpush1.bf16.xpose.msra.mxu0 0
        %4371 = vmatprep.subr.bf16.mxu0 0
        %4372 = vmatpush1.bf16.xpose.msra.mxu0 %v4355
        %4373 = vmatprep.subr.bf16.mxu0 0
        %4374 = vmatpush2.bf16.xpose.msra.mxu0 0
        %4375 = vmatprep.subr.bf16.mxu0 0
        %4376 = vmatpush2.bf16.xpose.msra.mxu0 0
        %4377 = vmatprep.subr.bf16.mxu0 0
        %4378 = vmatpush2.bf16.xpose.msra.mxu0 0
        %4379 = vmatprep.subr.bf16.mxu0 0
        %4380 = vmatpush2.bf16.xpose.msra.mxu0 0
        %4381 = vmatprep.subr.bf16.mxu0 0
        %4382 = vmatpush2.bf16.xpose.msra.mxu0 0
        %4383 = vmatprep.subr.bf16.mxu0 0
        %4384 = vmatpush2.bf16.xpose.msra.mxu0 0
        %4385 = vmatprep.subr.bf16.mxu0 0
        %4386 = vmatpush2.bf16.xpose.msra.mxu0 0
        %4387 = vmatprep.subr.bf16.mxu0 0
        %4388 = vmatpush2.bf16.xpose.msra.mxu0 0
        %4389 = vmatprep.mubr.bf16.mxu0 0
        %4390 = vmatmul.mubr.bf16.gmra.mxu0 %v4352
        %v4391 = vpop.f32.mrf.mxu0
        %v4392 = vadd.f32 0.0, %v4391
        %v4393 = vpop.f32.mrf.mxu0
        %v4394 = vpop.f32.mrf.mxu0
        %v4395 = vpop.f32.mrf.mxu0
        %4396 = vdwg.mxu0
        %v4397 = vmul.f32 %v4392, 0.35355338
        %v4398 = vsel %vm223, %v4397, -inf
        %4399 = vmax.xlane.f32.xlu0 %v4398
        %v4400 = vpop.xlane.xlu0 %4399
        %v4401 = vsub.f32 %v4397, %v4400
        %v4402 = vmul.f32 %v4401, 1.442695
        %v4403 = vpow.pop %v4402
        %v4404 = vsel %vm223, %v4403, 0.0
        %4405 = vadd.xlane.f32.xlu0 %v4404
        %v4406 = vpop.xlane.xlu0 %4405
        %v4407 = vrcp.pop %v4406
        %v4408 = vmul.f32 %v4403, %v4407
        %v4409 = vpack.c.bf16 %v4408, %v4408
        %4410 = vrot.lane.b32.xlu0 %v4033, 48
        %v4411 = vpop.permute.xlu0 %4410
        %v4413 = vsel %vm238, %v4409, 0
        %v4416 = vsel %vm242, %v4411, 0
        %4418 = vmatprep.subr.bf16.mxu0 0
        %4419 = vmatpush1.bf16.msra.mxu0 0
        %4420 = vmatprep.subr.bf16.mxu0 0
        %4421 = vmatpush1.bf16.msra.mxu0 0
        %4422 = vmatprep.subr.bf16.mxu0 0
        %4423 = vmatpush1.bf16.msra.mxu0 0
        %4424 = vmatprep.subr.bf16.mxu0 0
        %4425 = vmatpush1.bf16.msra.mxu0 0
        %4426 = vmatprep.subr.bf16.mxu0 0
        %4427 = vmatpush1.bf16.msra.mxu0 0
        %4428 = vmatprep.subr.bf16.mxu0 0
        %4429 = vmatpush1.bf16.msra.mxu0 0
        %4430 = vmatprep.subr.bf16.mxu0 0
        %4431 = vmatpush1.bf16.msra.mxu0 0
        %4432 = vmatprep.subr.bf16.mxu0 0
        %4433 = vmatpush1.bf16.msra.mxu0 %v4416
        %4434 = vmatprep.subr.bf16.mxu0 0
        %4435 = vmatpush2.bf16.msra.mxu0 0
        %4436 = vmatprep.subr.bf16.mxu0 0
        %4437 = vmatpush2.bf16.msra.mxu0 0
        %4438 = vmatprep.subr.bf16.mxu0 0
        %4439 = vmatpush2.bf16.msra.mxu0 0
        %4440 = vmatprep.subr.bf16.mxu0 0
        %4441 = vmatpush2.bf16.msra.mxu0 0
        %4442 = vmatprep.subr.bf16.mxu0 0
        %4443 = vmatpush2.bf16.msra.mxu0 0
        %4444 = vmatprep.subr.bf16.mxu0 0
        %4445 = vmatpush2.bf16.msra.mxu0 0
        %4446 = vmatprep.subr.bf16.mxu0 0
        %4447 = vmatpush2.bf16.msra.mxu0 0
        %4448 = vmatprep.subr.bf16.mxu0 0
        %4449 = vmatpush2.bf16.msra.mxu0 0
        %4450 = vmatprep.mubr.bf16.mxu0 0
        %4451 = vmatmul.mubr.bf16.gmra.mxu0 %v4413
        %v4452 = vpop.f32.mrf.mxu0
        %v4453 = vadd.f32 0.0, %v4452
        %v4454 = vpop.f32.mrf.mxu0
        %v4455 = vpop.f32.mrf.mxu0
        %v4456 = vpop.f32.mrf.mxu0
        %4457 = vdwg.mxu0
        %v4458 = vpack.c.bf16 %v4453, %v4453
        %v4461 = vunpack.c.l.s4 1966171168
        %v4462 = vunpack.c.0.s8 %v4461
        %v4463 = vlaneseq
        %v4464 = vshrl.u32 %v4463, 7
        %v4465 = vsub.s32 %v4462, %v4464
        %v4466 = vrot.slane %v4458, %v4465
        %v4468 = vunpack.c.l.s4 1966171168
        %v4469 = vunpack.c.0.s8 %v4468
        %v4470 = vlaneseq
        %v4471 = vshrl.u32 %v4470, 7
        %v4472 = vsub.s32 %v4469, %v4471
        %v4473 = vrot.slane %v4466, %v4472
        %v4474 = vunpack.i.l.s16 %v4473
        %v4475 = vunpack.i.h.s16 %v4473
        %v4476 = vpack.i.b16 %v4474, %v4474
        %v4477 = vpack.i.b16 %v4475, %v4475
        %v4479 = vunpack.c.l.s4 286326784
        %v4480 = vunpack.c.0.s8 %v4479
        %v4481 = vlaneseq
        %v4482 = vshrl.u32 %v4481, 7
        %v4483 = vsub.s32 %v4480, %v4482
        %v4484 = vrot.slane %v4476, %v4483
        %v4486 = vunpack.c.l.s4 286326784
        %v4487 = vunpack.c.0.s8 %v4486
        %v4488 = vlaneseq
        %v4489 = vshrl.u32 %v4488, 7
        %v4490 = vsub.s32 %v4487, %v4489
        %v4491 = vrot.slane %v4477, %v4490
        %4492 = vrot.lane.b32.xlu0 %v4484, 16
        %v4493 = vpop.permute.xlu0 %4492
        %4494 = vrot.lane.b32.xlu0 %v4491, 16
        %v4495 = vpop.permute.xlu0 %4494
        %vm4498 = vcmask 191619
        %vm4499 = vmand %vm4498, %vm4180
        %v4500 = vld [vmem:[%s157] sm:$0x8]
        %v4501 = vsel %vm4499, %v4493, %v4500
        %4502 = vst [vmem:[%s157] sm:$0x8] %v4501
        %v4503 = vld [vmem:[%s157 + $0x4] sm:$0x8]
        %v4504 = vsel %vm4499, %v4495, %v4503
        %4505 = vst [vmem:[%s157 + $0x4] sm:$0x8] %v4504
        %4506 = vrot.lane.b32.xlu0 %v4033, 104
        %v4507 = vpop.permute.xlu0 %4506
        %4508 = vrot.lane.b32.xlu0 %v4033, 72
        %v4509 = vpop.permute.xlu0 %4508
        %v4511 = vsel %vm175, %v4507, 0
        %v4514 = vsel %vm175, %v4509, 0
        %4516 = vmatprep.subr.bf16.mxu0 0
        %4517 = vmatpush1.bf16.xpose.msra.mxu0 0
        %4518 = vmatprep.subr.bf16.mxu0 0
        %4519 = vmatpush1.bf16.xpose.msra.mxu0 0
        %4520 = vmatprep.subr.bf16.mxu0 0
        %4521 = vmatpush1.bf16.xpose.msra.mxu0 0
        %4522 = vmatprep.subr.bf16.mxu0 0
        %4523 = vmatpush1.bf16.xpose.msra.mxu0 0
        %4524 = vmatprep.subr.bf16.mxu0 0
        %4525 = vmatpush1.bf16.xpose.msra.mxu0 0
        %4526 = vmatprep.subr.bf16.mxu0 0
        %4527 = vmatpush1.bf16.xpose.msra.mxu0 0
        %4528 = vmatprep.subr.bf16.mxu0 0
        %4529 = vmatpush1.bf16.xpose.msra.mxu0 0
        %4530 = vmatprep.subr.bf16.mxu0 0
        %4531 = vmatpush1.bf16.xpose.msra.mxu0 %v4514
        %4532 = vmatprep.subr.bf16.mxu0 0
        %4533 = vmatpush2.bf16.xpose.msra.mxu0 0
        %4534 = vmatprep.subr.bf16.mxu0 0
        %4535 = vmatpush2.bf16.xpose.msra.mxu0 0
        %4536 = vmatprep.subr.bf16.mxu0 0
        %4537 = vmatpush2.bf16.xpose.msra.mxu0 0
        %4538 = vmatprep.subr.bf16.mxu0 0
        %4539 = vmatpush2.bf16.xpose.msra.mxu0 0
        %4540 = vmatprep.subr.bf16.mxu0 0
        %4541 = vmatpush2.bf16.xpose.msra.mxu0 0
        %4542 = vmatprep.subr.bf16.mxu0 0
        %4543 = vmatpush2.bf16.xpose.msra.mxu0 0
        %4544 = vmatprep.subr.bf16.mxu0 0
        %4545 = vmatpush2.bf16.xpose.msra.mxu0 0
        %4546 = vmatprep.subr.bf16.mxu0 0
        %4547 = vmatpush2.bf16.xpose.msra.mxu0 0
        %4548 = vmatprep.mubr.bf16.mxu0 0
        %4549 = vmatmul.mubr.bf16.gmra.mxu0 %v4511
        %v4550 = vpop.f32.mrf.mxu0
        %v4551 = vadd.f32 0.0, %v4550
        %v4552 = vpop.f32.mrf.mxu0
        %v4553 = vpop.f32.mrf.mxu0
        %v4554 = vpop.f32.mrf.mxu0
        %4555 = vdwg.mxu0
        %v4556 = vmul.f32 %v4551, 0.35355338
        %v4557 = vsel %vm223, %v4556, -inf
        %4558 = vmax.xlane.f32.xlu0 %v4557
        %v4559 = vpop.xlane.xlu0 %4558
        %v4560 = vsub.f32 %v4556, %v4559
        %v4561 = vmul.f32 %v4560, 1.442695
        %v4562 = vpow.pop %v4561
        %v4563 = vsel %vm223, %v4562, 0.0
        %4564 = vadd.xlane.f32.xlu0 %v4563
        %v4565 = vpop.xlane.xlu0 %4564
        %v4566 = vrcp.pop %v4565
        %v4567 = vmul.f32 %v4562, %v4566
        %v4568 = vpack.c.bf16 %v4567, %v4567
        %4569 = vrot.lane.b32.xlu0 %v4033, 40
        %v4570 = vpop.permute.xlu0 %4569
        %v4572 = vsel %vm238, %v4568, 0
        %v4575 = vsel %vm242, %v4570, 0
        %4577 = vmatprep.subr.bf16.mxu0 0
        %4578 = vmatpush1.bf16.msra.mxu0 0
        %4579 = vmatprep.subr.bf16.mxu0 0
        %4580 = vmatpush1.bf16.msra.mxu0 0
        %4581 = vmatprep.subr.bf16.mxu0 0
        %4582 = vmatpush1.bf16.msra.mxu0 0
        %4583 = vmatprep.subr.bf16.mxu0 0
        %4584 = vmatpush1.bf16.msra.mxu0 0
        %4585 = vmatprep.subr.bf16.mxu0 0
        %4586 = vmatpush1.bf16.msra.mxu0 0
        %4587 = vmatprep.subr.bf16.mxu0 0
        %4588 = vmatpush1.bf16.msra.mxu0 0
        %4589 = vmatprep.subr.bf16.mxu0 0
        %4590 = vmatpush1.bf16.msra.mxu0 0
        %4591 = vmatprep.subr.bf16.mxu0 0
        %4592 = vmatpush1.bf16.msra.mxu0 %v4575
        %4593 = vmatprep.subr.bf16.mxu0 0
        %4594 = vmatpush2.bf16.msra.mxu0 0
        %4595 = vmatprep.subr.bf16.mxu0 0
        %4596 = vmatpush2.bf16.msra.mxu0 0
        %4597 = vmatprep.subr.bf16.mxu0 0
        %4598 = vmatpush2.bf16.msra.mxu0 0
        %4599 = vmatprep.subr.bf16.mxu0 0
        %4600 = vmatpush2.bf16.msra.mxu0 0
        %4601 = vmatprep.subr.bf16.mxu0 0
        %4602 = vmatpush2.bf16.msra.mxu0 0
        %4603 = vmatprep.subr.bf16.mxu0 0
        %4604 = vmatpush2.bf16.msra.mxu0 0
        %4605 = vmatprep.subr.bf16.mxu0 0
        %4606 = vmatpush2.bf16.msra.mxu0 0
        %4607 = vmatprep.subr.bf16.mxu0 0
        %4608 = vmatpush2.bf16.msra.mxu0 0
        %4609 = vmatprep.mubr.bf16.mxu0 0
        %4610 = vmatmul.mubr.bf16.gmra.mxu0 %v4572
        %v4611 = vpop.f32.mrf.mxu0
        %v4612 = vadd.f32 0.0, %v4611
        %v4613 = vpop.f32.mrf.mxu0
        %v4614 = vpop.f32.mrf.mxu0
        %v4615 = vpop.f32.mrf.mxu0
        %4616 = vdwg.mxu0
        %v4617 = vpack.c.bf16 %v4612, %v4612
        %v4620 = vunpack.c.l.s4 1966171168
        %v4621 = vunpack.c.0.s8 %v4620
        %v4622 = vlaneseq
        %v4623 = vshrl.u32 %v4622, 7
        %v4624 = vsub.s32 %v4621, %v4623
        %v4625 = vrot.slane %v4617, %v4624
        %v4627 = vunpack.c.l.s4 1966171168
        %v4628 = vunpack.c.0.s8 %v4627
        %v4629 = vlaneseq
        %v4630 = vshrl.u32 %v4629, 7
        %v4631 = vsub.s32 %v4628, %v4630
        %v4632 = vrot.slane %v4625, %v4631
        %v4633 = vunpack.i.l.s16 %v4632
        %v4634 = vunpack.i.h.s16 %v4632
        %v4635 = vpack.i.b16 %v4633, %v4633
        %v4636 = vpack.i.b16 %v4634, %v4634
        %v4638 = vunpack.c.l.s4 286326784
        %v4639 = vunpack.c.0.s8 %v4638
        %v4640 = vlaneseq
        %v4641 = vshrl.u32 %v4640, 7
        %v4642 = vsub.s32 %v4639, %v4641
        %v4643 = vrot.slane %v4635, %v4642
        %v4645 = vunpack.c.l.s4 286326784
        %v4646 = vunpack.c.0.s8 %v4645
        %v4647 = vlaneseq
        %v4648 = vshrl.u32 %v4647, 7
        %v4649 = vsub.s32 %v4646, %v4648
        %v4650 = vrot.slane %v4636, %v4649
        %4651 = vrot.lane.b32.xlu0 %v4643, 24
        %v4652 = vpop.permute.xlu0 %4651
        %4653 = vrot.lane.b32.xlu0 %v4650, 24
        %v4654 = vpop.permute.xlu0 %4653
        %vm4657 = vcmask 257219
        %vm4658 = vmand %vm4657, %vm4180
        %v4659 = vld [vmem:[%s157] sm:$0x8]
        %v4660 = vsel %vm4658, %v4652, %v4659
        %4661 = vst [vmem:[%s157] sm:$0x8] %v4660
        %v4662 = vld [vmem:[%s157 + $0x4] sm:$0x8]
        %v4663 = vsel %vm4658, %v4654, %v4662
        %4664 = vst [vmem:[%s157 + $0x4] sm:$0x8] %v4663
        %v4665 = vld [vmem:[%s142] sm:$0x8]
        %v4666 = vld [vmem:[%s142 + $0x4] sm:$0x8]
        %v4669 = vunpack.c.l.b16 %v4665
        %v4670 = vunpack.c.l.b16 %v4666
        %v4671 = vpack.c.b16 %v4669, %v4669
        %v4672 = vpack.c.b16 %v4670, %v4670
        %v4673 = vunpack.c.l.b16 %v4671
        %v4674 = vunpack.c.l.b16 %v4672
        %v4675 = vrot.slane %v4673, 7
        %v4676 = vrot.slane %v4674, 6
        %v4677 = vsel %vm170, %v4676, %v4675
        %v4678 = vpack.c.b16 %v4677, %v4677
        %4679 = vrot.lane.b32.xlu0 %v4678, 96
        %v4680 = vpop.permute.xlu0 %4679
        %v4682 = vsel %vm175, %v4678, 0
        %v4685 = vsel %vm175, %v4680, 0
        %4687 = vmatprep.subr.bf16.mxu0 0
        %4688 = vmatpush1.bf16.xpose.msra.mxu0 0
        %4689 = vmatprep.subr.bf16.mxu0 0
        %4690 = vmatpush1.bf16.xpose.msra.mxu0 0
        %4691 = vmatprep.subr.bf16.mxu0 0
        %4692 = vmatpush1.bf16.xpose.msra.mxu0 0
        %4693 = vmatprep.subr.bf16.mxu0 0
        %4694 = vmatpush1.bf16.xpose.msra.mxu0 0
        %4695 = vmatprep.subr.bf16.mxu0 0
        %4696 = vmatpush1.bf16.xpose.msra.mxu0 0
        %4697 = vmatprep.subr.bf16.mxu0 0
        %4698 = vmatpush1.bf16.xpose.msra.mxu0 0
        %4699 = vmatprep.subr.bf16.mxu0 0
        %4700 = vmatpush1.bf16.xpose.msra.mxu0 0
        %4701 = vmatprep.subr.bf16.mxu0 0
        %4702 = vmatpush1.bf16.xpose.msra.mxu0 %v4685
        %4703 = vmatprep.subr.bf16.mxu0 0
        %4704 = vmatpush2.bf16.xpose.msra.mxu0 0
        %4705 = vmatprep.subr.bf16.mxu0 0
        %4706 = vmatpush2.bf16.xpose.msra.mxu0 0
        %4707 = vmatprep.subr.bf16.mxu0 0
        %4708 = vmatpush2.bf16.xpose.msra.mxu0 0
        %4709 = vmatprep.subr.bf16.mxu0 0
        %4710 = vmatpush2.bf16.xpose.msra.mxu0 0
        %4711 = vmatprep.subr.bf16.mxu0 0
        %4712 = vmatpush2.bf16.xpose.msra.mxu0 0
        %4713 = vmatprep.subr.bf16.mxu0 0
        %4714 = vmatpush2.bf16.xpose.msra.mxu0 0
        %4715 = vmatprep.subr.bf16.mxu0 0
        %4716 = vmatpush2.bf16.xpose.msra.mxu0 0
        %4717 = vmatprep.subr.bf16.mxu0 0
        %4718 = vmatpush2.bf16.xpose.msra.mxu0 0
        %4719 = vmatprep.mubr.bf16.mxu0 0
        %4720 = vmatmul.mubr.bf16.gmra.mxu0 %v4682
        %v4721 = vpop.f32.mrf.mxu0
        %v4722 = vadd.f32 0.0, %v4721
        %v4723 = vpop.f32.mrf.mxu0
        %v4724 = vpop.f32.mrf.mxu0
        %v4725 = vpop.f32.mrf.mxu0
        %4726 = vdwg.mxu0
        %v4727 = vmul.f32 %v4722, 0.35355338
        %v4728 = vsel %vm223, %v4727, -inf
        %4729 = vmax.xlane.f32.xlu0 %v4728
        %v4730 = vpop.xlane.xlu0 %4729
        %v4731 = vsub.f32 %v4727, %v4730
        %v4732 = vmul.f32 %v4731, 1.442695
        %v4733 = vpow.pop %v4732
        %v4734 = vsel %vm223, %v4733, 0.0
        %4735 = vadd.xlane.f32.xlu0 %v4734
        %v4736 = vpop.xlane.xlu0 %4735
        %v4737 = vrcp.pop %v4736
        %v4738 = vmul.f32 %v4733, %v4737
        %v4739 = vpack.c.bf16 %v4738, %v4738
        %4740 = vrot.lane.b32.xlu0 %v4678, 64
        %v4741 = vpop.permute.xlu0 %4740
        %v4743 = vsel %vm238, %v4739, 0
        %v4746 = vsel %vm242, %v4741, 0
        %4748 = vmatprep.subr.bf16.mxu0 0
        %4749 = vmatpush1.bf16.msra.mxu0 0
        %4750 = vmatprep.subr.bf16.mxu0 0
        %4751 = vmatpush1.bf16.msra.mxu0 0
        %4752 = vmatprep.subr.bf16.mxu0 0
        %4753 = vmatpush1.bf16.msra.mxu0 0
        %4754 = vmatprep.subr.bf16.mxu0 0
        %4755 = vmatpush1.bf16.msra.mxu0 0
        %4756 = vmatprep.subr.bf16.mxu0 0
        %4757 = vmatpush1.bf16.msra.mxu0 0
        %4758 = vmatprep.subr.bf16.mxu0 0
        %4759 = vmatpush1.bf16.msra.mxu0 0
        %4760 = vmatprep.subr.bf16.mxu0 0
        %4761 = vmatpush1.bf16.msra.mxu0 0
        %4762 = vmatprep.subr.bf16.mxu0 0
        %4763 = vmatpush1.bf16.msra.mxu0 %v4746
        %4764 = vmatprep.subr.bf16.mxu0 0
        %4765 = vmatpush2.bf16.msra.mxu0 0
        %4766 = vmatprep.subr.bf16.mxu0 0
        %4767 = vmatpush2.bf16.msra.mxu0 0
        %4768 = vmatprep.subr.bf16.mxu0 0
        %4769 = vmatpush2.bf16.msra.mxu0 0
        %4770 = vmatprep.subr.bf16.mxu0 0
        %4771 = vmatpush2.bf16.msra.mxu0 0
        %4772 = vmatprep.subr.bf16.mxu0 0
        %4773 = vmatpush2.bf16.msra.mxu0 0
        %4774 = vmatprep.subr.bf16.mxu0 0
        %4775 = vmatpush2.bf16.msra.mxu0 0
        %4776 = vmatprep.subr.bf16.mxu0 0
        %4777 = vmatpush2.bf16.msra.mxu0 0
        %4778 = vmatprep.subr.bf16.mxu0 0
        %4779 = vmatpush2.bf16.msra.mxu0 0
        %4780 = vmatprep.mubr.bf16.mxu0 0
        %4781 = vmatmul.mubr.bf16.gmra.mxu0 %v4743
        %v4782 = vpop.f32.mrf.mxu0
        %v4783 = vadd.f32 0.0, %v4782
        %v4784 = vpop.f32.mrf.mxu0
        %v4785 = vpop.f32.mrf.mxu0
        %v4786 = vpop.f32.mrf.mxu0
        %4787 = vdwg.mxu0
        %v4788 = vpack.c.bf16 %v4783, %v4783
        %v4791 = vunpack.c.l.s4 1966171168
        %v4792 = vunpack.c.0.s8 %v4791
        %v4793 = vlaneseq
        %v4794 = vshrl.u32 %v4793, 7
        %v4795 = vsub.s32 %v4792, %v4794
        %v4796 = vrot.slane %v4788, %v4795
        %v4798 = vunpack.c.l.s4 1966171168
        %v4799 = vunpack.c.0.s8 %v4798
        %v4800 = vlaneseq
        %v4801 = vshrl.u32 %v4800, 7
        %v4802 = vsub.s32 %v4799, %v4801
        %v4803 = vrot.slane %v4796, %v4802
        %v4804 = vunpack.i.l.s16 %v4803
        %v4805 = vunpack.i.h.s16 %v4803
        %v4806 = vpack.i.b16 %v4804, %v4804
        %v4807 = vpack.i.b16 %v4805, %v4805
        %v4809 = vunpack.c.l.s4 286326784
        %v4810 = vunpack.c.0.s8 %v4809
        %v4811 = vlaneseq
        %v4812 = vshrl.u32 %v4811, 7
        %v4813 = vsub.s32 %v4810, %v4812
        %v4814 = vrot.slane %v4806, %v4813
        %v4816 = vunpack.c.l.s4 286326784
        %v4817 = vunpack.c.0.s8 %v4816
        %v4818 = vlaneseq
        %v4819 = vshrl.u32 %v4818, 7
        %v4820 = vsub.s32 %v4817, %v4819
        %v4821 = vrot.slane %v4807, %v4820
        %vm4824 = vsmask.f32 7950
        %vm4825 = vmand %vm4179, %vm4824
        %v4826 = vld [vmem:[%s157] sm:$0x8]
        %v4827 = vsel %vm4825, %v4814, %v4826
        %4828 = vst [vmem:[%s157] sm:$0x8] %v4827
        %v4829 = vld [vmem:[%s157 + $0x4] sm:$0x8]
        %v4830 = vsel %vm4825, %v4821, %v4829
        %4831 = vst [vmem:[%s157 + $0x4] sm:$0x8] %v4830
        %4832 = vrot.lane.b32.xlu0 %v4678, 120
        %v4833 = vpop.permute.xlu0 %4832
        %4834 = vrot.lane.b32.xlu0 %v4678, 88
        %v4835 = vpop.permute.xlu0 %4834
        %v4837 = vsel %vm175, %v4833, 0
        %v4840 = vsel %vm175, %v4835, 0
        %4842 = vmatprep.subr.bf16.mxu0 0
        %4843 = vmatpush1.bf16.xpose.msra.mxu0 0
        %4844 = vmatprep.subr.bf16.mxu0 0
        %4845 = vmatpush1.bf16.xpose.msra.mxu0 0
        %4846 = vmatprep.subr.bf16.mxu0 0
        %4847 = vmatpush1.bf16.xpose.msra.mxu0 0
        %4848 = vmatprep.subr.bf16.mxu0 0
        %4849 = vmatpush1.bf16.xpose.msra.mxu0 0
        %4850 = vmatprep.subr.bf16.mxu0 0
        %4851 = vmatpush1.bf16.xpose.msra.mxu0 0
        %4852 = vmatprep.subr.bf16.mxu0 0
        %4853 = vmatpush1.bf16.xpose.msra.mxu0 0
        %4854 = vmatprep.subr.bf16.mxu0 0
        %4855 = vmatpush1.bf16.xpose.msra.mxu0 0
        %4856 = vmatprep.subr.bf16.mxu0 0
        %4857 = vmatpush1.bf16.xpose.msra.mxu0 %v4840
        %4858 = vmatprep.subr.bf16.mxu0 0
        %4859 = vmatpush2.bf16.xpose.msra.mxu0 0
        %4860 = vmatprep.subr.bf16.mxu0 0
        %4861 = vmatpush2.bf16.xpose.msra.mxu0 0
        %4862 = vmatprep.subr.bf16.mxu0 0
        %4863 = vmatpush2.bf16.xpose.msra.mxu0 0
        %4864 = vmatprep.subr.bf16.mxu0 0
        %4865 = vmatpush2.bf16.xpose.msra.mxu0 0
        %4866 = vmatprep.subr.bf16.mxu0 0
        %4867 = vmatpush2.bf16.xpose.msra.mxu0 0
        %4868 = vmatprep.subr.bf16.mxu0 0
        %4869 = vmatpush2.bf16.xpose.msra.mxu0 0
        %4870 = vmatprep.subr.bf16.mxu0 0
        %4871 = vmatpush2.bf16.xpose.msra.mxu0 0
        %4872 = vmatprep.subr.bf16.mxu0 0
        %4873 = vmatpush2.bf16.xpose.msra.mxu0 0
        %4874 = vmatprep.mubr.bf16.mxu0 0
        %4875 = vmatmul.mubr.bf16.gmra.mxu0 %v4837
        %v4876 = vpop.f32.mrf.mxu0
        %v4877 = vadd.f32 0.0, %v4876
        %v4878 = vpop.f32.mrf.mxu0
        %v4879 = vpop.f32.mrf.mxu0
        %v4880 = vpop.f32.mrf.mxu0
        %4881 = vdwg.mxu0
        %v4882 = vmul.f32 %v4877, 0.35355338
        %v4883 = vsel %vm223, %v4882, -inf
        %4884 = vmax.xlane.f32.xlu0 %v4883
        %v4885 = vpop.xlane.xlu0 %4884
        %v4886 = vsub.f32 %v4882, %v4885
        %v4887 = vmul.f32 %v4886, 1.442695
        %v4888 = vpow.pop %v4887
        %v4889 = vsel %vm223, %v4888, 0.0
        %4890 = vadd.xlane.f32.xlu0 %v4889
        %v4891 = vpop.xlane.xlu0 %4890
        %v4892 = vrcp.pop %v4891
        %v4893 = vmul.f32 %v4888, %v4892
        %v4894 = vpack.c.bf16 %v4893, %v4893
        %4895 = vrot.lane.b32.xlu0 %v4678, 56
        %v4896 = vpop.permute.xlu0 %4895
        %v4898 = vsel %vm238, %v4894, 0
        %v4901 = vsel %vm242, %v4896, 0
        %4903 = vmatprep.subr.bf16.mxu0 0
        %4904 = vmatpush1.bf16.msra.mxu0 0
        %4905 = vmatprep.subr.bf16.mxu0 0
        %4906 = vmatpush1.bf16.msra.mxu0 0
        %4907 = vmatprep.subr.bf16.mxu0 0
        %4908 = vmatpush1.bf16.msra.mxu0 0
        %4909 = vmatprep.subr.bf16.mxu0 0
        %4910 = vmatpush1.bf16.msra.mxu0 0
        %4911 = vmatprep.subr.bf16.mxu0 0
        %4912 = vmatpush1.bf16.msra.mxu0 0
        %4913 = vmatprep.subr.bf16.mxu0 0
        %4914 = vmatpush1.bf16.msra.mxu0 0
        %4915 = vmatprep.subr.bf16.mxu0 0
        %4916 = vmatpush1.bf16.msra.mxu0 0
        %4917 = vmatprep.subr.bf16.mxu0 0
        %4918 = vmatpush1.bf16.msra.mxu0 %v4901
        %4919 = vmatprep.subr.bf16.mxu0 0
        %4920 = vmatpush2.bf16.msra.mxu0 0
        %4921 = vmatprep.subr.bf16.mxu0 0
        %4922 = vmatpush2.bf16.msra.mxu0 0
        %4923 = vmatprep.subr.bf16.mxu0 0
        %4924 = vmatpush2.bf16.msra.mxu0 0
        %4925 = vmatprep.subr.bf16.mxu0 0
        %4926 = vmatpush2.bf16.msra.mxu0 0
        %4927 = vmatprep.subr.bf16.mxu0 0
        %4928 = vmatpush2.bf16.msra.mxu0 0
        %4929 = vmatprep.subr.bf16.mxu0 0
        %4930 = vmatpush2.bf16.msra.mxu0 0
        %4931 = vmatprep.subr.bf16.mxu0 0
        %4932 = vmatpush2.bf16.msra.mxu0 0
        %4933 = vmatprep.subr.bf16.mxu0 0
        %4934 = vmatpush2.bf16.msra.mxu0 0
        %4935 = vmatprep.mubr.bf16.mxu0 0
        %4936 = vmatmul.mubr.bf16.gmra.mxu0 %v4898
        %v4937 = vpop.f32.mrf.mxu0
        %v4938 = vadd.f32 0.0, %v4937
        %v4939 = vpop.f32.mrf.mxu0
        %v4940 = vpop.f32.mrf.mxu0
        %v4941 = vpop.f32.mrf.mxu0
        %4942 = vdwg.mxu0
        %v4943 = vpack.c.bf16 %v4938, %v4938
        %v4946 = vunpack.c.l.s4 1966171168
        %v4947 = vunpack.c.0.s8 %v4946
        %v4948 = vlaneseq
        %v4949 = vshrl.u32 %v4948, 7
        %v4950 = vsub.s32 %v4947, %v4949
        %v4951 = vrot.slane %v4943, %v4950
        %v4953 = vunpack.c.l.s4 1966171168
        %v4954 = vunpack.c.0.s8 %v4953
        %v4955 = vlaneseq
        %v4956 = vshrl.u32 %v4955, 7
        %v4957 = vsub.s32 %v4954, %v4956
        %v4958 = vrot.slane %v4951, %v4957
        %v4959 = vunpack.i.l.s16 %v4958
        %v4960 = vunpack.i.h.s16 %v4958
        %v4961 = vpack.i.b16 %v4959, %v4959
        %v4962 = vpack.i.b16 %v4960, %v4960
        %v4964 = vunpack.c.l.s4 286326784
        %v4965 = vunpack.c.0.s8 %v4964
        %v4966 = vlaneseq
        %v4967 = vshrl.u32 %v4966, 7
        %v4968 = vsub.s32 %v4965, %v4967
        %v4969 = vrot.slane %v4961, %v4968
        %v4971 = vunpack.c.l.s4 286326784
        %v4972 = vunpack.c.0.s8 %v4971
        %v4973 = vlaneseq
        %v4974 = vshrl.u32 %v4973, 7
        %v4975 = vsub.s32 %v4972, %v4974
        %v4976 = vrot.slane %v4962, %v4975
        %4977 = vrot.lane.b32.xlu0 %v4969, 8
        %v4978 = vpop.permute.xlu0 %4977
        %4979 = vrot.lane.b32.xlu0 %v4976, 8
        %v4980 = vpop.permute.xlu0 %4979
        %vm4983 = vmand %vm4339, %vm4824
        %v4984 = vld [vmem:[%s157] sm:$0x8]
        %v4985 = vsel %vm4983, %v4978, %v4984
        %4986 = vst [vmem:[%s157] sm:$0x8] %v4985
        %v4987 = vld [vmem:[%s157 + $0x4] sm:$0x8]
        %v4988 = vsel %vm4983, %v4980, %v4987
        %4989 = vst [vmem:[%s157 + $0x4] sm:$0x8] %v4988
        %4990 = vrot.lane.b32.xlu0 %v4678, 112
        %v4991 = vpop.permute.xlu0 %4990
        %4992 = vrot.lane.b32.xlu0 %v4678, 80
        %v4993 = vpop.permute.xlu0 %4992
        %v4995 = vsel %vm175, %v4991, 0
        %v4998 = vsel %vm175, %v4993, 0
        %5000 = vmatprep.subr.bf16.mxu0 0
        %5001 = vmatpush1.bf16.xpose.msra.mxu0 0
        %5002 = vmatprep.subr.bf16.mxu0 0
        %5003 = vmatpush1.bf16.xpose.msra.mxu0 0
        %5004 = vmatprep.subr.bf16.mxu0 0
        %5005 = vmatpush1.bf16.xpose.msra.mxu0 0
        %5006 = vmatprep.subr.bf16.mxu0 0
        %5007 = vmatpush1.bf16.xpose.msra.mxu0 0
        %5008 = vmatprep.subr.bf16.mxu0 0
        %5009 = vmatpush1.bf16.xpose.msra.mxu0 0
        %5010 = vmatprep.subr.bf16.mxu0 0
        %5011 = vmatpush1.bf16.xpose.msra.mxu0 0
        %5012 = vmatprep.subr.bf16.mxu0 0
        %5013 = vmatpush1.bf16.xpose.msra.mxu0 0
        %5014 = vmatprep.subr.bf16.mxu0 0
        %5015 = vmatpush1.bf16.xpose.msra.mxu0 %v4998
        %5016 = vmatprep.subr.bf16.mxu0 0
        %5017 = vmatpush2.bf16.xpose.msra.mxu0 0
        %5018 = vmatprep.subr.bf16.mxu0 0
        %5019 = vmatpush2.bf16.xpose.msra.mxu0 0
        %5020 = vmatprep.subr.bf16.mxu0 0
        %5021 = vmatpush2.bf16.xpose.msra.mxu0 0
        %5022 = vmatprep.subr.bf16.mxu0 0
        %5023 = vmatpush2.bf16.xpose.msra.mxu0 0
        %5024 = vmatprep.subr.bf16.mxu0 0
        %5025 = vmatpush2.bf16.xpose.msra.mxu0 0
        %5026 = vmatprep.subr.bf16.mxu0 0
        %5027 = vmatpush2.bf16.xpose.msra.mxu0 0
        %5028 = vmatprep.subr.bf16.mxu0 0
        %5029 = vmatpush2.bf16.xpose.msra.mxu0 0
        %5030 = vmatprep.subr.bf16.mxu0 0
        %5031 = vmatpush2.bf16.xpose.msra.mxu0 0
        %5032 = vmatprep.mubr.bf16.mxu0 0
        %5033 = vmatmul.mubr.bf16.gmra.mxu0 %v4995
        %v5034 = vpop.f32.mrf.mxu0
        %v5035 = vadd.f32 0.0, %v5034
        %v5036 = vpop.f32.mrf.mxu0
        %v5037 = vpop.f32.mrf.mxu0
        %v5038 = vpop.f32.mrf.mxu0
        %5039 = vdwg.mxu0
        %v5040 = vmul.f32 %v5035, 0.35355338
        %v5041 = vsel %vm223, %v5040, -inf
        %5042 = vmax.xlane.f32.xlu0 %v5041
        %v5043 = vpop.xlane.xlu0 %5042
        %v5044 = vsub.f32 %v5040, %v5043
        %v5045 = vmul.f32 %v5044, 1.442695
        %v5046 = vpow.pop %v5045
        %v5047 = vsel %vm223, %v5046, 0.0
        %5048 = vadd.xlane.f32.xlu0 %v5047
        %v5049 = vpop.xlane.xlu0 %5048
        %v5050 = vrcp.pop %v5049
        %v5051 = vmul.f32 %v5046, %v5050
        %v5052 = vpack.c.bf16 %v5051, %v5051
        %5053 = vrot.lane.b32.xlu0 %v4678, 48
        %v5054 = vpop.permute.xlu0 %5053
        %v5056 = vsel %vm238, %v5052, 0
        %v5059 = vsel %vm242, %v5054, 0
        %5061 = vmatprep.subr.bf16.mxu0 0
        %5062 = vmatpush1.bf16.msra.mxu0 0
        %5063 = vmatprep.subr.bf16.mxu0 0
        %5064 = vmatpush1.bf16.msra.mxu0 0
        %5065 = vmatprep.subr.bf16.mxu0 0
        %5066 = vmatpush1.bf16.msra.mxu0 0
        %5067 = vmatprep.subr.bf16.mxu0 0
        %5068 = vmatpush1.bf16.msra.mxu0 0
        %5069 = vmatprep.subr.bf16.mxu0 0
        %5070 = vmatpush1.bf16.msra.mxu0 0
        %5071 = vmatprep.subr.bf16.mxu0 0
        %5072 = vmatpush1.bf16.msra.mxu0 0
        %5073 = vmatprep.subr.bf16.mxu0 0
        %5074 = vmatpush1.bf16.msra.mxu0 0
        %5075 = vmatprep.subr.bf16.mxu0 0
        %5076 = vmatpush1.bf16.msra.mxu0 %v5059
        %5077 = vmatprep.subr.bf16.mxu0 0
        %5078 = vmatpush2.bf16.msra.mxu0 0
        %5079 = vmatprep.subr.bf16.mxu0 0
        %5080 = vmatpush2.bf16.msra.mxu0 0
        %5081 = vmatprep.subr.bf16.mxu0 0
        %5082 = vmatpush2.bf16.msra.mxu0 0
        %5083 = vmatprep.subr.bf16.mxu0 0
        %5084 = vmatpush2.bf16.msra.mxu0 0
        %5085 = vmatprep.subr.bf16.mxu0 0
        %5086 = vmatpush2.bf16.msra.mxu0 0
        %5087 = vmatprep.subr.bf16.mxu0 0
        %5088 = vmatpush2.bf16.msra.mxu0 0
        %5089 = vmatprep.subr.bf16.mxu0 0
        %5090 = vmatpush2.bf16.msra.mxu0 0
        %5091 = vmatprep.subr.bf16.mxu0 0
        %5092 = vmatpush2.bf16.msra.mxu0 0
        %5093 = vmatprep.mubr.bf16.mxu0 0
        %5094 = vmatmul.mubr.bf16.gmra.mxu0 %v5056
        %v5095 = vpop.f32.mrf.mxu0
        %v5096 = vadd.f32 0.0, %v5095
        %v5097 = vpop.f32.mrf.mxu0
        %v5098 = vpop.f32.mrf.mxu0
        %v5099 = vpop.f32.mrf.mxu0
        %5100 = vdwg.mxu0
        %v5101 = vpack.c.bf16 %v5096, %v5096
        %v5104 = vunpack.c.l.s4 1966171168
        %v5105 = vunpack.c.0.s8 %v5104
        %v5106 = vlaneseq
        %v5107 = vshrl.u32 %v5106, 7
        %v5108 = vsub.s32 %v5105, %v5107
        %v5109 = vrot.slane %v5101, %v5108
        %v5111 = vunpack.c.l.s4 1966171168
        %v5112 = vunpack.c.0.s8 %v5111
        %v5113 = vlaneseq
        %v5114 = vshrl.u32 %v5113, 7
        %v5115 = vsub.s32 %v5112, %v5114
        %v5116 = vrot.slane %v5109, %v5115
        %v5117 = vunpack.i.l.s16 %v5116
        %v5118 = vunpack.i.h.s16 %v5116
        %v5119 = vpack.i.b16 %v5117, %v5117
        %v5120 = vpack.i.b16 %v5118, %v5118
        %v5122 = vunpack.c.l.s4 286326784
        %v5123 = vunpack.c.0.s8 %v5122
        %v5124 = vlaneseq
        %v5125 = vshrl.u32 %v5124, 7
        %v5126 = vsub.s32 %v5123, %v5125
        %v5127 = vrot.slane %v5119, %v5126
        %v5129 = vunpack.c.l.s4 286326784
        %v5130 = vunpack.c.0.s8 %v5129
        %v5131 = vlaneseq
        %v5132 = vshrl.u32 %v5131, 7
        %v5133 = vsub.s32 %v5130, %v5132
        %v5134 = vrot.slane %v5120, %v5133
        %5135 = vrot.lane.b32.xlu0 %v5127, 16
        %v5136 = vpop.permute.xlu0 %5135
        %5137 = vrot.lane.b32.xlu0 %v5134, 16
        %v5138 = vpop.permute.xlu0 %5137
        %vm5141 = vmand %vm4498, %vm4824
        %v5142 = vld [vmem:[%s157] sm:$0x8]
        %v5143 = vsel %vm5141, %v5136, %v5142
        %5144 = vst [vmem:[%s157] sm:$0x8] %v5143
        %v5145 = vld [vmem:[%s157 + $0x4] sm:$0x8]
        %v5146 = vsel %vm5141, %v5138, %v5145
        %5147 = vst [vmem:[%s157 + $0x4] sm:$0x8] %v5146
        %5148 = vrot.lane.b32.xlu0 %v4678, 104
        %v5149 = vpop.permute.xlu0 %5148
        %5150 = vrot.lane.b32.xlu0 %v4678, 72
        %v5151 = vpop.permute.xlu0 %5150
        %v5153 = vsel %vm175, %v5149, 0
        %v5156 = vsel %vm175, %v5151, 0
        %5158 = vmatprep.subr.bf16.mxu0 0
        %5159 = vmatpush1.bf16.xpose.msra.mxu0 0
        %5160 = vmatprep.subr.bf16.mxu0 0
        %5161 = vmatpush1.bf16.xpose.msra.mxu0 0
        %5162 = vmatprep.subr.bf16.mxu0 0
        %5163 = vmatpush1.bf16.xpose.msra.mxu0 0
        %5164 = vmatprep.subr.bf16.mxu0 0
        %5165 = vmatpush1.bf16.xpose.msra.mxu0 0
        %5166 = vmatprep.subr.bf16.mxu0 0
        %5167 = vmatpush1.bf16.xpose.msra.mxu0 0
        %5168 = vmatprep.subr.bf16.mxu0 0
        %5169 = vmatpush1.bf16.xpose.msra.mxu0 0
        %5170 = vmatprep.subr.bf16.mxu0 0
        %5171 = vmatpush1.bf16.xpose.msra.mxu0 0
        %5172 = vmatprep.subr.bf16.mxu0 0
        %5173 = vmatpush1.bf16.xpose.msra.mxu0 %v5156
        %5174 = vmatprep.subr.bf16.mxu0 0
        %5175 = vmatpush2.bf16.xpose.msra.mxu0 0
        %5176 = vmatprep.subr.bf16.mxu0 0
        %5177 = vmatpush2.bf16.xpose.msra.mxu0 0
        %5178 = vmatprep.subr.bf16.mxu0 0
        %5179 = vmatpush2.bf16.xpose.msra.mxu0 0
        %5180 = vmatprep.subr.bf16.mxu0 0
        %5181 = vmatpush2.bf16.xpose.msra.mxu0 0
        %5182 = vmatprep.subr.bf16.mxu0 0
        %5183 = vmatpush2.bf16.xpose.msra.mxu0 0
        %5184 = vmatprep.subr.bf16.mxu0 0
        %5185 = vmatpush2.bf16.xpose.msra.mxu0 0
        %5186 = vmatprep.subr.bf16.mxu0 0
        %5187 = vmatpush2.bf16.xpose.msra.mxu0 0
        %5188 = vmatprep.subr.bf16.mxu0 0
        %5189 = vmatpush2.bf16.xpose.msra.mxu0 0
        %5190 = vmatprep.mubr.bf16.mxu0 0
        %5191 = vmatmul.mubr.bf16.gmra.mxu0 %v5153
        %v5192 = vpop.f32.mrf.mxu0
        %v5193 = vadd.f32 0.0, %v5192
        %v5194 = vpop.f32.mrf.mxu0
        %v5195 = vpop.f32.mrf.mxu0
        %v5196 = vpop.f32.mrf.mxu0
        %5197 = vdwg.mxu0
        %v5198 = vmul.f32 %v5193, 0.35355338
        %v5199 = vsel %vm223, %v5198, -inf
        %5200 = vmax.xlane.f32.xlu0 %v5199
        %v5201 = vpop.xlane.xlu0 %5200
        %v5202 = vsub.f32 %v5198, %v5201
        %v5203 = vmul.f32 %v5202, 1.442695
        %v5204 = vpow.pop %v5203
        %v5205 = vsel %vm223, %v5204, 0.0
        %5206 = vadd.xlane.f32.xlu0 %v5205
        %v5207 = vpop.xlane.xlu0 %5206
        %v5208 = vrcp.pop %v5207
        %v5209 = vmul.f32 %v5204, %v5208
        %v5210 = vpack.c.bf16 %v5209, %v5209
        %5211 = vrot.lane.b32.xlu0 %v4678, 40
        %v5212 = vpop.permute.xlu0 %5211
        %v5214 = vsel %vm238, %v5210, 0
        %v5217 = vsel %vm242, %v5212, 0
        %5219 = vmatprep.subr.bf16.mxu0 0
        %5220 = vmatpush1.bf16.msra.mxu0 0
        %5221 = vmatprep.subr.bf16.mxu0 0
        %5222 = vmatpush1.bf16.msra.mxu0 0
        %5223 = vmatprep.subr.bf16.mxu0 0
        %5224 = vmatpush1.bf16.msra.mxu0 0
        %5225 = vmatprep.subr.bf16.mxu0 0
        %5226 = vmatpush1.bf16.msra.mxu0 0
        %5227 = vmatprep.subr.bf16.mxu0 0
        %5228 = vmatpush1.bf16.msra.mxu0 0
        %5229 = vmatprep.subr.bf16.mxu0 0
        %5230 = vmatpush1.bf16.msra.mxu0 0
        %5231 = vmatprep.subr.bf16.mxu0 0
        %5232 = vmatpush1.bf16.msra.mxu0 0
        %5233 = vmatprep.subr.bf16.mxu0 0
        %5234 = vmatpush1.bf16.msra.mxu0 %v5217
        %5235 = vmatprep.subr.bf16.mxu0 0
        %5236 = vmatpush2.bf16.msra.mxu0 0
        %5237 = vmatprep.subr.bf16.mxu0 0
        %5238 = vmatpush2.bf16.msra.mxu0 0
        %5239 = vmatprep.subr.bf16.mxu0 0
        %5240 = vmatpush2.bf16.msra.mxu0 0
        %5241 = vmatprep.subr.bf16.mxu0 0
        %5242 = vmatpush2.bf16.msra.mxu0 0
        %5243 = vmatprep.subr.bf16.mxu0 0
        %5244 = vmatpush2.bf16.msra.mxu0 0
        %5245 = vmatprep.subr.bf16.mxu0 0
        %5246 = vmatpush2.bf16.msra.mxu0 0
        %5247 = vmatprep.subr.bf16.mxu0 0
        %5248 = vmatpush2.bf16.msra.mxu0 0
        %5249 = vmatprep.subr.bf16.mxu0 0
        %5250 = vmatpush2.bf16.msra.mxu0 0
        %5251 = vmatprep.mubr.bf16.mxu0 0
        %5252 = vmatmul.mubr.bf16.gmra.mxu0 %v5214
        %v5253 = vpop.f32.mrf.mxu0
        %v5254 = vadd.f32 0.0, %v5253
        %v5255 = vpop.f32.mrf.mxu0
        %v5256 = vpop.f32.mrf.mxu0
        %v5257 = vpop.f32.mrf.mxu0
        %5258 = vdwg.mxu0
        %v5259 = vpack.c.bf16 %v5254, %v5254
        %v5262 = vunpack.c.l.s4 1966171168
        %v5263 = vunpack.c.0.s8 %v5262
        %v5264 = vlaneseq
        %v5265 = vshrl.u32 %v5264, 7
        %v5266 = vsub.s32 %v5263, %v5265
        %v5267 = vrot.slane %v5259, %v5266
        %v5269 = vunpack.c.l.s4 1966171168
        %v5270 = vunpack.c.0.s8 %v5269
        %v5271 = vlaneseq
        %v5272 = vshrl.u32 %v5271, 7
        %v5273 = vsub.s32 %v5270, %v5272
        %v5274 = vrot.slane %v5267, %v5273
        %v5275 = vunpack.i.l.s16 %v5274
        %v5276 = vunpack.i.h.s16 %v5274
        %v5277 = vpack.i.b16 %v5275, %v5275
        %v5278 = vpack.i.b16 %v5276, %v5276
        %v5280 = vunpack.c.l.s4 286326784
        %v5281 = vunpack.c.0.s8 %v5280
        %v5282 = vlaneseq
        %v5283 = vshrl.u32 %v5282, 7
        %v5284 = vsub.s32 %v5281, %v5283
        %v5285 = vrot.slane %v5277, %v5284
        %v5287 = vunpack.c.l.s4 286326784
        %v5288 = vunpack.c.0.s8 %v5287
        %v5289 = vlaneseq
        %v5290 = vshrl.u32 %v5289, 7
        %v5291 = vsub.s32 %v5288, %v5290
        %v5292 = vrot.slane %v5278, %v5291
        %5293 = vrot.lane.b32.xlu0 %v5285, 24
        %v5294 = vpop.permute.xlu0 %5293
        %5295 = vrot.lane.b32.xlu0 %v5292, 24
        %v5296 = vpop.permute.xlu0 %5295
        %vm5299 = vmand %vm4657, %vm4824
        %v5300 = vld [vmem:[%s157] sm:$0x8]
        %v5301 = vsel %vm5299, %v5294, %v5300
        %5302 = vst [vmem:[%s157] sm:$0x8] %v5301
        %v5303 = vld [vmem:[%s157 + $0x4] sm:$0x8]
        %v5304 = vsel %vm5299, %v5296, %v5303
        %5305 = vst [vmem:[%s157 + $0x4] sm:$0x8] %v5304
        %s5306 = sand.u32 %s46, 1
        %s5307 = sand.u32 %s46, 1
        %s5308 = smul.addr %s5307, 8
        %s5309 = scalar_lea.vmem [#allocation3], %s5308
        // Predicated region
        $region66: #{vision_transformer_forward.12} parent=60 // pred_check
          %p5310 = pneg %p56
        $region67: #{vision_transformer_forward.12} parent=60 // pred_check_branch
          %5312 = sbr.rel (%p5310) target = $region69
        $region68: #{vision_transformer_forward.12} parent=60 // pred_region
          %s5313 = smul.addr %s12, 4
          %s5314 = scalar_lea.vmem %s1, %s5313
          // Predicated region
          $region70: #{vision_transformer_forward.12} parent=68 // pred_check
            _
          $region71: #{vision_transformer_forward.12} parent=68 // pred_check_branch
            %5316 = sbr.rel (0) target = $region73
          $region72: #{vision_transformer_forward.12} parent=68 // pred_region
            // Predicated region
            $region74: #{vision_transformer_forward.12} parent=72 // pred_check
              _
            $region75: #{vision_transformer_forward.12} parent=72 // pred_check_branch
              %5318 = sbr.rel target = $region77
            $region76: #{vision_transformer_forward.12} parent=72 // pred_region
              // Predicated region
              $region89: #{vision_transformer_forward.12} parent=76 // pred_check
                _
              $region90: #{vision_transformer_forward.12} parent=76 // pred_check_branch
                %5336 = sbr.rel (0) target = $region92
              $region91: #{vision_transformer_forward.12} parent=76 // pred_region
                loop: start=0, step=1, limit=1
                $region93: #{vision_transformer_forward.12} parent=91 // loop_pre_header
                  _
                $region94: #{vision_transformer_forward.12} parent=91 // loop_header
                  %s5338 = sphi 0, %s5342
                  %p5339 = scmp.ge.s32.totalorder %s5338, 1
                  %s5343 = sphi %s5309, %s5309
                  %s5344 = sphi %s5314, %s5314
                $region95: #{vision_transformer_forward.12} parent=91 // loop_header_branch
                  %5341 = sbr.rel (%p5339) target = $region99
                $region96: #{vision_transformer_forward.12} parent=91 // loop_body
                  _
                $region97: #{vision_transformer_forward.12} parent=91 // loop_footer
                  %s5342 = sadd.s32 1, %s5338
                $region98: #{vision_transformer_forward.12} parent=91 // loop_footer_branch
                  %5337 = sbr.rel target = $region94
                $region99: #{vision_transformer_forward.12} parent=91 // loop_exit
                  _
                %s5346 = ssub.s32 16, 1
                loop: start=0, step=1, limit=1
                $region100: #{vision_transformer_forward.12} parent=91 // loop_pre_header
                  _
                $region101: #{vision_transformer_forward.12} parent=91 // loop_header
                  %s5348 = sphi 0, %s5352
                  %p5349 = scmp.ge.s32.totalorder %s5348, 1
                  %s5353 = sphi %s5309, %s5309
                  %s5354 = sphi %s5314, %s5314
                $region102: #{vision_transformer_forward.12} parent=91 // loop_header_branch
                  %5351 = sbr.rel (%p5349) target = $region106
                $region103: #{vision_transformer_forward.12} parent=91 // loop_body
                  %v5355 = vld [vmem:[%s5353] sm:%s5346]
                  %5356 = vst [vmem:[%s5354] sm:%s5346] %v5355
                  %v5357 = vld [vmem:[%s5353 + $0x4] sm:%s5346]
                  %5358 = vst [vmem:[%s5354 + $0xc] sm:%s5346] %v5357
                $region104: #{vision_transformer_forward.12} parent=91 // loop_footer
                  %s5352 = sadd.s32 1, %s5348
                $region105: #{vision_transformer_forward.12} parent=91 // loop_footer_branch
                  %5347 = sbr.rel target = $region101
                $region106: #{vision_transformer_forward.12} parent=91 // loop_exit
                  _
              $region92: #{vision_transformer_forward.12} parent=76 // pred_fallthru
                _
            $region77: #{vision_transformer_forward.12} parent=72 // pred_fallthru
              _
            // Predicated region
            $region78: #{vision_transformer_forward.12} parent=72 // pred_check
              _
            $region79: #{vision_transformer_forward.12} parent=72 // pred_check_branch
              %5320 = sbr.rel (0) target = $region81
            $region80: #{vision_transformer_forward.12} parent=72 // pred_region
              %s5322 = ssub.s32 16, 1
              loop: start=0, step=1, limit=1
              $region82: #{vision_transformer_forward.12} parent=80 // loop_pre_header
                _
              $region83: #{vision_transformer_forward.12} parent=80 // loop_header
                %s5324 = sphi 0, %s5328
                %p5325 = scmp.ge.s32.totalorder %s5324, 1
                %s5329 = sphi %s5309, %s5309
                %s5330 = sphi %s5314, %s5314
              $region84: #{vision_transformer_forward.12} parent=80 // loop_header_branch
                %5327 = sbr.rel (%p5325) target = $region88
              $region85: #{vision_transformer_forward.12} parent=80 // loop_body
                %v5331 = vld [vmem:[%s5329] sm:%s5322]
                %5332 = vst [vmem:[%s5330] sm:%s5322] %v5331
                %v5333 = vld [vmem:[%s5329 + $0x4] sm:%s5322]
                %5334 = vst [vmem:[%s5330 + $0xc] sm:%s5322] %v5333
              $region86: #{vision_transformer_forward.12} parent=80 // loop_footer
                %s5328 = sadd.s32 1, %s5324
              $region87: #{vision_transformer_forward.12} parent=80 // loop_footer_branch
                %5323 = sbr.rel target = $region83
              $region88: #{vision_transformer_forward.12} parent=80 // loop_exit
                _
            $region81: #{vision_transformer_forward.12} parent=72 // pred_fallthru
              _
          $region73: #{vision_transformer_forward.12} parent=68 // pred_fallthru
            _
          %5359 = vnop
        $region69: #{vision_transformer_forward.12} parent=60 // pred_fallthru
          _
      $region61: #{vision_transformer_forward.12} parent=5 // pred_fallthru
        _
      %p5360 = scmp.le.s32.totalorder 2, %s7
      // Predicated region
      $region107: #{vision_transformer_forward.12} parent=5 // pred_check
        %p5361 = pneg %p5360
      $region108: #{vision_transformer_forward.12} parent=5 // pred_check_branch
        %5363 = sbr.rel (%p5361) target = $region110
      $region109: #{vision_transformer_forward.12} parent=5 // pred_region
        %s5364 = ssub.s32 %s7, 2
        // Predicated region
        $region111: #{vision_transformer_forward.12} parent=109 // pred_check
          %p5365 = pneg %p62
        $region112: #{vision_transformer_forward.12} parent=109 // pred_check_branch
          %5367 = sbr.rel (%p5365) target = $region114
        $region113: #{vision_transformer_forward.12} parent=109 // pred_region
          %s5368 = sand.u32 %s47, 1
          %s5369 = sand.u32 %s47, 1
          %s5370 = smul.addr %s5369, 8
          %s5371 = scalar_lea.vmem [#allocation3], %s5370
        $region114: #{vision_transformer_forward.12} parent=109 // pred_fallthru
          _
      $region110: #{vision_transformer_forward.12} parent=5 // pred_fallthru
        _
    $region6: #{vision_transformer_forward.12} parent=1 // loop_footer
      %s11 = sadd.s32 1, %s7
    $region7: #{vision_transformer_forward.12} parent=1 // loop_footer_branch
      %6 = sbr.rel target = $region3
    $region8: #{vision_transformer_forward.12} parent=1 // loop_exit
      _

</llo_original>
